<compile_context>
chip_gen: v6e
topology: v6e:2x2x1
jax: 0.10.0
libtpu: 0.0.40
codegen_flags: <defaults>
</compile_context>

<pallas_src>
import numpy as np
import jax
import jax.numpy as jnp
from jax import lax
from jax.experimental import pallas as pl
from jax.experimental.pallas import tpu as pltpu

EMBED = 768        # self.embed_size (non "bert_"/"bart" checkpoint)
HIDDEN = 128       # self.hidden_size
CLASS_NUMS = 8     # Config.class_nums
BATCH = 2
BATCH_PAD = 8      # pad batch to a full sublane group (vreg sublane dim)
SEQ = 8
VOCAB = 100

_VMEM = pl.BlockSpec(memory_space=pltpu.MemorySpace.VMEM)


# ----------------------------- Pallas kernels --------------------------------

def _bilstm_kernel(x_ref, wih_ref, whh_ref, b_ref, out_ref, gates_scr):
    """One LSTM direction per grid step (grid=(2,), 'parallel').

    x:(T,Bp,E) bf16   wih:(E,4H) bf16   whh:(H,4H) f32   b:(1,4H) f32
    out:(T,Bp,2H) f32 -- this grid step writes columns [d*H:(d+1)*H] via the
    output BlockSpec.  gates_scr:(T,Bp,4H) f32 VMEM scratch for the hoisted
    input projection.  PyTorch gate order: i, f, g, o.
    """
    T, Bp, E = x_ref.shape
    H = whh_ref.shape[0]
    d = pl.program_id(0)

    # Hoisted input projection + fused bias: one large MXU matmul (bf16 in,
    # f32 accumulate) instead of T tiny matmuls on the serial path.
    gx = jnp.dot(x_ref[...].reshape(T * Bp, E), wih_ref[...],
                 preferred_element_type=jnp.float32) + b_ref[...]
    gates_scr[...] = gx.reshape(T, Bp, 4 * H)

    whh = whh_ref[...]                 # keep recurrent weight resident

    def step(t, carry):
        h, c = carry
        # forward direction reads/writes at t, backward at T-1-t
        t_eff = t + d * (T - 1 - 2 * t)
        g = gates_scr[t_eff] + jnp.dot(h, whh,
                                       preferred_element_type=jnp.float32)
        i = jax.nn.sigmoid(g[:, 0 * H:1 * H])
        f = jax.nn.sigmoid(g[:, 1 * H:2 * H])
        gg = jnp.tanh(g[:, 2 * H:3 * H])
        o = jax.nn.sigmoid(g[:, 3 * H:4 * H])
        c_new = f * c + i * gg
        h_new = o * jnp.tanh(c_new)
        out_ref[t_eff] = h_new
        return h_new, c_new

    h0 = jnp.zeros((Bp, H), jnp.float32)
    lax.fori_loop(0, T, step, (h0, h0), unroll=True)


def _fc_crf_kernel(h_ref, fcw_ref, fcb_ref, mask_ref, start_ref, end_ref,
                   transT_ref, logits_ref, logz_ref, vscore_ref, hist_ref):
    """FC epilogue + CRF forward algorithm + Viterbi max-DP with backpointers.

    h:(T,Bp,2H)  fcw:(2H,C)  fcb:(1,C)  mask:(T,Bp,1) f32  start/end:(1,C)
    transT:(C,C) with transT[next, prev] = trans[prev, next]
    Outputs: logits:(T,Bp,C), logz:(Bp,1), vscore:(Bp,C) (Viterbi score incl.
    end transitions), hist:(T,Bp,C) int32 backpointers (index 0 unused).
    """
    T, Bp, H2 = h_ref.shape
    C = fcw_ref.shape[1]

    # FC folded in: logits = h_cat @ W^T + b, written straight to the emission
    # buffer (no HBM round trip of seq_out).
    logits = jnp.dot(h_ref[...].reshape(T * Bp, H2), fcw_ref[...],
                     preferred_element_type=jnp.float32) + fcb_ref[...]
    logits_ref[...] = logits.reshape(T, Bp, C)

    transT = transT_ref[...]                          # (C, C)
    alpha0 = start_ref[...] + logits_ref[0]           # (Bp, C)
    hist_ref[0] = jnp.zeros((Bp, C), jnp.int32)

    def step(t, carry):
        alpha, vit = carry
        emit_t = logits_ref[t]                        # (Bp, C)
        m_t = mask_ref[t]                             # (Bp, 1)

        # forward algorithm: logsumexp over previous tag (last axis)
        a = alpha.reshape(Bp, 1, C) + transT.reshape(1, C, C)   # (Bp, Cn, Cp)
        a_max = jnp.max(a, axis=-1, keepdims=True)
        lse = jnp.log(jnp.sum(jnp.exp(a - a_max), axis=-1)) + a_max[..., 0]
        alpha = jnp.where(m_t > 0.0, lse + emit_t, alpha)

        # Viterbi: max over previous tag + argmax backpointer
        # (tie-break = smallest previous tag; may differ from torch on exact ties)
        v = vit.reshape(Bp, 1, C) + transT.reshape(1, C, C)     # (Bp, Cn, Cp)
        v_max = jnp.max(v, axis=-1, keepdims=True)
        idx = lax.broadcasted_iota(jnp.int32, v.shape, 2)
        bp = jnp.min(jnp.where(v == v_max, idx, C), axis=-1)
        vit = jnp.where(m_t > 0.0, v_max[..., 0] + emit_t, vit)
        # hist is also written for masked timesteps; backtrace never reads them.
        hist_ref[t] = bp.astype(jnp.int32)
        return alpha, vit

    alpha, vit = lax.fori_loop(1, T, step, (alpha0, alpha0), unroll=True)

    final = alpha + end_ref[...]                      # (Bp, C)
    f_max = jnp.max(final, axis=-1, keepdims=True)
    logz_ref[...] = (jnp.log(jnp.sum(jnp.exp(final - f_max), axis=-1,
                                     keepdims=True)) + f_max)
    vscore_ref[...] = vit + end_ref[...]


# ------------------------------ JAX wrappers ----------------------------------

def bilstm(x_tbe_bf16, w_ih, w_hh, lstm_b):
    """Fused bidirectional LSTM.  x:(T,Bp,E) bf16 -> (T,Bp,2H) f32."""
    T, Bp, E = x_tbe_bf16.shape
    H = w_hh.shape[1]
    return pl.pallas_call(
        _bilstm_kernel,
        out_shape=jax.ShapeDtypeStruct((T, Bp, 2 * H), jnp.float32),
        grid=(2,),
        in_specs=[
            pl.BlockSpec((T, Bp, E), lambda d: (0, 0, 0)),        # x (shared)
            pl.BlockSpec((None, E, 4 * H), lambda d: (d, 0, 0)),  # W_ih[d]
            pl.BlockSpec((None, H, 4 * H), lambda d: (d, 0, 0)),  # W_hh[d]
            pl.BlockSpec((None, 1, 4 * H), lambda d: (d, 0, 0)),  # bias[d]
        ],
        out_specs=pl.BlockSpec((T, Bp, H), lambda d: (0, 0, d)),  # half slab
        scratch_shapes=[pltpu.VMEM((T, Bp, 4 * H), jnp.float32)],
        compiler_params=pltpu.CompilerParams(
            dimension_semantics=("parallel",)),
    )(x_tbe_bf16, w_ih, w_hh, lstm_b)


def fc_crf(h_cat, fc_w, fc_b, mask_tb, start, end, trans):
    """Fused Linear + CRF DP.  h_cat:(T,Bp,2H) f32."""
    T, Bp, _ = h_cat.shape
    C = fc_w.shape[1]
    return pl.pallas_call(
        _fc_crf_kernel,
        out_shape=(jax.ShapeDtypeStruct((T, Bp, C), jnp.float32),
                   jax.ShapeDtypeStruct((Bp, 1), jnp.float32),
                   jax.ShapeDtypeStruct((Bp, C), jnp.float32),
                   jax.ShapeDtypeStruct((T, Bp, C), jnp.int32)),
        in_specs=[_VMEM] * 7,
        out_specs=(_VMEM, _VMEM, _VMEM, _VMEM),
    )(h_cat, fc_w, fc_b.reshape(1, C), mask_tb[:, :, None],
      start.reshape(1, C), end.reshape(1, C), trans.T)


def crf_gold_score(emissions, tags, mask, start, end, trans):
    """Numerator of the CRF log-likelihood (torchcrf._compute_score), glue-level."""
    emit_scores = jnp.take_along_axis(emissions, tags[:, :, None], axis=2)[:, :, 0]
    trans_scores = trans[tags[:, :-1], tags[:, 1:]]                   # (B, T-1)
    score = start[tags[:, 0]] + emit_scores[:, 0]
    score = score + jnp.sum(emit_scores[:, 1:] * mask[:, 1:], axis=1)
    score = score + jnp.sum(trans_scores * mask[:, 1:], axis=1)
    seq_ends = jnp.sum(mask, axis=1).astype(jnp.int32) - 1
    last_tags = jnp.take_along_axis(tags, seq_ends[:, None], axis=1)[:, 0]
    return score + end[last_tags]


def _forward_core(params, input_ids, attention_mask, labels):
    B, T = input_ids.shape
    Bp = BATCH_PAD

    # TODO(synk): the real module runs a pretrained BERT encoder here; it is an
    # external submodule, so a fixed embedding table stands in for its output.
    ids_p = jnp.zeros((Bp, T), jnp.int32).at[:B].set(input_ids)
    mask_p = jnp.zeros((Bp, T), jnp.float32).at[:B].set(
        attention_mask.astype(jnp.float32))

    hidden = params['bert_embed'][ids_p]                        # (Bp, T, 768)
    x_tbe = jnp.transpose(hidden, (1, 0, 2)).astype(jnp.bfloat16)

    h_cat = bilstm(x_tbe, params['w_ih'], params['w_hh'], params['lstm_b'])
    logits_tbc, logz_p, vscore_p, hist_p = fc_crf(
        h_cat, params['fc_w'], params['fc_b'], jnp.transpose(mask_p, (1, 0)),
        params['crf_start'], params['crf_end'], params['crf_trans'])

    logits = jnp.transpose(logits_tbc, (1, 0, 2))[:B]           # (B, T, C)
    logz = logz_p[:B, 0]
    vscore = vscore_p[:B]
    hist = hist_p[:, :B]

    mask_f = attention_mask.astype(jnp.float32)
    # labels: x - 1 if x != -100 else 0
    tags = jnp.where(labels == -100, 0, labels - 1).astype(jnp.int32)
    num = crf_gold_score(logits, tags, mask_f, params['crf_start'],
                         params['crf_end'], params['crf_trans'])
    loss = -jnp.sum(num - logz)                                 # reduction='sum'
    return loss, vscore, hist


def viterbi_backtrace(vscore, hist, mask):
    """Host-side backtrace (torchcrf._viterbi_decode tail); variable-length lists."""
    vscore = np.asarray(vscore)
    hist = np.asarray(hist)
    mask = np.asarray(mask)
    seq_ends = mask.sum(axis=1).astype(int) - 1
    paths = []
    for b in range(vscore.shape[0]):
        best = int(np.argmax(vscore[b]))
        tags = [best]
        for t in range(int(seq_ends[b]), 0, -1):
            best = int(hist[t, b, best])
            tags.append(best)
        tags.reverse()
        paths.append(tags)
    return paths


def bilstm_crf_forward(params, datas):
    loss, vscore, hist = jax.jit(_forward_core)(
        params, datas['input_ids'], datas['attention_mask'], datas['labels'])
    path = viterbi_backtrace(vscore, hist, datas['attention_mask'])
    res_paths = [x + 1 for row in path for x in row]
    return (0, loss / BATCH, res_paths)


# ------------------------------- Parameters -----------------------------------

def init_params(key):
    ks = jax.random.split(key, 16)
    nrm = lambda k, s, sc: jax.random.normal(k, s, jnp.float32) * sc
    uni = lambda k, s: jax.random.uniform(k, s, jnp.float32, -0.1, 0.1)
    g = 1.0 / np.sqrt(HIDDEN)
    w_ih_f = nrm(ks[1], (4 * HIDDEN, EMBED), g)
    w_hh_f = nrm(ks[2], (4 * HIDDEN, HIDDEN), g)
    b_f = nrm(ks[3], (4 * HIDDEN,), g) + nrm(ks[4], (4 * HIDDEN,), g)
    w_ih_b = nrm(ks[5], (4 * HIDDEN, EMBED), g)
    w_hh_b = nrm(ks[6], (4 * HIDDEN, HIDDEN), g)
    b_b = nrm(ks[7], (4 * HIDDEN,), g) + nrm(ks[8], (4 * HIDDEN,), g)
    return {
        'bert_embed': nrm(ks[0], (VOCAB, EMBED), 0.02),
        # stacked [fwd, bwd], pre-transposed to (in, 4H); W_ih kept in bf16 for
        # the MXU fast path (f32 accumulation in-kernel), b = b_ih + b_hh.
        'w_ih': jnp.stack([w_ih_f.T, w_ih_b.T]).astype(jnp.bfloat16),  # (2,E,4H)
        'w_hh': jnp.stack([w_hh_f.T, w_hh_b.T]),                       # (2,H,4H)
        'lstm_b': jnp.stack([b_f.reshape(1, -1), b_b.reshape(1, -1)]), # (2,1,4H)
        # fc: Linear(2H -> class_nums), stored pre-transposed (2H, C)
        'fc_w': nrm(ks[9], (CLASS_NUMS, 2 * HIDDEN), 1.0 / np.sqrt(2 * HIDDEN)).T,
        'fc_b': nrm(ks[10], (CLASS_NUMS,), 0.1),
        # CRF
        'crf_start': uni(ks[11], (CLASS_NUMS,)),
        'crf_end': uni(ks[12], (CLASS_NUMS,)),
        'crf_trans': uni(ks[13], (CLASS_NUMS, CLASS_NUMS)),
    }


# ---------------------------------- Main ---------------------------------------

if __name__ == "__main__":
    root = jax.random.PRNGKey(0)
    k_param, k_ids, k_lab = jax.random.split(root, 3)

    params = init_params(k_param)

    lengths = jnp.array([SEQ, 5], dtype=jnp.int32)                   # per-batch lens
    attention_mask = (jnp.arange(SEQ)[None, :] < lengths[:, None]).astype(jnp.int32)
    input_ids = jax.random.randint(k_ids, (BATCH, SEQ), 0, VOCAB, jnp.int32)
    raw_labels = jax.random.randint(k_lab, (BATCH, SEQ), 1, CLASS_NUMS + 1, jnp.int32)
    labels = jnp.where(attention_mask == 1, raw_labels, -100)

    datas = {'input_ids': input_ids, 'attention_mask': attention_mask,
             'labels': labels}

    zero, loss, res_paths = bilstm_crf_forward(params, datas)
    jax.block_until_ready(loss)

    assert np.isfinite(float(loss))
    assert len(res_paths) == int(np.asarray(attention_mask).sum())
    print("KERNEL_OK")
</pallas_src>

<mosaic_0001>
module attributes {stable_mosaic.version = 11 : i64} {
  func.func @_bilstm_kernel(%arg0: i32, %arg1: memref<8x8x768xbf16, #tpu.memory_space<vmem>>, %arg2: memref<1x768x512xbf16, #tpu.memory_space<vmem>>, %arg3: memref<1x128x512xf32, #tpu.memory_space<vmem>>, %arg4: memref<1x1x512xf32, #tpu.memory_space<vmem>>, %arg5: memref<8x8x128xf32, #tpu.memory_space<vmem>>, %arg6: memref<8x8x512xf32, #tpu.memory_space<vmem>>) attributes {dimension_semantics = [#tpu.dimension_semantics<parallel>], iteration_bounds = array<i64: 2>, scalar_prefetch = 0 : i64, scratch_operands = 1 : i64, tpu.core_type = #tpu.core_type<tc>, window_params = [{pipeline_mode = #tpu.pipeline_mode<synchronous>, transform_indices = @transform_0, window_bounds = array<i64: 8, 8, 768>}, {transform_indices = @transform_1, window_bounds = array<i64: 1, 768, 512>}, {transform_indices = @transform_2, window_bounds = array<i64: 1, 128, 512>}, {transform_indices = @transform_3, window_bounds = array<i64: 1, 1, 512>}, {transform_indices = @transform_4, window_bounds = array<i64: 8, 8, 128>}]} {
    %c0 = arith.constant 0 : index
    %c0_0 = arith.constant 0 : index
    %c0_1 = arith.constant 0 : index
    %0 = vector.load %arg1[%c0, %c0_0, %c0_1] : memref<8x8x768xbf16, #tpu.memory_space<vmem>>, vector<8x8x768xbf16>
    %1 = vector.shape_cast %0 : vector<8x8x768xbf16> to vector<64x768xbf16>
    %c0_2 = arith.constant 0 : index
    %c0_3 = arith.constant 0 : index
    %c0_4 = arith.constant 0 : index
    %2 = vector.load %arg2[%c0_2, %c0_3, %c0_4] : memref<1x768x512xbf16, #tpu.memory_space<vmem>>, vector<1x768x512xbf16>
    %3 = vector.shape_cast %2 : vector<1x768x512xbf16> to vector<768x512xbf16>
    %cst = arith.constant dense<0.000000e+00> : vector<64x512xf32>
    %4 = tpu.matmul %1, %3, %cst {dimension_numbers = #tpu.dot_dimension_numbers<[1], [0], [0], [1], [0, 0, 1, 1], [], []>} : vector<64x768xbf16>, vector<768x512xbf16>, vector<64x512xf32> -> vector<64x512xf32>
    %c0_5 = arith.constant 0 : index
    %c0_6 = arith.constant 0 : index
    %c0_7 = arith.constant 0 : index
    %5 = vector.load %arg4[%c0_5, %c0_6, %c0_7] : memref<1x1x512xf32, #tpu.memory_space<vmem>>, vector<1x1x512xf32>
    %6 = vector.shape_cast %5 : vector<1x1x512xf32> to vector<1x512xf32>
    %7 = vector.broadcast %6 : vector<1x512xf32> to vector<64x512xf32>
    %8 = arith.addf %4, %7 : vector<64x512xf32>
    %9 = vector.shape_cast %8 : vector<64x512xf32> to vector<8x8x512xf32>
    %c0_8 = arith.constant 0 : index
    %c0_9 = arith.constant 0 : index
    %c0_10 = arith.constant 0 : index
    %10 = vector.load %arg6[%c0_8, %c0_9, %c0_10] : memref<8x8x512xf32, #tpu.memory_space<vmem>>, vector<8x8x512xf32>
    tpu.vector_store %arg6[%c0_8, %c0_9, %c0_10], %9 {strides = array<i32>} : memref<8x8x512xf32, #tpu.memory_space<vmem>>, vector<8x8x512xf32>,
    %c0_11 = arith.constant 0 : index
    %c0_12 = arith.constant 0 : index
    %c0_13 = arith.constant 0 : index
    %11 = vector.load %arg3[%c0_11, %c0_12, %c0_13] : memref<1x128x512xf32, #tpu.memory_space<vmem>>, vector<1x128x512xf32>
    %12 = vector.shape_cast %11 : vector<1x128x512xf32> to vector<128x512xf32>
    %cst_14 = arith.constant 0.000000e+00 : f32
    %13 = vector.broadcast %cst_14 : f32 to vector<8x128xf32>
    %c0_i32 = arith.constant 0 : i32
    %c2_i32 = arith.constant 2 : i32
    %14 = arith.muli %c2_i32, %c0_i32 : i32
    %c7_i32 = arith.constant 7 : i32
    %15 = arith.subi %c7_i32, %14 : i32
    %16 = arith.muli %arg0, %15 : i32
    %17 = arith.addi %c0_i32, %16 : i32
    %18 = arith.index_cast %17 : i32 to index
    %c0_15 = arith.constant 0 : index
    %c0_16 = arith.constant 0 : index
    %19 = vector.load %arg6[%18, %c0_15, %c0_16] : memref<8x8x512xf32, #tpu.memory_space<vmem>>, vector<1x8x512xf32>
    %20 = vector.shape_cast %19 : vector<1x8x512xf32> to vector<8x512xf32>
    %cst_17 = arith.constant dense<0.000000e+00> : vector<8x512xf32>
    %21 = tpu.matmul %13, %12, %cst_17 {dimension_numbers = #tpu.dot_dimension_numbers<[1], [0], [0], [1], [0, 0, 1, 1], [], []>} : vector<8x128xf32>, vector<128x512xf32>, vector<8x512xf32> -> vector<8x512xf32>
    %22 = arith.addf %20, %21 : vector<8x512xf32>
    %23 = vector.extract_strided_slice %22 {offsets = [0, 0], sizes = [8, 128], strides = [1, 1]} : vector<8x512xf32> to vector<8x128xf32>
    %24 = arith.negf %23 : vector<8x128xf32>
    %25 = math.exp %24 : vector<8x128xf32>
    %cst_18 = arith.constant 1.000000e+00 : f32
    %26 = vector.broadcast %cst_18 : f32 to vector<8x128xf32>
    %27 = arith.addf %26, %25 : vector<8x128xf32>
    %28 = arith.divf %26, %27 : vector<8x128xf32>
    %29 = vector.extract_strided_slice %22 {offsets = [0, 128], sizes = [8, 128], strides = [1, 1]} : vector<8x512xf32> to vector<8x128xf32>
    %30 = arith.negf %29 : vector<8x128xf32>
    %31 = math.exp %30 : vector<8x128xf32>
    %cst_19 = arith.constant 1.000000e+00 : f32
    %32 = vector.broadcast %cst_19 : f32 to vector<8x128xf32>
    %33 = arith.addf %32, %31 : vector<8x128xf32>
    %34 = arith.divf %32, %33 : vector<8x128xf32>
    %35 = vector.extract_strided_slice %22 {offsets = [0, 256], sizes = [8, 128], strides = [1, 1]} : vector<8x512xf32> to vector<8x128xf32>
    %36 = math.tanh %35 : vector<8x128xf32>
    %37 = vector.extract_strided_slice %22 {offsets = [0, 384], sizes = [8, 128], strides = [1, 1]} : vector<8x512xf32> to vector<8x128xf32>
    %38 = arith.negf %37 : vector<8x128xf32>
    %39 = math.exp %38 : vector<8x128xf32>
    %cst_20 = arith.constant 1.000000e+00 : f32
    %40 = vector.broadcast %cst_20 : f32 to vector<8x128xf32>
    %41 = arith.addf %40, %39 : vector<8x128xf32>
    %42 = arith.divf %40, %41 : vector<8x128xf32>
    %43 = arith.mulf %34, %13 : vector<8x128xf32>
    %44 = arith.mulf %28, %36 : vector<8x128xf32>
    %45 = arith.addf %43, %44 : vector<8x128xf32>
    %46 = math.tanh %45 : vector<8x128xf32>
    %47 = arith.mulf %42, %46 : vector<8x128xf32>
    %48 = arith.index_cast %17 : i32 to index
    %c0_21 = arith.constant 0 : index
    %c0_22 = arith.constant 0 : index
    %49 = vector.load %arg5[%48, %c0_21, %c0_22] : memref<8x8x128xf32, #tpu.memory_space<vmem>>, vector<1x8x128xf32>
    %50 = vector.shape_cast %49 : vector<1x8x128xf32> to vector<8x128xf32>
    %51 = vector.shape_cast %47 : vector<8x128xf32> to vector<1x8x128xf32>
    tpu.vector_store %arg5[%48, %c0_21, %c0_22], %51 {strides = array<i32>} : memref<8x8x128xf32, #tpu.memory_space<vmem>>, vector<1x8x128xf32>,
    %c1_i32 = arith.constant 1 : i32
    %c2_i32_23 = arith.constant 2 : i32
    %52 = arith.muli %c2_i32_23, %c1_i32 : i32
    %c7_i32_24 = arith.constant 7 : i32
    %53 = arith.subi %c7_i32_24, %52 : i32
    %54 = arith.muli %arg0, %53 : i32
    %55 = arith.addi %c1_i32, %54 : i32
    %56 = arith.index_cast %55 : i32 to index
    %c0_25 = arith.constant 0 : index
    %c0_26 = arith.constant 0 : index
    %57 = vector.load %arg6[%56, %c0_25, %c0_26] : memref<8x8x512xf32, #tpu.memory_space<vmem>>, vector<1x8x512xf32>
    %58 = vector.shape_cast %57 : vector<1x8x512xf32> to vector<8x512xf32>
    %cst_27 = arith.constant dense<0.000000e+00> : vector<8x512xf32>
    %59 = tpu.matmul %47, %12, %cst_27 {dimension_numbers = #tpu.dot_dimension_numbers<[1], [0], [0], [1], [0, 0, 1, 1], [], []>} : vector<8x128xf32>, vector<128x512xf32>, vector<8x512xf32> -> vector<8x512xf32>
    %60 = arith.addf %58, %59 : vector<8x512xf32>
    %61 = vector.extract_strided_slice %60 {offsets = [0, 0], sizes = [8, 128], strides = [1, 1]} : vector<8x512xf32> to vector<8x128xf32>
    %62 = arith.negf %61 : vector<8x128xf32>
    %63 = math.exp %62 : vector<8x128xf32>
    %cst_28 = arith.constant 1.000000e+00 : f32
    %64 = vector.broadcast %cst_28 : f32 to vector<8x128xf32>
    %65 = arith.addf %64, %63 : vector<8x128xf32>
    %66 = arith.divf %64, %65 : vector<8x128xf32>
    %67 = vector.extract_strided_slice %60 {offsets = [0, 128], sizes = [8, 128], strides = [1, 1]} : vector<8x512xf32> to vector<8x128xf32>
    %68 = arith.negf %67 : vector<8x128xf32>
    %69 = math.exp %68 : vector<8x128xf32>
    %cst_29 = arith.constant 1.000000e+00 : f32
    %70 = vector.broadcast %cst_29 : f32 to vector<8x128xf32>
    %71 = arith.addf %70, %69 : vector<8x128xf32>
    %72 = arith.divf %70, %71 : vector<8x128xf32>
    %73 = vector.extract_strided_slice %60 {offsets = [0, 256], sizes = [8, 128], strides = [1, 1]} : vector<8x512xf32> to vector<8x128xf32>
    %74 = math.tanh %73 : vector<8x128xf32>
    %75 = vector.extract_strided_slice %60 {offsets = [0, 384], sizes = [8, 128], strides = [1, 1]} : vector<8x512xf32> to vector<8x128xf32>
    %76 = arith.negf %75 : vector<8x128xf32>
    %77 = math.exp %76 : vector<8x128xf32>
    %cst_30 = arith.constant 1.000000e+00 : f32
    %78 = vector.broadcast %cst_30 : f32 to vector<8x128xf32>
    %79 = arith.addf %78, %77 : vector<8x128xf32>
    %80 = arith.divf %78, %79 : vector<8x128xf32>
    %81 = arith.mulf %72, %45 : vector<8x128xf32>
    %82 = arith.mulf %66, %74 : vector<8x128xf32>
    %83 = arith.addf %81, %82 : vector<8x128xf32>
    %84 = math.tanh %83 : vector<8x128xf32>
    %85 = arith.mulf %80, %84 : vector<8x128xf32>
    %86 = arith.index_cast %55 : i32 to index
    %c0_31 = arith.constant 0 : index
    %c0_32 = arith.constant 0 : index
    %87 = vector.load %arg5[%86, %c0_31, %c0_32] : memref<8x8x128xf32, #tpu.memory_space<vmem>>, vector<1x8x128xf32>
    %88 = vector.shape_cast %87 : vector<1x8x128xf32> to vector<8x128xf32>
    %89 = vector.shape_cast %85 : vector<8x128xf32> to vector<1x8x128xf32>
    tpu.vector_store %arg5[%86, %c0_31, %c0_32], %89 {strides = array<i32>} : memref<8x8x128xf32, #tpu.memory_space<vmem>>, vector<1x8x128xf32>,
    %c2_i32_33 = arith.constant 2 : i32
    %c2_i32_34 = arith.constant 2 : i32
    %90 = arith.muli %c2_i32_34, %c2_i32_33 : i32
    %c7_i32_35 = arith.constant 7 : i32
    %91 = arith.subi %c7_i32_35, %90 : i32
    %92 = arith.muli %arg0, %91 : i32
    %93 = arith.addi %c2_i32_33, %92 : i32
    %94 = arith.index_cast %93 : i32 to index
    %c0_36 = arith.constant 0 : index
    %c0_37 = arith.constant 0 : index
    %95 = vector.load %arg6[%94, %c0_36, %c0_37] : memref<8x8x512xf32, #tpu.memory_space<vmem>>, vector<1x8x512xf32>
    %96 = vector.shape_cast %95 : vector<1x8x512xf32> to vector<8x512xf32>
    %cst_38 = arith.constant dense<0.000000e+00> : vector<8x512xf32>
    %97 = tpu.matmul %85, %12, %cst_38 {dimension_numbers = #tpu.dot_dimension_numbers<[1], [0], [0], [1], [0, 0, 1, 1], [], []>} : vector<8x128xf32>, vector<128x512xf32>, vector<8x512xf32> -> vector<8x512xf32>
    %98 = arith.addf %96, %97 : vector<8x512xf32>
    %99 = vector.extract_strided_slice %98 {offsets = [0, 0], sizes = [8, 128], strides = [1, 1]} : vector<8x512xf32> to vector<8x128xf32>
    %100 = arith.negf %99 : vector<8x128xf32>
    %101 = math.exp %100 : vector<8x128xf32>
    %cst_39 = arith.constant 1.000000e+00 : f32
    %102 = vector.broadcast %cst_39 : f32 to vector<8x128xf32>
    %103 = arith.addf %102, %101 : vector<8x128xf32>
    %104 = arith.divf %102, %103 : vector<8x128xf32>
    %105 = vector.extract_strided_slice %98 {offsets = [0, 128], sizes = [8, 128], strides = [1, 1]} : vector<8x512xf32> to vector<8x128xf32>
    %106 = arith.negf %105 : vector<8x128xf32>
    %107 = math.exp %106 : vector<8x128xf32>
    %cst_40 = arith.constant 1.000000e+00 : f32
    %108 = vector.broadcast %cst_40 : f32 to vector<8x128xf32>
    %109 = arith.addf %108, %107 : vector<8x128xf32>
    %110 = arith.divf %108, %109 : vector<8x128xf32>
    %111 = vector.extract_strided_slice %98 {offsets = [0, 256], sizes = [8, 128], strides = [1, 1]} : vector<8x512xf32> to vector<8x128xf32>
    %112 = math.tanh %111 : vector<8x128xf32>
    %113 = vector.extract_strided_slice %98 {offsets = [0, 384], sizes = [8, 128], strides = [1, 1]} : vector<8x512xf32> to vector<8x128xf32>
    %114 = arith.negf %113 : vector<8x128xf32>
    %115 = math.exp %114 : vector<8x128xf32>
    %cst_41 = arith.constant 1.000000e+00 : f32
    %116 = vector.broadcast %cst_41 : f32 to vector<8x128xf32>
    %117 = arith.addf %116, %115 : vector<8x128xf32>
    %118 = arith.divf %116, %117 : vector<8x128xf32>
    %119 = arith.mulf %110, %83 : vector<8x128xf32>
    %120 = arith.mulf %104, %112 : vector<8x128xf32>
    %121 = arith.addf %119, %120 : vector<8x128xf32>
    %122 = math.tanh %121 : vector<8x128xf32>
    %123 = arith.mulf %118, %122 : vector<8x128xf32>
    %124 = arith.index_cast %93 : i32 to index
    %c0_42 = arith.constant 0 : index
    %c0_43 = arith.constant 0 : index
    %125 = vector.load %arg5[%124, %c0_42, %c0_43] : memref<8x8x128xf32, #tpu.memory_space<vmem>>, vector<1x8x128xf32>
    %126 = vector.shape_cast %125 : vector<1x8x128xf32> to vector<8x128xf32>
    %127 = vector.shape_cast %123 : vector<8x128xf32> to vector<1x8x128xf32>
    tpu.vector_store %arg5[%124, %c0_42, %c0_43], %127 {strides = array<i32>} : memref<8x8x128xf32, #tpu.memory_space<vmem>>, vector<1x8x128xf32>,
    %c3_i32 = arith.constant 3 : i32
    %c2_i32_44 = arith.constant 2 : i32
    %128 = arith.muli %c2_i32_44, %c3_i32 : i32
    %c7_i32_45 = arith.constant 7 : i32
    %129 = arith.subi %c7_i32_45, %128 : i32
    %130 = arith.muli %arg0, %129 : i32
    %131 = arith.addi %c3_i32, %130 : i32
    %132 = arith.index_cast %131 : i32 to index
    %c0_46 = arith.constant 0 : index
    %c0_47 = arith.constant 0 : index
    %133 = vector.load %arg6[%132, %c0_46, %c0_47] : memref<8x8x512xf32, #tpu.memory_space<vmem>>, vector<1x8x512xf32>
    %134 = vector.shape_cast %133 : vector<1x8x512xf32> to vector<8x512xf32>
    %cst_48 = arith.constant dense<0.000000e+00> : vector<8x512xf32>
    %135 = tpu.matmul %123, %12, %cst_48 {dimension_numbers = #tpu.dot_dimension_numbers<[1], [0], [0], [1], [0, 0, 1, 1], [], []>} : vector<8x128xf32>, vector<128x512xf32>, vector<8x512xf32> -> vector<8x512xf32>
    %136 = arith.addf %134, %135 : vector<8x512xf32>
    %137 = vector.extract_strided_slice %136 {offsets = [0, 0], sizes = [8, 128], strides = [1, 1]} : vector<8x512xf32> to vector<8x128xf32>
    %138 = arith.negf %137 : vector<8x128xf32>
    %139 = math.exp %138 : vector<8x128xf32>
    %cst_49 = arith.constant 1.000000e+00 : f32
    %140 = vector.broadcast %cst_49 : f32 to vector<8x128xf32>
    %141 = arith.addf %140, %139 : vector<8x128xf32>
    %142 = arith.divf %140, %141 : vector<8x128xf32>
    %143 = vector.extract_strided_slice %136 {offsets = [0, 128], sizes = [8, 128], strides = [1, 1]} : vector<8x512xf32> to vector<8x128xf32>
    %144 = arith.negf %143 : vector<8x128xf32>
    %145 = math.exp %144 : vector<8x128xf32>
    %cst_50 = arith.constant 1.000000e+00 : f32
    %146 = vector.broadcast %cst_50 : f32 to vector<8x128xf32>
    %147 = arith.addf %146, %145 : vector<8x128xf32>
    %148 = arith.divf %146, %147 : vector<8x128xf32>
    %149 = vector.extract_strided_slice %136 {offsets = [0, 256], sizes = [8, 128], strides = [1, 1]} : vector<8x512xf32> to vector<8x128xf32>
    %150 = math.tanh %149 : vector<8x128xf32>
    %151 = vector.extract_strided_slice %136 {offsets = [0, 384], sizes = [8, 128], strides = [1, 1]} : vector<8x512xf32> to vector<8x128xf32>
    %152 = arith.negf %151 : vector<8x128xf32>
    %153 = math.exp %152 : vector<8x128xf32>
    %cst_51 = arith.constant 1.000000e+00 : f32
    %154 = vector.broadcast %cst_51 : f32 to vector<8x128xf32>
    %155 = arith.addf %154, %153 : vector<8x128xf32>
    %156 = arith.divf %154, %155 : vector<8x128xf32>
    %157 = arith.mulf %148, %121 : vector<8x128xf32>
    %158 = arith.mulf %142, %150 : vector<8x128xf32>
    %159 = arith.addf %157, %158 : vector<8x128xf32>
    %160 = math.tanh %159 : vector<8x128xf32>
    %161 = arith.mulf %156, %160 : vector<8x128xf32>
    %162 = arith.index_cast %131 : i32 to index
    %c0_52 = arith.constant 0 : index
    %c0_53 = arith.constant 0 : index
    %163 = vector.load %arg5[%162, %c0_52, %c0_53] : memref<8x8x128xf32, #tpu.memory_space<vmem>>, vector<1x8x128xf32>
    %164 = vector.shape_cast %163 : vector<1x8x128xf32> to vector<8x128xf32>
    %165 = vector.shape_cast %161 : vector<8x128xf32> to vector<1x8x128xf32>
    tpu.vector_store %arg5[%162, %c0_52, %c0_53], %165 {strides = array<i32>} : memref<8x8x128xf32, #tpu.memory_space<vmem>>, vector<1x8x128xf32>,
    %c4_i32 = arith.constant 4 : i32
    %c2_i32_54 = arith.constant 2 : i32
    %166 = arith.muli %c2_i32_54, %c4_i32 : i32
    %c7_i32_55 = arith.constant 7 : i32
    %167 = arith.subi %c7_i32_55, %166 : i32
    %168 = arith.muli %arg0, %167 : i32
    %169 = arith.addi %c4_i32, %168 : i32
    %170 = arith.index_cast %169 : i32 to index
    %c0_56 = arith.constant 0 : index
    %c0_57 = arith.constant 0 : index
    %171 = vector.load %arg6[%170, %c0_56, %c0_57] : memref<8x8x512xf32, #tpu.memory_space<vmem>>, vector<1x8x512xf32>
    %172 = vector.shape_cast %171 : vector<1x8x512xf32> to vector<8x512xf32>
    %cst_58 = arith.constant dense<0.000000e+00> : vector<8x512xf32>
    %173 = tpu.matmul %161, %12, %cst_58 {dimension_numbers = #tpu.dot_dimension_numbers<[1], [0], [0], [1], [0, 0, 1, 1], [], []>} : vector<8x128xf32>, vector<128x512xf32>, vector<8x512xf32> -> vector<8x512xf32>
    %174 = arith.addf %172, %173 : vector<8x512xf32>
    %175 = vector.extract_strided_slice %174 {offsets = [0, 0], sizes = [8, 128], strides = [1, 1]} : vector<8x512xf32> to vector<8x128xf32>
    %176 = arith.negf %175 : vector<8x128xf32>
    %177 = math.exp %176 : vector<8x128xf32>
    %cst_59 = arith.constant 1.000000e+00 : f32
    %178 = vector.broadcast %cst_59 : f32 to vector<8x128xf32>
    %179 = arith.addf %178, %177 : vector<8x128xf32>
    %180 = arith.divf %178, %179 : vector<8x128xf32>
    %181 = vector.extract_strided_slice %174 {offsets = [0, 128], sizes = [8, 128], strides = [1, 1]} : vector<8x512xf32> to vector<8x128xf32>
    %182 = arith.negf %181 : vector<8x128xf32>
    %183 = math.exp %182 : vector<8x128xf32>
    %cst_60 = arith.constant 1.000000e+00 : f32
    %184 = vector.broadcast %cst_60 : f32 to vector<8x128xf32>
    %185 = arith.addf %184, %183 : vector<8x128xf32>
    %186 = arith.divf %184, %185 : vector<8x128xf32>
    %187 = vector.extract_strided_slice %174 {offsets = [0, 256], sizes = [8, 128], strides = [1, 1]} : vector<8x512xf32> to vector<8x128xf32>
    %188 = math.tanh %187 : vector<8x128xf32>
    %189 = vector.extract_strided_slice %174 {offsets = [0, 384], sizes = [8, 128], strides = [1, 1]} : vector<8x512xf32> to vector<8x128xf32>
    %190 = arith.negf %189 : vector<8x128xf32>
    %191 = math.exp %190 : vector<8x128xf32>
    %cst_61 = arith.constant 1.000000e+00 : f32
    %192 = vector.broadcast %cst_61 : f32 to vector<8x128xf32>
    %193 = arith.addf %192, %191 : vector<8x128xf32>
    %194 = arith.divf %192, %193 : vector<8x128xf32>
    %195 = arith.mulf %186, %159 : vector<8x128xf32>
    %196 = arith.mulf %180, %188 : vector<8x128xf32>
    %197 = arith.addf %195, %196 : vector<8x128xf32>
    %198 = math.tanh %197 : vector<8x128xf32>
    %199 = arith.mulf %194, %198 : vector<8x128xf32>
    %200 = arith.index_cast %169 : i32 to index
    %c0_62 = arith.constant 0 : index
    %c0_63 = arith.constant 0 : index
    %201 = vector.load %arg5[%200, %c0_62, %c0_63] : memref<8x8x128xf32, #tpu.memory_space<vmem>>, vector<1x8x128xf32>
    %202 = vector.shape_cast %201 : vector<1x8x128xf32> to vector<8x128xf32>
    %203 = vector.shape_cast %199 : vector<8x128xf32> to vector<1x8x128xf32>
    tpu.vector_store %arg5[%200, %c0_62, %c0_63], %203 {strides = array<i32>} : memref<8x8x128xf32, #tpu.memory_space<vmem>>, vector<1x8x128xf32>,
    %c5_i32 = arith.constant 5 : i32
    %c2_i32_64 = arith.constant 2 : i32
    %204 = arith.muli %c2_i32_64, %c5_i32 : i32
    %c7_i32_65 = arith.constant 7 : i32
    %205 = arith.subi %c7_i32_65, %204 : i32
    %206 = arith.muli %arg0, %205 : i32
    %207 = arith.addi %c5_i32, %206 : i32
    %208 = arith.index_cast %207 : i32 to index
    %c0_66 = arith.constant 0 : index
    %c0_67 = arith.constant 0 : index
    %209 = vector.load %arg6[%208, %c0_66, %c0_67] : memref<8x8x512xf32, #tpu.memory_space<vmem>>, vector<1x8x512xf32>
    %210 = vector.shape_cast %209 : vector<1x8x512xf32> to vector<8x512xf32>
    %cst_68 = arith.constant dense<0.000000e+00> : vector<8x512xf32>
    %211 = tpu.matmul %199, %12, %cst_68 {dimension_numbers = #tpu.dot_dimension_numbers<[1], [0], [0], [1], [0, 0, 1, 1], [], []>} : vector<8x128xf32>, vector<128x512xf32>, vector<8x512xf32> -> vector<8x512xf32>
    %212 = arith.addf %210, %211 : vector<8x512xf32>
    %213 = vector.extract_strided_slice %212 {offsets = [0, 0], sizes = [8, 128], strides = [1, 1]} : vector<8x512xf32> to vector<8x128xf32>
    %214 = arith.negf %213 : vector<8x128xf32>
    %215 = math.exp %214 : vector<8x128xf32>
    %cst_69 = arith.constant 1.000000e+00 : f32
    %216 = vector.broadcast %cst_69 : f32 to vector<8x128xf32>
    %217 = arith.addf %216, %215 : vector<8x128xf32>
    %218 = arith.divf %216, %217 : vector<8x128xf32>
    %219 = vector.extract_strided_slice %212 {offsets = [0, 128], sizes = [8, 128], strides = [1, 1]} : vector<8x512xf32> to vector<8x128xf32>
    %220 = arith.negf %219 : vector<8x128xf32>
    %221 = math.exp %220 : vector<8x128xf32>
    %cst_70 = arith.constant 1.000000e+00 : f32
    %222 = vector.broadcast %cst_70 : f32 to vector<8x128xf32>
    %223 = arith.addf %222, %221 : vector<8x128xf32>
    %224 = arith.divf %222, %223 : vector<8x128xf32>
    %225 = vector.extract_strided_slice %212 {offsets = [0, 256], sizes = [8, 128], strides = [1, 1]} : vector<8x512xf32> to vector<8x128xf32>
    %226 = math.tanh %225 : vector<8x128xf32>
    %227 = vector.extract_strided_slice %212 {offsets = [0, 384], sizes = [8, 128], strides = [1, 1]} : vector<8x512xf32> to vector<8x128xf32>
    %228 = arith.negf %227 : vector<8x128xf32>
    %229 = math.exp %228 : vector<8x128xf32>
    %cst_71 = arith.constant 1.000000e+00 : f32
    %230 = vector.broadcast %cst_71 : f32 to vector<8x128xf32>
    %231 = arith.addf %230, %229 : vector<8x128xf32>
    %232 = arith.divf %230, %231 : vector<8x128xf32>
    %233 = arith.mulf %224, %197 : vector<8x128xf32>
    %234 = arith.mulf %218, %226 : vector<8x128xf32>
    %235 = arith.addf %233, %234 : vector<8x128xf32>
    %236 = math.tanh %235 : vector<8x128xf32>
    %237 = arith.mulf %232, %236 : vector<8x128xf32>
    %238 = arith.index_cast %207 : i32 to index
    %c0_72 = arith.constant 0 : index
    %c0_73 = arith.constant 0 : index
    %239 = vector.load %arg5[%238, %c0_72, %c0_73] : memref<8x8x128xf32, #tpu.memory_space<vmem>>, vector<1x8x128xf32>
    %240 = vector.shape_cast %239 : vector<1x8x128xf32> to vector<8x128xf32>
    %241 = vector.shape_cast %237 : vector<8x128xf32> to vector<1x8x128xf32>
    tpu.vector_store %arg5[%238, %c0_72, %c0_73], %241 {strides = array<i32>} : memref<8x8x128xf32, #tpu.memory_space<vmem>>, vector<1x8x128xf32>,
    %c6_i32 = arith.constant 6 : i32
    %c2_i32_74 = arith.constant 2 : i32
    %242 = arith.muli %c2_i32_74, %c6_i32 : i32
    %c7_i32_75 = arith.constant 7 : i32
    %243 = arith.subi %c7_i32_75, %242 : i32
    %244 = arith.muli %arg0, %243 : i32
    %245 = arith.addi %c6_i32, %244 : i32
    %246 = arith.index_cast %245 : i32 to index
    %c0_76 = arith.constant 0 : index
    %c0_77 = arith.constant 0 : index
    %247 = vector.load %arg6[%246, %c0_76, %c0_77] : memref<8x8x512xf32, #tpu.memory_space<vmem>>, vector<1x8x512xf32>
    %248 = vector.shape_cast %247 : vector<1x8x512xf32> to vector<8x512xf32>
    %cst_78 = arith.constant dense<0.000000e+00> : vector<8x512xf32>
    %249 = tpu.matmul %237, %12, %cst_78 {dimension_numbers = #tpu.dot_dimension_numbers<[1], [0], [0], [1], [0, 0, 1, 1], [], []>} : vector<8x128xf32>, vector<128x512xf32>, vector<8x512xf32> -> vector<8x512xf32>
    %250 = arith.addf %248, %249 : vector<8x512xf32>
    %251 = vector.extract_strided_slice %250 {offsets = [0, 0], sizes = [8, 128], strides = [1, 1]} : vector<8x512xf32> to vector<8x128xf32>
    %252 = arith.negf %251 : vector<8x128xf32>
    %253 = math.exp %252 : vector<8x128xf32>
    %cst_79 = arith.constant 1.000000e+00 : f32
    %254 = vector.broadcast %cst_79 : f32 to vector<8x128xf32>
    %255 = arith.addf %254, %253 : vector<8x128xf32>
    %256 = arith.divf %254, %255 : vector<8x128xf32>
    %257 = vector.extract_strided_slice %250 {offsets = [0, 128], sizes = [8, 128], strides = [1, 1]} : vector<8x512xf32> to vector<8x128xf32>
    %258 = arith.negf %257 : vector<8x128xf32>
    %259 = math.exp %258 : vector<8x128xf32>
    %cst_80 = arith.constant 1.000000e+00 : f32
    %260 = vector.broadcast %cst_80 : f32 to vector<8x128xf32>
    %261 = arith.addf %260, %259 : vector<8x128xf32>
    %262 = arith.divf %260, %261 : vector<8x128xf32>
    %263 = vector.extract_strided_slice %250 {offsets = [0, 256], sizes = [8, 128], strides = [1, 1]} : vector<8x512xf32> to vector<8x128xf32>
    %264 = math.tanh %263 : vector<8x128xf32>
    %265 = vector.extract_strided_slice %250 {offsets = [0, 384], sizes = [8, 128], strides = [1, 1]} : vector<8x512xf32> to vector<8x128xf32>
    %266 = arith.negf %265 : vector<8x128xf32>
    %267 = math.exp %266 : vector<8x128xf32>
    %cst_81 = arith.constant 1.000000e+00 : f32
    %268 = vector.broadcast %cst_81 : f32 to vector<8x128xf32>
    %269 = arith.addf %268, %267 : vector<8x128xf32>
    %270 = arith.divf %268, %269 : vector<8x128xf32>
    %271 = arith.mulf %262, %235 : vector<8x128xf32>
    %272 = arith.mulf %256, %264 : vector<8x128xf32>
    %273 = arith.addf %271, %272 : vector<8x128xf32>
    %274 = math.tanh %273 : vector<8x128xf32>
    %275 = arith.mulf %270, %274 : vector<8x128xf32>
    %276 = arith.index_cast %245 : i32 to index
    %c0_82 = arith.constant 0 : index
    %c0_83 = arith.constant 0 : index
    %277 = vector.load %arg5[%276, %c0_82, %c0_83] : memref<8x8x128xf32, #tpu.memory_space<vmem>>, vector<1x8x128xf32>
    %278 = vector.shape_cast %277 : vector<1x8x128xf32> to vector<8x128xf32>
    %279 = vector.shape_cast %275 : vector<8x128xf32> to vector<1x8x128xf32>
    tpu.vector_store %arg5[%276, %c0_82, %c0_83], %279 {strides = array<i32>} : memref<8x8x128xf32, #tpu.memory_space<vmem>>, vector<1x8x128xf32>,
    %c7_i32_84 = arith.constant 7 : i32
    %c2_i32_85 = arith.constant 2 : i32
    %280 = arith.muli %c2_i32_85, %c7_i32_84 : i32
    %c7_i32_86 = arith.constant 7 : i32
    %281 = arith.subi %c7_i32_86, %280 : i32
    %282 = arith.muli %arg0, %281 : i32
    %283 = arith.addi %c7_i32_84, %282 : i32
    %284 = arith.index_cast %283 : i32 to index
    %c0_87 = arith.constant 0 : index
    %c0_88 = arith.constant 0 : index
    %285 = vector.load %arg6[%284, %c0_87, %c0_88] : memref<8x8x512xf32, #tpu.memory_space<vmem>>, vector<1x8x512xf32>
    %286 = vector.shape_cast %285 : vector<1x8x512xf32> to vector<8x512xf32>
    %cst_89 = arith.constant dense<0.000000e+00> : vector<8x512xf32>
    %287 = tpu.matmul %275, %12, %cst_89 {dimension_numbers = #tpu.dot_dimension_numbers<[1], [0], [0], [1], [0, 0, 1, 1], [], []>} : vector<8x128xf32>, vector<128x512xf32>, vector<8x512xf32> -> vector<8x512xf32>
    %288 = arith.addf %286, %287 : vector<8x512xf32>
    %289 = vector.extract_strided_slice %288 {offsets = [0, 0], sizes = [8, 128], strides = [1, 1]} : vector<8x512xf32> to vector<8x128xf32>
    %290 = arith.negf %289 : vector<8x128xf32>
    %291 = math.exp %290 : vector<8x128xf32>
    %cst_90 = arith.constant 1.000000e+00 : f32
    %292 = vector.broadcast %cst_90 : f32 to vector<8x128xf32>
    %293 = arith.addf %292, %291 : vector<8x128xf32>
    %294 = arith.divf %292, %293 : vector<8x128xf32>
    %295 = vector.extract_strided_slice %288 {offsets = [0, 128], sizes = [8, 128], strides = [1, 1]} : vector<8x512xf32> to vector<8x128xf32>
    %296 = arith.negf %295 : vector<8x128xf32>
    %297 = math.exp %296 : vector<8x128xf32>
    %cst_91 = arith.constant 1.000000e+00 : f32
    %298 = vector.broadcast %cst_91 : f32 to vector<8x128xf32>
    %299 = arith.addf %298, %297 : vector<8x128xf32>
    %300 = arith.divf %298, %299 : vector<8x128xf32>
    %301 = vector.extract_strided_slice %288 {offsets = [0, 256], sizes = [8, 128], strides = [1, 1]} : vector<8x512xf32> to vector<8x128xf32>
    %302 = math.tanh %301 : vector<8x128xf32>
    %303 = vector.extract_strided_slice %288 {offsets = [0, 384], sizes = [8, 128], strides = [1, 1]} : vector<8x512xf32> to vector<8x128xf32>
    %304 = arith.negf %303 : vector<8x128xf32>
    %305 = math.exp %304 : vector<8x128xf32>
    %cst_92 = arith.constant 1.000000e+00 : f32
    %306 = vector.broadcast %cst_92 : f32 to vector<8x128xf32>
    %307 = arith.addf %306, %305 : vector<8x128xf32>
    %308 = arith.divf %306, %307 : vector<8x128xf32>
    %309 = arith.mulf %300, %273 : vector<8x128xf32>
    %310 = arith.mulf %294, %302 : vector<8x128xf32>
    %311 = arith.addf %309, %310 : vector<8x128xf32>
    %312 = math.tanh %311 : vector<8x128xf32>
    %313 = arith.mulf %308, %312 : vector<8x128xf32>
    %314 = arith.index_cast %283 : i32 to index
    %c0_93 = arith.constant 0 : index
    %c0_94 = arith.constant 0 : index
    %315 = vector.load %arg5[%314, %c0_93, %c0_94] : memref<8x8x128xf32, #tpu.memory_space<vmem>>, vector<1x8x128xf32>
    %316 = vector.shape_cast %315 : vector<1x8x128xf32> to vector<8x128xf32>
    %317 = vector.shape_cast %313 : vector<8x128xf32> to vector<1x8x128xf32>
    tpu.vector_store %arg5[%314, %c0_93, %c0_94], %317 {strides = array<i32>} : memref<8x8x128xf32, #tpu.memory_space<vmem>>, vector<1x8x128xf32>,
    %c8_i32 = arith.constant 8 : i32
    return
  }
  func.func @transform_0(%arg0: i32) -> (i32, i32, i32) {
    %c0_i32 = arith.constant 0 : i32
    %c0_i32_0 = arith.constant 0 : i32
    %c0_i32_1 = arith.constant 0 : i32
    %c0_i32_2 = arith.constant 0 : i32
    return %c0_i32, %c0_i32_0, %c0_i32_1 : i32, i32, i32
  }
  func.func @transform_1(%arg0: i32) -> (i32, i32, i32) {
    %c0_i32 = arith.constant 0 : i32
    %c0_i32_0 = arith.constant 0 : i32
    %c0_i32_1 = arith.constant 0 : i32
    return %arg0, %c0_i32, %c0_i32_0 : i32, i32, i32
  }
  func.func @transform_2(%arg0: i32) -> (i32, i32, i32) {
    %c0_i32 = arith.constant 0 : i32
    %c0_i32_0 = arith.constant 0 : i32
    %c0_i32_1 = arith.constant 0 : i32
    return %arg0, %c0_i32, %c0_i32_0 : i32, i32, i32
  }
  func.func @transform_3(%arg0: i32) -> (i32, i32, i32) {
    %c0_i32 = arith.constant 0 : i32
    %c0_i32_0 = arith.constant 0 : i32
    %c0_i32_1 = arith.constant 0 : i32
    return %arg0, %c0_i32, %c0_i32_0 : i32, i32, i32
  }
  func.func @transform_4(%arg0: i32) -> (i32, i32, i32) {
    %c0_i32 = arith.constant 0 : i32
    %c0_i32_0 = arith.constant 0 : i32
    %c0_i32_1 = arith.constant 0 : i32
    return %c0_i32, %c0_i32_0, %arg0 : i32, i32, i32
  }
}

module attributes {stable_mosaic.version = 11 : i64} {
  func.func @_fc_crf_kernel(%arg0: memref<8x8x256xf32, #tpu.memory_space<vmem>>, %arg1: memref<256x8xf32, #tpu.memory_space<vmem>>, %arg2: memref<1x8xf32, #tpu.memory_space<vmem>>, %arg3: memref<8x8x1xf32, #tpu.memory_space<vmem>>, %arg4: memref<1x8xf32, #tpu.memory_space<vmem>>, %arg5: memref<1x8xf32, #tpu.memory_space<vmem>>, %arg6: memref<8x8xf32, #tpu.memory_space<vmem>>, %arg7: memref<8x8x8xf32, #tpu.memory_space<vmem>>, %arg8: memref<8x1xf32, #tpu.memory_space<vmem>>, %arg9: memref<8x8xf32, #tpu.memory_space<vmem>>, %arg10: memref<8x8x8xi32, #tpu.memory_space<vmem>>) attributes {dimension_semantics = [], scalar_prefetch = 0 : i64, scratch_operands = 0 : i64, tpu.core_type = #tpu.core_type<tc>} {
    %c0 = arith.constant 0 : index
    %c0_0 = arith.constant 0 : index
    %c0_1 = arith.constant 0 : index
    %0 = vector.load %arg0[%c0, %c0_0, %c0_1] : memref<8x8x256xf32, #tpu.memory_space<vmem>>, vector<8x8x256xf32>
    %1 = vector.shape_cast %0 : vector<8x8x256xf32> to vector<64x256xf32>
    %c0_2 = arith.constant 0 : index
    %c0_3 = arith.constant 0 : index
    %2 = vector.load %arg1[%c0_2, %c0_3] : memref<256x8xf32, #tpu.memory_space<vmem>>, vector<256x8xf32>
    %cst = arith.constant dense<0.000000e+00> : vector<64x8xf32>
    %3 = tpu.matmul %1, %2, %cst {dimension_numbers = #tpu.dot_dimension_numbers<[1], [0], [0], [1], [0, 0, 1, 1], [], []>} : vector<64x256xf32>, vector<256x8xf32>, vector<64x8xf32> -> vector<64x8xf32>
    %c0_4 = arith.constant 0 : index
    %c0_5 = arith.constant 0 : index
    %4 = vector.load %arg2[%c0_4, %c0_5] : memref<1x8xf32, #tpu.memory_space<vmem>>, vector<1x8xf32>
    %5 = vector.broadcast %4 : vector<1x8xf32> to vector<64x8xf32>
    %6 = arith.addf %3, %5 : vector<64x8xf32>
    %7 = vector.shape_cast %6 : vector<64x8xf32> to vector<8x8x8xf32>
    %c0_6 = arith.constant 0 : index
    %c0_7 = arith.constant 0 : index
    %c0_8 = arith.constant 0 : index
    %8 = vector.load %arg7[%c0_6, %c0_7, %c0_8] : memref<8x8x8xf32, #tpu.memory_space<vmem>>, vector<8x8x8xf32>
    tpu.vector_store %arg7[%c0_6, %c0_7, %c0_8], %7 {strides = array<i32>} : memref<8x8x8xf32, #tpu.memory_space<vmem>>, vector<8x8x8xf32>,
    %c0_9 = arith.constant 0 : index
    %c0_10 = arith.constant 0 : index
    %9 = vector.load %arg6[%c0_9, %c0_10] : memref<8x8xf32, #tpu.memory_space<vmem>>, vector<8x8xf32>
    %c0_11 = arith.constant 0 : index
    %c0_12 = arith.constant 0 : index
    %10 = vector.load %arg4[%c0_11, %c0_12] : memref<1x8xf32, #tpu.memory_space<vmem>>, vector<1x8xf32>
    %c0_13 = arith.constant 0 : index
    %c0_14 = arith.constant 0 : index
    %c0_15 = arith.constant 0 : index
    %11 = vector.load %arg7[%c0_13, %c0_14, %c0_15] : memref<8x8x8xf32, #tpu.memory_space<vmem>>, vector<1x8x8xf32>
    %12 = vector.shape_cast %11 : vector<1x8x8xf32> to vector<8x8xf32>
    %13 = vector.broadcast %10 : vector<1x8xf32> to vector<8x8xf32>
    %14 = arith.addf %13, %12 : vector<8x8xf32>
    %c0_i32 = arith.constant 0 : i32
    %15 = vector.broadcast %c0_i32 : i32 to vector<8x8xi32>
    %c0_16 = arith.constant 0 : index
    %c0_17 = arith.constant 0 : index
    %c0_18 = arith.constant 0 : index
    %16 = vector.load %arg10[%c0_16, %c0_17, %c0_18] : memref<8x8x8xi32, #tpu.memory_space<vmem>>, vector<1x8x8xi32>
    %17 = vector.shape_cast %16 : vector<1x8x8xi32> to vector<8x8xi32>
    %18 = vector.shape_cast %15 : vector<8x8xi32> to vector<1x8x8xi32>
    tpu.vector_store %arg10[%c0_16, %c0_17, %c0_18], %18 {strides = array<i32>} : memref<8x8x8xi32, #tpu.memory_space<vmem>>, vector<1x8x8xi32>,
    %c1_i32 = arith.constant 1 : i32
    %19 = arith.index_cast %c1_i32 : i32 to index
    %c0_19 = arith.constant 0 : index
    %c0_20 = arith.constant 0 : index
    %20 = vector.load %arg7[%19, %c0_19, %c0_20] : memref<8x8x8xf32, #tpu.memory_space<vmem>>, vector<1x8x8xf32>
    %21 = vector.shape_cast %20 : vector<1x8x8xf32> to vector<8x8xf32>
    %22 = arith.index_cast %c1_i32 : i32 to index
    %c0_21 = arith.constant 0 : index
    %c0_22 = arith.constant 0 : index
    %23 = vector.load %arg3[%22, %c0_21, %c0_22] : memref<8x8x1xf32, #tpu.memory_space<vmem>>, vector<1x8x1xf32>
    %24 = vector.shape_cast %23 : vector<1x8x1xf32> to vector<8x1xf32>
    %25 = vector.shape_cast %14 : vector<8x8xf32> to vector<8x1x8xf32>
    %26 = vector.shape_cast %9 : vector<8x8xf32> to vector<1x8x8xf32>
    %27 = vector.broadcast %25 : vector<8x1x8xf32> to vector<8x8x8xf32>
    %28 = vector.broadcast %26 : vector<1x8x8xf32> to vector<8x8x8xf32>
    %29 = arith.addf %27, %28 : vector<8x8x8xf32>
    %cst_23 = arith.constant dense<0xFF800000> : vector<8x8xf32>
    %30 = vector.multi_reduction <maximumf>, %29, %cst_23 [2] : vector<8x8x8xf32> to vector<8x8xf32>
    %31 = vector.shape_cast %30 : vector<8x8xf32> to vector<8x8x1xf32>
    %32 = vector.broadcast %31 : vector<8x8x1xf32> to vector<8x8x8xf32>
    %33 = arith.subf %29, %32 : vector<8x8x8xf32>
    %34 = math.exp %33 : vector<8x8x8xf32>
    %cst_24 = arith.constant dense<0.000000e+00> : vector<8x8xf32>
    %35 = vector.multi_reduction <add>, %34, %cst_24 [2] : vector<8x8x8xf32> to vector<8x8xf32>
    %36 = math.log %35 : vector<8x8xf32>
    %37 = vector.shape_cast %31 : vector<8x8x1xf32> to vector<8x8xf32>
    %38 = arith.addf %36, %37 : vector<8x8xf32>
    %cst_25 = arith.constant 0.000000e+00 : f32
    %39 = vector.broadcast %cst_25 : f32 to vector<8x1xf32>
    %40 = arith.cmpf ogt, %24, %39 : vector<8x1xf32>
    %41 = arith.addf %38, %21 : vector<8x8xf32>
    %42 = vector.shape_cast %40 : vector<8x1xi1> to vector<8x1xi1>
    %43 = vector.broadcast %42 : vector<8x1xi1> to vector<8x8xi1>
    %44 = arith.select %43, %41, %14 : vector<8x8xi1>, vector<8x8xf32>
    %45 = vector.shape_cast %14 : vector<8x8xf32> to vector<8x1x8xf32>
    %46 = vector.shape_cast %9 : vector<8x8xf32> to vector<1x8x8xf32>
    %47 = vector.broadcast %45 : vector<8x1x8xf32> to vector<8x8x8xf32>
    %48 = vector.broadcast %46 : vector<1x8x8xf32> to vector<8x8x8xf32>
    %49 = arith.addf %47, %48 : vector<8x8x8xf32>
    %cst_26 = arith.constant dense<0xFF800000> : vector<8x8xf32>
    %50 = vector.multi_reduction <maximumf>, %49, %cst_26 [2] : vector<8x8x8xf32> to vector<8x8xf32>
    %51 = vector.shape_cast %50 : vector<8x8xf32> to vector<8x8x1xf32>
    %52 = tpu.iota {dimensions = array<i32: 2>} : vector<8x8x8xi32>
    %53 = vector.broadcast %51 : vector<8x8x1xf32> to vector<8x8x8xf32>
    %54 = arith.cmpf oeq, %49, %53 : vector<8x8x8xf32>
    %c8_i32 = arith.constant 8 : i32
    %55 = vector.broadcast %c8_i32 : i32 to vector<8x8x8xi32>
    %56 = arith.select %54, %52, %55 : vector<8x8x8xi1>, vector<8x8x8xi32>
    %cst_27 = arith.constant dense<2147483647> : vector<8x8xi32>
    %57 = vector.multi_reduction <minsi>, %56, %cst_27 [2] : vector<8x8x8xi32> to vector<8x8xi32>
    %cst_28 = arith.constant 0.000000e+00 : f32
    %58 = vector.broadcast %cst_28 : f32 to vector<8x1xf32>
    %59 = arith.cmpf ogt, %24, %58 : vector<8x1xf32>
    %60 = vector.shape_cast %51 : vector<8x8x1xf32> to vector<8x8xf32>
    %61 = arith.addf %60, %21 : vector<8x8xf32>
    %62 = vector.shape_cast %59 : vector<8x1xi1> to vector<8x1xi1>
    %63 = vector.broadcast %62 : vector<8x1xi1> to vector<8x8xi1>
    %64 = arith.select %63, %61, %14 : vector<8x8xi1>, vector<8x8xf32>
    %65 = arith.index_cast %c1_i32 : i32 to index
    %c0_29 = arith.constant 0 : index
    %c0_30 = arith.constant 0 : index
    %66 = vector.load %arg10[%65, %c0_29, %c0_30] : memref<8x8x8xi32, #tpu.memory_space<vmem>>, vector<1x8x8xi32>
    %67 = vector.shape_cast %66 : vector<1x8x8xi32> to vector<8x8xi32>
    %68 = vector.shape_cast %57 : vector<8x8xi32> to vector<1x8x8xi32>
    tpu.vector_store %arg10[%65, %c0_29, %c0_30], %68 {strides = array<i32>} : memref<8x8x8xi32, #tpu.memory_space<vmem>>, vector<1x8x8xi32>,
    %c2_i32 = arith.constant 2 : i32
    %69 = arith.index_cast %c2_i32 : i32 to index
    %c0_31 = arith.constant 0 : index
    %c0_32 = arith.constant 0 : index
    %70 = vector.load %arg7[%69, %c0_31, %c0_32] : memref<8x8x8xf32, #tpu.memory_space<vmem>>, vector<1x8x8xf32>
    %71 = vector.shape_cast %70 : vector<1x8x8xf32> to vector<8x8xf32>
    %72 = arith.index_cast %c2_i32 : i32 to index
    %c0_33 = arith.constant 0 : index
    %c0_34 = arith.constant 0 : index
    %73 = vector.load %arg3[%72, %c0_33, %c0_34] : memref<8x8x1xf32, #tpu.memory_space<vmem>>, vector<1x8x1xf32>
    %74 = vector.shape_cast %73 : vector<1x8x1xf32> to vector<8x1xf32>
    %75 = vector.shape_cast %44 : vector<8x8xf32> to vector<8x1x8xf32>
    %76 = vector.shape_cast %9 : vector<8x8xf32> to vector<1x8x8xf32>
    %77 = vector.broadcast %75 : vector<8x1x8xf32> to vector<8x8x8xf32>
    %78 = vector.broadcast %76 : vector<1x8x8xf32> to vector<8x8x8xf32>
    %79 = arith.addf %77, %78 : vector<8x8x8xf32>
    %cst_35 = arith.constant dense<0xFF800000> : vector<8x8xf32>
    %80 = vector.multi_reduction <maximumf>, %79, %cst_35 [2] : vector<8x8x8xf32> to vector<8x8xf32>
    %81 = vector.shape_cast %80 : vector<8x8xf32> to vector<8x8x1xf32>
    %82 = vector.broadcast %81 : vector<8x8x1xf32> to vector<8x8x8xf32>
    %83 = arith.subf %79, %82 : vector<8x8x8xf32>
    %84 = math.exp %83 : vector<8x8x8xf32>
    %cst_36 = arith.constant dense<0.000000e+00> : vector<8x8xf32>
    %85 = vector.multi_reduction <add>, %84, %cst_36 [2] : vector<8x8x8xf32> to vector<8x8xf32>
    %86 = math.log %85 : vector<8x8xf32>
    %87 = vector.shape_cast %81 : vector<8x8x1xf32> to vector<8x8xf32>
    %88 = arith.addf %86, %87 : vector<8x8xf32>
    %cst_37 = arith.constant 0.000000e+00 : f32
    %89 = vector.broadcast %cst_37 : f32 to vector<8x1xf32>
    %90 = arith.cmpf ogt, %74, %89 : vector<8x1xf32>
    %91 = arith.addf %88, %71 : vector<8x8xf32>
    %92 = vector.shape_cast %90 : vector<8x1xi1> to vector<8x1xi1>
    %93 = vector.broadcast %92 : vector<8x1xi1> to vector<8x8xi1>
    %94 = arith.select %93, %91, %44 : vector<8x8xi1>, vector<8x8xf32>
    %95 = vector.shape_cast %64 : vector<8x8xf32> to vector<8x1x8xf32>
    %96 = vector.shape_cast %9 : vector<8x8xf32> to vector<1x8x8xf32>
    %97 = vector.broadcast %95 : vector<8x1x8xf32> to vector<8x8x8xf32>
    %98 = vector.broadcast %96 : vector<1x8x8xf32> to vector<8x8x8xf32>
    %99 = arith.addf %97, %98 : vector<8x8x8xf32>
    %cst_38 = arith.constant dense<0xFF800000> : vector<8x8xf32>
    %100 = vector.multi_reduction <maximumf>, %99, %cst_38 [2] : vector<8x8x8xf32> to vector<8x8xf32>
    %101 = vector.shape_cast %100 : vector<8x8xf32> to vector<8x8x1xf32>
    %102 = tpu.iota {dimensions = array<i32: 2>} : vector<8x8x8xi32>
    %103 = vector.broadcast %101 : vector<8x8x1xf32> to vector<8x8x8xf32>
    %104 = arith.cmpf oeq, %99, %103 : vector<8x8x8xf32>
    %c8_i32_39 = arith.constant 8 : i32
    %105 = vector.broadcast %c8_i32_39 : i32 to vector<8x8x8xi32>
    %106 = arith.select %104, %102, %105 : vector<8x8x8xi1>, vector<8x8x8xi32>
    %cst_40 = arith.constant dense<2147483647> : vector<8x8xi32>
    %107 = vector.multi_reduction <minsi>, %106, %cst_40 [2] : vector<8x8x8xi32> to vector<8x8xi32>
    %cst_41 = arith.constant 0.000000e+00 : f32
    %108 = vector.broadcast %cst_41 : f32 to vector<8x1xf32>
    %109 = arith.cmpf ogt, %74, %108 : vector<8x1xf32>
    %110 = vector.shape_cast %101 : vector<8x8x1xf32> to vector<8x8xf32>
    %111 = arith.addf %110, %71 : vector<8x8xf32>
    %112 = vector.shape_cast %109 : vector<8x1xi1> to vector<8x1xi1>
    %113 = vector.broadcast %112 : vector<8x1xi1> to vector<8x8xi1>
    %114 = arith.select %113, %111, %64 : vector<8x8xi1>, vector<8x8xf32>
    %115 = arith.index_cast %c2_i32 : i32 to index
    %c0_42 = arith.constant 0 : index
    %c0_43 = arith.constant 0 : index
    %116 = vector.load %arg10[%115, %c0_42, %c0_43] : memref<8x8x8xi32, #tpu.memory_space<vmem>>, vector<1x8x8xi32>
    %117 = vector.shape_cast %116 : vector<1x8x8xi32> to vector<8x8xi32>
    %118 = vector.shape_cast %107 : vector<8x8xi32> to vector<1x8x8xi32>
    tpu.vector_store %arg10[%115, %c0_42, %c0_43], %118 {strides = array<i32>} : memref<8x8x8xi32, #tpu.memory_space<vmem>>, vector<1x8x8xi32>,
    %c3_i32 = arith.constant 3 : i32
    %119 = arith.index_cast %c3_i32 : i32 to index
    %c0_44 = arith.constant 0 : index
    %c0_45 = arith.constant 0 : index
    %120 = vector.load %arg7[%119, %c0_44, %c0_45] : memref<8x8x8xf32, #tpu.memory_space<vmem>>, vector<1x8x8xf32>
    %121 = vector.shape_cast %120 : vector<1x8x8xf32> to vector<8x8xf32>
    %122 = arith.index_cast %c3_i32 : i32 to index
    %c0_46 = arith.constant 0 : index
    %c0_47 = arith.constant 0 : index
    %123 = vector.load %arg3[%122, %c0_46, %c0_47] : memref<8x8x1xf32, #tpu.memory_space<vmem>>, vector<1x8x1xf32>
    %124 = vector.shape_cast %123 : vector<1x8x1xf32> to vector<8x1xf32>
    %125 = vector.shape_cast %94 : vector<8x8xf32> to vector<8x1x8xf32>
    %126 = vector.shape_cast %9 : vector<8x8xf32> to vector<1x8x8xf32>
    %127 = vector.broadcast %125 : vector<8x1x8xf32> to vector<8x8x8xf32>
    %128 = vector.broadcast %126 : vector<1x8x8xf32> to vector<8x8x8xf32>
    %129 = arith.addf %127, %128 : vector<8x8x8xf32>
    %cst_48 = arith.constant dense<0xFF800000> : vector<8x8xf32>
    %130 = vector.multi_reduction <maximumf>, %129, %cst_48 [2] : vector<8x8x8xf32> to vector<8x8xf32>
    %131 = vector.shape_cast %130 : vector<8x8xf32> to vector<8x8x1xf32>
    %132 = vector.broadcast %131 : vector<8x8x1xf32> to vector<8x8x8xf32>
    %133 = arith.subf %129, %132 : vector<8x8x8xf32>
    %134 = math.exp %133 : vector<8x8x8xf32>
    %cst_49 = arith.constant dense<0.000000e+00> : vector<8x8xf32>
    %135 = vector.multi_reduction <add>, %134, %cst_49 [2] : vector<8x8x8xf32> to vector<8x8xf32>
    %136 = math.log %135 : vector<8x8xf32>
    %137 = vector.shape_cast %131 : vector<8x8x1xf32> to vector<8x8xf32>
    %138 = arith.addf %136, %137 : vector<8x8xf32>
    %cst_50 = arith.constant 0.000000e+00 : f32
    %139 = vector.broadcast %cst_50 : f32 to vector<8x1xf32>
    %140 = arith.cmpf ogt, %124, %139 : vector<8x1xf32>
    %141 = arith.addf %138, %121 : vector<8x8xf32>
    %142 = vector.shape_cast %140 : vector<8x1xi1> to vector<8x1xi1>
    %143 = vector.broadcast %142 : vector<8x1xi1> to vector<8x8xi1>
    %144 = arith.select %143, %141, %94 : vector<8x8xi1>, vector<8x8xf32>
    %145 = vector.shape_cast %114 : vector<8x8xf32> to vector<8x1x8xf32>
    %146 = vector.shape_cast %9 : vector<8x8xf32> to vector<1x8x8xf32>
    %147 = vector.broadcast %145 : vector<8x1x8xf32> to vector<8x8x8xf32>
    %148 = vector.broadcast %146 : vector<1x8x8xf32> to vector<8x8x8xf32>
    %149 = arith.addf %147, %148 : vector<8x8x8xf32>
    %cst_51 = arith.constant dense<0xFF800000> : vector<8x8xf32>
    %150 = vector.multi_reduction <maximumf>, %149, %cst_51 [2] : vector<8x8x8xf32> to vector<8x8xf32>
    %151 = vector.shape_cast %150 : vector<8x8xf32> to vector<8x8x1xf32>
    %152 = tpu.iota {dimensions = array<i32: 2>} : vector<8x8x8xi32>
    %153 = vector.broadcast %151 : vector<8x8x1xf32> to vector<8x8x8xf32>
    %154 = arith.cmpf oeq, %149, %153 : vector<8x8x8xf32>
    %c8_i32_52 = arith.constant 8 : i32
    %155 = vector.broadcast %c8_i32_52 : i32 to vector<8x8x8xi32>
    %156 = arith.select %154, %152, %155 : vector<8x8x8xi1>, vector<8x8x8xi32>
    %cst_53 = arith.constant dense<2147483647> : vector<8x8xi32>
    %157 = vector.multi_reduction <minsi>, %156, %cst_53 [2] : vector<8x8x8xi32> to vector<8x8xi32>
    %cst_54 = arith.constant 0.000000e+00 : f32
    %158 = vector.broadcast %cst_54 : f32 to vector<8x1xf32>
    %159 = arith.cmpf ogt, %124, %158 : vector<8x1xf32>
    %160 = vector.shape_cast %151 : vector<8x8x1xf32> to vector<8x8xf32>
    %161 = arith.addf %160, %121 : vector<8x8xf32>
    %162 = vector.shape_cast %159 : vector<8x1xi1> to vector<8x1xi1>
    %163 = vector.broadcast %162 : vector<8x1xi1> to vector<8x8xi1>
    %164 = arith.select %163, %161, %114 : vector<8x8xi1>, vector<8x8xf32>
    %165 = arith.index_cast %c3_i32 : i32 to index
    %c0_55 = arith.constant 0 : index
    %c0_56 = arith.constant 0 : index
    %166 = vector.load %arg10[%165, %c0_55, %c0_56] : memref<8x8x8xi32, #tpu.memory_space<vmem>>, vector<1x8x8xi32>
    %167 = vector.shape_cast %166 : vector<1x8x8xi32> to vector<8x8xi32>
    %168 = vector.shape_cast %157 : vector<8x8xi32> to vector<1x8x8xi32>
    tpu.vector_store %arg10[%165, %c0_55, %c0_56], %168 {strides = array<i32>} : memref<8x8x8xi32, #tpu.memory_space<vmem>>, vector<1x8x8xi32>,
    %c4_i32 = arith.constant 4 : i32
    %169 = arith.index_cast %c4_i32 : i32 to index
    %c0_57 = arith.constant 0 : index
    %c0_58 = arith.constant 0 : index
    %170 = vector.load %arg7[%169, %c0_57, %c0_58] : memref<8x8x8xf32, #tpu.memory_space<vmem>>, vector<1x8x8xf32>
    %171 = vector.shape_cast %170 : vector<1x8x8xf32> to vector<8x8xf32>
    %172 = arith.index_cast %c4_i32 : i32 to index
    %c0_59 = arith.constant 0 : index
    %c0_60 = arith.constant 0 : index
    %173 = vector.load %arg3[%172, %c0_59, %c0_60] : memref<8x8x1xf32, #tpu.memory_space<vmem>>, vector<1x8x1xf32>
    %174 = vector.shape_cast %173 : vector<1x8x1xf32> to vector<8x1xf32>
    %175 = vector.shape_cast %144 : vector<8x8xf32> to vector<8x1x8xf32>
    %176 = vector.shape_cast %9 : vector<8x8xf32> to vector<1x8x8xf32>
    %177 = vector.broadcast %175 : vector<8x1x8xf32> to vector<8x8x8xf32>
    %178 = vector.broadcast %176 : vector<1x8x8xf32> to vector<8x8x8xf32>
    %179 = arith.addf %177, %178 : vector<8x8x8xf32>
    %cst_61 = arith.constant dense<0xFF800000> : vector<8x8xf32>
    %180 = vector.multi_reduction <maximumf>, %179, %cst_61 [2] : vector<8x8x8xf32> to vector<8x8xf32>
    %181 = vector.shape_cast %180 : vector<8x8xf32> to vector<8x8x1xf32>
    %182 = vector.broadcast %181 : vector<8x8x1xf32> to vector<8x8x8xf32>
    %183 = arith.subf %179, %182 : vector<8x8x8xf32>
    %184 = math.exp %183 : vector<8x8x8xf32>
    %cst_62 = arith.constant dense<0.000000e+00> : vector<8x8xf32>
    %185 = vector.multi_reduction <add>, %184, %cst_62 [2] : vector<8x8x8xf32> to vector<8x8xf32>
    %186 = math.log %185 : vector<8x8xf32>
    %187 = vector.shape_cast %181 : vector<8x8x1xf32> to vector<8x8xf32>
    %188 = arith.addf %186, %187 : vector<8x8xf32>
    %cst_63 = arith.constant 0.000000e+00 : f32
    %189 = vector.broadcast %cst_63 : f32 to vector<8x1xf32>
    %190 = arith.cmpf ogt, %174, %189 : vector<8x1xf32>
    %191 = arith.addf %188, %171 : vector<8x8xf32>
    %192 = vector.shape_cast %190 : vector<8x1xi1> to vector<8x1xi1>
    %193 = vector.broadcast %192 : vector<8x1xi1> to vector<8x8xi1>
    %194 = arith.select %193, %191, %144 : vector<8x8xi1>, vector<8x8xf32>
    %195 = vector.shape_cast %164 : vector<8x8xf32> to vector<8x1x8xf32>
    %196 = vector.shape_cast %9 : vector<8x8xf32> to vector<1x8x8xf32>
    %197 = vector.broadcast %195 : vector<8x1x8xf32> to vector<8x8x8xf32>
    %198 = vector.broadcast %196 : vector<1x8x8xf32> to vector<8x8x8xf32>
    %199 = arith.addf %197, %198 : vector<8x8x8xf32>
    %cst_64 = arith.constant dense<0xFF800000> : vector<8x8xf32>
    %200 = vector.multi_reduction <maximumf>, %199, %cst_64 [2] : vector<8x8x8xf32> to vector<8x8xf32>
    %201 = vector.shape_cast %200 : vector<8x8xf32> to vector<8x8x1xf32>
    %202 = tpu.iota {dimensions = array<i32: 2>} : vector<8x8x8xi32>
    %203 = vector.broadcast %201 : vector<8x8x1xf32> to vector<8x8x8xf32>
    %204 = arith.cmpf oeq, %199, %203 : vector<8x8x8xf32>
    %c8_i32_65 = arith.constant 8 : i32
    %205 = vector.broadcast %c8_i32_65 : i32 to vector<8x8x8xi32>
    %206 = arith.select %204, %202, %205 : vector<8x8x8xi1>, vector<8x8x8xi32>
    %cst_66 = arith.constant dense<2147483647> : vector<8x8xi32>
    %207 = vector.multi_reduction <minsi>, %206, %cst_66 [2] : vector<8x8x8xi32> to vector<8x8xi32>
    %cst_67 = arith.constant 0.000000e+00 : f32
    %208 = vector.broadcast %cst_67 : f32 to vector<8x1xf32>
    %209 = arith.cmpf ogt, %174, %208 : vector<8x1xf32>
    %210 = vector.shape_cast %201 : vector<8x8x1xf32> to vector<8x8xf32>
    %211 = arith.addf %210, %171 : vector<8x8xf32>
    %212 = vector.shape_cast %209 : vector<8x1xi1> to vector<8x1xi1>
    %213 = vector.broadcast %212 : vector<8x1xi1> to vector<8x8xi1>
    %214 = arith.select %213, %211, %164 : vector<8x8xi1>, vector<8x8xf32>
    %215 = arith.index_cast %c4_i32 : i32 to index
    %c0_68 = arith.constant 0 : index
    %c0_69 = arith.constant 0 : index
    %216 = vector.load %arg10[%215, %c0_68, %c0_69] : memref<8x8x8xi32, #tpu.memory_space<vmem>>, vector<1x8x8xi32>
    %217 = vector.shape_cast %216 : vector<1x8x8xi32> to vector<8x8xi32>
    %218 = vector.shape_cast %207 : vector<8x8xi32> to vector<1x8x8xi32>
    tpu.vector_store %arg10[%215, %c0_68, %c0_69], %218 {strides = array<i32>} : memref<8x8x8xi32, #tpu.memory_space<vmem>>, vector<1x8x8xi32>,
    %c5_i32 = arith.constant 5 : i32
    %219 = arith.index_cast %c5_i32 : i32 to index
    %c0_70 = arith.constant 0 : index
    %c0_71 = arith.constant 0 : index
    %220 = vector.load %arg7[%219, %c0_70, %c0_71] : memref<8x8x8xf32, #tpu.memory_space<vmem>>, vector<1x8x8xf32>
    %221 = vector.shape_cast %220 : vector<1x8x8xf32> to vector<8x8xf32>
    %222 = arith.index_cast %c5_i32 : i32 to index
    %c0_72 = arith.constant 0 : index
    %c0_73 = arith.constant 0 : index
    %223 = vector.load %arg3[%222, %c0_72, %c0_73] : memref<8x8x1xf32, #tpu.memory_space<vmem>>, vector<1x8x1xf32>
    %224 = vector.shape_cast %223 : vector<1x8x1xf32> to vector<8x1xf32>
    %225 = vector.shape_cast %194 : vector<8x8xf32> to vector<8x1x8xf32>
    %226 = vector.shape_cast %9 : vector<8x8xf32> to vector<1x8x8xf32>
    %227 = vector.broadcast %225 : vector<8x1x8xf32> to vector<8x8x8xf32>
    %228 = vector.broadcast %226 : vector<1x8x8xf32> to vector<8x8x8xf32>
    %229 = arith.addf %227, %228 : vector<8x8x8xf32>
    %cst_74 = arith.constant dense<0xFF800000> : vector<8x8xf32>
    %230 = vector.multi_reduction <maximumf>, %229, %cst_74 [2] : vector<8x8x8xf32> to vector<8x8xf32>
    %231 = vector.shape_cast %230 : vector<8x8xf32> to vector<8x8x1xf32>
    %232 = vector.broadcast %231 : vector<8x8x1xf32> to vector<8x8x8xf32>
    %233 = arith.subf %229, %232 : vector<8x8x8xf32>
    %234 = math.exp %233 : vector<8x8x8xf32>
    %cst_75 = arith.constant dense<0.000000e+00> : vector<8x8xf32>
    %235 = vector.multi_reduction <add>, %234, %cst_75 [2] : vector<8x8x8xf32> to vector<8x8xf32>
    %236 = math.log %235 : vector<8x8xf32>
    %237 = vector.shape_cast %231 : vector<8x8x1xf32> to vector<8x8xf32>
    %238 = arith.addf %236, %237 : vector<8x8xf32>
    %cst_76 = arith.constant 0.000000e+00 : f32
    %239 = vector.broadcast %cst_76 : f32 to vector<8x1xf32>
    %240 = arith.cmpf ogt, %224, %239 : vector<8x1xf32>
    %241 = arith.addf %238, %221 : vector<8x8xf32>
    %242 = vector.shape_cast %240 : vector<8x1xi1> to vector<8x1xi1>
    %243 = vector.broadcast %242 : vector<8x1xi1> to vector<8x8xi1>
    %244 = arith.select %243, %241, %194 : vector<8x8xi1>, vector<8x8xf32>
    %245 = vector.shape_cast %214 : vector<8x8xf32> to vector<8x1x8xf32>
    %246 = vector.shape_cast %9 : vector<8x8xf32> to vector<1x8x8xf32>
    %247 = vector.broadcast %245 : vector<8x1x8xf32> to vector<8x8x8xf32>
    %248 = vector.broadcast %246 : vector<1x8x8xf32> to vector<8x8x8xf32>
    %249 = arith.addf %247, %248 : vector<8x8x8xf32>
    %cst_77 = arith.constant dense<0xFF800000> : vector<8x8xf32>
    %250 = vector.multi_reduction <maximumf>, %249, %cst_77 [2] : vector<8x8x8xf32> to vector<8x8xf32>
    %251 = vector.shape_cast %250 : vector<8x8xf32> to vector<8x8x1xf32>
    %252 = tpu.iota {dimensions = array<i32: 2>} : vector<8x8x8xi32>
    %253 = vector.broadcast %251 : vector<8x8x1xf32> to vector<8x8x8xf32>
    %254 = arith.cmpf oeq, %249, %253 : vector<8x8x8xf32>
    %c8_i32_78 = arith.constant 8 : i32
    %255 = vector.broadcast %c8_i32_78 : i32 to vector<8x8x8xi32>
    %256 = arith.select %254, %252, %255 : vector<8x8x8xi1>, vector<8x8x8xi32>
    %cst_79 = arith.constant dense<2147483647> : vector<8x8xi32>
    %257 = vector.multi_reduction <minsi>, %256, %cst_79 [2] : vector<8x8x8xi32> to vector<8x8xi32>
    %cst_80 = arith.constant 0.000000e+00 : f32
    %258 = vector.broadcast %cst_80 : f32 to vector<8x1xf32>
    %259 = arith.cmpf ogt, %224, %258 : vector<8x1xf32>
    %260 = vector.shape_cast %251 : vector<8x8x1xf32> to vector<8x8xf32>
    %261 = arith.addf %260, %221 : vector<8x8xf32>
    %262 = vector.shape_cast %259 : vector<8x1xi1> to vector<8x1xi1>
    %263 = vector.broadcast %262 : vector<8x1xi1> to vector<8x8xi1>
    %264 = arith.select %263, %261, %214 : vector<8x8xi1>, vector<8x8xf32>
    %265 = arith.index_cast %c5_i32 : i32 to index
    %c0_81 = arith.constant 0 : index
    %c0_82 = arith.constant 0 : index
    %266 = vector.load %arg10[%265, %c0_81, %c0_82] : memref<8x8x8xi32, #tpu.memory_space<vmem>>, vector<1x8x8xi32>
    %267 = vector.shape_cast %266 : vector<1x8x8xi32> to vector<8x8xi32>
    %268 = vector.shape_cast %257 : vector<8x8xi32> to vector<1x8x8xi32>
    tpu.vector_store %arg10[%265, %c0_81, %c0_82], %268 {strides = array<i32>} : memref<8x8x8xi32, #tpu.memory_space<vmem>>, vector<1x8x8xi32>,
    %c6_i32 = arith.constant 6 : i32
    %269 = arith.index_cast %c6_i32 : i32 to index
    %c0_83 = arith.constant 0 : index
    %c0_84 = arith.constant 0 : index
    %270 = vector.load %arg7[%269, %c0_83, %c0_84] : memref<8x8x8xf32, #tpu.memory_space<vmem>>, vector<1x8x8xf32>
    %271 = vector.shape_cast %270 : vector<1x8x8xf32> to vector<8x8xf32>
    %272 = arith.index_cast %c6_i32 : i32 to index
    %c0_85 = arith.constant 0 : index
    %c0_86 = arith.constant 0 : index
    %273 = vector.load %arg3[%272, %c0_85, %c0_86] : memref<8x8x1xf32, #tpu.memory_space<vmem>>, vector<1x8x1xf32>
    %274 = vector.shape_cast %273 : vector<1x8x1xf32> to vector<8x1xf32>
    %275 = vector.shape_cast %244 : vector<8x8xf32> to vector<8x1x8xf32>
    %276 = vector.shape_cast %9 : vector<8x8xf32> to vector<1x8x8xf32>
    %277 = vector.broadcast %275 : vector<8x1x8xf32> to vector<8x8x8xf32>
    %278 = vector.broadcast %276 : vector<1x8x8xf32> to vector<8x8x8xf32>
    %279 = arith.addf %277, %278 : vector<8x8x8xf32>
    %cst_87 = arith.constant dense<0xFF800000> : vector<8x8xf32>
    %280 = vector.multi_reduction <maximumf>, %279, %cst_87 [2] : vector<8x8x8xf32> to vector<8x8xf32>
    %281 = vector.shape_cast %280 : vector<8x8xf32> to vector<8x8x1xf32>
    %282 = vector.broadcast %281 : vector<8x8x1xf32> to vector<8x8x8xf32>
    %283 = arith.subf %279, %282 : vector<8x8x8xf32>
    %284 = math.exp %283 : vector<8x8x8xf32>
    %cst_88 = arith.constant dense<0.000000e+00> : vector<8x8xf32>
    %285 = vector.multi_reduction <add>, %284, %cst_88 [2] : vector<8x8x8xf32> to vector<8x8xf32>
    %286 = math.log %285 : vector<8x8xf32>
    %287 = vector.shape_cast %281 : vector<8x8x1xf32> to vector<8x8xf32>
    %288 = arith.addf %286, %287 : vector<8x8xf32>
    %cst_89 = arith.constant 0.000000e+00 : f32
    %289 = vector.broadcast %cst_89 : f32 to vector<8x1xf32>
    %290 = arith.cmpf ogt, %274, %289 : vector<8x1xf32>
    %291 = arith.addf %288, %271 : vector<8x8xf32>
    %292 = vector.shape_cast %290 : vector<8x1xi1> to vector<8x1xi1>
    %293 = vector.broadcast %292 : vector<8x1xi1> to vector<8x8xi1>
    %294 = arith.select %293, %291, %244 : vector<8x8xi1>, vector<8x8xf32>
    %295 = vector.shape_cast %264 : vector<8x8xf32> to vector<8x1x8xf32>
    %296 = vector.shape_cast %9 : vector<8x8xf32> to vector<1x8x8xf32>
    %297 = vector.broadcast %295 : vector<8x1x8xf32> to vector<8x8x8xf32>
    %298 = vector.broadcast %296 : vector<1x8x8xf32> to vector<8x8x8xf32>
    %299 = arith.addf %297, %298 : vector<8x8x8xf32>
    %cst_90 = arith.constant dense<0xFF800000> : vector<8x8xf32>
    %300 = vector.multi_reduction <maximumf>, %299, %cst_90 [2] : vector<8x8x8xf32> to vector<8x8xf32>
    %301 = vector.shape_cast %300 : vector<8x8xf32> to vector<8x8x1xf32>
    %302 = tpu.iota {dimensions = array<i32: 2>} : vector<8x8x8xi32>
    %303 = vector.broadcast %301 : vector<8x8x1xf32> to vector<8x8x8xf32>
    %304 = arith.cmpf oeq, %299, %303 : vector<8x8x8xf32>
    %c8_i32_91 = arith.constant 8 : i32
    %305 = vector.broadcast %c8_i32_91 : i32 to vector<8x8x8xi32>
    %306 = arith.select %304, %302, %305 : vector<8x8x8xi1>, vector<8x8x8xi32>
    %cst_92 = arith.constant dense<2147483647> : vector<8x8xi32>
    %307 = vector.multi_reduction <minsi>, %306, %cst_92 [2] : vector<8x8x8xi32> to vector<8x8xi32>
    %cst_93 = arith.constant 0.000000e+00 : f32
    %308 = vector.broadcast %cst_93 : f32 to vector<8x1xf32>
    %309 = arith.cmpf ogt, %274, %308 : vector<8x1xf32>
    %310 = vector.shape_cast %301 : vector<8x8x1xf32> to vector<8x8xf32>
    %311 = arith.addf %310, %271 : vector<8x8xf32>
    %312 = vector.shape_cast %309 : vector<8x1xi1> to vector<8x1xi1>
    %313 = vector.broadcast %312 : vector<8x1xi1> to vector<8x8xi1>
    %314 = arith.select %313, %311, %264 : vector<8x8xi1>, vector<8x8xf32>
    %315 = arith.index_cast %c6_i32 : i32 to index
    %c0_94 = arith.constant 0 : index
    %c0_95 = arith.constant 0 : index
    %316 = vector.load %arg10[%315, %c0_94, %c0_95] : memref<8x8x8xi32, #tpu.memory_space<vmem>>, vector<1x8x8xi32>
    %317 = vector.shape_cast %316 : vector<1x8x8xi32> to vector<8x8xi32>
    %318 = vector.shape_cast %307 : vector<8x8xi32> to vector<1x8x8xi32>
    tpu.vector_store %arg10[%315, %c0_94, %c0_95], %318 {strides = array<i32>} : memref<8x8x8xi32, #tpu.memory_space<vmem>>, vector<1x8x8xi32>,
    %c7_i32 = arith.constant 7 : i32
    %319 = arith.index_cast %c7_i32 : i32 to index
    %c0_96 = arith.constant 0 : index
    %c0_97 = arith.constant 0 : index
    %320 = vector.load %arg7[%319, %c0_96, %c0_97] : memref<8x8x8xf32, #tpu.memory_space<vmem>>, vector<1x8x8xf32>
    %321 = vector.shape_cast %320 : vector<1x8x8xf32> to vector<8x8xf32>
    %322 = arith.index_cast %c7_i32 : i32 to index
    %c0_98 = arith.constant 0 : index
    %c0_99 = arith.constant 0 : index
    %323 = vector.load %arg3[%322, %c0_98, %c0_99] : memref<8x8x1xf32, #tpu.memory_space<vmem>>, vector<1x8x1xf32>
    %324 = vector.shape_cast %323 : vector<1x8x1xf32> to vector<8x1xf32>
    %325 = vector.shape_cast %294 : vector<8x8xf32> to vector<8x1x8xf32>
    %326 = vector.shape_cast %9 : vector<8x8xf32> to vector<1x8x8xf32>
    %327 = vector.broadcast %325 : vector<8x1x8xf32> to vector<8x8x8xf32>
    %328 = vector.broadcast %326 : vector<1x8x8xf32> to vector<8x8x8xf32>
    %329 = arith.addf %327, %328 : vector<8x8x8xf32>
    %cst_100 = arith.constant dense<0xFF800000> : vector<8x8xf32>
    %330 = vector.multi_reduction <maximumf>, %329, %cst_100 [2] : vector<8x8x8xf32> to vector<8x8xf32>
    %331 = vector.shape_cast %330 : vector<8x8xf32> to vector<8x8x1xf32>
    %332 = vector.broadcast %331 : vector<8x8x1xf32> to vector<8x8x8xf32>
    %333 = arith.subf %329, %332 : vector<8x8x8xf32>
    %334 = math.exp %333 : vector<8x8x8xf32>
    %cst_101 = arith.constant dense<0.000000e+00> : vector<8x8xf32>
    %335 = vector.multi_reduction <add>, %334, %cst_101 [2] : vector<8x8x8xf32> to vector<8x8xf32>
    %336 = math.log %335 : vector<8x8xf32>
    %337 = vector.shape_cast %331 : vector<8x8x1xf32> to vector<8x8xf32>
    %338 = arith.addf %336, %337 : vector<8x8xf32>
    %cst_102 = arith.constant 0.000000e+00 : f32
    %339 = vector.broadcast %cst_102 : f32 to vector<8x1xf32>
    %340 = arith.cmpf ogt, %324, %339 : vector<8x1xf32>
    %341 = arith.addf %338, %321 : vector<8x8xf32>
    %342 = vector.shape_cast %340 : vector<8x1xi1> to vector<8x1xi1>
    %343 = vector.broadcast %342 : vector<8x1xi1> to vector<8x8xi1>
    %344 = arith.select %343, %341, %294 : vector<8x8xi1>, vector<8x8xf32>
    %345 = vector.shape_cast %314 : vector<8x8xf32> to vector<8x1x8xf32>
    %346 = vector.shape_cast %9 : vector<8x8xf32> to vector<1x8x8xf32>
    %347 = vector.broadcast %345 : vector<8x1x8xf32> to vector<8x8x8xf32>
    %348 = vector.broadcast %346 : vector<1x8x8xf32> to vector<8x8x8xf32>
    %349 = arith.addf %347, %348 : vector<8x8x8xf32>
    %cst_103 = arith.constant dense<0xFF800000> : vector<8x8xf32>
    %350 = vector.multi_reduction <maximumf>, %349, %cst_103 [2] : vector<8x8x8xf32> to vector<8x8xf32>
    %351 = vector.shape_cast %350 : vector<8x8xf32> to vector<8x8x1xf32>
    %352 = tpu.iota {dimensions = array<i32: 2>} : vector<8x8x8xi32>
    %353 = vector.broadcast %351 : vector<8x8x1xf32> to vector<8x8x8xf32>
    %354 = arith.cmpf oeq, %349, %353 : vector<8x8x8xf32>
    %c8_i32_104 = arith.constant 8 : i32
    %355 = vector.broadcast %c8_i32_104 : i32 to vector<8x8x8xi32>
    %356 = arith.select %354, %352, %355 : vector<8x8x8xi1>, vector<8x8x8xi32>
    %cst_105 = arith.constant dense<2147483647> : vector<8x8xi32>
    %357 = vector.multi_reduction <minsi>, %356, %cst_105 [2] : vector<8x8x8xi32> to vector<8x8xi32>
    %cst_106 = arith.constant 0.000000e+00 : f32
    %358 = vector.broadcast %cst_106 : f32 to vector<8x1xf32>
    %359 = arith.cmpf ogt, %324, %358 : vector<8x1xf32>
    %360 = vector.shape_cast %351 : vector<8x8x1xf32> to vector<8x8xf32>
    %361 = arith.addf %360, %321 : vector<8x8xf32>
    %362 = vector.shape_cast %359 : vector<8x1xi1> to vector<8x1xi1>
    %363 = vector.broadcast %362 : vector<8x1xi1> to vector<8x8xi1>
    %364 = arith.select %363, %361, %314 : vector<8x8xi1>, vector<8x8xf32>
    %365 = arith.index_cast %c7_i32 : i32 to index
    %c0_107 = arith.constant 0 : index
    %c0_108 = arith.constant 0 : index
    %366 = vector.load %arg10[%365, %c0_107, %c0_108] : memref<8x8x8xi32, #tpu.memory_space<vmem>>, vector<1x8x8xi32>
    %367 = vector.shape_cast %366 : vector<1x8x8xi32> to vector<8x8xi32>
    %368 = vector.shape_cast %357 : vector<8x8xi32> to vector<1x8x8xi32>
    tpu.vector_store %arg10[%365, %c0_107, %c0_108], %368 {strides = array<i32>} : memref<8x8x8xi32, #tpu.memory_space<vmem>>, vector<1x8x8xi32>,
    %c7_i32_109 = arith.constant 7 : i32
    %c0_110 = arith.constant 0 : index
    %c0_111 = arith.constant 0 : index
    %369 = vector.load %arg5[%c0_110, %c0_111] : memref<1x8xf32, #tpu.memory_space<vmem>>, vector<1x8xf32>
    %370 = vector.broadcast %369 : vector<1x8xf32> to vector<8x8xf32>
    %371 = arith.addf %344, %370 : vector<8x8xf32>
    %cst_112 = arith.constant dense<0xFF800000> : vector<8xf32>
    %372 = vector.multi_reduction <maximumf>, %371, %cst_112 [1] : vector<8x8xf32> to vector<8xf32>
    %373 = vector.shape_cast %372 : vector<8xf32> to vector<8x1xf32>
    %374 = vector.broadcast %373 : vector<8x1xf32> to vector<8x8xf32>
    %375 = arith.subf %371, %374 : vector<8x8xf32>
    %376 = math.exp %375 : vector<8x8xf32>
    %cst_113 = arith.constant dense<0.000000e+00> : vector<8xf32>
    %377 = vector.multi_reduction <add>, %376, %cst_113 [1] : vector<8x8xf32> to vector<8xf32>
    %378 = vector.shape_cast %377 : vector<8xf32> to vector<8x1xf32>
    %379 = math.log %378 : vector<8x1xf32>
    %380 = arith.addf %379, %373 : vector<8x1xf32>
    %c0_114 = arith.constant 0 : index
    %c0_115 = arith.constant 0 : index
    %381 = vector.load %arg8[%c0_114, %c0_115] : memref<8x1xf32, #tpu.memory_space<vmem>>, vector<8x1xf32>
    tpu.vector_store %arg8[%c0_114, %c0_115], %380 {strides = array<i32>} : memref<8x1xf32, #tpu.memory_space<vmem>>, vector<8x1xf32>,
    %c0_116 = arith.constant 0 : index
    %c0_117 = arith.constant 0 : index
    %382 = vector.load %arg5[%c0_116, %c0_117] : memref<1x8xf32, #tpu.memory_space<vmem>>, vector<1x8xf32>
    %383 = vector.broadcast %382 : vector<1x8xf32> to vector<8x8xf32>
    %384 = arith.addf %364, %383 : vector<8x8xf32>
    %c0_118 = arith.constant 0 : index
    %c0_119 = arith.constant 0 : index
    %385 = vector.load %arg9[%c0_118, %c0_119] : memref<8x8xf32, #tpu.memory_space<vmem>>, vector<8x8xf32>
    tpu.vector_store %arg9[%c0_118, %c0_119], %384 {strides = array<i32>} : memref<8x8xf32, #tpu.memory_space<vmem>>, vector<8x8xf32>,
    return
  }
}

</mosaic_0001>

<llo_original>
// kernel: _forward_core.3
$region0: #{_forward_core.3}
  #allocation0 [shape = 'u32[]', space=smem, size = 0x4, offset = 0x4, fixed_abs, tag = 'smem constant byte address 0x4 - core index']
  #allocation1 [shape = 'u32[144,128]{1,0:T(1,128)}', space=vmem, size = 0x12000, scoped, tag = 'internal scratch']
  %s0 = inlined_call_operand.vmem [shape: f32[8,8,256], index: 0, kind: input, shape index: {}]
  %s1 = inlined_call_operand.vmem [shape: f32[256,8], index: 1, kind: input, shape index: {}]
  %s2 = inlined_call_operand.vmem [shape: f32[1,8], index: 2, kind: input, shape index: {}]
  %s3 = inlined_call_operand.vmem [shape: f32[8,8,1], index: 3, kind: input, shape index: {}]
  %s4 = inlined_call_operand.vmem [shape: f32[1,8], index: 4, kind: input, shape index: {}]
  %s5 = inlined_call_operand.vmem [shape: f32[1,8], index: 5, kind: input, shape index: {}]
  %s6 = inlined_call_operand.vmem [shape: f32[8,8], index: 6, kind: input, shape index: {}]
  %s7 = inlined_call_operand.vmem [shape: f32[8,8,8], index: 7, kind: output, shape index: {0}]
  %s8 = inlined_call_operand.vmem [shape: f32[8,1], index: 8, kind: output, shape index: {1}]
  %s9 = inlined_call_operand.vmem [shape: f32[8,8], index: 9, kind: output, shape index: {2}]
  %s10 = inlined_call_operand.vmem [shape: s32[8,8,8], index: 10, kind: output, shape index: {3}]
  %11 = xla_tuple %s7, %s8, %s9, %s10
  %s12 = sld [smem:[#allocation0]]
  $region62: #{_forward_core.3} parent=0
    _
  %s14 = ssub.s32 1, %s12
  %s15 = scalar_select 0, %s14, %s12
  // Predicated region
  $region2: #{_forward_core.3} parent=0 // pred_check
    _
  $region3: #{_forward_core.3} parent=0 // pred_check_branch
    %17 = sbr.rel (0) target = $region5
  $region4: #{_forward_core.3} parent=0 // pred_region
    _
  $region5: #{_forward_core.3} parent=0 // pred_fallthru
    _
  // Predicated region
  $region6: #{_forward_core.3} parent=0 // pred_check
    _
  $region7: #{_forward_core.3} parent=0 // pred_check_branch
    %19 = sbr.rel (0) target = $region9
  $region8: #{_forward_core.3} parent=0 // pred_region
    _
  $region9: #{_forward_core.3} parent=0 // pred_fallthru
    _
  // Predicated region
  $region10: #{_forward_core.3} parent=0 // pred_check
    _
  $region11: #{_forward_core.3} parent=0 // pred_check_branch
    %21 = sbr.rel (0) target = $region13
  $region12: #{_forward_core.3} parent=0 // pred_region
    _
  $region13: #{_forward_core.3} parent=0 // pred_fallthru
    _
  // Predicated region
  $region14: #{_forward_core.3} parent=0 // pred_check
    _
  $region15: #{_forward_core.3} parent=0 // pred_check_branch
    %23 = sbr.rel (0) target = $region17
  $region16: #{_forward_core.3} parent=0 // pred_region
    _
  $region17: #{_forward_core.3} parent=0 // pred_fallthru
    _
  // Predicated region
  $region18: #{_forward_core.3} parent=0 // pred_check
    _
  $region19: #{_forward_core.3} parent=0 // pred_check_branch
    %25 = sbr.rel (0) target = $region21
  $region20: #{_forward_core.3} parent=0 // pred_region
    _
  $region21: #{_forward_core.3} parent=0 // pred_fallthru
    _
  // Predicated region
  $region22: #{_forward_core.3} parent=0 // pred_check
    _
  $region23: #{_forward_core.3} parent=0 // pred_check_branch
    %27 = sbr.rel (0) target = $region25
  $region24: #{_forward_core.3} parent=0 // pred_region
    _
  $region25: #{_forward_core.3} parent=0 // pred_fallthru
    _
  // Predicated region
  $region26: #{_forward_core.3} parent=0 // pred_check
    _
  $region27: #{_forward_core.3} parent=0 // pred_check_branch
    %29 = sbr.rel (0) target = $region29
  $region28: #{_forward_core.3} parent=0 // pred_region
    _
  $region29: #{_forward_core.3} parent=0 // pred_fallthru
    _
  %v30 = vld [vmem:[%s0] sm:$0xff]
  %v31 = vld [vmem:[%s0 + $0x8] sm:$0xff]
  %v32 = vld [vmem:[%s0 + $0x10] sm:$0xff]
  %v33 = vld [vmem:[%s0 + $0x18] sm:$0xff]
  %v34 = vld [vmem:[%s0 + $0x20] sm:$0xff]
  %v35 = vld [vmem:[%s0 + $0x28] sm:$0xff]
  %v36 = vld [vmem:[%s0 + $0x30] sm:$0xff]
  %v37 = vld [vmem:[%s0 + $0x38] sm:$0xff]
  %v38 = vld [vmem:[%s0 + $0x40] sm:$0xff]
  %v39 = vld [vmem:[%s0 + $0x48] sm:$0xff]
  %v40 = vld [vmem:[%s0 + $0x50] sm:$0xff]
  %v41 = vld [vmem:[%s0 + $0x58] sm:$0xff]
  %v42 = vld [vmem:[%s0 + $0x60] sm:$0xff]
  %v43 = vld [vmem:[%s0 + $0x68] sm:$0xff]
  %v44 = vld [vmem:[%s0 + $0x70] sm:$0xff]
  %v45 = vld [vmem:[%s0 + $0x78] sm:$0xff]
  %v46 = vld [vmem:[%s1] sm:$0xff]
  %v47 = vld [vmem:[%s1 + $0x8] sm:$0xff]
  %v48 = vld [vmem:[%s1 + $0x10] sm:$0xff]
  %v49 = vld [vmem:[%s1 + $0x18] sm:$0xff]
  %v50 = vld [vmem:[%s1 + $0x20] sm:$0xff]
  %v51 = vld [vmem:[%s1 + $0x28] sm:$0xff]
  %v52 = vld [vmem:[%s1 + $0x30] sm:$0xff]
  %v53 = vld [vmem:[%s1 + $0x38] sm:$0xff]
  %v54 = vld [vmem:[%s1 + $0x40] sm:$0xff]
  %v55 = vld [vmem:[%s1 + $0x48] sm:$0xff]
  %v56 = vld [vmem:[%s1 + $0x50] sm:$0xff]
  %v57 = vld [vmem:[%s1 + $0x58] sm:$0xff]
  %v58 = vld [vmem:[%s1 + $0x60] sm:$0xff]
  %v59 = vld [vmem:[%s1 + $0x68] sm:$0xff]
  %v60 = vld [vmem:[%s1 + $0x70] sm:$0xff]
  %v61 = vld [vmem:[%s1 + $0x78] sm:$0xff]
  %v62 = vld [vmem:[%s1 + $0x80] sm:$0xff]
  %v63 = vld [vmem:[%s1 + $0x88] sm:$0xff]
  %v64 = vld [vmem:[%s1 + $0x90] sm:$0xff]
  %v65 = vld [vmem:[%s1 + $0x98] sm:$0xff]
  %v66 = vld [vmem:[%s1 + $0xa0] sm:$0xff]
  %v67 = vld [vmem:[%s1 + $0xa8] sm:$0xff]
  %v68 = vld [vmem:[%s1 + $0xb0] sm:$0xff]
  %v69 = vld [vmem:[%s1 + $0xb8] sm:$0xff]
  %v70 = vld [vmem:[%s1 + $0xc0] sm:$0xff]
  %v71 = vld [vmem:[%s1 + $0xc8] sm:$0xff]
  %v72 = vld [vmem:[%s1 + $0xd0] sm:$0xff]
  %v73 = vld [vmem:[%s1 + $0xd8] sm:$0xff]
  %v74 = vld [vmem:[%s1 + $0xe0] sm:$0xff]
  %v75 = vld [vmem:[%s1 + $0xe8] sm:$0xff]
  %v76 = vld [vmem:[%s1 + $0xf0] sm:$0xff]
  %v77 = vld [vmem:[%s1 + $0xf8] sm:$0xff]
  %v78 = vld [vmem:[%s2] sm:$0x1]
  %v80 = vlaneseq
  %v81 = vshrl.u32 %v80, 7
  %v82 = vsub.s32 0, %v81
  %v83 = vrot.slane %v78, %v82
  %85 = vmatprep.subr.mxu0 0.0
  %86 = vmatpush1.msra.mxu0 %v61
  %87 = vmatprep.subr.mxu0 0.0
  %88 = vmatpush1.msra.mxu0 %v60
  %89 = vmatprep.subr.mxu0 0.0
  %90 = vmatpush1.msra.mxu0 %v59
  %91 = vmatprep.subr.mxu0 0.0
  %92 = vmatpush1.msra.mxu0 %v58
  %93 = vmatprep.subr.mxu0 0.0
  %94 = vmatpush1.msra.mxu0 %v57
  %95 = vmatprep.subr.mxu0 0.0
  %96 = vmatpush1.msra.mxu0 %v56
  %97 = vmatprep.subr.mxu0 0.0
  %98 = vmatpush1.msra.mxu0 %v55
  %99 = vmatprep.subr.mxu0 0.0
  %100 = vmatpush1.msra.mxu0 %v54
  %101 = vmatprep.subr.mxu0 0.0
  %102 = vmatpush1.msra.mxu0 %v53
  %103 = vmatprep.subr.mxu0 0.0
  %104 = vmatpush1.msra.mxu0 %v52
  %105 = vmatprep.subr.mxu0 0.0
  %106 = vmatpush1.msra.mxu0 %v51
  %107 = vmatprep.subr.mxu0 0.0
  %108 = vmatpush1.msra.mxu0 %v50
  %109 = vmatprep.subr.mxu0 0.0
  %110 = vmatpush1.msra.mxu0 %v49
  %111 = vmatprep.subr.mxu0 0.0
  %112 = vmatpush1.msra.mxu0 %v48
  %113 = vmatprep.subr.mxu0 0.0
  %114 = vmatpush1.msra.mxu0 %v47
  %115 = vmatprep.subr.mxu0 0.0
  %116 = vmatpush1.msra.mxu0 %v46
  %117 = vmatprep.subr.mxu0 0.0
  %118 = vmatpush2.msra.mxu0 %v77
  %119 = vmatprep.subr.mxu0 0.0
  %120 = vmatpush2.msra.mxu0 %v76
  %121 = vmatprep.subr.mxu0 0.0
  %122 = vmatpush2.msra.mxu0 %v75
  %123 = vmatprep.subr.mxu0 0.0
  %124 = vmatpush2.msra.mxu0 %v74
  %125 = vmatprep.subr.mxu0 0.0
  %126 = vmatpush2.msra.mxu0 %v73
  %127 = vmatprep.subr.mxu0 0.0
  %128 = vmatpush2.msra.mxu0 %v72
  %129 = vmatprep.subr.mxu0 0.0
  %130 = vmatpush2.msra.mxu0 %v71
  %131 = vmatprep.subr.mxu0 0.0
  %132 = vmatpush2.msra.mxu0 %v70
  %133 = vmatprep.subr.mxu0 0.0
  %134 = vmatpush2.msra.mxu0 %v69
  %135 = vmatprep.subr.mxu0 0.0
  %136 = vmatpush2.msra.mxu0 %v68
  %137 = vmatprep.subr.mxu0 0.0
  %138 = vmatpush2.msra.mxu0 %v67
  %139 = vmatprep.subr.mxu0 0.0
  %140 = vmatpush2.msra.mxu0 %v66
  %141 = vmatprep.subr.mxu0 0.0
  %142 = vmatpush2.msra.mxu0 %v65
  %143 = vmatprep.subr.mxu0 0.0
  %144 = vmatpush2.msra.mxu0 %v64
  %145 = vmatprep.subr.mxu0 0.0
  %146 = vmatpush2.msra.mxu0 %v63
  %147 = vmatprep.subr.mxu0 0.0
  %148 = vmatpush2.msra.mxu0 %v62
  %149 = vmatprep.mubr.f32.mxu0 %v31
  %150 = vmatmul.mubr.f32.gmra.mxu0 %v30
  %v151 = vpop.f32.mrf.mxu0
  %v152 = vadd.f32 %v83, %v151
  %v153 = vpop.f32.mrf.mxu0
  %154 = vmatprep.mubr.f32.mxu0 %v33
  %155 = vmatmul.mubr.f32.gmra.mxu0 %v32
  %v156 = vpop.f32.mrf.mxu0
  %v157 = vadd.f32 %v83, %v156
  %v158 = vpop.f32.mrf.mxu0
  %159 = vmatprep.mubr.f32.mxu0 %v35
  %160 = vmatmul.mubr.f32.gmra.mxu0 %v34
  %v161 = vpop.f32.mrf.mxu0
  %v162 = vadd.f32 %v83, %v161
  %v163 = vpop.f32.mrf.mxu0
  %164 = vmatprep.mubr.f32.mxu0 %v37
  %165 = vmatmul.mubr.f32.gmra.mxu0 %v36
  %v166 = vpop.f32.mrf.mxu0
  %v167 = vadd.f32 %v83, %v166
  %v168 = vpop.f32.mrf.mxu0
  %169 = vmatprep.mubr.f32.mxu0 %v39
  %170 = vmatmul.mubr.f32.gmra.mxu0 %v38
  %v171 = vpop.f32.mrf.mxu0
  %v172 = vadd.f32 %v83, %v171
  %v173 = vpop.f32.mrf.mxu0
  %174 = vmatprep.mubr.f32.mxu0 %v41
  %175 = vmatmul.mubr.f32.gmra.mxu0 %v40
  %v176 = vpop.f32.mrf.mxu0
  %v177 = vadd.f32 %v83, %v176
  %v178 = vpop.f32.mrf.mxu0
  %179 = vmatprep.mubr.f32.mxu0 %v43
  %180 = vmatmul.mubr.f32.gmra.mxu0 %v42
  %v181 = vpop.f32.mrf.mxu0
  %v182 = vadd.f32 %v83, %v181
  %v183 = vpop.f32.mrf.mxu0
  %184 = vmatprep.mubr.f32.mxu0 %v45
  %185 = vmatmul.mubr.f32.gmra.mxu0 %v44
  %v186 = vpop.f32.mrf.mxu0
  %v187 = vadd.f32 %v83, %v186
  %v188 = vpop.f32.mrf.mxu0
  %189 = vdwg.mxu0
  %vm190 = vcmask 64512
  %191 = vst.msk [vmem:[%s7] sm:$0xff] %vm190, %v152
  %192 = vst.msk [vmem:[%s7 + $0x8] sm:$0xff] %vm190, %v157
  %193 = vst.msk [vmem:[%s7 + $0x10] sm:$0xff] %vm190, %v162
  %194 = vst.msk [vmem:[%s7 + $0x18] sm:$0xff] %vm190, %v167
  %195 = vst.msk [vmem:[%s7 + $0x20] sm:$0xff] %vm190, %v172
  %196 = vst.msk [vmem:[%s7 + $0x28] sm:$0xff] %vm190, %v177
  %197 = vst.msk [vmem:[%s7 + $0x30] sm:$0xff] %vm190, %v182
  %198 = vst.msk [vmem:[%s7 + $0x38] sm:$0xff] %vm190, %v187
  %v199 = vld [vmem:[%s6] sm:$0xff]
  %v200 = vld [vmem:[%s4] sm:$0x1]
  %v201 = vld [vmem:[%s7] sm:$0xff]
  %v203 = vlaneseq
  %v204 = vshrl.u32 %v203, 7
  %v205 = vsub.s32 0, %v204
  %v206 = vrot.slane %v200, %v205
  %v208 = vadd.f32 %v206, %v201
  %209 = vst.msk [vmem:[%s10] sm:$0xff] %vm190, 0
  %s210 = scalar_lea.vmem %s7, 8
  %v211 = vld [vmem:[%s210] sm:$0xff]
  %s212 = scalar_lea.vmem %s3, 8
  %v213 = vld [vmem:[%s212] sm:$0xff]
  %v215 = vcombine.high %v208, %v208
  %v217 = vunpack.c.l.s4 1966171168
  %v218 = vunpack.c.0.s8 %v217
  %v219 = vlaneseq
  %v220 = vshrl.u32 %v219, 7
  %v221 = vsub.s32 %v218, %v220
  %v222 = vrot.slane %v208, %v221
  %v224 = vunpack.c.l.s4 1966171168
  %v225 = vunpack.c.0.s8 %v224
  %v226 = vlaneseq
  %v227 = vshrl.u32 %v226, 7
  %v228 = vsub.s32 %v225, %v227
  %v229 = vrot.slane %v215, %v228
  %v230 = vcombine.high %v222, %v222
  %v231 = vcombine.high %v229, %v229
  %v233 = vunpack.c.l.s4 1966171168
  %v234 = vunpack.c.0.s8 %v233
  %v235 = vlaneseq
  %v236 = vshrl.u32 %v235, 7
  %v237 = vsub.s32 %v234, %v236
  %v238 = vrot.slane %v222, %v237
  %v240 = vunpack.c.l.s4 1966171168
  %v241 = vunpack.c.0.s8 %v240
  %v242 = vlaneseq
  %v243 = vshrl.u32 %v242, 7
  %v244 = vsub.s32 %v241, %v243
  %v245 = vrot.slane %v229, %v244
  %v247 = vunpack.c.l.s4 1966171168
  %v248 = vunpack.c.0.s8 %v247
  %v249 = vlaneseq
  %v250 = vshrl.u32 %v249, 7
  %v251 = vsub.s32 %v248, %v250
  %v252 = vrot.slane %v230, %v251
  %v254 = vunpack.c.l.s4 1966171168
  %v255 = vunpack.c.0.s8 %v254
  %v256 = vlaneseq
  %v257 = vshrl.u32 %v256, 7
  %v258 = vsub.s32 %v255, %v257
  %v259 = vrot.slane %v231, %v258
  %v260 = vcombine.high %v238, %v238
  %v261 = vcombine.high %v245, %v245
  %v262 = vcombine.high %v252, %v252
  %v263 = vcombine.high %v259, %v259
  %v264 = vlaneseq
  %v265 = vshrl.u32 %v264, 7
  %v266 = vsub.s32 0, %v265
  %v267 = vrot.slane %v238, %v266
  %v268 = vlaneseq
  %v269 = vshrl.u32 %v268, 7
  %v270 = vsub.s32 0, %v269
  %v271 = vrot.slane %v252, %v270
  %v272 = vlaneseq
  %v273 = vshrl.u32 %v272, 7
  %v274 = vsub.s32 0, %v273
  %v275 = vrot.slane %v260, %v274
  %v276 = vlaneseq
  %v277 = vshrl.u32 %v276, 7
  %v278 = vsub.s32 0, %v277
  %v279 = vrot.slane %v262, %v278
  %v280 = vlaneseq
  %v281 = vshrl.u32 %v280, 7
  %v282 = vsub.s32 0, %v281
  %v283 = vrot.slane %v245, %v282
  %v284 = vlaneseq
  %v285 = vshrl.u32 %v284, 7
  %v286 = vsub.s32 0, %v285
  %v287 = vrot.slane %v259, %v286
  %v288 = vlaneseq
  %v289 = vshrl.u32 %v288, 7
  %v290 = vsub.s32 0, %v289
  %v291 = vrot.slane %v261, %v290
  %v292 = vlaneseq
  %v293 = vshrl.u32 %v292, 7
  %v294 = vsub.s32 0, %v293
  %v295 = vrot.slane %v263, %v294
  %v304 = vadd.f32 %v267, %v199
  %v305 = vadd.f32 %v271, %v199
  %v306 = vadd.f32 %v275, %v199
  %v307 = vadd.f32 %v279, %v199
  %v308 = vadd.f32 %v283, %v199
  %v309 = vadd.f32 %v287, %v199
  %v310 = vadd.f32 %v291, %v199
  %v311 = vadd.f32 %v295, %v199
  %v312 = vsel %vm190, %v304, -inf
  %313 = vmax.xlane.f32.xlu0 %v312
  %v314 = vpop.xlane.xlu0 %313
  %v315 = vsel %vm190, %v305, -inf
  %316 = vmax.xlane.f32.xlu0 %v315
  %v317 = vpop.xlane.xlu0 %316
  %v318 = vsel %vm190, %v306, -inf
  %319 = vmax.xlane.f32.xlu0 %v318
  %v320 = vpop.xlane.xlu0 %319
  %v321 = vsel %vm190, %v307, -inf
  %322 = vmax.xlane.f32.xlu0 %v321
  %v323 = vpop.xlane.xlu0 %322
  %v324 = vsel %vm190, %v308, -inf
  %325 = vmax.xlane.f32.xlu0 %v324
  %v326 = vpop.xlane.xlu0 %325
  %v327 = vsel %vm190, %v309, -inf
  %328 = vmax.xlane.f32.xlu0 %v327
  %v329 = vpop.xlane.xlu0 %328
  %v330 = vsel %vm190, %v310, -inf
  %331 = vmax.xlane.f32.xlu0 %v330
  %v332 = vpop.xlane.xlu0 %331
  %v333 = vsel %vm190, %v311, -inf
  %334 = vmax.xlane.f32.xlu0 %v333
  %v335 = vpop.xlane.xlu0 %334
  %v336 = vsub.f32 %v304, %v314
  %v337 = vsub.f32 %v305, %v317
  %v338 = vsub.f32 %v306, %v320
  %v339 = vsub.f32 %v307, %v323
  %v340 = vsub.f32 %v308, %v326
  %v341 = vsub.f32 %v309, %v329
  %v342 = vsub.f32 %v310, %v332
  %v343 = vsub.f32 %v311, %v335
  %v344 = vmul.f32 %v336, 1.442695
  %v345 = vpow.pop %v344
  %v346 = vmul.f32 %v337, 1.442695
  %v347 = vpow.pop %v346
  %v348 = vmul.f32 %v338, 1.442695
  %v349 = vpow.pop %v348
  %v350 = vmul.f32 %v339, 1.442695
  %v351 = vpow.pop %v350
  %v352 = vmul.f32 %v340, 1.442695
  %v353 = vpow.pop %v352
  %v354 = vmul.f32 %v341, 1.442695
  %v355 = vpow.pop %v354
  %v356 = vmul.f32 %v342, 1.442695
  %v357 = vpow.pop %v356
  %v358 = vmul.f32 %v343, 1.442695
  %v359 = vpow.pop %v358
  %v360 = vsel %vm190, %v345, 0.0
  %361 = vadd.xlane.f32.xlu0 %v360
  %v362 = vpop.xlane.xlu0 %361
  %v363 = vsel %vm190, %v347, 0.0
  %364 = vadd.xlane.f32.xlu0 %v363
  %v365 = vpop.xlane.xlu0 %364
  %v366 = vsel %vm190, %v349, 0.0
  %367 = vadd.xlane.f32.xlu0 %v366
  %v368 = vpop.xlane.xlu0 %367
  %v369 = vsel %vm190, %v351, 0.0
  %370 = vadd.xlane.f32.xlu0 %v369
  %v371 = vpop.xlane.xlu0 %370
  %v372 = vsel %vm190, %v353, 0.0
  %373 = vadd.xlane.f32.xlu0 %v372
  %v374 = vpop.xlane.xlu0 %373
  %v375 = vsel %vm190, %v355, 0.0
  %376 = vadd.xlane.f32.xlu0 %v375
  %v377 = vpop.xlane.xlu0 %376
  %v378 = vsel %vm190, %v357, 0.0
  %379 = vadd.xlane.f32.xlu0 %v378
  %v380 = vpop.xlane.xlu0 %379
  %v381 = vsel %vm190, %v359, 0.0
  %382 = vadd.xlane.f32.xlu0 %v381
  %v383 = vpop.xlane.xlu0 %382
  %v384 = vlog2.pop %v362
  %v385 = vmul.f32 %v384, 0.6931472
  %v386 = vlog2.pop %v365
  %v387 = vmul.f32 %v386, 0.6931472
  %v388 = vlog2.pop %v368
  %v389 = vmul.f32 %v388, 0.6931472
  %v390 = vlog2.pop %v371
  %v391 = vmul.f32 %v390, 0.6931472
  %v392 = vlog2.pop %v374
  %v393 = vmul.f32 %v392, 0.6931472
  %v394 = vlog2.pop %v377
  %v395 = vmul.f32 %v394, 0.6931472
  %v396 = vlog2.pop %v380
  %v397 = vmul.f32 %v396, 0.6931472
  %v398 = vlog2.pop %v383
  %v399 = vmul.f32 %v398, 0.6931472
  %v400 = vadd.f32 %v385, %v314
  %v401 = vadd.f32 %v387, %v317
  %v402 = vadd.f32 %v389, %v320
  %v403 = vadd.f32 %v391, %v323
  %v404 = vadd.f32 %v393, %v326
  %v405 = vadd.f32 %v395, %v329
  %v406 = vadd.f32 %v397, %v332
  %v407 = vadd.f32 %v399, %v335
  %vm408 = vcmp.gt.f32.partialorder %v213, 0.0
  %v410 = vlaneseq
  %v411 = vshrl.u32 %v410, 7
  %v412 = vsub.s32 0, %v411
  %v413 = vrot.slane %v211, %v412
  %415 = vbcast.lane.b32.xlu0 %v413, 256
  %v416 = vpop.permute.xlu0 %415
  %v417 = vlaneseq
  %v418 = vshrl.u32 %v417, 7
  %v419 = vsub.s32 1, %v418
  %v420 = vrot.slane %v211, %v419
  %422 = vbcast.lane.b32.xlu0 %v420, 256
  %v423 = vpop.permute.xlu0 %422
  %v424 = vlaneseq
  %v425 = vshrl.u32 %v424, 7
  %v426 = vsub.s32 2, %v425
  %v427 = vrot.slane %v211, %v426
  %429 = vbcast.lane.b32.xlu0 %v427, 256
  %v430 = vpop.permute.xlu0 %429
  %v431 = vlaneseq
  %v432 = vshrl.u32 %v431, 7
  %v433 = vsub.s32 3, %v432
  %v434 = vrot.slane %v211, %v433
  %436 = vbcast.lane.b32.xlu0 %v434, 256
  %v437 = vpop.permute.xlu0 %436
  %v438 = vlaneseq
  %v439 = vshrl.u32 %v438, 7
  %v440 = vsub.s32 4, %v439
  %v441 = vrot.slane %v211, %v440
  %443 = vbcast.lane.b32.xlu0 %v441, 256
  %v444 = vpop.permute.xlu0 %443
  %v445 = vlaneseq
  %v446 = vshrl.u32 %v445, 7
  %v447 = vsub.s32 5, %v446
  %v448 = vrot.slane %v211, %v447
  %450 = vbcast.lane.b32.xlu0 %v448, 256
  %v451 = vpop.permute.xlu0 %450
  %v452 = vlaneseq
  %v453 = vshrl.u32 %v452, 7
  %v454 = vsub.s32 6, %v453
  %v455 = vrot.slane %v211, %v454
  %457 = vbcast.lane.b32.xlu0 %v455, 256
  %v458 = vpop.permute.xlu0 %457
  %v459 = vlaneseq
  %v460 = vshrl.u32 %v459, 7
  %v461 = vsub.s32 7, %v460
  %v462 = vrot.slane %v211, %v461
  %464 = vbcast.lane.b32.xlu0 %v462, 256
  %v465 = vpop.permute.xlu0 %464
  %v474 = vadd.f32 %v400, %v416
  %v475 = vadd.f32 %v401, %v423
  %v476 = vadd.f32 %v402, %v430
  %v477 = vadd.f32 %v403, %v437
  %v478 = vadd.f32 %v404, %v444
  %v479 = vadd.f32 %v405, %v451
  %v480 = vadd.f32 %v406, %v458
  %v481 = vadd.f32 %v407, %v465
  %v482 = vsel %vm408, 1, 0
  %483 = vset.pattern.permute.xlu0 0
  %484 = vperm.xlu0 %483, %v482
  %v485 = vpop.permute.xlu0 %484
  %vm486 = vcmp.eq.s32.totalorder %v485, 1
  %495 = vset.pattern.permute.xlu0 0
  %496 = vperm.xlu0 %495, %v474
  %v497 = vpop.permute.xlu0 %496
  %498 = vset.pattern.permute.xlu0 0
  %499 = vperm.xlu0 %498, %v475
  %v500 = vpop.permute.xlu0 %499
  %501 = vset.pattern.permute.xlu0 0
  %502 = vperm.xlu0 %501, %v476
  %v503 = vpop.permute.xlu0 %502
  %504 = vset.pattern.permute.xlu0 0
  %505 = vperm.xlu0 %504, %v477
  %v506 = vpop.permute.xlu0 %505
  %507 = vset.pattern.permute.xlu0 0
  %508 = vperm.xlu0 %507, %v478
  %v509 = vpop.permute.xlu0 %508
  %510 = vset.pattern.permute.xlu0 0
  %511 = vperm.xlu0 %510, %v479
  %v512 = vpop.permute.xlu0 %511
  %513 = vset.pattern.permute.xlu0 0
  %514 = vperm.xlu0 %513, %v480
  %v515 = vpop.permute.xlu0 %514
  %516 = vset.pattern.permute.xlu0 0
  %517 = vperm.xlu0 %516, %v481
  %v518 = vpop.permute.xlu0 %517
  %v519 = vlaneseq
  %v520 = vand.u32 %v519, 127
  %v521 = vlaneseq
  %v522 = vshrl.u32 %v521, 7
  %v523 = vsub.s32 %v520, %v522
  %v524 = vrot.slane %v497, %v523
  %v525 = vlaneseq
  %v526 = vshrl.u32 %v525, 7
  %v527 = vsub.s32 %v520, %v526
  %v528 = vrot.slane %v500, %v527
  %v529 = vlaneseq
  %v530 = vshrl.u32 %v529, 7
  %v531 = vsub.s32 %v520, %v530
  %v532 = vrot.slane %v503, %v531
  %v533 = vlaneseq
  %v534 = vshrl.u32 %v533, 7
  %v535 = vsub.s32 %v520, %v534
  %v536 = vrot.slane %v506, %v535
  %v537 = vlaneseq
  %v538 = vshrl.u32 %v537, 7
  %v539 = vsub.s32 %v520, %v538
  %v540 = vrot.slane %v509, %v539
  %v541 = vlaneseq
  %v542 = vshrl.u32 %v541, 7
  %v543 = vsub.s32 %v520, %v542
  %v544 = vrot.slane %v512, %v543
  %v545 = vlaneseq
  %v546 = vshrl.u32 %v545, 7
  %v547 = vsub.s32 %v520, %v546
  %v548 = vrot.slane %v515, %v547
  %v549 = vlaneseq
  %v550 = vshrl.u32 %v549, 7
  %v551 = vsub.s32 %v520, %v550
  %v552 = vrot.slane %v518, %v551
  %vm553 = vcmask 1041409
  %v554 = vsel %vm553, %v528, %v524
  %vm555 = vcmask 1042434
  %v556 = vsel %vm555, %v532, %v554
  %vm557 = vcmask 1043459
  %v558 = vsel %vm557, %v536, %v556
  %vm559 = vcmask 1044484
  %v560 = vsel %vm559, %v540, %v558
  %vm561 = vcmask 1045509
  %v562 = vsel %vm561, %v544, %v560
  %vm563 = vcmask 1046534
  %v564 = vsel %vm563, %v548, %v562
  %vm565 = vcmask 1047559
  %v566 = vsel %vm565, %v552, %v564
  %v568 = vsel %vm486, %v566, %v208
  %vm569 = vcmp.eq.f32.partialorder %v304, %v314
  %vm570 = vcmp.eq.f32.partialorder %v305, %v317
  %vm571 = vcmp.eq.f32.partialorder %v306, %v320
  %vm572 = vcmp.eq.f32.partialorder %v307, %v323
  %vm573 = vcmp.eq.f32.partialorder %v308, %v326
  %vm574 = vcmp.eq.f32.partialorder %v309, %v329
  %vm575 = vcmp.eq.f32.partialorder %v310, %v332
  %vm576 = vcmp.eq.f32.partialorder %v311, %v335
  %v577 = vsel %vm569, %v520, 8
  %v578 = vsel %vm570, %v520, 8
  %v579 = vsel %vm571, %v520, 8
  %v580 = vsel %vm572, %v520, 8
  %v581 = vsel %vm573, %v520, 8
  %v582 = vsel %vm574, %v520, 8
  %v583 = vsel %vm575, %v520, 8
  %v584 = vsel %vm576, %v520, 8
  %v585 = vsel %vm190, %v577, 2147483647
  %v586 = vand.u32 %v585, 65535
  %v587 = vshra.s32 %v585, 16
  %v588 = vcvt.s32.f32 %v586
  %v589 = vcvt.s32.f32 %v587
  %590 = vmin.xlane.f32.xlu0 %v589
  %v591 = vpop.xlane.xlu0 %590
  %vm592 = vcmp.eq.f32.partialorder %v589, %v591
  %v593 = vsel %vm592, %v588, inf
  %594 = vmin.xlane.f32.xlu0 %v593
  %v595 = vpop.xlane.xlu0 %594
  %v596 = vcvt.f32.s32 %v595
  %v597 = vcvt.f32.s32 %v591
  %v598 = vshll.u32 %v597, 16
  %v599 = vadd.s32 %v598, %v596
  %v600 = vsel %vm190, %v578, 2147483647
  %v601 = vand.u32 %v600, 65535
  %v602 = vshra.s32 %v600, 16
  %v603 = vcvt.s32.f32 %v601
  %v604 = vcvt.s32.f32 %v602
  %605 = vmin.xlane.f32.xlu0 %v604
  %v606 = vpop.xlane.xlu0 %605
  %vm607 = vcmp.eq.f32.partialorder %v604, %v606
  %v608 = vsel %vm607, %v603, inf
  %609 = vmin.xlane.f32.xlu0 %v608
  %v610 = vpop.xlane.xlu0 %609
  %v611 = vcvt.f32.s32 %v610
  %v612 = vcvt.f32.s32 %v606
  %v613 = vshll.u32 %v612, 16
  %v614 = vadd.s32 %v613, %v611
  %v615 = vsel %vm190, %v579, 2147483647
  %v616 = vand.u32 %v615, 65535
  %v617 = vshra.s32 %v615, 16
  %v618 = vcvt.s32.f32 %v616
  %v619 = vcvt.s32.f32 %v617
  %620 = vmin.xlane.f32.xlu0 %v619
  %v621 = vpop.xlane.xlu0 %620
  %vm622 = vcmp.eq.f32.partialorder %v619, %v621
  %v623 = vsel %vm622, %v618, inf
  %624 = vmin.xlane.f32.xlu0 %v623
  %v625 = vpop.xlane.xlu0 %624
  %v626 = vcvt.f32.s32 %v625
  %v627 = vcvt.f32.s32 %v621
  %v628 = vshll.u32 %v627, 16
  %v629 = vadd.s32 %v628, %v626
  %v630 = vsel %vm190, %v580, 2147483647
  %v631 = vand.u32 %v630, 65535
  %v632 = vshra.s32 %v630, 16
  %v633 = vcvt.s32.f32 %v631
  %v634 = vcvt.s32.f32 %v632
  %635 = vmin.xlane.f32.xlu0 %v634
  %v636 = vpop.xlane.xlu0 %635
  %vm637 = vcmp.eq.f32.partialorder %v634, %v636
  %v638 = vsel %vm637, %v633, inf
  %639 = vmin.xlane.f32.xlu0 %v638
  %v640 = vpop.xlane.xlu0 %639
  %v641 = vcvt.f32.s32 %v640
  %v642 = vcvt.f32.s32 %v636
  %v643 = vshll.u32 %v642, 16
  %v644 = vadd.s32 %v643, %v641
  %v645 = vsel %vm190, %v581, 2147483647
  %v646 = vand.u32 %v645, 65535
  %v647 = vshra.s32 %v645, 16
  %v648 = vcvt.s32.f32 %v646
  %v649 = vcvt.s32.f32 %v647
  %650 = vmin.xlane.f32.xlu0 %v649
  %v651 = vpop.xlane.xlu0 %650
  %vm652 = vcmp.eq.f32.partialorder %v649, %v651
  %v653 = vsel %vm652, %v648, inf
  %654 = vmin.xlane.f32.xlu0 %v653
  %v655 = vpop.xlane.xlu0 %654
  %v656 = vcvt.f32.s32 %v655
  %v657 = vcvt.f32.s32 %v651
  %v658 = vshll.u32 %v657, 16
  %v659 = vadd.s32 %v658, %v656
  %v660 = vsel %vm190, %v582, 2147483647
  %v661 = vand.u32 %v660, 65535
  %v662 = vshra.s32 %v660, 16
  %v663 = vcvt.s32.f32 %v661
  %v664 = vcvt.s32.f32 %v662
  %665 = vmin.xlane.f32.xlu0 %v664
  %v666 = vpop.xlane.xlu0 %665
  %vm667 = vcmp.eq.f32.partialorder %v664, %v666
  %v668 = vsel %vm667, %v663, inf
  %669 = vmin.xlane.f32.xlu0 %v668
  %v670 = vpop.xlane.xlu0 %669
  %v671 = vcvt.f32.s32 %v670
  %v672 = vcvt.f32.s32 %v666
  %v673 = vshll.u32 %v672, 16
  %v674 = vadd.s32 %v673, %v671
  %v675 = vsel %vm190, %v583, 2147483647
  %v676 = vand.u32 %v675, 65535
  %v677 = vshra.s32 %v675, 16
  %v678 = vcvt.s32.f32 %v676
  %v679 = vcvt.s32.f32 %v677
  %680 = vmin.xlane.f32.xlu0 %v679
  %v681 = vpop.xlane.xlu0 %680
  %vm682 = vcmp.eq.f32.partialorder %v679, %v681
  %v683 = vsel %vm682, %v678, inf
  %684 = vmin.xlane.f32.xlu0 %v683
  %v685 = vpop.xlane.xlu0 %684
  %v686 = vcvt.f32.s32 %v685
  %v687 = vcvt.f32.s32 %v681
  %v688 = vshll.u32 %v687, 16
  %v689 = vadd.s32 %v688, %v686
  %v690 = vsel %vm190, %v584, 2147483647
  %v691 = vand.u32 %v690, 65535
  %v692 = vshra.s32 %v690, 16
  %v693 = vcvt.s32.f32 %v691
  %v694 = vcvt.s32.f32 %v692
  %695 = vmin.xlane.f32.xlu0 %v694
  %v696 = vpop.xlane.xlu0 %695
  %vm697 = vcmp.eq.f32.partialorder %v694, %v696
  %v698 = vsel %vm697, %v693, inf
  %699 = vmin.xlane.f32.xlu0 %v698
  %v700 = vpop.xlane.xlu0 %699
  %v701 = vcvt.f32.s32 %v700
  %v702 = vcvt.f32.s32 %v696
  %v703 = vshll.u32 %v702, 16
  %v704 = vadd.s32 %v703, %v701
  %v705 = vadd.f32 %v314, %v416
  %v706 = vadd.f32 %v317, %v423
  %v707 = vadd.f32 %v320, %v430
  %v708 = vadd.f32 %v323, %v437
  %v709 = vadd.f32 %v326, %v444
  %v710 = vadd.f32 %v329, %v451
  %v711 = vadd.f32 %v332, %v458
  %v712 = vadd.f32 %v335, %v465
  %721 = vset.pattern.permute.xlu0 0
  %722 = vperm.xlu0 %721, %v705
  %v723 = vpop.permute.xlu0 %722
  %724 = vset.pattern.permute.xlu0 0
  %725 = vperm.xlu0 %724, %v706
  %v726 = vpop.permute.xlu0 %725
  %727 = vset.pattern.permute.xlu0 0
  %728 = vperm.xlu0 %727, %v707
  %v729 = vpop.permute.xlu0 %728
  %730 = vset.pattern.permute.xlu0 0
  %731 = vperm.xlu0 %730, %v708
  %v732 = vpop.permute.xlu0 %731
  %733 = vset.pattern.permute.xlu0 0
  %734 = vperm.xlu0 %733, %v709
  %v735 = vpop.permute.xlu0 %734
  %736 = vset.pattern.permute.xlu0 0
  %737 = vperm.xlu0 %736, %v710
  %v738 = vpop.permute.xlu0 %737
  %739 = vset.pattern.permute.xlu0 0
  %740 = vperm.xlu0 %739, %v711
  %v741 = vpop.permute.xlu0 %740
  %742 = vset.pattern.permute.xlu0 0
  %743 = vperm.xlu0 %742, %v712
  %v744 = vpop.permute.xlu0 %743
  %v745 = vlaneseq
  %v746 = vshrl.u32 %v745, 7
  %v747 = vsub.s32 %v520, %v746
  %v748 = vrot.slane %v723, %v747
  %v749 = vlaneseq
  %v750 = vshrl.u32 %v749, 7
  %v751 = vsub.s32 %v520, %v750
  %v752 = vrot.slane %v726, %v751
  %v753 = vlaneseq
  %v754 = vshrl.u32 %v753, 7
  %v755 = vsub.s32 %v520, %v754
  %v756 = vrot.slane %v729, %v755
  %v757 = vlaneseq
  %v758 = vshrl.u32 %v757, 7
  %v759 = vsub.s32 %v520, %v758
  %v760 = vrot.slane %v732, %v759
  %v761 = vlaneseq
  %v762 = vshrl.u32 %v761, 7
  %v763 = vsub.s32 %v520, %v762
  %v764 = vrot.slane %v735, %v763
  %v765 = vlaneseq
  %v766 = vshrl.u32 %v765, 7
  %v767 = vsub.s32 %v520, %v766
  %v768 = vrot.slane %v738, %v767
  %v769 = vlaneseq
  %v770 = vshrl.u32 %v769, 7
  %v771 = vsub.s32 %v520, %v770
  %v772 = vrot.slane %v741, %v771
  %v773 = vlaneseq
  %v774 = vshrl.u32 %v773, 7
  %v775 = vsub.s32 %v520, %v774
  %v776 = vrot.slane %v744, %v775
  %v777 = vsel %vm553, %v752, %v748
  %v778 = vsel %vm555, %v756, %v777
  %v779 = vsel %vm557, %v760, %v778
  %v780 = vsel %vm559, %v764, %v779
  %v781 = vsel %vm561, %v768, %v780
  %v782 = vsel %vm563, %v772, %v781
  %v783 = vsel %vm565, %v776, %v782
  %v785 = vsel %vm486, %v783, %v208
  %v786 = vlaneseq
  %v787 = vshrl.u32 %v786, 7
  %v788 = vsub.s32 %v520, %v787
  %v789 = vrot.slane %v599, %v788
  %v790 = vlaneseq
  %v791 = vshrl.u32 %v790, 7
  %v792 = vsub.s32 %v520, %v791
  %v793 = vrot.slane %v614, %v792
  %v794 = vlaneseq
  %v795 = vshrl.u32 %v794, 7
  %v796 = vsub.s32 %v520, %v795
  %v797 = vrot.slane %v629, %v796
  %v798 = vlaneseq
  %v799 = vshrl.u32 %v798, 7
  %v800 = vsub.s32 %v520, %v799
  %v801 = vrot.slane %v644, %v800
  %v802 = vlaneseq
  %v803 = vshrl.u32 %v802, 7
  %v804 = vsub.s32 %v520, %v803
  %v805 = vrot.slane %v659, %v804
  %v806 = vlaneseq
  %v807 = vshrl.u32 %v806, 7
  %v808 = vsub.s32 %v520, %v807
  %v809 = vrot.slane %v674, %v808
  %v810 = vlaneseq
  %v811 = vshrl.u32 %v810, 7
  %v812 = vsub.s32 %v520, %v811
  %v813 = vrot.slane %v689, %v812
  %v814 = vlaneseq
  %v815 = vshrl.u32 %v814, 7
  %v816 = vsub.s32 %v520, %v815
  %v817 = vrot.slane %v704, %v816
  %v818 = vsel %vm553, %v793, %v789
  %v819 = vsel %vm555, %v797, %v818
  %v820 = vsel %vm557, %v801, %v819
  %v821 = vsel %vm559, %v805, %v820
  %v822 = vsel %vm561, %v809, %v821
  %v823 = vsel %vm563, %v813, %v822
  %v824 = vsel %vm565, %v817, %v823
  %s825 = scalar_lea.vmem %s10, 8
  %826 = vst.msk [vmem:[%s825] sm:$0xff] %vm190, %v824
  %s827 = scalar_lea.vmem %s7, 16
  %v828 = vld [vmem:[%s827] sm:$0xff]
  %s829 = scalar_lea.vmem %s3, 16
  %v830 = vld [vmem:[%s829] sm:$0xff]
  %v832 = vcombine.high %v568, %v568
  %v834 = vunpack.c.l.s4 1966171168
  %v835 = vunpack.c.0.s8 %v834
  %v836 = vlaneseq
  %v837 = vshrl.u32 %v836, 7
  %v838 = vsub.s32 %v835, %v837
  %v839 = vrot.slane %v568, %v838
  %v841 = vunpack.c.l.s4 1966171168
  %v842 = vunpack.c.0.s8 %v841
  %v843 = vlaneseq
  %v844 = vshrl.u32 %v843, 7
  %v845 = vsub.s32 %v842, %v844
  %v846 = vrot.slane %v832, %v845
  %v847 = vcombine.high %v839, %v839
  %v848 = vcombine.high %v846, %v846
  %v850 = vunpack.c.l.s4 1966171168
  %v851 = vunpack.c.0.s8 %v850
  %v852 = vlaneseq
  %v853 = vshrl.u32 %v852, 7
  %v854 = vsub.s32 %v851, %v853
  %v855 = vrot.slane %v839, %v854
  %v857 = vunpack.c.l.s4 1966171168
  %v858 = vunpack.c.0.s8 %v857
  %v859 = vlaneseq
  %v860 = vshrl.u32 %v859, 7
  %v861 = vsub.s32 %v858, %v860
  %v862 = vrot.slane %v846, %v861
  %v864 = vunpack.c.l.s4 1966171168
  %v865 = vunpack.c.0.s8 %v864
  %v866 = vlaneseq
  %v867 = vshrl.u32 %v866, 7
  %v868 = vsub.s32 %v865, %v867
  %v869 = vrot.slane %v847, %v868
  %v871 = vunpack.c.l.s4 1966171168
  %v872 = vunpack.c.0.s8 %v871
  %v873 = vlaneseq
  %v874 = vshrl.u32 %v873, 7
  %v875 = vsub.s32 %v872, %v874
  %v876 = vrot.slane %v848, %v875
  %v877 = vcombine.high %v855, %v855
  %v878 = vcombine.high %v862, %v862
  %v879 = vcombine.high %v869, %v869
  %v880 = vcombine.high %v876, %v876
  %v881 = vlaneseq
  %v882 = vshrl.u32 %v881, 7
  %v883 = vsub.s32 0, %v882
  %v884 = vrot.slane %v855, %v883
  %v885 = vlaneseq
  %v886 = vshrl.u32 %v885, 7
  %v887 = vsub.s32 0, %v886
  %v888 = vrot.slane %v869, %v887
  %v889 = vlaneseq
  %v890 = vshrl.u32 %v889, 7
  %v891 = vsub.s32 0, %v890
  %v892 = vrot.slane %v877, %v891
  %v893 = vlaneseq
  %v894 = vshrl.u32 %v893, 7
  %v895 = vsub.s32 0, %v894
  %v896 = vrot.slane %v879, %v895
  %v897 = vlaneseq
  %v898 = vshrl.u32 %v897, 7
  %v899 = vsub.s32 0, %v898
  %v900 = vrot.slane %v862, %v899
  %v901 = vlaneseq
  %v902 = vshrl.u32 %v901, 7
  %v903 = vsub.s32 0, %v902
  %v904 = vrot.slane %v876, %v903
  %v905 = vlaneseq
  %v906 = vshrl.u32 %v905, 7
  %v907 = vsub.s32 0, %v906
  %v908 = vrot.slane %v878, %v907
  %v909 = vlaneseq
  %v910 = vshrl.u32 %v909, 7
  %v911 = vsub.s32 0, %v910
  %v912 = vrot.slane %v880, %v911
  %v921 = vadd.f32 %v884, %v199
  %v922 = vadd.f32 %v888, %v199
  %v923 = vadd.f32 %v892, %v199
  %v924 = vadd.f32 %v896, %v199
  %v925 = vadd.f32 %v900, %v199
  %v926 = vadd.f32 %v904, %v199
  %v927 = vadd.f32 %v908, %v199
  %v928 = vadd.f32 %v912, %v199
  %v929 = vsel %vm190, %v921, -inf
  %930 = vmax.xlane.f32.xlu0 %v929
  %v931 = vpop.xlane.xlu0 %930
  %v932 = vsel %vm190, %v922, -inf
  %933 = vmax.xlane.f32.xlu0 %v932
  %v934 = vpop.xlane.xlu0 %933
  %v935 = vsel %vm190, %v923, -inf
  %936 = vmax.xlane.f32.xlu0 %v935
  %v937 = vpop.xlane.xlu0 %936
  %v938 = vsel %vm190, %v924, -inf
  %939 = vmax.xlane.f32.xlu0 %v938
  %v940 = vpop.xlane.xlu0 %939
  %v941 = vsel %vm190, %v925, -inf
  %942 = vmax.xlane.f32.xlu0 %v941
  %v943 = vpop.xlane.xlu0 %942
  %v944 = vsel %vm190, %v926, -inf
  %945 = vmax.xlane.f32.xlu0 %v944
  %v946 = vpop.xlane.xlu0 %945
  %v947 = vsel %vm190, %v927, -inf
  %948 = vmax.xlane.f32.xlu0 %v947
  %v949 = vpop.xlane.xlu0 %948
  %v950 = vsel %vm190, %v928, -inf
  %951 = vmax.xlane.f32.xlu0 %v950
  %v952 = vpop.xlane.xlu0 %951
  %v953 = vsub.f32 %v921, %v931
  %v954 = vsub.f32 %v922, %v934
  %v955 = vsub.f32 %v923, %v937
  %v956 = vsub.f32 %v924, %v940
  %v957 = vsub.f32 %v925, %v943
  %v958 = vsub.f32 %v926, %v946
  %v959 = vsub.f32 %v927, %v949
  %v960 = vsub.f32 %v928, %v952
  %v961 = vmul.f32 %v953, 1.442695
  %v962 = vpow.pop %v961
  %v963 = vmul.f32 %v954, 1.442695
  %v964 = vpow.pop %v963
  %v965 = vmul.f32 %v955, 1.442695
  %v966 = vpow.pop %v965
  %v967 = vmul.f32 %v956, 1.442695
  %v968 = vpow.pop %v967
  %v969 = vmul.f32 %v957, 1.442695
  %v970 = vpow.pop %v969
  %v971 = vmul.f32 %v958, 1.442695
  %v972 = vpow.pop %v971
  %v973 = vmul.f32 %v959, 1.442695
  %v974 = vpow.pop %v973
  %v975 = vmul.f32 %v960, 1.442695
  %v976 = vpow.pop %v975
  %v977 = vsel %vm190, %v962, 0.0
  %978 = vadd.xlane.f32.xlu0 %v977
  %v979 = vpop.xlane.xlu0 %978
  %v980 = vsel %vm190, %v964, 0.0
  %981 = vadd.xlane.f32.xlu0 %v980
  %v982 = vpop.xlane.xlu0 %981
  %v983 = vsel %vm190, %v966, 0.0
  %984 = vadd.xlane.f32.xlu0 %v983
  %v985 = vpop.xlane.xlu0 %984
  %v986 = vsel %vm190, %v968, 0.0
  %987 = vadd.xlane.f32.xlu0 %v986
  %v988 = vpop.xlane.xlu0 %987
  %v989 = vsel %vm190, %v970, 0.0
  %990 = vadd.xlane.f32.xlu0 %v989
  %v991 = vpop.xlane.xlu0 %990
  %v992 = vsel %vm190, %v972, 0.0
  %993 = vadd.xlane.f32.xlu0 %v992
  %v994 = vpop.xlane.xlu0 %993
  %v995 = vsel %vm190, %v974, 0.0
  %996 = vadd.xlane.f32.xlu0 %v995
  %v997 = vpop.xlane.xlu0 %996
  %v998 = vsel %vm190, %v976, 0.0
  %999 = vadd.xlane.f32.xlu0 %v998
  %v1000 = vpop.xlane.xlu0 %999
  %v1001 = vlog2.pop %v979
  %v1002 = vmul.f32 %v1001, 0.6931472
  %v1003 = vlog2.pop %v982
  %v1004 = vmul.f32 %v1003, 0.6931472
  %v1005 = vlog2.pop %v985
  %v1006 = vmul.f32 %v1005, 0.6931472
  %v1007 = vlog2.pop %v988
  %v1008 = vmul.f32 %v1007, 0.6931472
  %v1009 = vlog2.pop %v991
  %v1010 = vmul.f32 %v1009, 0.6931472
  %v1011 = vlog2.pop %v994
  %v1012 = vmul.f32 %v1011, 0.6931472
  %v1013 = vlog2.pop %v997
  %v1014 = vmul.f32 %v1013, 0.6931472
  %v1015 = vlog2.pop %v1000
  %v1016 = vmul.f32 %v1015, 0.6931472
  %v1017 = vadd.f32 %v1002, %v931
  %v1018 = vadd.f32 %v1004, %v934
  %v1019 = vadd.f32 %v1006, %v937
  %v1020 = vadd.f32 %v1008, %v940
  %v1021 = vadd.f32 %v1010, %v943
  %v1022 = vadd.f32 %v1012, %v946
  %v1023 = vadd.f32 %v1014, %v949
  %v1024 = vadd.f32 %v1016, %v952
  %vm1025 = vcmp.gt.f32.partialorder %v830, 0.0
  %v1027 = vlaneseq
  %v1028 = vshrl.u32 %v1027, 7
  %v1029 = vsub.s32 0, %v1028
  %v1030 = vrot.slane %v828, %v1029
  %1032 = vbcast.lane.b32.xlu0 %v1030, 256
  %v1033 = vpop.permute.xlu0 %1032
  %v1034 = vlaneseq
  %v1035 = vshrl.u32 %v1034, 7
  %v1036 = vsub.s32 1, %v1035
  %v1037 = vrot.slane %v828, %v1036
  %1039 = vbcast.lane.b32.xlu0 %v1037, 256
  %v1040 = vpop.permute.xlu0 %1039
  %v1041 = vlaneseq
  %v1042 = vshrl.u32 %v1041, 7
  %v1043 = vsub.s32 2, %v1042
  %v1044 = vrot.slane %v828, %v1043
  %1046 = vbcast.lane.b32.xlu0 %v1044, 256
  %v1047 = vpop.permute.xlu0 %1046
  %v1048 = vlaneseq
  %v1049 = vshrl.u32 %v1048, 7
  %v1050 = vsub.s32 3, %v1049
  %v1051 = vrot.slane %v828, %v1050
  %1053 = vbcast.lane.b32.xlu0 %v1051, 256
  %v1054 = vpop.permute.xlu0 %1053
  %v1055 = vlaneseq
  %v1056 = vshrl.u32 %v1055, 7
  %v1057 = vsub.s32 4, %v1056
  %v1058 = vrot.slane %v828, %v1057
  %1060 = vbcast.lane.b32.xlu0 %v1058, 256
  %v1061 = vpop.permute.xlu0 %1060
  %v1062 = vlaneseq
  %v1063 = vshrl.u32 %v1062, 7
  %v1064 = vsub.s32 5, %v1063
  %v1065 = vrot.slane %v828, %v1064
  %1067 = vbcast.lane.b32.xlu0 %v1065, 256
  %v1068 = vpop.permute.xlu0 %1067
  %v1069 = vlaneseq
  %v1070 = vshrl.u32 %v1069, 7
  %v1071 = vsub.s32 6, %v1070
  %v1072 = vrot.slane %v828, %v1071
  %1074 = vbcast.lane.b32.xlu0 %v1072, 256
  %v1075 = vpop.permute.xlu0 %1074
  %v1076 = vlaneseq
  %v1077 = vshrl.u32 %v1076, 7
  %v1078 = vsub.s32 7, %v1077
  %v1079 = vrot.slane %v828, %v1078
  %1081 = vbcast.lane.b32.xlu0 %v1079, 256
  %v1082 = vpop.permute.xlu0 %1081
  %v1091 = vadd.f32 %v1017, %v1033
  %v1092 = vadd.f32 %v1018, %v1040
  %v1093 = vadd.f32 %v1019, %v1047
  %v1094 = vadd.f32 %v1020, %v1054
  %v1095 = vadd.f32 %v1021, %v1061
  %v1096 = vadd.f32 %v1022, %v1068
  %v1097 = vadd.f32 %v1023, %v1075
  %v1098 = vadd.f32 %v1024, %v1082
  %v1099 = vsel %vm1025, 1, 0
  %1100 = vset.pattern.permute.xlu0 0
  %1101 = vperm.xlu0 %1100, %v1099
  %v1102 = vpop.permute.xlu0 %1101
  %vm1103 = vcmp.eq.s32.totalorder %v1102, 1
  %1112 = vset.pattern.permute.xlu0 0
  %1113 = vperm.xlu0 %1112, %v1091
  %v1114 = vpop.permute.xlu0 %1113
  %1115 = vset.pattern.permute.xlu0 0
  %1116 = vperm.xlu0 %1115, %v1092
  %v1117 = vpop.permute.xlu0 %1116
  %1118 = vset.pattern.permute.xlu0 0
  %1119 = vperm.xlu0 %1118, %v1093
  %v1120 = vpop.permute.xlu0 %1119
  %1121 = vset.pattern.permute.xlu0 0
  %1122 = vperm.xlu0 %1121, %v1094
  %v1123 = vpop.permute.xlu0 %1122
  %1124 = vset.pattern.permute.xlu0 0
  %1125 = vperm.xlu0 %1124, %v1095
  %v1126 = vpop.permute.xlu0 %1125
  %1127 = vset.pattern.permute.xlu0 0
  %1128 = vperm.xlu0 %1127, %v1096
  %v1129 = vpop.permute.xlu0 %1128
  %1130 = vset.pattern.permute.xlu0 0
  %1131 = vperm.xlu0 %1130, %v1097
  %v1132 = vpop.permute.xlu0 %1131
  %1133 = vset.pattern.permute.xlu0 0
  %1134 = vperm.xlu0 %1133, %v1098
  %v1135 = vpop.permute.xlu0 %1134
  %v1136 = vlaneseq
  %v1137 = vshrl.u32 %v1136, 7
  %v1138 = vsub.s32 %v520, %v1137
  %v1139 = vrot.slane %v1114, %v1138
  %v1140 = vlaneseq
  %v1141 = vshrl.u32 %v1140, 7
  %v1142 = vsub.s32 %v520, %v1141
  %v1143 = vrot.slane %v1117, %v1142
  %v1144 = vlaneseq
  %v1145 = vshrl.u32 %v1144, 7
  %v1146 = vsub.s32 %v520, %v1145
  %v1147 = vrot.slane %v1120, %v1146
  %v1148 = vlaneseq
  %v1149 = vshrl.u32 %v1148, 7
  %v1150 = vsub.s32 %v520, %v1149
  %v1151 = vrot.slane %v1123, %v1150
  %v1152 = vlaneseq
  %v1153 = vshrl.u32 %v1152, 7
  %v1154 = vsub.s32 %v520, %v1153
  %v1155 = vrot.slane %v1126, %v1154
  %v1156 = vlaneseq
  %v1157 = vshrl.u32 %v1156, 7
  %v1158 = vsub.s32 %v520, %v1157
  %v1159 = vrot.slane %v1129, %v1158
  %v1160 = vlaneseq
  %v1161 = vshrl.u32 %v1160, 7
  %v1162 = vsub.s32 %v520, %v1161
  %v1163 = vrot.slane %v1132, %v1162
  %v1164 = vlaneseq
  %v1165 = vshrl.u32 %v1164, 7
  %v1166 = vsub.s32 %v520, %v1165
  %v1167 = vrot.slane %v1135, %v1166
  %v1168 = vsel %vm553, %v1143, %v1139
  %v1169 = vsel %vm555, %v1147, %v1168
  %v1170 = vsel %vm557, %v1151, %v1169
  %v1171 = vsel %vm559, %v1155, %v1170
  %v1172 = vsel %vm561, %v1159, %v1171
  %v1173 = vsel %vm563, %v1163, %v1172
  %v1174 = vsel %vm565, %v1167, %v1173
  %v1176 = vsel %vm1103, %v1174, %v568
  %v1178 = vcombine.high %v785, %v785
  %v1180 = vunpack.c.l.s4 1966171168
  %v1181 = vunpack.c.0.s8 %v1180
  %v1182 = vlaneseq
  %v1183 = vshrl.u32 %v1182, 7
  %v1184 = vsub.s32 %v1181, %v1183
  %v1185 = vrot.slane %v785, %v1184
  %v1187 = vunpack.c.l.s4 1966171168
  %v1188 = vunpack.c.0.s8 %v1187
  %v1189 = vlaneseq
  %v1190 = vshrl.u32 %v1189, 7
  %v1191 = vsub.s32 %v1188, %v1190
  %v1192 = vrot.slane %v1178, %v1191
  %v1193 = vcombine.high %v1185, %v1185
  %v1194 = vcombine.high %v1192, %v1192
  %v1196 = vunpack.c.l.s4 1966171168
  %v1197 = vunpack.c.0.s8 %v1196
  %v1198 = vlaneseq
  %v1199 = vshrl.u32 %v1198, 7
  %v1200 = vsub.s32 %v1197, %v1199
  %v1201 = vrot.slane %v1185, %v1200
  %v1203 = vunpack.c.l.s4 1966171168
  %v1204 = vunpack.c.0.s8 %v1203
  %v1205 = vlaneseq
  %v1206 = vshrl.u32 %v1205, 7
  %v1207 = vsub.s32 %v1204, %v1206
  %v1208 = vrot.slane %v1192, %v1207
  %v1210 = vunpack.c.l.s4 1966171168
  %v1211 = vunpack.c.0.s8 %v1210
  %v1212 = vlaneseq
  %v1213 = vshrl.u32 %v1212, 7
  %v1214 = vsub.s32 %v1211, %v1213
  %v1215 = vrot.slane %v1193, %v1214
  %v1217 = vunpack.c.l.s4 1966171168
  %v1218 = vunpack.c.0.s8 %v1217
  %v1219 = vlaneseq
  %v1220 = vshrl.u32 %v1219, 7
  %v1221 = vsub.s32 %v1218, %v1220
  %v1222 = vrot.slane %v1194, %v1221
  %v1223 = vcombine.high %v1201, %v1201
  %v1224 = vcombine.high %v1208, %v1208
  %v1225 = vcombine.high %v1215, %v1215
  %v1226 = vcombine.high %v1222, %v1222
  %v1227 = vlaneseq
  %v1228 = vshrl.u32 %v1227, 7
  %v1229 = vsub.s32 0, %v1228
  %v1230 = vrot.slane %v1201, %v1229
  %v1231 = vlaneseq
  %v1232 = vshrl.u32 %v1231, 7
  %v1233 = vsub.s32 0, %v1232
  %v1234 = vrot.slane %v1215, %v1233
  %v1235 = vlaneseq
  %v1236 = vshrl.u32 %v1235, 7
  %v1237 = vsub.s32 0, %v1236
  %v1238 = vrot.slane %v1223, %v1237
  %v1239 = vlaneseq
  %v1240 = vshrl.u32 %v1239, 7
  %v1241 = vsub.s32 0, %v1240
  %v1242 = vrot.slane %v1225, %v1241
  %v1243 = vlaneseq
  %v1244 = vshrl.u32 %v1243, 7
  %v1245 = vsub.s32 0, %v1244
  %v1246 = vrot.slane %v1208, %v1245
  %v1247 = vlaneseq
  %v1248 = vshrl.u32 %v1247, 7
  %v1249 = vsub.s32 0, %v1248
  %v1250 = vrot.slane %v1222, %v1249
  %v1251 = vlaneseq
  %v1252 = vshrl.u32 %v1251, 7
  %v1253 = vsub.s32 0, %v1252
  %v1254 = vrot.slane %v1224, %v1253
  %v1255 = vlaneseq
  %v1256 = vshrl.u32 %v1255, 7
  %v1257 = vsub.s32 0, %v1256
  %v1258 = vrot.slane %v1226, %v1257
  %v1267 = vadd.f32 %v1230, %v199
  %v1268 = vadd.f32 %v1234, %v199
  %v1269 = vadd.f32 %v1238, %v199
  %v1270 = vadd.f32 %v1242, %v199
  %v1271 = vadd.f32 %v1246, %v199
  %v1272 = vadd.f32 %v1250, %v199
  %v1273 = vadd.f32 %v1254, %v199
  %v1274 = vadd.f32 %v1258, %v199
  %v1275 = vsel %vm190, %v1267, -inf
  %1276 = vmax.xlane.f32.xlu0 %v1275
  %v1277 = vpop.xlane.xlu0 %1276
  %v1278 = vsel %vm190, %v1268, -inf
  %1279 = vmax.xlane.f32.xlu0 %v1278
  %v1280 = vpop.xlane.xlu0 %1279
  %v1281 = vsel %vm190, %v1269, -inf
  %1282 = vmax.xlane.f32.xlu0 %v1281
  %v1283 = vpop.xlane.xlu0 %1282
  %v1284 = vsel %vm190, %v1270, -inf
  %1285 = vmax.xlane.f32.xlu0 %v1284
  %v1286 = vpop.xlane.xlu0 %1285
  %v1287 = vsel %vm190, %v1271, -inf
  %1288 = vmax.xlane.f32.xlu0 %v1287
  %v1289 = vpop.xlane.xlu0 %1288
  %v1290 = vsel %vm190, %v1272, -inf
  %1291 = vmax.xlane.f32.xlu0 %v1290
  %v1292 = vpop.xlane.xlu0 %1291
  %v1293 = vsel %vm190, %v1273, -inf
  %1294 = vmax.xlane.f32.xlu0 %v1293
  %v1295 = vpop.xlane.xlu0 %1294
  %v1296 = vsel %vm190, %v1274, -inf
  %1297 = vmax.xlane.f32.xlu0 %v1296
  %v1298 = vpop.xlane.xlu0 %1297
  %vm1299 = vcmp.eq.f32.partialorder %v1267, %v1277
  %vm1300 = vcmp.eq.f32.partialorder %v1268, %v1280
  %vm1301 = vcmp.eq.f32.partialorder %v1269, %v1283
  %vm1302 = vcmp.eq.f32.partialorder %v1270, %v1286
  %vm1303 = vcmp.eq.f32.partialorder %v1271, %v1289
  %vm1304 = vcmp.eq.f32.partialorder %v1272, %v1292
  %vm1305 = vcmp.eq.f32.partialorder %v1273, %v1295
  %vm1306 = vcmp.eq.f32.partialorder %v1274, %v1298
  %v1307 = vsel %vm1299, %v520, 8
  %v1308 = vsel %vm1300, %v520, 8
  %v1309 = vsel %vm1301, %v520, 8
  %v1310 = vsel %vm1302, %v520, 8
  %v1311 = vsel %vm1303, %v520, 8
  %v1312 = vsel %vm1304, %v520, 8
  %v1313 = vsel %vm1305, %v520, 8
  %v1314 = vsel %vm1306, %v520, 8
  %v1315 = vsel %vm190, %v1307, 2147483647
  %v1316 = vand.u32 %v1315, 65535
  %v1317 = vshra.s32 %v1315, 16
  %v1318 = vcvt.s32.f32 %v1316
  %v1319 = vcvt.s32.f32 %v1317
  %1320 = vmin.xlane.f32.xlu0 %v1319
  %v1321 = vpop.xlane.xlu0 %1320
  %vm1322 = vcmp.eq.f32.partialorder %v1319, %v1321
  %v1323 = vsel %vm1322, %v1318, inf
  %1324 = vmin.xlane.f32.xlu0 %v1323
  %v1325 = vpop.xlane.xlu0 %1324
  %v1326 = vcvt.f32.s32 %v1325
  %v1327 = vcvt.f32.s32 %v1321
  %v1328 = vshll.u32 %v1327, 16
  %v1329 = vadd.s32 %v1328, %v1326
  %v1330 = vsel %vm190, %v1308, 2147483647
  %v1331 = vand.u32 %v1330, 65535
  %v1332 = vshra.s32 %v1330, 16
  %v1333 = vcvt.s32.f32 %v1331
  %v1334 = vcvt.s32.f32 %v1332
  %1335 = vmin.xlane.f32.xlu0 %v1334
  %v1336 = vpop.xlane.xlu0 %1335
  %vm1337 = vcmp.eq.f32.partialorder %v1334, %v1336
  %v1338 = vsel %vm1337, %v1333, inf
  %1339 = vmin.xlane.f32.xlu0 %v1338
  %v1340 = vpop.xlane.xlu0 %1339
  %v1341 = vcvt.f32.s32 %v1340
  %v1342 = vcvt.f32.s32 %v1336
  %v1343 = vshll.u32 %v1342, 16
  %v1344 = vadd.s32 %v1343, %v1341
  %v1345 = vsel %vm190, %v1309, 2147483647
  %v1346 = vand.u32 %v1345, 65535
  %v1347 = vshra.s32 %v1345, 16
  %v1348 = vcvt.s32.f32 %v1346
  %v1349 = vcvt.s32.f32 %v1347
  %1350 = vmin.xlane.f32.xlu0 %v1349
  %v1351 = vpop.xlane.xlu0 %1350
  %vm1352 = vcmp.eq.f32.partialorder %v1349, %v1351
  %v1353 = vsel %vm1352, %v1348, inf
  %1354 = vmin.xlane.f32.xlu0 %v1353
  %v1355 = vpop.xlane.xlu0 %1354
  %v1356 = vcvt.f32.s32 %v1355
  %v1357 = vcvt.f32.s32 %v1351
  %v1358 = vshll.u32 %v1357, 16
  %v1359 = vadd.s32 %v1358, %v1356
  %v1360 = vsel %vm190, %v1310, 2147483647
  %v1361 = vand.u32 %v1360, 65535
  %v1362 = vshra.s32 %v1360, 16
  %v1363 = vcvt.s32.f32 %v1361
  %v1364 = vcvt.s32.f32 %v1362
  %1365 = vmin.xlane.f32.xlu0 %v1364
  %v1366 = vpop.xlane.xlu0 %1365
  %vm1367 = vcmp.eq.f32.partialorder %v1364, %v1366
  %v1368 = vsel %vm1367, %v1363, inf
  %1369 = vmin.xlane.f32.xlu0 %v1368
  %v1370 = vpop.xlane.xlu0 %1369
  %v1371 = vcvt.f32.s32 %v1370
  %v1372 = vcvt.f32.s32 %v1366
  %v1373 = vshll.u32 %v1372, 16
  %v1374 = vadd.s32 %v1373, %v1371
  %v1375 = vsel %vm190, %v1311, 2147483647
  %v1376 = vand.u32 %v1375, 65535
  %v1377 = vshra.s32 %v1375, 16
  %v1378 = vcvt.s32.f32 %v1376
  %v1379 = vcvt.s32.f32 %v1377
  %1380 = vmin.xlane.f32.xlu0 %v1379
  %v1381 = vpop.xlane.xlu0 %1380
  %vm1382 = vcmp.eq.f32.partialorder %v1379, %v1381
  %v1383 = vsel %vm1382, %v1378, inf
  %1384 = vmin.xlane.f32.xlu0 %v1383
  %v1385 = vpop.xlane.xlu0 %1384
  %v1386 = vcvt.f32.s32 %v1385
  %v1387 = vcvt.f32.s32 %v1381
  %v1388 = vshll.u32 %v1387, 16
  %v1389 = vadd.s32 %v1388, %v1386
  %v1390 = vsel %vm190, %v1312, 2147483647
  %v1391 = vand.u32 %v1390, 65535
  %v1392 = vshra.s32 %v1390, 16
  %v1393 = vcvt.s32.f32 %v1391
  %v1394 = vcvt.s32.f32 %v1392
  %1395 = vmin.xlane.f32.xlu0 %v1394
  %v1396 = vpop.xlane.xlu0 %1395
  %vm1397 = vcmp.eq.f32.partialorder %v1394, %v1396
  %v1398 = vsel %vm1397, %v1393, inf
  %1399 = vmin.xlane.f32.xlu0 %v1398
  %v1400 = vpop.xlane.xlu0 %1399
  %v1401 = vcvt.f32.s32 %v1400
  %v1402 = vcvt.f32.s32 %v1396
  %v1403 = vshll.u32 %v1402, 16
  %v1404 = vadd.s32 %v1403, %v1401
  %v1405 = vsel %vm190, %v1313, 2147483647
  %v1406 = vand.u32 %v1405, 65535
  %v1407 = vshra.s32 %v1405, 16
  %v1408 = vcvt.s32.f32 %v1406
  %v1409 = vcvt.s32.f32 %v1407
  %1410 = vmin.xlane.f32.xlu0 %v1409
  %v1411 = vpop.xlane.xlu0 %1410
  %vm1412 = vcmp.eq.f32.partialorder %v1409, %v1411
  %v1413 = vsel %vm1412, %v1408, inf
  %1414 = vmin.xlane.f32.xlu0 %v1413
  %v1415 = vpop.xlane.xlu0 %1414
  %v1416 = vcvt.f32.s32 %v1415
  %v1417 = vcvt.f32.s32 %v1411
  %v1418 = vshll.u32 %v1417, 16
  %v1419 = vadd.s32 %v1418, %v1416
  %v1420 = vsel %vm190, %v1314, 2147483647
  %v1421 = vand.u32 %v1420, 65535
  %v1422 = vshra.s32 %v1420, 16
  %v1423 = vcvt.s32.f32 %v1421
  %v1424 = vcvt.s32.f32 %v1422
  %1425 = vmin.xlane.f32.xlu0 %v1424
  %v1426 = vpop.xlane.xlu0 %1425
  %vm1427 = vcmp.eq.f32.partialorder %v1424, %v1426
  %v1428 = vsel %vm1427, %v1423, inf
  %1429 = vmin.xlane.f32.xlu0 %v1428
  %v1430 = vpop.xlane.xlu0 %1429
  %v1431 = vcvt.f32.s32 %v1430
  %v1432 = vcvt.f32.s32 %v1426
  %v1433 = vshll.u32 %v1432, 16
  %v1434 = vadd.s32 %v1433, %v1431
  %v1435 = vadd.f32 %v1277, %v1033
  %v1436 = vadd.f32 %v1280, %v1040
  %v1437 = vadd.f32 %v1283, %v1047
  %v1438 = vadd.f32 %v1286, %v1054
  %v1439 = vadd.f32 %v1289, %v1061
  %v1440 = vadd.f32 %v1292, %v1068
  %v1441 = vadd.f32 %v1295, %v1075
  %v1442 = vadd.f32 %v1298, %v1082
  %1451 = vset.pattern.permute.xlu0 0
  %1452 = vperm.xlu0 %1451, %v1435
  %v1453 = vpop.permute.xlu0 %1452
  %1454 = vset.pattern.permute.xlu0 0
  %1455 = vperm.xlu0 %1454, %v1436
  %v1456 = vpop.permute.xlu0 %1455
  %1457 = vset.pattern.permute.xlu0 0
  %1458 = vperm.xlu0 %1457, %v1437
  %v1459 = vpop.permute.xlu0 %1458
  %1460 = vset.pattern.permute.xlu0 0
  %1461 = vperm.xlu0 %1460, %v1438
  %v1462 = vpop.permute.xlu0 %1461
  %1463 = vset.pattern.permute.xlu0 0
  %1464 = vperm.xlu0 %1463, %v1439
  %v1465 = vpop.permute.xlu0 %1464
  %1466 = vset.pattern.permute.xlu0 0
  %1467 = vperm.xlu0 %1466, %v1440
  %v1468 = vpop.permute.xlu0 %1467
  %1469 = vset.pattern.permute.xlu0 0
  %1470 = vperm.xlu0 %1469, %v1441
  %v1471 = vpop.permute.xlu0 %1470
  %1472 = vset.pattern.permute.xlu0 0
  %1473 = vperm.xlu0 %1472, %v1442
  %v1474 = vpop.permute.xlu0 %1473
  %v1475 = vlaneseq
  %v1476 = vshrl.u32 %v1475, 7
  %v1477 = vsub.s32 %v520, %v1476
  %v1478 = vrot.slane %v1453, %v1477
  %v1479 = vlaneseq
  %v1480 = vshrl.u32 %v1479, 7
  %v1481 = vsub.s32 %v520, %v1480
  %v1482 = vrot.slane %v1456, %v1481
  %v1483 = vlaneseq
  %v1484 = vshrl.u32 %v1483, 7
  %v1485 = vsub.s32 %v520, %v1484
  %v1486 = vrot.slane %v1459, %v1485
  %v1487 = vlaneseq
  %v1488 = vshrl.u32 %v1487, 7
  %v1489 = vsub.s32 %v520, %v1488
  %v1490 = vrot.slane %v1462, %v1489
  %v1491 = vlaneseq
  %v1492 = vshrl.u32 %v1491, 7
  %v1493 = vsub.s32 %v520, %v1492
  %v1494 = vrot.slane %v1465, %v1493
  %v1495 = vlaneseq
  %v1496 = vshrl.u32 %v1495, 7
  %v1497 = vsub.s32 %v520, %v1496
  %v1498 = vrot.slane %v1468, %v1497
  %v1499 = vlaneseq
  %v1500 = vshrl.u32 %v1499, 7
  %v1501 = vsub.s32 %v520, %v1500
  %v1502 = vrot.slane %v1471, %v1501
  %v1503 = vlaneseq
  %v1504 = vshrl.u32 %v1503, 7
  %v1505 = vsub.s32 %v520, %v1504
  %v1506 = vrot.slane %v1474, %v1505
  %v1507 = vsel %vm553, %v1482, %v1478
  %v1508 = vsel %vm555, %v1486, %v1507
  %v1509 = vsel %vm557, %v1490, %v1508
  %v1510 = vsel %vm559, %v1494, %v1509
  %v1511 = vsel %vm561, %v1498, %v1510
  %v1512 = vsel %vm563, %v1502, %v1511
  %v1513 = vsel %vm565, %v1506, %v1512
  %v1515 = vsel %vm1103, %v1513, %v785
  %v1516 = vlaneseq
  %v1517 = vshrl.u32 %v1516, 7
  %v1518 = vsub.s32 %v520, %v1517
  %v1519 = vrot.slane %v1329, %v1518
  %v1520 = vlaneseq
  %v1521 = vshrl.u32 %v1520, 7
  %v1522 = vsub.s32 %v520, %v1521
  %v1523 = vrot.slane %v1344, %v1522
  %v1524 = vlaneseq
  %v1525 = vshrl.u32 %v1524, 7
  %v1526 = vsub.s32 %v520, %v1525
  %v1527 = vrot.slane %v1359, %v1526
  %v1528 = vlaneseq
  %v1529 = vshrl.u32 %v1528, 7
  %v1530 = vsub.s32 %v520, %v1529
  %v1531 = vrot.slane %v1374, %v1530
  %v1532 = vlaneseq
  %v1533 = vshrl.u32 %v1532, 7
  %v1534 = vsub.s32 %v520, %v1533
  %v1535 = vrot.slane %v1389, %v1534
  %v1536 = vlaneseq
  %v1537 = vshrl.u32 %v1536, 7
  %v1538 = vsub.s32 %v520, %v1537
  %v1539 = vrot.slane %v1404, %v1538
  %v1540 = vlaneseq
  %v1541 = vshrl.u32 %v1540, 7
  %v1542 = vsub.s32 %v520, %v1541
  %v1543 = vrot.slane %v1419, %v1542
  %v1544 = vlaneseq
  %v1545 = vshrl.u32 %v1544, 7
  %v1546 = vsub.s32 %v520, %v1545
  %v1547 = vrot.slane %v1434, %v1546
  %v1548 = vsel %vm553, %v1523, %v1519
  %v1549 = vsel %vm555, %v1527, %v1548
  %v1550 = vsel %vm557, %v1531, %v1549
  %v1551 = vsel %vm559, %v1535, %v1550
  %v1552 = vsel %vm561, %v1539, %v1551
  %v1553 = vsel %vm563, %v1543, %v1552
  %v1554 = vsel %vm565, %v1547, %v1553
  %s1555 = scalar_lea.vmem %s10, 16
  %1556 = vst.msk [vmem:[%s1555] sm:$0xff] %vm190, %v1554
  %s1557 = scalar_lea.vmem %s7, 24
  %v1558 = vld [vmem:[%s1557] sm:$0xff]
  %s1559 = scalar_lea.vmem %s3, 24
  %v1560 = vld [vmem:[%s1559] sm:$0xff]
  %v1562 = vcombine.high %v1176, %v1176
  %v1564 = vunpack.c.l.s4 1966171168
  %v1565 = vunpack.c.0.s8 %v1564
  %v1566 = vlaneseq
  %v1567 = vshrl.u32 %v1566, 7
  %v1568 = vsub.s32 %v1565, %v1567
  %v1569 = vrot.slane %v1176, %v1568
  %v1571 = vunpack.c.l.s4 1966171168
  %v1572 = vunpack.c.0.s8 %v1571
  %v1573 = vlaneseq
  %v1574 = vshrl.u32 %v1573, 7
  %v1575 = vsub.s32 %v1572, %v1574
  %v1576 = vrot.slane %v1562, %v1575
  %v1577 = vcombine.high %v1569, %v1569
  %v1578 = vcombine.high %v1576, %v1576
  %v1580 = vunpack.c.l.s4 1966171168
  %v1581 = vunpack.c.0.s8 %v1580
  %v1582 = vlaneseq
  %v1583 = vshrl.u32 %v1582, 7
  %v1584 = vsub.s32 %v1581, %v1583
  %v1585 = vrot.slane %v1569, %v1584
  %v1587 = vunpack.c.l.s4 1966171168
  %v1588 = vunpack.c.0.s8 %v1587
  %v1589 = vlaneseq
  %v1590 = vshrl.u32 %v1589, 7
  %v1591 = vsub.s32 %v1588, %v1590
  %v1592 = vrot.slane %v1576, %v1591
  %v1594 = vunpack.c.l.s4 1966171168
  %v1595 = vunpack.c.0.s8 %v1594
  %v1596 = vlaneseq
  %v1597 = vshrl.u32 %v1596, 7
  %v1598 = vsub.s32 %v1595, %v1597
  %v1599 = vrot.slane %v1577, %v1598
  %v1601 = vunpack.c.l.s4 1966171168
  %v1602 = vunpack.c.0.s8 %v1601
  %v1603 = vlaneseq
  %v1604 = vshrl.u32 %v1603, 7
  %v1605 = vsub.s32 %v1602, %v1604
  %v1606 = vrot.slane %v1578, %v1605
  %v1607 = vcombine.high %v1585, %v1585
  %v1608 = vcombine.high %v1592, %v1592
  %v1609 = vcombine.high %v1599, %v1599
  %v1610 = vcombine.high %v1606, %v1606
  %v1611 = vlaneseq
  %v1612 = vshrl.u32 %v1611, 7
  %v1613 = vsub.s32 0, %v1612
  %v1614 = vrot.slane %v1585, %v1613
  %v1615 = vlaneseq
  %v1616 = vshrl.u32 %v1615, 7
  %v1617 = vsub.s32 0, %v1616
  %v1618 = vrot.slane %v1599, %v1617
  %v1619 = vlaneseq
  %v1620 = vshrl.u32 %v1619, 7
  %v1621 = vsub.s32 0, %v1620
  %v1622 = vrot.slane %v1607, %v1621
  %v1623 = vlaneseq
  %v1624 = vshrl.u32 %v1623, 7
  %v1625 = vsub.s32 0, %v1624
  %v1626 = vrot.slane %v1609, %v1625
  %v1627 = vlaneseq
  %v1628 = vshrl.u32 %v1627, 7
  %v1629 = vsub.s32 0, %v1628
  %v1630 = vrot.slane %v1592, %v1629
  %v1631 = vlaneseq
  %v1632 = vshrl.u32 %v1631, 7
  %v1633 = vsub.s32 0, %v1632
  %v1634 = vrot.slane %v1606, %v1633
  %v1635 = vlaneseq
  %v1636 = vshrl.u32 %v1635, 7
  %v1637 = vsub.s32 0, %v1636
  %v1638 = vrot.slane %v1608, %v1637
  %v1639 = vlaneseq
  %v1640 = vshrl.u32 %v1639, 7
  %v1641 = vsub.s32 0, %v1640
  %v1642 = vrot.slane %v1610, %v1641
  %v1651 = vadd.f32 %v1614, %v199
  %v1652 = vadd.f32 %v1618, %v199
  %v1653 = vadd.f32 %v1622, %v199
  %v1654 = vadd.f32 %v1626, %v199
  %v1655 = vadd.f32 %v1630, %v199
  %v1656 = vadd.f32 %v1634, %v199
  %v1657 = vadd.f32 %v1638, %v199
  %v1658 = vadd.f32 %v1642, %v199
  %v1659 = vsel %vm190, %v1651, -inf
  %1660 = vmax.xlane.f32.xlu0 %v1659
  %v1661 = vpop.xlane.xlu0 %1660
  %v1662 = vsel %vm190, %v1652, -inf
  %1663 = vmax.xlane.f32.xlu0 %v1662
  %v1664 = vpop.xlane.xlu0 %1663
  %v1665 = vsel %vm190, %v1653, -inf
  %1666 = vmax.xlane.f32.xlu0 %v1665
  %v1667 = vpop.xlane.xlu0 %1666
  %v1668 = vsel %vm190, %v1654, -inf
  %1669 = vmax.xlane.f32.xlu0 %v1668
  %v1670 = vpop.xlane.xlu0 %1669
  %v1671 = vsel %vm190, %v1655, -inf
  %1672 = vmax.xlane.f32.xlu0 %v1671
  %v1673 = vpop.xlane.xlu0 %1672
  %v1674 = vsel %vm190, %v1656, -inf
  %1675 = vmax.xlane.f32.xlu0 %v1674
  %v1676 = vpop.xlane.xlu0 %1675
  %v1677 = vsel %vm190, %v1657, -inf
  %1678 = vmax.xlane.f32.xlu0 %v1677
  %v1679 = vpop.xlane.xlu0 %1678
  %v1680 = vsel %vm190, %v1658, -inf
  %1681 = vmax.xlane.f32.xlu0 %v1680
  %v1682 = vpop.xlane.xlu0 %1681
  %v1683 = vsub.f32 %v1651, %v1661
  %v1684 = vsub.f32 %v1652, %v1664
  %v1685 = vsub.f32 %v1653, %v1667
  %v1686 = vsub.f32 %v1654, %v1670
  %v1687 = vsub.f32 %v1655, %v1673
  %v1688 = vsub.f32 %v1656, %v1676
  %v1689 = vsub.f32 %v1657, %v1679
  %v1690 = vsub.f32 %v1658, %v1682
  %v1691 = vmul.f32 %v1683, 1.442695
  %v1692 = vpow.pop %v1691
  %v1693 = vmul.f32 %v1684, 1.442695
  %v1694 = vpow.pop %v1693
  %v1695 = vmul.f32 %v1685, 1.442695
  %v1696 = vpow.pop %v1695
  %v1697 = vmul.f32 %v1686, 1.442695
  %v1698 = vpow.pop %v1697
  %v1699 = vmul.f32 %v1687, 1.442695
  %v1700 = vpow.pop %v1699
  %v1701 = vmul.f32 %v1688, 1.442695
  %v1702 = vpow.pop %v1701
  %v1703 = vmul.f32 %v1689, 1.442695
  %v1704 = vpow.pop %v1703
  %v1705 = vmul.f32 %v1690, 1.442695
  %v1706 = vpow.pop %v1705
  %v1707 = vsel %vm190, %v1692, 0.0
  %1708 = vadd.xlane.f32.xlu0 %v1707
  %v1709 = vpop.xlane.xlu0 %1708
  %v1710 = vsel %vm190, %v1694, 0.0
  %1711 = vadd.xlane.f32.xlu0 %v1710
  %v1712 = vpop.xlane.xlu0 %1711
  %v1713 = vsel %vm190, %v1696, 0.0
  %1714 = vadd.xlane.f32.xlu0 %v1713
  %v1715 = vpop.xlane.xlu0 %1714
  %v1716 = vsel %vm190, %v1698, 0.0
  %1717 = vadd.xlane.f32.xlu0 %v1716
  %v1718 = vpop.xlane.xlu0 %1717
  %v1719 = vsel %vm190, %v1700, 0.0
  %1720 = vadd.xlane.f32.xlu0 %v1719
  %v1721 = vpop.xlane.xlu0 %1720
  %v1722 = vsel %vm190, %v1702, 0.0
  %1723 = vadd.xlane.f32.xlu0 %v1722
  %v1724 = vpop.xlane.xlu0 %1723
  %v1725 = vsel %vm190, %v1704, 0.0
  %1726 = vadd.xlane.f32.xlu0 %v1725
  %v1727 = vpop.xlane.xlu0 %1726
  %v1728 = vsel %vm190, %v1706, 0.0
  %1729 = vadd.xlane.f32.xlu0 %v1728
  %v1730 = vpop.xlane.xlu0 %1729
  %v1731 = vlog2.pop %v1709
  %v1732 = vmul.f32 %v1731, 0.6931472
  %v1733 = vlog2.pop %v1712
  %v1734 = vmul.f32 %v1733, 0.6931472
  %v1735 = vlog2.pop %v1715
  %v1736 = vmul.f32 %v1735, 0.6931472
  %v1737 = vlog2.pop %v1718
  %v1738 = vmul.f32 %v1737, 0.6931472
  %v1739 = vlog2.pop %v1721
  %v1740 = vmul.f32 %v1739, 0.6931472
  %v1741 = vlog2.pop %v1724
  %v1742 = vmul.f32 %v1741, 0.6931472
  %v1743 = vlog2.pop %v1727
  %v1744 = vmul.f32 %v1743, 0.6931472
  %v1745 = vlog2.pop %v1730
  %v1746 = vmul.f32 %v1745, 0.6931472
  %v1747 = vadd.f32 %v1732, %v1661
  %v1748 = vadd.f32 %v1734, %v1664
  %v1749 = vadd.f32 %v1736, %v1667
  %v1750 = vadd.f32 %v1738, %v1670
  %v1751 = vadd.f32 %v1740, %v1673
  %v1752 = vadd.f32 %v1742, %v1676
  %v1753 = vadd.f32 %v1744, %v1679
  %v1754 = vadd.f32 %v1746, %v1682
  %vm1755 = vcmp.gt.f32.partialorder %v1560, 0.0
  %v1757 = vlaneseq
  %v1758 = vshrl.u32 %v1757, 7
  %v1759 = vsub.s32 0, %v1758
  %v1760 = vrot.slane %v1558, %v1759
  %1762 = vbcast.lane.b32.xlu0 %v1760, 256
  %v1763 = vpop.permute.xlu0 %1762
  %v1764 = vlaneseq
  %v1765 = vshrl.u32 %v1764, 7
  %v1766 = vsub.s32 1, %v1765
  %v1767 = vrot.slane %v1558, %v1766
  %1769 = vbcast.lane.b32.xlu0 %v1767, 256
  %v1770 = vpop.permute.xlu0 %1769
  %v1771 = vlaneseq
  %v1772 = vshrl.u32 %v1771, 7
  %v1773 = vsub.s32 2, %v1772
  %v1774 = vrot.slane %v1558, %v1773
  %1776 = vbcast.lane.b32.xlu0 %v1774, 256
  %v1777 = vpop.permute.xlu0 %1776
  %v1778 = vlaneseq
  %v1779 = vshrl.u32 %v1778, 7
  %v1780 = vsub.s32 3, %v1779
  %v1781 = vrot.slane %v1558, %v1780
  %1783 = vbcast.lane.b32.xlu0 %v1781, 256
  %v1784 = vpop.permute.xlu0 %1783
  %v1785 = vlaneseq
  %v1786 = vshrl.u32 %v1785, 7
  %v1787 = vsub.s32 4, %v1786
  %v1788 = vrot.slane %v1558, %v1787
  %1790 = vbcast.lane.b32.xlu0 %v1788, 256
  %v1791 = vpop.permute.xlu0 %1790
  %v1792 = vlaneseq
  %v1793 = vshrl.u32 %v1792, 7
  %v1794 = vsub.s32 5, %v1793
  %v1795 = vrot.slane %v1558, %v1794
  %1797 = vbcast.lane.b32.xlu0 %v1795, 256
  %v1798 = vpop.permute.xlu0 %1797
  %v1799 = vlaneseq
  %v1800 = vshrl.u32 %v1799, 7
  %v1801 = vsub.s32 6, %v1800
  %v1802 = vrot.slane %v1558, %v1801
  %1804 = vbcast.lane.b32.xlu0 %v1802, 256
  %v1805 = vpop.permute.xlu0 %1804
  %v1806 = vlaneseq
  %v1807 = vshrl.u32 %v1806, 7
  %v1808 = vsub.s32 7, %v1807
  %v1809 = vrot.slane %v1558, %v1808
  %1811 = vbcast.lane.b32.xlu0 %v1809, 256
  %v1812 = vpop.permute.xlu0 %1811
  %v1821 = vadd.f32 %v1747, %v1763
  %v1822 = vadd.f32 %v1748, %v1770
  %v1823 = vadd.f32 %v1749, %v1777
  %v1824 = vadd.f32 %v1750, %v1784
  %v1825 = vadd.f32 %v1751, %v1791
  %v1826 = vadd.f32 %v1752, %v1798
  %v1827 = vadd.f32 %v1753, %v1805
  %v1828 = vadd.f32 %v1754, %v1812
  %v1829 = vsel %vm1755, 1, 0
  %1830 = vset.pattern.permute.xlu0 0
  %1831 = vperm.xlu0 %1830, %v1829
  %v1832 = vpop.permute.xlu0 %1831
  %vm1833 = vcmp.eq.s32.totalorder %v1832, 1
  %1842 = vset.pattern.permute.xlu0 0
  %1843 = vperm.xlu0 %1842, %v1821
  %v1844 = vpop.permute.xlu0 %1843
  %1845 = vset.pattern.permute.xlu0 0
  %1846 = vperm.xlu0 %1845, %v1822
  %v1847 = vpop.permute.xlu0 %1846
  %1848 = vset.pattern.permute.xlu0 0
  %1849 = vperm.xlu0 %1848, %v1823
  %v1850 = vpop.permute.xlu0 %1849
  %1851 = vset.pattern.permute.xlu0 0
  %1852 = vperm.xlu0 %1851, %v1824
  %v1853 = vpop.permute.xlu0 %1852
  %1854 = vset.pattern.permute.xlu0 0
  %1855 = vperm.xlu0 %1854, %v1825
  %v1856 = vpop.permute.xlu0 %1855
  %1857 = vset.pattern.permute.xlu0 0
  %1858 = vperm.xlu0 %1857, %v1826
  %v1859 = vpop.permute.xlu0 %1858
  %1860 = vset.pattern.permute.xlu0 0
  %1861 = vperm.xlu0 %1860, %v1827
  %v1862 = vpop.permute.xlu0 %1861
  %1863 = vset.pattern.permute.xlu0 0
  %1864 = vperm.xlu0 %1863, %v1828
  %v1865 = vpop.permute.xlu0 %1864
  %v1866 = vlaneseq
  %v1867 = vshrl.u32 %v1866, 7
  %v1868 = vsub.s32 %v520, %v1867
  %v1869 = vrot.slane %v1844, %v1868
  %v1870 = vlaneseq
  %v1871 = vshrl.u32 %v1870, 7
  %v1872 = vsub.s32 %v520, %v1871
  %v1873 = vrot.slane %v1847, %v1872
  %v1874 = vlaneseq
  %v1875 = vshrl.u32 %v1874, 7
  %v1876 = vsub.s32 %v520, %v1875
  %v1877 = vrot.slane %v1850, %v1876
  %v1878 = vlaneseq
  %v1879 = vshrl.u32 %v1878, 7
  %v1880 = vsub.s32 %v520, %v1879
  %v1881 = vrot.slane %v1853, %v1880
  %v1882 = vlaneseq
  %v1883 = vshrl.u32 %v1882, 7
  %v1884 = vsub.s32 %v520, %v1883
  %v1885 = vrot.slane %v1856, %v1884
  %v1886 = vlaneseq
  %v1887 = vshrl.u32 %v1886, 7
  %v1888 = vsub.s32 %v520, %v1887
  %v1889 = vrot.slane %v1859, %v1888
  %v1890 = vlaneseq
  %v1891 = vshrl.u32 %v1890, 7
  %v1892 = vsub.s32 %v520, %v1891
  %v1893 = vrot.slane %v1862, %v1892
  %v1894 = vlaneseq
  %v1895 = vshrl.u32 %v1894, 7
  %v1896 = vsub.s32 %v520, %v1895
  %v1897 = vrot.slane %v1865, %v1896
  %v1898 = vsel %vm553, %v1873, %v1869
  %v1899 = vsel %vm555, %v1877, %v1898
  %v1900 = vsel %vm557, %v1881, %v1899
  %v1901 = vsel %vm559, %v1885, %v1900
  %v1902 = vsel %vm561, %v1889, %v1901
  %v1903 = vsel %vm563, %v1893, %v1902
  %v1904 = vsel %vm565, %v1897, %v1903
  %v1906 = vsel %vm1833, %v1904, %v1176
  %v1908 = vcombine.high %v1515, %v1515
  %v1910 = vunpack.c.l.s4 1966171168
  %v1911 = vunpack.c.0.s8 %v1910
  %v1912 = vlaneseq
  %v1913 = vshrl.u32 %v1912, 7
  %v1914 = vsub.s32 %v1911, %v1913
  %v1915 = vrot.slane %v1515, %v1914
  %v1917 = vunpack.c.l.s4 1966171168
  %v1918 = vunpack.c.0.s8 %v1917
  %v1919 = vlaneseq
  %v1920 = vshrl.u32 %v1919, 7
  %v1921 = vsub.s32 %v1918, %v1920
  %v1922 = vrot.slane %v1908, %v1921
  %v1923 = vcombine.high %v1915, %v1915
  %v1924 = vcombine.high %v1922, %v1922
  %v1926 = vunpack.c.l.s4 1966171168
  %v1927 = vunpack.c.0.s8 %v1926
  %v1928 = vlaneseq
  %v1929 = vshrl.u32 %v1928, 7
  %v1930 = vsub.s32 %v1927, %v1929
  %v1931 = vrot.slane %v1915, %v1930
  %v1933 = vunpack.c.l.s4 1966171168
  %v1934 = vunpack.c.0.s8 %v1933
  %v1935 = vlaneseq
  %v1936 = vshrl.u32 %v1935, 7
  %v1937 = vsub.s32 %v1934, %v1936
  %v1938 = vrot.slane %v1922, %v1937
  %v1940 = vunpack.c.l.s4 1966171168
  %v1941 = vunpack.c.0.s8 %v1940
  %v1942 = vlaneseq
  %v1943 = vshrl.u32 %v1942, 7
  %v1944 = vsub.s32 %v1941, %v1943
  %v1945 = vrot.slane %v1923, %v1944
  %v1947 = vunpack.c.l.s4 1966171168
  %v1948 = vunpack.c.0.s8 %v1947
  %v1949 = vlaneseq
  %v1950 = vshrl.u32 %v1949, 7
  %v1951 = vsub.s32 %v1948, %v1950
  %v1952 = vrot.slane %v1924, %v1951
  %v1953 = vcombine.high %v1931, %v1931
  %v1954 = vcombine.high %v1938, %v1938
  %v1955 = vcombine.high %v1945, %v1945
  %v1956 = vcombine.high %v1952, %v1952
  %v1957 = vlaneseq
  %v1958 = vshrl.u32 %v1957, 7
  %v1959 = vsub.s32 0, %v1958
  %v1960 = vrot.slane %v1931, %v1959
  %v1961 = vlaneseq
  %v1962 = vshrl.u32 %v1961, 7
  %v1963 = vsub.s32 0, %v1962
  %v1964 = vrot.slane %v1945, %v1963
  %v1965 = vlaneseq
  %v1966 = vshrl.u32 %v1965, 7
  %v1967 = vsub.s32 0, %v1966
  %v1968 = vrot.slane %v1953, %v1967
  %v1969 = vlaneseq
  %v1970 = vshrl.u32 %v1969, 7
  %v1971 = vsub.s32 0, %v1970
  %v1972 = vrot.slane %v1955, %v1971
  %v1973 = vlaneseq
  %v1974 = vshrl.u32 %v1973, 7
  %v1975 = vsub.s32 0, %v1974
  %v1976 = vrot.slane %v1938, %v1975
  %v1977 = vlaneseq
  %v1978 = vshrl.u32 %v1977, 7
  %v1979 = vsub.s32 0, %v1978
  %v1980 = vrot.slane %v1952, %v1979
  %v1981 = vlaneseq
  %v1982 = vshrl.u32 %v1981, 7
  %v1983 = vsub.s32 0, %v1982
  %v1984 = vrot.slane %v1954, %v1983
  %v1985 = vlaneseq
  %v1986 = vshrl.u32 %v1985, 7
  %v1987 = vsub.s32 0, %v1986
  %v1988 = vrot.slane %v1956, %v1987
  %v1997 = vadd.f32 %v1960, %v199
  %v1998 = vadd.f32 %v1964, %v199
  %v1999 = vadd.f32 %v1968, %v199
  %v2000 = vadd.f32 %v1972, %v199
  %v2001 = vadd.f32 %v1976, %v199
  %v2002 = vadd.f32 %v1980, %v199
  %v2003 = vadd.f32 %v1984, %v199
  %v2004 = vadd.f32 %v1988, %v199
  %v2005 = vsel %vm190, %v1997, -inf
  %2006 = vmax.xlane.f32.xlu0 %v2005
  %v2007 = vpop.xlane.xlu0 %2006
  %v2008 = vsel %vm190, %v1998, -inf
  %2009 = vmax.xlane.f32.xlu0 %v2008
  %v2010 = vpop.xlane.xlu0 %2009
  %v2011 = vsel %vm190, %v1999, -inf
  %2012 = vmax.xlane.f32.xlu0 %v2011
  %v2013 = vpop.xlane.xlu0 %2012
  %v2014 = vsel %vm190, %v2000, -inf
  %2015 = vmax.xlane.f32.xlu0 %v2014
  %v2016 = vpop.xlane.xlu0 %2015
  %v2017 = vsel %vm190, %v2001, -inf
  %2018 = vmax.xlane.f32.xlu0 %v2017
  %v2019 = vpop.xlane.xlu0 %2018
  %v2020 = vsel %vm190, %v2002, -inf
  %2021 = vmax.xlane.f32.xlu0 %v2020
  %v2022 = vpop.xlane.xlu0 %2021
  %v2023 = vsel %vm190, %v2003, -inf
  %2024 = vmax.xlane.f32.xlu0 %v2023
  %v2025 = vpop.xlane.xlu0 %2024
  %v2026 = vsel %vm190, %v2004, -inf
  %2027 = vmax.xlane.f32.xlu0 %v2026
  %v2028 = vpop.xlane.xlu0 %2027
  %vm2029 = vcmp.eq.f32.partialorder %v1997, %v2007
  %vm2030 = vcmp.eq.f32.partialorder %v1998, %v2010
  %vm2031 = vcmp.eq.f32.partialorder %v1999, %v2013
  %vm2032 = vcmp.eq.f32.partialorder %v2000, %v2016
  %vm2033 = vcmp.eq.f32.partialorder %v2001, %v2019
  %vm2034 = vcmp.eq.f32.partialorder %v2002, %v2022
  %vm2035 = vcmp.eq.f32.partialorder %v2003, %v2025
  %vm2036 = vcmp.eq.f32.partialorder %v2004, %v2028
  %v2037 = vsel %vm2029, %v520, 8
  %v2038 = vsel %vm2030, %v520, 8
  %v2039 = vsel %vm2031, %v520, 8
  %v2040 = vsel %vm2032, %v520, 8
  %v2041 = vsel %vm2033, %v520, 8
  %v2042 = vsel %vm2034, %v520, 8
  %v2043 = vsel %vm2035, %v520, 8
  %v2044 = vsel %vm2036, %v520, 8
  %v2045 = vsel %vm190, %v2037, 2147483647
  %v2046 = vand.u32 %v2045, 65535
  %v2047 = vshra.s32 %v2045, 16
  %v2048 = vcvt.s32.f32 %v2046
  %v2049 = vcvt.s32.f32 %v2047
  %2050 = vmin.xlane.f32.xlu0 %v2049
  %v2051 = vpop.xlane.xlu0 %2050
  %vm2052 = vcmp.eq.f32.partialorder %v2049, %v2051
  %v2053 = vsel %vm2052, %v2048, inf
  %2054 = vmin.xlane.f32.xlu0 %v2053
  %v2055 = vpop.xlane.xlu0 %2054
  %v2056 = vcvt.f32.s32 %v2055
  %v2057 = vcvt.f32.s32 %v2051
  %v2058 = vshll.u32 %v2057, 16
  %v2059 = vadd.s32 %v2058, %v2056
  %v2060 = vsel %vm190, %v2038, 2147483647
  %v2061 = vand.u32 %v2060, 65535
  %v2062 = vshra.s32 %v2060, 16
  %v2063 = vcvt.s32.f32 %v2061
  %v2064 = vcvt.s32.f32 %v2062
  %2065 = vmin.xlane.f32.xlu0 %v2064
  %v2066 = vpop.xlane.xlu0 %2065
  %vm2067 = vcmp.eq.f32.partialorder %v2064, %v2066
  %v2068 = vsel %vm2067, %v2063, inf
  %2069 = vmin.xlane.f32.xlu0 %v2068
  %v2070 = vpop.xlane.xlu0 %2069
  %v2071 = vcvt.f32.s32 %v2070
  %v2072 = vcvt.f32.s32 %v2066
  %v2073 = vshll.u32 %v2072, 16
  %v2074 = vadd.s32 %v2073, %v2071
  %v2075 = vsel %vm190, %v2039, 2147483647
  %v2076 = vand.u32 %v2075, 65535
  %v2077 = vshra.s32 %v2075, 16
  %v2078 = vcvt.s32.f32 %v2076
  %v2079 = vcvt.s32.f32 %v2077
  %2080 = vmin.xlane.f32.xlu0 %v2079
  %v2081 = vpop.xlane.xlu0 %2080
  %vm2082 = vcmp.eq.f32.partialorder %v2079, %v2081
  %v2083 = vsel %vm2082, %v2078, inf
  %2084 = vmin.xlane.f32.xlu0 %v2083
  %v2085 = vpop.xlane.xlu0 %2084
  %v2086 = vcvt.f32.s32 %v2085
  %v2087 = vcvt.f32.s32 %v2081
  %v2088 = vshll.u32 %v2087, 16
  %v2089 = vadd.s32 %v2088, %v2086
  %v2090 = vsel %vm190, %v2040, 2147483647
  %v2091 = vand.u32 %v2090, 65535
  %v2092 = vshra.s32 %v2090, 16
  %v2093 = vcvt.s32.f32 %v2091
  %v2094 = vcvt.s32.f32 %v2092
  %2095 = vmin.xlane.f32.xlu0 %v2094
  %v2096 = vpop.xlane.xlu0 %2095
  %vm2097 = vcmp.eq.f32.partialorder %v2094, %v2096
  %v2098 = vsel %vm2097, %v2093, inf
  %2099 = vmin.xlane.f32.xlu0 %v2098
  %v2100 = vpop.xlane.xlu0 %2099
  %v2101 = vcvt.f32.s32 %v2100
  %v2102 = vcvt.f32.s32 %v2096
  %v2103 = vshll.u32 %v2102, 16
  %v2104 = vadd.s32 %v2103, %v2101
  %v2105 = vsel %vm190, %v2041, 2147483647
  %v2106 = vand.u32 %v2105, 65535
  %v2107 = vshra.s32 %v2105, 16
  %v2108 = vcvt.s32.f32 %v2106
  %v2109 = vcvt.s32.f32 %v2107
  %2110 = vmin.xlane.f32.xlu0 %v2109
  %v2111 = vpop.xlane.xlu0 %2110
  %vm2112 = vcmp.eq.f32.partialorder %v2109, %v2111
  %v2113 = vsel %vm2112, %v2108, inf
  %2114 = vmin.xlane.f32.xlu0 %v2113
  %v2115 = vpop.xlane.xlu0 %2114
  %v2116 = vcvt.f32.s32 %v2115
  %v2117 = vcvt.f32.s32 %v2111
  %v2118 = vshll.u32 %v2117, 16
  %v2119 = vadd.s32 %v2118, %v2116
  %v2120 = vsel %vm190, %v2042, 2147483647
  %v2121 = vand.u32 %v2120, 65535
  %v2122 = vshra.s32 %v2120, 16
  %v2123 = vcvt.s32.f32 %v2121
  %v2124 = vcvt.s32.f32 %v2122
  %2125 = vmin.xlane.f32.xlu0 %v2124
  %v2126 = vpop.xlane.xlu0 %2125
  %vm2127 = vcmp.eq.f32.partialorder %v2124, %v2126
  %v2128 = vsel %vm2127, %v2123, inf
  %2129 = vmin.xlane.f32.xlu0 %v2128
  %v2130 = vpop.xlane.xlu0 %2129
  %v2131 = vcvt.f32.s32 %v2130
  %v2132 = vcvt.f32.s32 %v2126
  %v2133 = vshll.u32 %v2132, 16
  %v2134 = vadd.s32 %v2133, %v2131
  %v2135 = vsel %vm190, %v2043, 2147483647
  %v2136 = vand.u32 %v2135, 65535
  %v2137 = vshra.s32 %v2135, 16
  %v2138 = vcvt.s32.f32 %v2136
  %v2139 = vcvt.s32.f32 %v2137
  %2140 = vmin.xlane.f32.xlu0 %v2139
  %v2141 = vpop.xlane.xlu0 %2140
  %vm2142 = vcmp.eq.f32.partialorder %v2139, %v2141
  %v2143 = vsel %vm2142, %v2138, inf
  %2144 = vmin.xlane.f32.xlu0 %v2143
  %v2145 = vpop.xlane.xlu0 %2144
  %v2146 = vcvt.f32.s32 %v2145
  %v2147 = vcvt.f32.s32 %v2141
  %v2148 = vshll.u32 %v2147, 16
  %v2149 = vadd.s32 %v2148, %v2146
  %v2150 = vsel %vm190, %v2044, 2147483647
  %v2151 = vand.u32 %v2150, 65535
  %v2152 = vshra.s32 %v2150, 16
  %v2153 = vcvt.s32.f32 %v2151
  %v2154 = vcvt.s32.f32 %v2152
  %2155 = vmin.xlane.f32.xlu0 %v2154
  %v2156 = vpop.xlane.xlu0 %2155
  %vm2157 = vcmp.eq.f32.partialorder %v2154, %v2156
  %v2158 = vsel %vm2157, %v2153, inf
  %2159 = vmin.xlane.f32.xlu0 %v2158
  %v2160 = vpop.xlane.xlu0 %2159
  %v2161 = vcvt.f32.s32 %v2160
  %v2162 = vcvt.f32.s32 %v2156
  %v2163 = vshll.u32 %v2162, 16
  %v2164 = vadd.s32 %v2163, %v2161
  %v2165 = vadd.f32 %v2007, %v1763
  %v2166 = vadd.f32 %v2010, %v1770
  %v2167 = vadd.f32 %v2013, %v1777
  %v2168 = vadd.f32 %v2016, %v1784
  %v2169 = vadd.f32 %v2019, %v1791
  %v2170 = vadd.f32 %v2022, %v1798
  %v2171 = vadd.f32 %v2025, %v1805
  %v2172 = vadd.f32 %v2028, %v1812
  %2181 = vset.pattern.permute.xlu0 0
  %2182 = vperm.xlu0 %2181, %v2165
  %v2183 = vpop.permute.xlu0 %2182
  %2184 = vset.pattern.permute.xlu0 0
  %2185 = vperm.xlu0 %2184, %v2166
  %v2186 = vpop.permute.xlu0 %2185
  %2187 = vset.pattern.permute.xlu0 0
  %2188 = vperm.xlu0 %2187, %v2167
  %v2189 = vpop.permute.xlu0 %2188
  %2190 = vset.pattern.permute.xlu0 0
  %2191 = vperm.xlu0 %2190, %v2168
  %v2192 = vpop.permute.xlu0 %2191
  %2193 = vset.pattern.permute.xlu0 0
  %2194 = vperm.xlu0 %2193, %v2169
  %v2195 = vpop.permute.xlu0 %2194
  %2196 = vset.pattern.permute.xlu0 0
  %2197 = vperm.xlu0 %2196, %v2170
  %v2198 = vpop.permute.xlu0 %2197
  %2199 = vset.pattern.permute.xlu0 0
  %2200 = vperm.xlu0 %2199, %v2171
  %v2201 = vpop.permute.xlu0 %2200
  %2202 = vset.pattern.permute.xlu0 0
  %2203 = vperm.xlu0 %2202, %v2172
  %v2204 = vpop.permute.xlu0 %2203
  %v2205 = vlaneseq
  %v2206 = vshrl.u32 %v2205, 7
  %v2207 = vsub.s32 %v520, %v2206
  %v2208 = vrot.slane %v2183, %v2207
  %v2209 = vlaneseq
  %v2210 = vshrl.u32 %v2209, 7
  %v2211 = vsub.s32 %v520, %v2210
  %v2212 = vrot.slane %v2186, %v2211
  %v2213 = vlaneseq
  %v2214 = vshrl.u32 %v2213, 7
  %v2215 = vsub.s32 %v520, %v2214
  %v2216 = vrot.slane %v2189, %v2215
  %v2217 = vlaneseq
  %v2218 = vshrl.u32 %v2217, 7
  %v2219 = vsub.s32 %v520, %v2218
  %v2220 = vrot.slane %v2192, %v2219
  %v2221 = vlaneseq
  %v2222 = vshrl.u32 %v2221, 7
  %v2223 = vsub.s32 %v520, %v2222
  %v2224 = vrot.slane %v2195, %v2223
  %v2225 = vlaneseq
  %v2226 = vshrl.u32 %v2225, 7
  %v2227 = vsub.s32 %v520, %v2226
  %v2228 = vrot.slane %v2198, %v2227
  %v2229 = vlaneseq
  %v2230 = vshrl.u32 %v2229, 7
  %v2231 = vsub.s32 %v520, %v2230
  %v2232 = vrot.slane %v2201, %v2231
  %v2233 = vlaneseq
  %v2234 = vshrl.u32 %v2233, 7
  %v2235 = vsub.s32 %v520, %v2234
  %v2236 = vrot.slane %v2204, %v2235
  %v2237 = vsel %vm553, %v2212, %v2208
  %v2238 = vsel %vm555, %v2216, %v2237
  %v2239 = vsel %vm557, %v2220, %v2238
  %v2240 = vsel %vm559, %v2224, %v2239
  %v2241 = vsel %vm561, %v2228, %v2240
  %v2242 = vsel %vm563, %v2232, %v2241
  %v2243 = vsel %vm565, %v2236, %v2242
  %v2245 = vsel %vm1833, %v2243, %v1515
  %v2246 = vlaneseq
  %v2247 = vshrl.u32 %v2246, 7
  %v2248 = vsub.s32 %v520, %v2247
  %v2249 = vrot.slane %v2059, %v2248
  %v2250 = vlaneseq
  %v2251 = vshrl.u32 %v2250, 7
  %v2252 = vsub.s32 %v520, %v2251
  %v2253 = vrot.slane %v2074, %v2252
  %v2254 = vlaneseq
  %v2255 = vshrl.u32 %v2254, 7
  %v2256 = vsub.s32 %v520, %v2255
  %v2257 = vrot.slane %v2089, %v2256
  %v2258 = vlaneseq
  %v2259 = vshrl.u32 %v2258, 7
  %v2260 = vsub.s32 %v520, %v2259
  %v2261 = vrot.slane %v2104, %v2260
  %v2262 = vlaneseq
  %v2263 = vshrl.u32 %v2262, 7
  %v2264 = vsub.s32 %v520, %v2263
  %v2265 = vrot.slane %v2119, %v2264
  %v2266 = vlaneseq
  %v2267 = vshrl.u32 %v2266, 7
  %v2268 = vsub.s32 %v520, %v2267
  %v2269 = vrot.slane %v2134, %v2268
  %v2270 = vlaneseq
  %v2271 = vshrl.u32 %v2270, 7
  %v2272 = vsub.s32 %v520, %v2271
  %v2273 = vrot.slane %v2149, %v2272
  %v2274 = vlaneseq
  %v2275 = vshrl.u32 %v2274, 7
  %v2276 = vsub.s32 %v520, %v2275
  %v2277 = vrot.slane %v2164, %v2276
  %v2278 = vsel %vm553, %v2253, %v2249
  %v2279 = vsel %vm555, %v2257, %v2278
  %v2280 = vsel %vm557, %v2261, %v2279
  %v2281 = vsel %vm559, %v2265, %v2280
  %v2282 = vsel %vm561, %v2269, %v2281
  %v2283 = vsel %vm563, %v2273, %v2282
  %v2284 = vsel %vm565, %v2277, %v2283
  %s2285 = scalar_lea.vmem %s10, 24
  %2286 = vst.msk [vmem:[%s2285] sm:$0xff] %vm190, %v2284
  %s2287 = scalar_lea.vmem %s7, 32
  %v2288 = vld [vmem:[%s2287] sm:$0xff]
  %s2289 = scalar_lea.vmem %s3, 32
  %v2290 = vld [vmem:[%s2289] sm:$0xff]
  %v2292 = vcombine.high %v1906, %v1906
  %v2294 = vunpack.c.l.s4 1966171168
  %v2295 = vunpack.c.0.s8 %v2294
  %v2296 = vlaneseq
  %v2297 = vshrl.u32 %v2296, 7
  %v2298 = vsub.s32 %v2295, %v2297
  %v2299 = vrot.slane %v1906, %v2298
  %v2301 = vunpack.c.l.s4 1966171168
  %v2302 = vunpack.c.0.s8 %v2301
  %v2303 = vlaneseq
  %v2304 = vshrl.u32 %v2303, 7
  %v2305 = vsub.s32 %v2302, %v2304
  %v2306 = vrot.slane %v2292, %v2305
  %v2307 = vcombine.high %v2299, %v2299
  %v2308 = vcombine.high %v2306, %v2306
  %v2310 = vunpack.c.l.s4 1966171168
  %v2311 = vunpack.c.0.s8 %v2310
  %v2312 = vlaneseq
  %v2313 = vshrl.u32 %v2312, 7
  %v2314 = vsub.s32 %v2311, %v2313
  %v2315 = vrot.slane %v2299, %v2314
  %v2317 = vunpack.c.l.s4 1966171168
  %v2318 = vunpack.c.0.s8 %v2317
  %v2319 = vlaneseq
  %v2320 = vshrl.u32 %v2319, 7
  %v2321 = vsub.s32 %v2318, %v2320
  %v2322 = vrot.slane %v2306, %v2321
  %v2324 = vunpack.c.l.s4 1966171168
  %v2325 = vunpack.c.0.s8 %v2324
  %v2326 = vlaneseq
  %v2327 = vshrl.u32 %v2326, 7
  %v2328 = vsub.s32 %v2325, %v2327
  %v2329 = vrot.slane %v2307, %v2328
  %v2331 = vunpack.c.l.s4 1966171168
  %v2332 = vunpack.c.0.s8 %v2331
  %v2333 = vlaneseq
  %v2334 = vshrl.u32 %v2333, 7
  %v2335 = vsub.s32 %v2332, %v2334
  %v2336 = vrot.slane %v2308, %v2335
  %v2337 = vcombine.high %v2315, %v2315
  %v2338 = vcombine.high %v2322, %v2322
  %v2339 = vcombine.high %v2329, %v2329
  %v2340 = vcombine.high %v2336, %v2336
  %v2341 = vlaneseq
  %v2342 = vshrl.u32 %v2341, 7
  %v2343 = vsub.s32 0, %v2342
  %v2344 = vrot.slane %v2315, %v2343
  %v2345 = vlaneseq
  %v2346 = vshrl.u32 %v2345, 7
  %v2347 = vsub.s32 0, %v2346
  %v2348 = vrot.slane %v2329, %v2347
  %v2349 = vlaneseq
  %v2350 = vshrl.u32 %v2349, 7
  %v2351 = vsub.s32 0, %v2350
  %v2352 = vrot.slane %v2337, %v2351
  %v2353 = vlaneseq
  %v2354 = vshrl.u32 %v2353, 7
  %v2355 = vsub.s32 0, %v2354
  %v2356 = vrot.slane %v2339, %v2355
  %v2357 = vlaneseq
  %v2358 = vshrl.u32 %v2357, 7
  %v2359 = vsub.s32 0, %v2358
  %v2360 = vrot.slane %v2322, %v2359
  %v2361 = vlaneseq
  %v2362 = vshrl.u32 %v2361, 7
  %v2363 = vsub.s32 0, %v2362
  %v2364 = vrot.slane %v2336, %v2363
  %v2365 = vlaneseq
  %v2366 = vshrl.u32 %v2365, 7
  %v2367 = vsub.s32 0, %v2366
  %v2368 = vrot.slane %v2338, %v2367
  %v2369 = vlaneseq
  %v2370 = vshrl.u32 %v2369, 7
  %v2371 = vsub.s32 0, %v2370
  %v2372 = vrot.slane %v2340, %v2371
  %v2381 = vadd.f32 %v2344, %v199
  %v2382 = vadd.f32 %v2348, %v199
  %v2383 = vadd.f32 %v2352, %v199
  %v2384 = vadd.f32 %v2356, %v199
  %v2385 = vadd.f32 %v2360, %v199
  %v2386 = vadd.f32 %v2364, %v199
  %v2387 = vadd.f32 %v2368, %v199
  %v2388 = vadd.f32 %v2372, %v199
  %v2389 = vsel %vm190, %v2381, -inf
  %2390 = vmax.xlane.f32.xlu0 %v2389
  %v2391 = vpop.xlane.xlu0 %2390
  %v2392 = vsel %vm190, %v2382, -inf
  %2393 = vmax.xlane.f32.xlu0 %v2392
  %v2394 = vpop.xlane.xlu0 %2393
  %v2395 = vsel %vm190, %v2383, -inf
  %2396 = vmax.xlane.f32.xlu0 %v2395
  %v2397 = vpop.xlane.xlu0 %2396
  %v2398 = vsel %vm190, %v2384, -inf
  %2399 = vmax.xlane.f32.xlu0 %v2398
  %v2400 = vpop.xlane.xlu0 %2399
  %v2401 = vsel %vm190, %v2385, -inf
  %2402 = vmax.xlane.f32.xlu0 %v2401
  %v2403 = vpop.xlane.xlu0 %2402
  %v2404 = vsel %vm190, %v2386, -inf
  %2405 = vmax.xlane.f32.xlu0 %v2404
  %v2406 = vpop.xlane.xlu0 %2405
  %v2407 = vsel %vm190, %v2387, -inf
  %2408 = vmax.xlane.f32.xlu0 %v2407
  %v2409 = vpop.xlane.xlu0 %2408
  %v2410 = vsel %vm190, %v2388, -inf
  %2411 = vmax.xlane.f32.xlu0 %v2410
  %v2412 = vpop.xlane.xlu0 %2411
  %v2413 = vsub.f32 %v2381, %v2391
  %v2414 = vsub.f32 %v2382, %v2394
  %v2415 = vsub.f32 %v2383, %v2397
  %v2416 = vsub.f32 %v2384, %v2400
  %v2417 = vsub.f32 %v2385, %v2403
  %v2418 = vsub.f32 %v2386, %v2406
  %v2419 = vsub.f32 %v2387, %v2409
  %v2420 = vsub.f32 %v2388, %v2412
  %v2421 = vmul.f32 %v2413, 1.442695
  %v2422 = vpow.pop %v2421
  %v2423 = vmul.f32 %v2414, 1.442695
  %v2424 = vpow.pop %v2423
  %v2425 = vmul.f32 %v2415, 1.442695
  %v2426 = vpow.pop %v2425
  %v2427 = vmul.f32 %v2416, 1.442695
  %v2428 = vpow.pop %v2427
  %v2429 = vmul.f32 %v2417, 1.442695
  %v2430 = vpow.pop %v2429
  %v2431 = vmul.f32 %v2418, 1.442695
  %v2432 = vpow.pop %v2431
  %v2433 = vmul.f32 %v2419, 1.442695
  %v2434 = vpow.pop %v2433
  %v2435 = vmul.f32 %v2420, 1.442695
  %v2436 = vpow.pop %v2435
  %v2437 = vsel %vm190, %v2422, 0.0
  %2438 = vadd.xlane.f32.xlu0 %v2437
  %v2439 = vpop.xlane.xlu0 %2438
  %v2440 = vsel %vm190, %v2424, 0.0
  %2441 = vadd.xlane.f32.xlu0 %v2440
  %v2442 = vpop.xlane.xlu0 %2441
  %v2443 = vsel %vm190, %v2426, 0.0
  %2444 = vadd.xlane.f32.xlu0 %v2443
  %v2445 = vpop.xlane.xlu0 %2444
  %v2446 = vsel %vm190, %v2428, 0.0
  %2447 = vadd.xlane.f32.xlu0 %v2446
  %v2448 = vpop.xlane.xlu0 %2447
  %v2449 = vsel %vm190, %v2430, 0.0
  %2450 = vadd.xlane.f32.xlu0 %v2449
  %v2451 = vpop.xlane.xlu0 %2450
  %v2452 = vsel %vm190, %v2432, 0.0
  %2453 = vadd.xlane.f32.xlu0 %v2452
  %v2454 = vpop.xlane.xlu0 %2453
  %v2455 = vsel %vm190, %v2434, 0.0
  %2456 = vadd.xlane.f32.xlu0 %v2455
  %v2457 = vpop.xlane.xlu0 %2456
  %v2458 = vsel %vm190, %v2436, 0.0
  %2459 = vadd.xlane.f32.xlu0 %v2458
  %v2460 = vpop.xlane.xlu0 %2459
  %v2461 = vlog2.pop %v2439
  %v2462 = vmul.f32 %v2461, 0.6931472
  %v2463 = vlog2.pop %v2442
  %v2464 = vmul.f32 %v2463, 0.6931472
  %v2465 = vlog2.pop %v2445
  %v2466 = vmul.f32 %v2465, 0.6931472
  %v2467 = vlog2.pop %v2448
  %v2468 = vmul.f32 %v2467, 0.6931472
  %v2469 = vlog2.pop %v2451
  %v2470 = vmul.f32 %v2469, 0.6931472
  %v2471 = vlog2.pop %v2454
  %v2472 = vmul.f32 %v2471, 0.6931472
  %v2473 = vlog2.pop %v2457
  %v2474 = vmul.f32 %v2473, 0.6931472
  %v2475 = vlog2.pop %v2460
  %v2476 = vmul.f32 %v2475, 0.6931472
  %v2477 = vadd.f32 %v2462, %v2391
  %v2478 = vadd.f32 %v2464, %v2394
  %v2479 = vadd.f32 %v2466, %v2397
  %v2480 = vadd.f32 %v2468, %v2400
  %v2481 = vadd.f32 %v2470, %v2403
  %v2482 = vadd.f32 %v2472, %v2406
  %v2483 = vadd.f32 %v2474, %v2409
  %v2484 = vadd.f32 %v2476, %v2412
  %vm2485 = vcmp.gt.f32.partialorder %v2290, 0.0
  %v2487 = vlaneseq
  %v2488 = vshrl.u32 %v2487, 7
  %v2489 = vsub.s32 0, %v2488
  %v2490 = vrot.slane %v2288, %v2489
  %2492 = vbcast.lane.b32.xlu0 %v2490, 256
  %v2493 = vpop.permute.xlu0 %2492
  %v2494 = vlaneseq
  %v2495 = vshrl.u32 %v2494, 7
  %v2496 = vsub.s32 1, %v2495
  %v2497 = vrot.slane %v2288, %v2496
  %2499 = vbcast.lane.b32.xlu0 %v2497, 256
  %v2500 = vpop.permute.xlu0 %2499
  %v2501 = vlaneseq
  %v2502 = vshrl.u32 %v2501, 7
  %v2503 = vsub.s32 2, %v2502
  %v2504 = vrot.slane %v2288, %v2503
  %2506 = vbcast.lane.b32.xlu0 %v2504, 256
  %v2507 = vpop.permute.xlu0 %2506
  %v2508 = vlaneseq
  %v2509 = vshrl.u32 %v2508, 7
  %v2510 = vsub.s32 3, %v2509
  %v2511 = vrot.slane %v2288, %v2510
  %2513 = vbcast.lane.b32.xlu0 %v2511, 256
  %v2514 = vpop.permute.xlu0 %2513
  %v2515 = vlaneseq
  %v2516 = vshrl.u32 %v2515, 7
  %v2517 = vsub.s32 4, %v2516
  %v2518 = vrot.slane %v2288, %v2517
  %2520 = vbcast.lane.b32.xlu0 %v2518, 256
  %v2521 = vpop.permute.xlu0 %2520
  %v2522 = vlaneseq
  %v2523 = vshrl.u32 %v2522, 7
  %v2524 = vsub.s32 5, %v2523
  %v2525 = vrot.slane %v2288, %v2524
  %2527 = vbcast.lane.b32.xlu0 %v2525, 256
  %v2528 = vpop.permute.xlu0 %2527
  %v2529 = vlaneseq
  %v2530 = vshrl.u32 %v2529, 7
  %v2531 = vsub.s32 6, %v2530
  %v2532 = vrot.slane %v2288, %v2531
  %2534 = vbcast.lane.b32.xlu0 %v2532, 256
  %v2535 = vpop.permute.xlu0 %2534
  %v2536 = vlaneseq
  %v2537 = vshrl.u32 %v2536, 7
  %v2538 = vsub.s32 7, %v2537
  %v2539 = vrot.slane %v2288, %v2538
  %2541 = vbcast.lane.b32.xlu0 %v2539, 256
  %v2542 = vpop.permute.xlu0 %2541
  %v2551 = vadd.f32 %v2477, %v2493
  %v2552 = vadd.f32 %v2478, %v2500
  %v2553 = vadd.f32 %v2479, %v2507
  %v2554 = vadd.f32 %v2480, %v2514
  %v2555 = vadd.f32 %v2481, %v2521
  %v2556 = vadd.f32 %v2482, %v2528
  %v2557 = vadd.f32 %v2483, %v2535
  %v2558 = vadd.f32 %v2484, %v2542
  %v2559 = vsel %vm2485, 1, 0
  %2560 = vset.pattern.permute.xlu0 0
  %2561 = vperm.xlu0 %2560, %v2559
  %v2562 = vpop.permute.xlu0 %2561
  %vm2563 = vcmp.eq.s32.totalorder %v2562, 1
  %2572 = vset.pattern.permute.xlu0 0
  %2573 = vperm.xlu0 %2572, %v2551
  %v2574 = vpop.permute.xlu0 %2573
  %2575 = vset.pattern.permute.xlu0 0
  %2576 = vperm.xlu0 %2575, %v2552
  %v2577 = vpop.permute.xlu0 %2576
  %2578 = vset.pattern.permute.xlu0 0
  %2579 = vperm.xlu0 %2578, %v2553
  %v2580 = vpop.permute.xlu0 %2579
  %2581 = vset.pattern.permute.xlu0 0
  %2582 = vperm.xlu0 %2581, %v2554
  %v2583 = vpop.permute.xlu0 %2582
  %2584 = vset.pattern.permute.xlu0 0
  %2585 = vperm.xlu0 %2584, %v2555
  %v2586 = vpop.permute.xlu0 %2585
  %2587 = vset.pattern.permute.xlu0 0
  %2588 = vperm.xlu0 %2587, %v2556
  %v2589 = vpop.permute.xlu0 %2588
  %2590 = vset.pattern.permute.xlu0 0
  %2591 = vperm.xlu0 %2590, %v2557
  %v2592 = vpop.permute.xlu0 %2591
  %2593 = vset.pattern.permute.xlu0 0
  %2594 = vperm.xlu0 %2593, %v2558
  %v2595 = vpop.permute.xlu0 %2594
  %v2596 = vlaneseq
  %v2597 = vshrl.u32 %v2596, 7
  %v2598 = vsub.s32 %v520, %v2597
  %v2599 = vrot.slane %v2574, %v2598
  %v2600 = vlaneseq
  %v2601 = vshrl.u32 %v2600, 7
  %v2602 = vsub.s32 %v520, %v2601
  %v2603 = vrot.slane %v2577, %v2602
  %v2604 = vlaneseq
  %v2605 = vshrl.u32 %v2604, 7
  %v2606 = vsub.s32 %v520, %v2605
  %v2607 = vrot.slane %v2580, %v2606
  %v2608 = vlaneseq
  %v2609 = vshrl.u32 %v2608, 7
  %v2610 = vsub.s32 %v520, %v2609
  %v2611 = vrot.slane %v2583, %v2610
  %v2612 = vlaneseq
  %v2613 = vshrl.u32 %v2612, 7
  %v2614 = vsub.s32 %v520, %v2613
  %v2615 = vrot.slane %v2586, %v2614
  %v2616 = vlaneseq
  %v2617 = vshrl.u32 %v2616, 7
  %v2618 = vsub.s32 %v520, %v2617
  %v2619 = vrot.slane %v2589, %v2618
  %v2620 = vlaneseq
  %v2621 = vshrl.u32 %v2620, 7
  %v2622 = vsub.s32 %v520, %v2621
  %v2623 = vrot.slane %v2592, %v2622
  %v2624 = vlaneseq
  %v2625 = vshrl.u32 %v2624, 7
  %v2626 = vsub.s32 %v520, %v2625
  %v2627 = vrot.slane %v2595, %v2626
  %v2628 = vsel %vm553, %v2603, %v2599
  %v2629 = vsel %vm555, %v2607, %v2628
  %v2630 = vsel %vm557, %v2611, %v2629
  %v2631 = vsel %vm559, %v2615, %v2630
  %v2632 = vsel %vm561, %v2619, %v2631
  %v2633 = vsel %vm563, %v2623, %v2632
  %v2634 = vsel %vm565, %v2627, %v2633
  %v2636 = vsel %vm2563, %v2634, %v1906
  %v2638 = vcombine.high %v2245, %v2245
  %v2640 = vunpack.c.l.s4 1966171168
  %v2641 = vunpack.c.0.s8 %v2640
  %v2642 = vlaneseq
  %v2643 = vshrl.u32 %v2642, 7
  %v2644 = vsub.s32 %v2641, %v2643
  %v2645 = vrot.slane %v2245, %v2644
  %v2647 = vunpack.c.l.s4 1966171168
  %v2648 = vunpack.c.0.s8 %v2647
  %v2649 = vlaneseq
  %v2650 = vshrl.u32 %v2649, 7
  %v2651 = vsub.s32 %v2648, %v2650
  %v2652 = vrot.slane %v2638, %v2651
  %v2653 = vcombine.high %v2645, %v2645
  %v2654 = vcombine.high %v2652, %v2652
  %v2656 = vunpack.c.l.s4 1966171168
  %v2657 = vunpack.c.0.s8 %v2656
  %v2658 = vlaneseq
  %v2659 = vshrl.u32 %v2658, 7
  %v2660 = vsub.s32 %v2657, %v2659
  %v2661 = vrot.slane %v2645, %v2660
  %v2663 = vunpack.c.l.s4 1966171168
  %v2664 = vunpack.c.0.s8 %v2663
  %v2665 = vlaneseq
  %v2666 = vshrl.u32 %v2665, 7
  %v2667 = vsub.s32 %v2664, %v2666
  %v2668 = vrot.slane %v2652, %v2667
  %v2670 = vunpack.c.l.s4 1966171168
  %v2671 = vunpack.c.0.s8 %v2670
  %v2672 = vlaneseq
  %v2673 = vshrl.u32 %v2672, 7
  %v2674 = vsub.s32 %v2671, %v2673
  %v2675 = vrot.slane %v2653, %v2674
  %v2677 = vunpack.c.l.s4 1966171168
  %v2678 = vunpack.c.0.s8 %v2677
  %v2679 = vlaneseq
  %v2680 = vshrl.u32 %v2679, 7
  %v2681 = vsub.s32 %v2678, %v2680
  %v2682 = vrot.slane %v2654, %v2681
  %v2683 = vcombine.high %v2661, %v2661
  %v2684 = vcombine.high %v2668, %v2668
  %v2685 = vcombine.high %v2675, %v2675
  %v2686 = vcombine.high %v2682, %v2682
  %v2687 = vlaneseq
  %v2688 = vshrl.u32 %v2687, 7
  %v2689 = vsub.s32 0, %v2688
  %v2690 = vrot.slane %v2661, %v2689
  %v2691 = vlaneseq
  %v2692 = vshrl.u32 %v2691, 7
  %v2693 = vsub.s32 0, %v2692
  %v2694 = vrot.slane %v2675, %v2693
  %v2695 = vlaneseq
  %v2696 = vshrl.u32 %v2695, 7
  %v2697 = vsub.s32 0, %v2696
  %v2698 = vrot.slane %v2683, %v2697
  %v2699 = vlaneseq
  %v2700 = vshrl.u32 %v2699, 7
  %v2701 = vsub.s32 0, %v2700
  %v2702 = vrot.slane %v2685, %v2701
  %v2703 = vlaneseq
  %v2704 = vshrl.u32 %v2703, 7
  %v2705 = vsub.s32 0, %v2704
  %v2706 = vrot.slane %v2668, %v2705
  %v2707 = vlaneseq
  %v2708 = vshrl.u32 %v2707, 7
  %v2709 = vsub.s32 0, %v2708
  %v2710 = vrot.slane %v2682, %v2709
  %v2711 = vlaneseq
  %v2712 = vshrl.u32 %v2711, 7
  %v2713 = vsub.s32 0, %v2712
  %v2714 = vrot.slane %v2684, %v2713
  %v2715 = vlaneseq
  %v2716 = vshrl.u32 %v2715, 7
  %v2717 = vsub.s32 0, %v2716
  %v2718 = vrot.slane %v2686, %v2717
  %v2727 = vadd.f32 %v2690, %v199
  %v2728 = vadd.f32 %v2694, %v199
  %v2729 = vadd.f32 %v2698, %v199
  %v2730 = vadd.f32 %v2702, %v199
  %v2731 = vadd.f32 %v2706, %v199
  %v2732 = vadd.f32 %v2710, %v199
  %v2733 = vadd.f32 %v2714, %v199
  %v2734 = vadd.f32 %v2718, %v199
  %v2735 = vsel %vm190, %v2727, -inf
  %2736 = vmax.xlane.f32.xlu0 %v2735
  %v2737 = vpop.xlane.xlu0 %2736
  %v2738 = vsel %vm190, %v2728, -inf
  %2739 = vmax.xlane.f32.xlu0 %v2738
  %v2740 = vpop.xlane.xlu0 %2739
  %v2741 = vsel %vm190, %v2729, -inf
  %2742 = vmax.xlane.f32.xlu0 %v2741
  %v2743 = vpop.xlane.xlu0 %2742
  %v2744 = vsel %vm190, %v2730, -inf
  %2745 = vmax.xlane.f32.xlu0 %v2744
  %v2746 = vpop.xlane.xlu0 %2745
  %v2747 = vsel %vm190, %v2731, -inf
  %2748 = vmax.xlane.f32.xlu0 %v2747
  %v2749 = vpop.xlane.xlu0 %2748
  %v2750 = vsel %vm190, %v2732, -inf
  %2751 = vmax.xlane.f32.xlu0 %v2750
  %v2752 = vpop.xlane.xlu0 %2751
  %v2753 = vsel %vm190, %v2733, -inf
  %2754 = vmax.xlane.f32.xlu0 %v2753
  %v2755 = vpop.xlane.xlu0 %2754
  %v2756 = vsel %vm190, %v2734, -inf
  %2757 = vmax.xlane.f32.xlu0 %v2756
  %v2758 = vpop.xlane.xlu0 %2757
  %vm2759 = vcmp.eq.f32.partialorder %v2727, %v2737
  %vm2760 = vcmp.eq.f32.partialorder %v2728, %v2740
  %vm2761 = vcmp.eq.f32.partialorder %v2729, %v2743
  %vm2762 = vcmp.eq.f32.partialorder %v2730, %v2746
  %vm2763 = vcmp.eq.f32.partialorder %v2731, %v2749
  %vm2764 = vcmp.eq.f32.partialorder %v2732, %v2752
  %vm2765 = vcmp.eq.f32.partialorder %v2733, %v2755
  %vm2766 = vcmp.eq.f32.partialorder %v2734, %v2758
  %v2767 = vsel %vm2759, %v520, 8
  %v2768 = vsel %vm2760, %v520, 8
  %v2769 = vsel %vm2761, %v520, 8
  %v2770 = vsel %vm2762, %v520, 8
  %v2771 = vsel %vm2763, %v520, 8
  %v2772 = vsel %vm2764, %v520, 8
  %v2773 = vsel %vm2765, %v520, 8
  %v2774 = vsel %vm2766, %v520, 8
  %v2775 = vsel %vm190, %v2767, 2147483647
  %v2776 = vand.u32 %v2775, 65535
  %v2777 = vshra.s32 %v2775, 16
  %v2778 = vcvt.s32.f32 %v2776
  %v2779 = vcvt.s32.f32 %v2777
  %2780 = vmin.xlane.f32.xlu0 %v2779
  %v2781 = vpop.xlane.xlu0 %2780
  %vm2782 = vcmp.eq.f32.partialorder %v2779, %v2781
  %v2783 = vsel %vm2782, %v2778, inf
  %2784 = vmin.xlane.f32.xlu0 %v2783
  %v2785 = vpop.xlane.xlu0 %2784
  %v2786 = vcvt.f32.s32 %v2785
  %v2787 = vcvt.f32.s32 %v2781
  %v2788 = vshll.u32 %v2787, 16
  %v2789 = vadd.s32 %v2788, %v2786
  %v2790 = vsel %vm190, %v2768, 2147483647
  %v2791 = vand.u32 %v2790, 65535
  %v2792 = vshra.s32 %v2790, 16
  %v2793 = vcvt.s32.f32 %v2791
  %v2794 = vcvt.s32.f32 %v2792
  %2795 = vmin.xlane.f32.xlu0 %v2794
  %v2796 = vpop.xlane.xlu0 %2795
  %vm2797 = vcmp.eq.f32.partialorder %v2794, %v2796
  %v2798 = vsel %vm2797, %v2793, inf
  %2799 = vmin.xlane.f32.xlu0 %v2798
  %v2800 = vpop.xlane.xlu0 %2799
  %v2801 = vcvt.f32.s32 %v2800
  %v2802 = vcvt.f32.s32 %v2796
  %v2803 = vshll.u32 %v2802, 16
  %v2804 = vadd.s32 %v2803, %v2801
  %v2805 = vsel %vm190, %v2769, 2147483647
  %v2806 = vand.u32 %v2805, 65535
  %v2807 = vshra.s32 %v2805, 16
  %v2808 = vcvt.s32.f32 %v2806
  %v2809 = vcvt.s32.f32 %v2807
  %2810 = vmin.xlane.f32.xlu0 %v2809
  %v2811 = vpop.xlane.xlu0 %2810
  %vm2812 = vcmp.eq.f32.partialorder %v2809, %v2811
  %v2813 = vsel %vm2812, %v2808, inf
  %2814 = vmin.xlane.f32.xlu0 %v2813
  %v2815 = vpop.xlane.xlu0 %2814
  %v2816 = vcvt.f32.s32 %v2815
  %v2817 = vcvt.f32.s32 %v2811
  %v2818 = vshll.u32 %v2817, 16
  %v2819 = vadd.s32 %v2818, %v2816
  %v2820 = vsel %vm190, %v2770, 2147483647
  %v2821 = vand.u32 %v2820, 65535
  %v2822 = vshra.s32 %v2820, 16
  %v2823 = vcvt.s32.f32 %v2821
  %v2824 = vcvt.s32.f32 %v2822
  %2825 = vmin.xlane.f32.xlu0 %v2824
  %v2826 = vpop.xlane.xlu0 %2825
  %vm2827 = vcmp.eq.f32.partialorder %v2824, %v2826
  %v2828 = vsel %vm2827, %v2823, inf
  %2829 = vmin.xlane.f32.xlu0 %v2828
  %v2830 = vpop.xlane.xlu0 %2829
  %v2831 = vcvt.f32.s32 %v2830
  %v2832 = vcvt.f32.s32 %v2826
  %v2833 = vshll.u32 %v2832, 16
  %v2834 = vadd.s32 %v2833, %v2831
  %v2835 = vsel %vm190, %v2771, 2147483647
  %v2836 = vand.u32 %v2835, 65535
  %v2837 = vshra.s32 %v2835, 16
  %v2838 = vcvt.s32.f32 %v2836
  %v2839 = vcvt.s32.f32 %v2837
  %2840 = vmin.xlane.f32.xlu0 %v2839
  %v2841 = vpop.xlane.xlu0 %2840
  %vm2842 = vcmp.eq.f32.partialorder %v2839, %v2841
  %v2843 = vsel %vm2842, %v2838, inf
  %2844 = vmin.xlane.f32.xlu0 %v2843
  %v2845 = vpop.xlane.xlu0 %2844
  %v2846 = vcvt.f32.s32 %v2845
  %v2847 = vcvt.f32.s32 %v2841
  %v2848 = vshll.u32 %v2847, 16
  %v2849 = vadd.s32 %v2848, %v2846
  %v2850 = vsel %vm190, %v2772, 2147483647
  %v2851 = vand.u32 %v2850, 65535
  %v2852 = vshra.s32 %v2850, 16
  %v2853 = vcvt.s32.f32 %v2851
  %v2854 = vcvt.s32.f32 %v2852
  %2855 = vmin.xlane.f32.xlu0 %v2854
  %v2856 = vpop.xlane.xlu0 %2855
  %vm2857 = vcmp.eq.f32.partialorder %v2854, %v2856
  %v2858 = vsel %vm2857, %v2853, inf
  %2859 = vmin.xlane.f32.xlu0 %v2858
  %v2860 = vpop.xlane.xlu0 %2859
  %v2861 = vcvt.f32.s32 %v2860
  %v2862 = vcvt.f32.s32 %v2856
  %v2863 = vshll.u32 %v2862, 16
  %v2864 = vadd.s32 %v2863, %v2861
  %v2865 = vsel %vm190, %v2773, 2147483647
  %v2866 = vand.u32 %v2865, 65535
  %v2867 = vshra.s32 %v2865, 16
  %v2868 = vcvt.s32.f32 %v2866
  %v2869 = vcvt.s32.f32 %v2867
  %2870 = vmin.xlane.f32.xlu0 %v2869
  %v2871 = vpop.xlane.xlu0 %2870
  %vm2872 = vcmp.eq.f32.partialorder %v2869, %v2871
  %v2873 = vsel %vm2872, %v2868, inf
  %2874 = vmin.xlane.f32.xlu0 %v2873
  %v2875 = vpop.xlane.xlu0 %2874
  %v2876 = vcvt.f32.s32 %v2875
  %v2877 = vcvt.f32.s32 %v2871
  %v2878 = vshll.u32 %v2877, 16
  %v2879 = vadd.s32 %v2878, %v2876
  %v2880 = vsel %vm190, %v2774, 2147483647
  %v2881 = vand.u32 %v2880, 65535
  %v2882 = vshra.s32 %v2880, 16
  %v2883 = vcvt.s32.f32 %v2881
  %v2884 = vcvt.s32.f32 %v2882
  %2885 = vmin.xlane.f32.xlu0 %v2884
  %v2886 = vpop.xlane.xlu0 %2885
  %vm2887 = vcmp.eq.f32.partialorder %v2884, %v2886
  %v2888 = vsel %vm2887, %v2883, inf
  %2889 = vmin.xlane.f32.xlu0 %v2888
  %v2890 = vpop.xlane.xlu0 %2889
  %v2891 = vcvt.f32.s32 %v2890
  %v2892 = vcvt.f32.s32 %v2886
  %v2893 = vshll.u32 %v2892, 16
  %v2894 = vadd.s32 %v2893, %v2891
  %v2895 = vadd.f32 %v2737, %v2493
  %v2896 = vadd.f32 %v2740, %v2500
  %v2897 = vadd.f32 %v2743, %v2507
  %v2898 = vadd.f32 %v2746, %v2514
  %v2899 = vadd.f32 %v2749, %v2521
  %v2900 = vadd.f32 %v2752, %v2528
  %v2901 = vadd.f32 %v2755, %v2535
  %v2902 = vadd.f32 %v2758, %v2542
  %2911 = vset.pattern.permute.xlu0 0
  %2912 = vperm.xlu0 %2911, %v2895
  %v2913 = vpop.permute.xlu0 %2912
  %2914 = vset.pattern.permute.xlu0 0
  %2915 = vperm.xlu0 %2914, %v2896
  %v2916 = vpop.permute.xlu0 %2915
  %2917 = vset.pattern.permute.xlu0 0
  %2918 = vperm.xlu0 %2917, %v2897
  %v2919 = vpop.permute.xlu0 %2918
  %2920 = vset.pattern.permute.xlu0 0
  %2921 = vperm.xlu0 %2920, %v2898
  %v2922 = vpop.permute.xlu0 %2921
  %2923 = vset.pattern.permute.xlu0 0
  %2924 = vperm.xlu0 %2923, %v2899
  %v2925 = vpop.permute.xlu0 %2924
  %2926 = vset.pattern.permute.xlu0 0
  %2927 = vperm.xlu0 %2926, %v2900
  %v2928 = vpop.permute.xlu0 %2927
  %2929 = vset.pattern.permute.xlu0 0
  %2930 = vperm.xlu0 %2929, %v2901
  %v2931 = vpop.permute.xlu0 %2930
  %2932 = vset.pattern.permute.xlu0 0
  %2933 = vperm.xlu0 %2932, %v2902
  %v2934 = vpop.permute.xlu0 %2933
  %v2935 = vlaneseq
  %v2936 = vshrl.u32 %v2935, 7
  %v2937 = vsub.s32 %v520, %v2936
  %v2938 = vrot.slane %v2913, %v2937
  %v2939 = vlaneseq
  %v2940 = vshrl.u32 %v2939, 7
  %v2941 = vsub.s32 %v520, %v2940
  %v2942 = vrot.slane %v2916, %v2941
  %v2943 = vlaneseq
  %v2944 = vshrl.u32 %v2943, 7
  %v2945 = vsub.s32 %v520, %v2944
  %v2946 = vrot.slane %v2919, %v2945
  %v2947 = vlaneseq
  %v2948 = vshrl.u32 %v2947, 7
  %v2949 = vsub.s32 %v520, %v2948
  %v2950 = vrot.slane %v2922, %v2949
  %v2951 = vlaneseq
  %v2952 = vshrl.u32 %v2951, 7
  %v2953 = vsub.s32 %v520, %v2952
  %v2954 = vrot.slane %v2925, %v2953
  %v2955 = vlaneseq
  %v2956 = vshrl.u32 %v2955, 7
  %v2957 = vsub.s32 %v520, %v2956
  %v2958 = vrot.slane %v2928, %v2957
  %v2959 = vlaneseq
  %v2960 = vshrl.u32 %v2959, 7
  %v2961 = vsub.s32 %v520, %v2960
  %v2962 = vrot.slane %v2931, %v2961
  %v2963 = vlaneseq
  %v2964 = vshrl.u32 %v2963, 7
  %v2965 = vsub.s32 %v520, %v2964
  %v2966 = vrot.slane %v2934, %v2965
  %v2967 = vsel %vm553, %v2942, %v2938
  %v2968 = vsel %vm555, %v2946, %v2967
  %v2969 = vsel %vm557, %v2950, %v2968
  %v2970 = vsel %vm559, %v2954, %v2969
  %v2971 = vsel %vm561, %v2958, %v2970
  %v2972 = vsel %vm563, %v2962, %v2971
  %v2973 = vsel %vm565, %v2966, %v2972
  %v2975 = vsel %vm2563, %v2973, %v2245
  %v2976 = vlaneseq
  %v2977 = vshrl.u32 %v2976, 7
  %v2978 = vsub.s32 %v520, %v2977
  %v2979 = vrot.slane %v2789, %v2978
  %v2980 = vlaneseq
  %v2981 = vshrl.u32 %v2980, 7
  %v2982 = vsub.s32 %v520, %v2981
  %v2983 = vrot.slane %v2804, %v2982
  %v2984 = vlaneseq
  %v2985 = vshrl.u32 %v2984, 7
  %v2986 = vsub.s32 %v520, %v2985
  %v2987 = vrot.slane %v2819, %v2986
  %v2988 = vlaneseq
  %v2989 = vshrl.u32 %v2988, 7
  %v2990 = vsub.s32 %v520, %v2989
  %v2991 = vrot.slane %v2834, %v2990
  %v2992 = vlaneseq
  %v2993 = vshrl.u32 %v2992, 7
  %v2994 = vsub.s32 %v520, %v2993
  %v2995 = vrot.slane %v2849, %v2994
  %v2996 = vlaneseq
  %v2997 = vshrl.u32 %v2996, 7
  %v2998 = vsub.s32 %v520, %v2997
  %v2999 = vrot.slane %v2864, %v2998
  %v3000 = vlaneseq
  %v3001 = vshrl.u32 %v3000, 7
  %v3002 = vsub.s32 %v520, %v3001
  %v3003 = vrot.slane %v2879, %v3002
  %v3004 = vlaneseq
  %v3005 = vshrl.u32 %v3004, 7
  %v3006 = vsub.s32 %v520, %v3005
  %v3007 = vrot.slane %v2894, %v3006
  %v3008 = vsel %vm553, %v2983, %v2979
  %v3009 = vsel %vm555, %v2987, %v3008
  %v3010 = vsel %vm557, %v2991, %v3009
  %v3011 = vsel %vm559, %v2995, %v3010
  %v3012 = vsel %vm561, %v2999, %v3011
  %v3013 = vsel %vm563, %v3003, %v3012
  %v3014 = vsel %vm565, %v3007, %v3013
  %s3015 = scalar_lea.vmem %s10, 32
  %3016 = vst.msk [vmem:[%s3015] sm:$0xff] %vm190, %v3014
  %s3017 = scalar_lea.vmem %s7, 40
  %v3018 = vld [vmem:[%s3017] sm:$0xff]
  %s3019 = scalar_lea.vmem %s3, 40
  %v3020 = vld [vmem:[%s3019] sm:$0xff]
  %v3022 = vcombine.high %v2636, %v2636
  %v3024 = vunpack.c.l.s4 1966171168
  %v3025 = vunpack.c.0.s8 %v3024
  %v3026 = vlaneseq
  %v3027 = vshrl.u32 %v3026, 7
  %v3028 = vsub.s32 %v3025, %v3027
  %v3029 = vrot.slane %v2636, %v3028
  %v3031 = vunpack.c.l.s4 1966171168
  %v3032 = vunpack.c.0.s8 %v3031
  %v3033 = vlaneseq
  %v3034 = vshrl.u32 %v3033, 7
  %v3035 = vsub.s32 %v3032, %v3034
  %v3036 = vrot.slane %v3022, %v3035
  %v3037 = vcombine.high %v3029, %v3029
  %v3038 = vcombine.high %v3036, %v3036
  %v3040 = vunpack.c.l.s4 1966171168
  %v3041 = vunpack.c.0.s8 %v3040
  %v3042 = vlaneseq
  %v3043 = vshrl.u32 %v3042, 7
  %v3044 = vsub.s32 %v3041, %v3043
  %v3045 = vrot.slane %v3029, %v3044
  %v3047 = vunpack.c.l.s4 1966171168
  %v3048 = vunpack.c.0.s8 %v3047
  %v3049 = vlaneseq
  %v3050 = vshrl.u32 %v3049, 7
  %v3051 = vsub.s32 %v3048, %v3050
  %v3052 = vrot.slane %v3036, %v3051
  %v3054 = vunpack.c.l.s4 1966171168
  %v3055 = vunpack.c.0.s8 %v3054
  %v3056 = vlaneseq
  %v3057 = vshrl.u32 %v3056, 7
  %v3058 = vsub.s32 %v3055, %v3057
  %v3059 = vrot.slane %v3037, %v3058
  %v3061 = vunpack.c.l.s4 1966171168
  %v3062 = vunpack.c.0.s8 %v3061
  %v3063 = vlaneseq
  %v3064 = vshrl.u32 %v3063, 7
  %v3065 = vsub.s32 %v3062, %v3064
  %v3066 = vrot.slane %v3038, %v3065
  %v3067 = vcombine.high %v3045, %v3045
  %v3068 = vcombine.high %v3052, %v3052
  %v3069 = vcombine.high %v3059, %v3059
  %v3070 = vcombine.high %v3066, %v3066
  %v3071 = vlaneseq
  %v3072 = vshrl.u32 %v3071, 7
  %v3073 = vsub.s32 0, %v3072
  %v3074 = vrot.slane %v3045, %v3073
  %v3075 = vlaneseq
  %v3076 = vshrl.u32 %v3075, 7
  %v3077 = vsub.s32 0, %v3076
  %v3078 = vrot.slane %v3059, %v3077
  %v3079 = vlaneseq
  %v3080 = vshrl.u32 %v3079, 7
  %v3081 = vsub.s32 0, %v3080
  %v3082 = vrot.slane %v3067, %v3081
  %v3083 = vlaneseq
  %v3084 = vshrl.u32 %v3083, 7
  %v3085 = vsub.s32 0, %v3084
  %v3086 = vrot.slane %v3069, %v3085
  %v3087 = vlaneseq
  %v3088 = vshrl.u32 %v3087, 7
  %v3089 = vsub.s32 0, %v3088
  %v3090 = vrot.slane %v3052, %v3089
  %v3091 = vlaneseq
  %v3092 = vshrl.u32 %v3091, 7
  %v3093 = vsub.s32 0, %v3092
  %v3094 = vrot.slane %v3066, %v3093
  %v3095 = vlaneseq
  %v3096 = vshrl.u32 %v3095, 7
  %v3097 = vsub.s32 0, %v3096
  %v3098 = vrot.slane %v3068, %v3097
  %v3099 = vlaneseq
  %v3100 = vshrl.u32 %v3099, 7
  %v3101 = vsub.s32 0, %v3100
  %v3102 = vrot.slane %v3070, %v3101
  %v3111 = vadd.f32 %v3074, %v199
  %v3112 = vadd.f32 %v3078, %v199
  %v3113 = vadd.f32 %v3082, %v199
  %v3114 = vadd.f32 %v3086, %v199
  %v3115 = vadd.f32 %v3090, %v199
  %v3116 = vadd.f32 %v3094, %v199
  %v3117 = vadd.f32 %v3098, %v199
  %v3118 = vadd.f32 %v3102, %v199
  %v3119 = vsel %vm190, %v3111, -inf
  %3120 = vmax.xlane.f32.xlu0 %v3119
  %v3121 = vpop.xlane.xlu0 %3120
  %v3122 = vsel %vm190, %v3112, -inf
  %3123 = vmax.xlane.f32.xlu0 %v3122
  %v3124 = vpop.xlane.xlu0 %3123
  %v3125 = vsel %vm190, %v3113, -inf
  %3126 = vmax.xlane.f32.xlu0 %v3125
  %v3127 = vpop.xlane.xlu0 %3126
  %v3128 = vsel %vm190, %v3114, -inf
  %3129 = vmax.xlane.f32.xlu0 %v3128
  %v3130 = vpop.xlane.xlu0 %3129
  %v3131 = vsel %vm190, %v3115, -inf
  %3132 = vmax.xlane.f32.xlu0 %v3131
  %v3133 = vpop.xlane.xlu0 %3132
  %v3134 = vsel %vm190, %v3116, -inf
  %3135 = vmax.xlane.f32.xlu0 %v3134
  %v3136 = vpop.xlane.xlu0 %3135
  %v3137 = vsel %vm190, %v3117, -inf
  %3138 = vmax.xlane.f32.xlu0 %v3137
  %v3139 = vpop.xlane.xlu0 %3138
  %v3140 = vsel %vm190, %v3118, -inf
  %3141 = vmax.xlane.f32.xlu0 %v3140
  %v3142 = vpop.xlane.xlu0 %3141
  %v3143 = vsub.f32 %v3111, %v3121
  %v3144 = vsub.f32 %v3112, %v3124
  %v3145 = vsub.f32 %v3113, %v3127
  %v3146 = vsub.f32 %v3114, %v3130
  %v3147 = vsub.f32 %v3115, %v3133
  %v3148 = vsub.f32 %v3116, %v3136
  %v3149 = vsub.f32 %v3117, %v3139
  %v3150 = vsub.f32 %v3118, %v3142
  %v3151 = vmul.f32 %v3143, 1.442695
  %v3152 = vpow.pop %v3151
  %v3153 = vmul.f32 %v3144, 1.442695
  %v3154 = vpow.pop %v3153
  %v3155 = vmul.f32 %v3145, 1.442695
  %v3156 = vpow.pop %v3155
  %v3157 = vmul.f32 %v3146, 1.442695
  %v3158 = vpow.pop %v3157
  %v3159 = vmul.f32 %v3147, 1.442695
  %v3160 = vpow.pop %v3159
  %v3161 = vmul.f32 %v3148, 1.442695
  %v3162 = vpow.pop %v3161
  %v3163 = vmul.f32 %v3149, 1.442695
  %v3164 = vpow.pop %v3163
  %v3165 = vmul.f32 %v3150, 1.442695
  %v3166 = vpow.pop %v3165
  %v3167 = vsel %vm190, %v3152, 0.0
  %3168 = vadd.xlane.f32.xlu0 %v3167
  %v3169 = vpop.xlane.xlu0 %3168
  %v3170 = vsel %vm190, %v3154, 0.0
  %3171 = vadd.xlane.f32.xlu0 %v3170
  %v3172 = vpop.xlane.xlu0 %3171
  %v3173 = vsel %vm190, %v3156, 0.0
  %3174 = vadd.xlane.f32.xlu0 %v3173
  %v3175 = vpop.xlane.xlu0 %3174
  %v3176 = vsel %vm190, %v3158, 0.0
  %3177 = vadd.xlane.f32.xlu0 %v3176
  %v3178 = vpop.xlane.xlu0 %3177
  %v3179 = vsel %vm190, %v3160, 0.0
  %3180 = vadd.xlane.f32.xlu0 %v3179
  %v3181 = vpop.xlane.xlu0 %3180
  %v3182 = vsel %vm190, %v3162, 0.0
  %3183 = vadd.xlane.f32.xlu0 %v3182
  %v3184 = vpop.xlane.xlu0 %3183
  %v3185 = vsel %vm190, %v3164, 0.0
  %3186 = vadd.xlane.f32.xlu0 %v3185
  %v3187 = vpop.xlane.xlu0 %3186
  %v3188 = vsel %vm190, %v3166, 0.0
  %3189 = vadd.xlane.f32.xlu0 %v3188
  %v3190 = vpop.xlane.xlu0 %3189
  %v3191 = vlog2.pop %v3169
  %v3192 = vmul.f32 %v3191, 0.6931472
  %v3193 = vlog2.pop %v3172
  %v3194 = vmul.f32 %v3193, 0.6931472
  %v3195 = vlog2.pop %v3175
  %v3196 = vmul.f32 %v3195, 0.6931472
  %v3197 = vlog2.pop %v3178
  %v3198 = vmul.f32 %v3197, 0.6931472
  %v3199 = vlog2.pop %v3181
  %v3200 = vmul.f32 %v3199, 0.6931472
  %v3201 = vlog2.pop %v3184
  %v3202 = vmul.f32 %v3201, 0.6931472
  %v3203 = vlog2.pop %v3187
  %v3204 = vmul.f32 %v3203, 0.6931472
  %v3205 = vlog2.pop %v3190
  %v3206 = vmul.f32 %v3205, 0.6931472
  %v3207 = vadd.f32 %v3192, %v3121
  %v3208 = vadd.f32 %v3194, %v3124
  %v3209 = vadd.f32 %v3196, %v3127
  %v3210 = vadd.f32 %v3198, %v3130
  %v3211 = vadd.f32 %v3200, %v3133
  %v3212 = vadd.f32 %v3202, %v3136
  %v3213 = vadd.f32 %v3204, %v3139
  %v3214 = vadd.f32 %v3206, %v3142
  %vm3215 = vcmp.gt.f32.partialorder %v3020, 0.0
  %v3217 = vlaneseq
  %v3218 = vshrl.u32 %v3217, 7
  %v3219 = vsub.s32 0, %v3218
  %v3220 = vrot.slane %v3018, %v3219
  %3222 = vbcast.lane.b32.xlu0 %v3220, 256
  %v3223 = vpop.permute.xlu0 %3222
  %v3224 = vlaneseq
  %v3225 = vshrl.u32 %v3224, 7
  %v3226 = vsub.s32 1, %v3225
  %v3227 = vrot.slane %v3018, %v3226
  %3229 = vbcast.lane.b32.xlu0 %v3227, 256
  %v3230 = vpop.permute.xlu0 %3229
  %v3231 = vlaneseq
  %v3232 = vshrl.u32 %v3231, 7
  %v3233 = vsub.s32 2, %v3232
  %v3234 = vrot.slane %v3018, %v3233
  %3236 = vbcast.lane.b32.xlu0 %v3234, 256
  %v3237 = vpop.permute.xlu0 %3236
  %v3238 = vlaneseq
  %v3239 = vshrl.u32 %v3238, 7
  %v3240 = vsub.s32 3, %v3239
  %v3241 = vrot.slane %v3018, %v3240
  %3243 = vbcast.lane.b32.xlu0 %v3241, 256
  %v3244 = vpop.permute.xlu0 %3243
  %v3245 = vlaneseq
  %v3246 = vshrl.u32 %v3245, 7
  %v3247 = vsub.s32 4, %v3246
  %v3248 = vrot.slane %v3018, %v3247
  %3250 = vbcast.lane.b32.xlu0 %v3248, 256
  %v3251 = vpop.permute.xlu0 %3250
  %v3252 = vlaneseq
  %v3253 = vshrl.u32 %v3252, 7
  %v3254 = vsub.s32 5, %v3253
  %v3255 = vrot.slane %v3018, %v3254
  %3257 = vbcast.lane.b32.xlu0 %v3255, 256
  %v3258 = vpop.permute.xlu0 %3257
  %v3259 = vlaneseq
  %v3260 = vshrl.u32 %v3259, 7
  %v3261 = vsub.s32 6, %v3260
  %v3262 = vrot.slane %v3018, %v3261
  %3264 = vbcast.lane.b32.xlu0 %v3262, 256
  %v3265 = vpop.permute.xlu0 %3264
  %v3266 = vlaneseq
  %v3267 = vshrl.u32 %v3266, 7
  %v3268 = vsub.s32 7, %v3267
  %v3269 = vrot.slane %v3018, %v3268
  %3271 = vbcast.lane.b32.xlu0 %v3269, 256
  %v3272 = vpop.permute.xlu0 %3271
  %v3281 = vadd.f32 %v3207, %v3223
  %v3282 = vadd.f32 %v3208, %v3230
  %v3283 = vadd.f32 %v3209, %v3237
  %v3284 = vadd.f32 %v3210, %v3244
  %v3285 = vadd.f32 %v3211, %v3251
  %v3286 = vadd.f32 %v3212, %v3258
  %v3287 = vadd.f32 %v3213, %v3265
  %v3288 = vadd.f32 %v3214, %v3272
  %v3289 = vsel %vm3215, 1, 0
  %3290 = vset.pattern.permute.xlu0 0
  %3291 = vperm.xlu0 %3290, %v3289
  %v3292 = vpop.permute.xlu0 %3291
  %vm3293 = vcmp.eq.s32.totalorder %v3292, 1
  %3302 = vset.pattern.permute.xlu0 0
  %3303 = vperm.xlu0 %3302, %v3281
  %v3304 = vpop.permute.xlu0 %3303
  %3305 = vset.pattern.permute.xlu0 0
  %3306 = vperm.xlu0 %3305, %v3282
  %v3307 = vpop.permute.xlu0 %3306
  %3308 = vset.pattern.permute.xlu0 0
  %3309 = vperm.xlu0 %3308, %v3283
  %v3310 = vpop.permute.xlu0 %3309
  %3311 = vset.pattern.permute.xlu0 0
  %3312 = vperm.xlu0 %3311, %v3284
  %v3313 = vpop.permute.xlu0 %3312
  %3314 = vset.pattern.permute.xlu0 0
  %3315 = vperm.xlu0 %3314, %v3285
  %v3316 = vpop.permute.xlu0 %3315
  %3317 = vset.pattern.permute.xlu0 0
  %3318 = vperm.xlu0 %3317, %v3286
  %v3319 = vpop.permute.xlu0 %3318
  %3320 = vset.pattern.permute.xlu0 0
  %3321 = vperm.xlu0 %3320, %v3287
  %v3322 = vpop.permute.xlu0 %3321
  %3323 = vset.pattern.permute.xlu0 0
  %3324 = vperm.xlu0 %3323, %v3288
  %v3325 = vpop.permute.xlu0 %3324
  %v3326 = vlaneseq
  %v3327 = vshrl.u32 %v3326, 7
  %v3328 = vsub.s32 %v520, %v3327
  %v3329 = vrot.slane %v3304, %v3328
  %v3330 = vlaneseq
  %v3331 = vshrl.u32 %v3330, 7
  %v3332 = vsub.s32 %v520, %v3331
  %v3333 = vrot.slane %v3307, %v3332
  %v3334 = vlaneseq
  %v3335 = vshrl.u32 %v3334, 7
  %v3336 = vsub.s32 %v520, %v3335
  %v3337 = vrot.slane %v3310, %v3336
  %v3338 = vlaneseq
  %v3339 = vshrl.u32 %v3338, 7
  %v3340 = vsub.s32 %v520, %v3339
  %v3341 = vrot.slane %v3313, %v3340
  %v3342 = vlaneseq
  %v3343 = vshrl.u32 %v3342, 7
  %v3344 = vsub.s32 %v520, %v3343
  %v3345 = vrot.slane %v3316, %v3344
  %v3346 = vlaneseq
  %v3347 = vshrl.u32 %v3346, 7
  %v3348 = vsub.s32 %v520, %v3347
  %v3349 = vrot.slane %v3319, %v3348
  %v3350 = vlaneseq
  %v3351 = vshrl.u32 %v3350, 7
  %v3352 = vsub.s32 %v520, %v3351
  %v3353 = vrot.slane %v3322, %v3352
  %v3354 = vlaneseq
  %v3355 = vshrl.u32 %v3354, 7
  %v3356 = vsub.s32 %v520, %v3355
  %v3357 = vrot.slane %v3325, %v3356
  %v3358 = vsel %vm553, %v3333, %v3329
  %v3359 = vsel %vm555, %v3337, %v3358
  %v3360 = vsel %vm557, %v3341, %v3359
  %v3361 = vsel %vm559, %v3345, %v3360
  %v3362 = vsel %vm561, %v3349, %v3361
  %v3363 = vsel %vm563, %v3353, %v3362
  %v3364 = vsel %vm565, %v3357, %v3363
  %v3366 = vsel %vm3293, %v3364, %v2636
  %v3368 = vcombine.high %v2975, %v2975
  %v3370 = vunpack.c.l.s4 1966171168
  %v3371 = vunpack.c.0.s8 %v3370
  %v3372 = vlaneseq
  %v3373 = vshrl.u32 %v3372, 7
  %v3374 = vsub.s32 %v3371, %v3373
  %v3375 = vrot.slane %v2975, %v3374
  %v3377 = vunpack.c.l.s4 1966171168
  %v3378 = vunpack.c.0.s8 %v3377
  %v3379 = vlaneseq
  %v3380 = vshrl.u32 %v3379, 7
  %v3381 = vsub.s32 %v3378, %v3380
  %v3382 = vrot.slane %v3368, %v3381
  %v3383 = vcombine.high %v3375, %v3375
  %v3384 = vcombine.high %v3382, %v3382
  %v3386 = vunpack.c.l.s4 1966171168
  %v3387 = vunpack.c.0.s8 %v3386
  %v3388 = vlaneseq
  %v3389 = vshrl.u32 %v3388, 7
  %v3390 = vsub.s32 %v3387, %v3389
  %v3391 = vrot.slane %v3375, %v3390
  %v3393 = vunpack.c.l.s4 1966171168
  %v3394 = vunpack.c.0.s8 %v3393
  %v3395 = vlaneseq
  %v3396 = vshrl.u32 %v3395, 7
  %v3397 = vsub.s32 %v3394, %v3396
  %v3398 = vrot.slane %v3382, %v3397
  %v3400 = vunpack.c.l.s4 1966171168
  %v3401 = vunpack.c.0.s8 %v3400
  %v3402 = vlaneseq
  %v3403 = vshrl.u32 %v3402, 7
  %v3404 = vsub.s32 %v3401, %v3403
  %v3405 = vrot.slane %v3383, %v3404
  %v3407 = vunpack.c.l.s4 1966171168
  %v3408 = vunpack.c.0.s8 %v3407
  %v3409 = vlaneseq
  %v3410 = vshrl.u32 %v3409, 7
  %v3411 = vsub.s32 %v3408, %v3410
  %v3412 = vrot.slane %v3384, %v3411
  %v3413 = vcombine.high %v3391, %v3391
  %v3414 = vcombine.high %v3398, %v3398
  %v3415 = vcombine.high %v3405, %v3405
  %v3416 = vcombine.high %v3412, %v3412
  %v3417 = vlaneseq
  %v3418 = vshrl.u32 %v3417, 7
  %v3419 = vsub.s32 0, %v3418
  %v3420 = vrot.slane %v3391, %v3419
  %v3421 = vlaneseq
  %v3422 = vshrl.u32 %v3421, 7
  %v3423 = vsub.s32 0, %v3422
  %v3424 = vrot.slane %v3405, %v3423
  %v3425 = vlaneseq
  %v3426 = vshrl.u32 %v3425, 7
  %v3427 = vsub.s32 0, %v3426
  %v3428 = vrot.slane %v3413, %v3427
  %v3429 = vlaneseq
  %v3430 = vshrl.u32 %v3429, 7
  %v3431 = vsub.s32 0, %v3430
  %v3432 = vrot.slane %v3415, %v3431
  %v3433 = vlaneseq
  %v3434 = vshrl.u32 %v3433, 7
  %v3435 = vsub.s32 0, %v3434
  %v3436 = vrot.slane %v3398, %v3435
  %v3437 = vlaneseq
  %v3438 = vshrl.u32 %v3437, 7
  %v3439 = vsub.s32 0, %v3438
  %v3440 = vrot.slane %v3412, %v3439
  %v3441 = vlaneseq
  %v3442 = vshrl.u32 %v3441, 7
  %v3443 = vsub.s32 0, %v3442
  %v3444 = vrot.slane %v3414, %v3443
  %v3445 = vlaneseq
  %v3446 = vshrl.u32 %v3445, 7
  %v3447 = vsub.s32 0, %v3446
  %v3448 = vrot.slane %v3416, %v3447
  %v3457 = vadd.f32 %v3420, %v199
  %v3458 = vadd.f32 %v3424, %v199
  %v3459 = vadd.f32 %v3428, %v199
  %v3460 = vadd.f32 %v3432, %v199
  %v3461 = vadd.f32 %v3436, %v199
  %v3462 = vadd.f32 %v3440, %v199
  %v3463 = vadd.f32 %v3444, %v199
  %v3464 = vadd.f32 %v3448, %v199
  %v3465 = vsel %vm190, %v3457, -inf
  %3466 = vmax.xlane.f32.xlu0 %v3465
  %v3467 = vpop.xlane.xlu0 %3466
  %v3468 = vsel %vm190, %v3458, -inf
  %3469 = vmax.xlane.f32.xlu0 %v3468
  %v3470 = vpop.xlane.xlu0 %3469
  %v3471 = vsel %vm190, %v3459, -inf
  %3472 = vmax.xlane.f32.xlu0 %v3471
  %v3473 = vpop.xlane.xlu0 %3472
  %v3474 = vsel %vm190, %v3460, -inf
  %3475 = vmax.xlane.f32.xlu0 %v3474
  %v3476 = vpop.xlane.xlu0 %3475
  %v3477 = vsel %vm190, %v3461, -inf
  %3478 = vmax.xlane.f32.xlu0 %v3477
  %v3479 = vpop.xlane.xlu0 %3478
  %v3480 = vsel %vm190, %v3462, -inf
  %3481 = vmax.xlane.f32.xlu0 %v3480
  %v3482 = vpop.xlane.xlu0 %3481
  %v3483 = vsel %vm190, %v3463, -inf
  %3484 = vmax.xlane.f32.xlu0 %v3483
  %v3485 = vpop.xlane.xlu0 %3484
  %v3486 = vsel %vm190, %v3464, -inf
  %3487 = vmax.xlane.f32.xlu0 %v3486
  %v3488 = vpop.xlane.xlu0 %3487
  %vm3489 = vcmp.eq.f32.partialorder %v3457, %v3467
  %vm3490 = vcmp.eq.f32.partialorder %v3458, %v3470
  %vm3491 = vcmp.eq.f32.partialorder %v3459, %v3473
  %vm3492 = vcmp.eq.f32.partialorder %v3460, %v3476
  %vm3493 = vcmp.eq.f32.partialorder %v3461, %v3479
  %vm3494 = vcmp.eq.f32.partialorder %v3462, %v3482
  %vm3495 = vcmp.eq.f32.partialorder %v3463, %v3485
  %vm3496 = vcmp.eq.f32.partialorder %v3464, %v3488
  %v3497 = vsel %vm3489, %v520, 8
  %v3498 = vsel %vm3490, %v520, 8
  %v3499 = vsel %vm3491, %v520, 8
  %v3500 = vsel %vm3492, %v520, 8
  %v3501 = vsel %vm3493, %v520, 8
  %v3502 = vsel %vm3494, %v520, 8
  %v3503 = vsel %vm3495, %v520, 8
  %v3504 = vsel %vm3496, %v520, 8
  %v3505 = vsel %vm190, %v3497, 2147483647
  %v3506 = vand.u32 %v3505, 65535
  %v3507 = vshra.s32 %v3505, 16
  %v3508 = vcvt.s32.f32 %v3506
  %v3509 = vcvt.s32.f32 %v3507
  %3510 = vmin.xlane.f32.xlu0 %v3509
  %v3511 = vpop.xlane.xlu0 %3510
  %vm3512 = vcmp.eq.f32.partialorder %v3509, %v3511
  %v3513 = vsel %vm3512, %v3508, inf
  %3514 = vmin.xlane.f32.xlu0 %v3513
  %v3515 = vpop.xlane.xlu0 %3514
  %v3516 = vcvt.f32.s32 %v3515
  %v3517 = vcvt.f32.s32 %v3511
  %v3518 = vshll.u32 %v3517, 16
  %v3519 = vadd.s32 %v3518, %v3516
  %v3520 = vsel %vm190, %v3498, 2147483647
  %v3521 = vand.u32 %v3520, 65535
  %v3522 = vshra.s32 %v3520, 16
  %v3523 = vcvt.s32.f32 %v3521
  %v3524 = vcvt.s32.f32 %v3522
  %3525 = vmin.xlane.f32.xlu0 %v3524
  %v3526 = vpop.xlane.xlu0 %3525
  %vm3527 = vcmp.eq.f32.partialorder %v3524, %v3526
  %v3528 = vsel %vm3527, %v3523, inf
  %3529 = vmin.xlane.f32.xlu0 %v3528
  %v3530 = vpop.xlane.xlu0 %3529
  %v3531 = vcvt.f32.s32 %v3530
  %v3532 = vcvt.f32.s32 %v3526
  %v3533 = vshll.u32 %v3532, 16
  %v3534 = vadd.s32 %v3533, %v3531
  %v3535 = vsel %vm190, %v3499, 2147483647
  %v3536 = vand.u32 %v3535, 65535
  %v3537 = vshra.s32 %v3535, 16
  %v3538 = vcvt.s32.f32 %v3536
  %v3539 = vcvt.s32.f32 %v3537
  %3540 = vmin.xlane.f32.xlu0 %v3539
  %v3541 = vpop.xlane.xlu0 %3540
  %vm3542 = vcmp.eq.f32.partialorder %v3539, %v3541
  %v3543 = vsel %vm3542, %v3538, inf
  %3544 = vmin.xlane.f32.xlu0 %v3543
  %v3545 = vpop.xlane.xlu0 %3544
  %v3546 = vcvt.f32.s32 %v3545
  %v3547 = vcvt.f32.s32 %v3541
  %v3548 = vshll.u32 %v3547, 16
  %v3549 = vadd.s32 %v3548, %v3546
  %v3550 = vsel %vm190, %v3500, 2147483647
  %v3551 = vand.u32 %v3550, 65535
  %v3552 = vshra.s32 %v3550, 16
  %v3553 = vcvt.s32.f32 %v3551
  %v3554 = vcvt.s32.f32 %v3552
  %3555 = vmin.xlane.f32.xlu0 %v3554
  %v3556 = vpop.xlane.xlu0 %3555
  %vm3557 = vcmp.eq.f32.partialorder %v3554, %v3556
  %v3558 = vsel %vm3557, %v3553, inf
  %3559 = vmin.xlane.f32.xlu0 %v3558
  %v3560 = vpop.xlane.xlu0 %3559
  %v3561 = vcvt.f32.s32 %v3560
  %v3562 = vcvt.f32.s32 %v3556
  %v3563 = vshll.u32 %v3562, 16
  %v3564 = vadd.s32 %v3563, %v3561
  %v3565 = vsel %vm190, %v3501, 2147483647
  %v3566 = vand.u32 %v3565, 65535
  %v3567 = vshra.s32 %v3565, 16
  %v3568 = vcvt.s32.f32 %v3566
  %v3569 = vcvt.s32.f32 %v3567
  %3570 = vmin.xlane.f32.xlu0 %v3569
  %v3571 = vpop.xlane.xlu0 %3570
  %vm3572 = vcmp.eq.f32.partialorder %v3569, %v3571
  %v3573 = vsel %vm3572, %v3568, inf
  %3574 = vmin.xlane.f32.xlu0 %v3573
  %v3575 = vpop.xlane.xlu0 %3574
  %v3576 = vcvt.f32.s32 %v3575
  %v3577 = vcvt.f32.s32 %v3571
  %v3578 = vshll.u32 %v3577, 16
  %v3579 = vadd.s32 %v3578, %v3576
  %v3580 = vsel %vm190, %v3502, 2147483647
  %v3581 = vand.u32 %v3580, 65535
  %v3582 = vshra.s32 %v3580, 16
  %v3583 = vcvt.s32.f32 %v3581
  %v3584 = vcvt.s32.f32 %v3582
  %3585 = vmin.xlane.f32.xlu0 %v3584
  %v3586 = vpop.xlane.xlu0 %3585
  %vm3587 = vcmp.eq.f32.partialorder %v3584, %v3586
  %v3588 = vsel %vm3587, %v3583, inf
  %3589 = vmin.xlane.f32.xlu0 %v3588
  %v3590 = vpop.xlane.xlu0 %3589
  %v3591 = vcvt.f32.s32 %v3590
  %v3592 = vcvt.f32.s32 %v3586
  %v3593 = vshll.u32 %v3592, 16
  %v3594 = vadd.s32 %v3593, %v3591
  %v3595 = vsel %vm190, %v3503, 2147483647
  %v3596 = vand.u32 %v3595, 65535
  %v3597 = vshra.s32 %v3595, 16
  %v3598 = vcvt.s32.f32 %v3596
  %v3599 = vcvt.s32.f32 %v3597
  %3600 = vmin.xlane.f32.xlu0 %v3599
  %v3601 = vpop.xlane.xlu0 %3600
  %vm3602 = vcmp.eq.f32.partialorder %v3599, %v3601
  %v3603 = vsel %vm3602, %v3598, inf
  %3604 = vmin.xlane.f32.xlu0 %v3603
  %v3605 = vpop.xlane.xlu0 %3604
  %v3606 = vcvt.f32.s32 %v3605
  %v3607 = vcvt.f32.s32 %v3601
  %v3608 = vshll.u32 %v3607, 16
  %v3609 = vadd.s32 %v3608, %v3606
  %v3610 = vsel %vm190, %v3504, 2147483647
  %v3611 = vand.u32 %v3610, 65535
  %v3612 = vshra.s32 %v3610, 16
  %v3613 = vcvt.s32.f32 %v3611
  %v3614 = vcvt.s32.f32 %v3612
  %3615 = vmin.xlane.f32.xlu0 %v3614
  %v3616 = vpop.xlane.xlu0 %3615
  %vm3617 = vcmp.eq.f32.partialorder %v3614, %v3616
  %v3618 = vsel %vm3617, %v3613, inf
  %3619 = vmin.xlane.f32.xlu0 %v3618
  %v3620 = vpop.xlane.xlu0 %3619
  %v3621 = vcvt.f32.s32 %v3620
  %v3622 = vcvt.f32.s32 %v3616
  %v3623 = vshll.u32 %v3622, 16
  %v3624 = vadd.s32 %v3623, %v3621
  %v3625 = vadd.f32 %v3467, %v3223
  %v3626 = vadd.f32 %v3470, %v3230
  %v3627 = vadd.f32 %v3473, %v3237
  %v3628 = vadd.f32 %v3476, %v3244
  %v3629 = vadd.f32 %v3479, %v3251
  %v3630 = vadd.f32 %v3482, %v3258
  %v3631 = vadd.f32 %v3485, %v3265
  %v3632 = vadd.f32 %v3488, %v3272
  %3641 = vset.pattern.permute.xlu0 0
  %3642 = vperm.xlu0 %3641, %v3625
  %v3643 = vpop.permute.xlu0 %3642
  %3644 = vset.pattern.permute.xlu0 0
  %3645 = vperm.xlu0 %3644, %v3626
  %v3646 = vpop.permute.xlu0 %3645
  %3647 = vset.pattern.permute.xlu0 0
  %3648 = vperm.xlu0 %3647, %v3627
  %v3649 = vpop.permute.xlu0 %3648
  %3650 = vset.pattern.permute.xlu0 0
  %3651 = vperm.xlu0 %3650, %v3628
  %v3652 = vpop.permute.xlu0 %3651
  %3653 = vset.pattern.permute.xlu0 0
  %3654 = vperm.xlu0 %3653, %v3629
  %v3655 = vpop.permute.xlu0 %3654
  %3656 = vset.pattern.permute.xlu0 0
  %3657 = vperm.xlu0 %3656, %v3630
  %v3658 = vpop.permute.xlu0 %3657
  %3659 = vset.pattern.permute.xlu0 0
  %3660 = vperm.xlu0 %3659, %v3631
  %v3661 = vpop.permute.xlu0 %3660
  %3662 = vset.pattern.permute.xlu0 0
  %3663 = vperm.xlu0 %3662, %v3632
  %v3664 = vpop.permute.xlu0 %3663
  %v3665 = vlaneseq
  %v3666 = vshrl.u32 %v3665, 7
  %v3667 = vsub.s32 %v520, %v3666
  %v3668 = vrot.slane %v3643, %v3667
  %v3669 = vlaneseq
  %v3670 = vshrl.u32 %v3669, 7
  %v3671 = vsub.s32 %v520, %v3670
  %v3672 = vrot.slane %v3646, %v3671
  %v3673 = vlaneseq
  %v3674 = vshrl.u32 %v3673, 7
  %v3675 = vsub.s32 %v520, %v3674
  %v3676 = vrot.slane %v3649, %v3675
  %v3677 = vlaneseq
  %v3678 = vshrl.u32 %v3677, 7
  %v3679 = vsub.s32 %v520, %v3678
  %v3680 = vrot.slane %v3652, %v3679
  %v3681 = vlaneseq
  %v3682 = vshrl.u32 %v3681, 7
  %v3683 = vsub.s32 %v520, %v3682
  %v3684 = vrot.slane %v3655, %v3683
  %v3685 = vlaneseq
  %v3686 = vshrl.u32 %v3685, 7
  %v3687 = vsub.s32 %v520, %v3686
  %v3688 = vrot.slane %v3658, %v3687
  %v3689 = vlaneseq
  %v3690 = vshrl.u32 %v3689, 7
  %v3691 = vsub.s32 %v520, %v3690
  %v3692 = vrot.slane %v3661, %v3691
  %v3693 = vlaneseq
  %v3694 = vshrl.u32 %v3693, 7
  %v3695 = vsub.s32 %v520, %v3694
  %v3696 = vrot.slane %v3664, %v3695
  %v3697 = vsel %vm553, %v3672, %v3668
  %v3698 = vsel %vm555, %v3676, %v3697
  %v3699 = vsel %vm557, %v3680, %v3698
  %v3700 = vsel %vm559, %v3684, %v3699
  %v3701 = vsel %vm561, %v3688, %v3700
  %v3702 = vsel %vm563, %v3692, %v3701
  %v3703 = vsel %vm565, %v3696, %v3702
  %v3705 = vsel %vm3293, %v3703, %v2975
  %v3706 = vlaneseq
  %v3707 = vshrl.u32 %v3706, 7
  %v3708 = vsub.s32 %v520, %v3707
  %v3709 = vrot.slane %v3519, %v3708
  %v3710 = vlaneseq
  %v3711 = vshrl.u32 %v3710, 7
  %v3712 = vsub.s32 %v520, %v3711
  %v3713 = vrot.slane %v3534, %v3712
  %v3714 = vlaneseq
  %v3715 = vshrl.u32 %v3714, 7
  %v3716 = vsub.s32 %v520, %v3715
  %v3717 = vrot.slane %v3549, %v3716
  %v3718 = vlaneseq
  %v3719 = vshrl.u32 %v3718, 7
  %v3720 = vsub.s32 %v520, %v3719
  %v3721 = vrot.slane %v3564, %v3720
  %v3722 = vlaneseq
  %v3723 = vshrl.u32 %v3722, 7
  %v3724 = vsub.s32 %v520, %v3723
  %v3725 = vrot.slane %v3579, %v3724
  %v3726 = vlaneseq
  %v3727 = vshrl.u32 %v3726, 7
  %v3728 = vsub.s32 %v520, %v3727
  %v3729 = vrot.slane %v3594, %v3728
  %v3730 = vlaneseq
  %v3731 = vshrl.u32 %v3730, 7
  %v3732 = vsub.s32 %v520, %v3731
  %v3733 = vrot.slane %v3609, %v3732
  %v3734 = vlaneseq
  %v3735 = vshrl.u32 %v3734, 7
  %v3736 = vsub.s32 %v520, %v3735
  %v3737 = vrot.slane %v3624, %v3736
  %v3738 = vsel %vm553, %v3713, %v3709
  %v3739 = vsel %vm555, %v3717, %v3738
  %v3740 = vsel %vm557, %v3721, %v3739
  %v3741 = vsel %vm559, %v3725, %v3740
  %v3742 = vsel %vm561, %v3729, %v3741
  %v3743 = vsel %vm563, %v3733, %v3742
  %v3744 = vsel %vm565, %v3737, %v3743
  %s3745 = scalar_lea.vmem %s10, 40
  %3746 = vst.msk [vmem:[%s3745] sm:$0xff] %vm190, %v3744
  %s3747 = scalar_lea.vmem %s7, 48
  %v3748 = vld [vmem:[%s3747] sm:$0xff]
  %s3749 = scalar_lea.vmem %s3, 48
  %v3750 = vld [vmem:[%s3749] sm:$0xff]
  %v3752 = vcombine.high %v3366, %v3366
  %v3754 = vunpack.c.l.s4 1966171168
  %v3755 = vunpack.c.0.s8 %v3754
  %v3756 = vlaneseq
  %v3757 = vshrl.u32 %v3756, 7
  %v3758 = vsub.s32 %v3755, %v3757
  %v3759 = vrot.slane %v3366, %v3758
  %v3761 = vunpack.c.l.s4 1966171168
  %v3762 = vunpack.c.0.s8 %v3761
  %v3763 = vlaneseq
  %v3764 = vshrl.u32 %v3763, 7
  %v3765 = vsub.s32 %v3762, %v3764
  %v3766 = vrot.slane %v3752, %v3765
  %v3767 = vcombine.high %v3759, %v3759
  %v3768 = vcombine.high %v3766, %v3766
  %v3770 = vunpack.c.l.s4 1966171168
  %v3771 = vunpack.c.0.s8 %v3770
  %v3772 = vlaneseq
  %v3773 = vshrl.u32 %v3772, 7
  %v3774 = vsub.s32 %v3771, %v3773
  %v3775 = vrot.slane %v3759, %v3774
  %v3777 = vunpack.c.l.s4 1966171168
  %v3778 = vunpack.c.0.s8 %v3777
  %v3779 = vlaneseq
  %v3780 = vshrl.u32 %v3779, 7
  %v3781 = vsub.s32 %v3778, %v3780
  %v3782 = vrot.slane %v3766, %v3781
  %v3784 = vunpack.c.l.s4 1966171168
  %v3785 = vunpack.c.0.s8 %v3784
  %v3786 = vlaneseq
  %v3787 = vshrl.u32 %v3786, 7
  %v3788 = vsub.s32 %v3785, %v3787
  %v3789 = vrot.slane %v3767, %v3788
  %v3791 = vunpack.c.l.s4 1966171168
  %v3792 = vunpack.c.0.s8 %v3791
  %v3793 = vlaneseq
  %v3794 = vshrl.u32 %v3793, 7
  %v3795 = vsub.s32 %v3792, %v3794
  %v3796 = vrot.slane %v3768, %v3795
  %v3797 = vcombine.high %v3775, %v3775
  %v3798 = vcombine.high %v3782, %v3782
  %v3799 = vcombine.high %v3789, %v3789
  %v3800 = vcombine.high %v3796, %v3796
  %v3801 = vlaneseq
  %v3802 = vshrl.u32 %v3801, 7
  %v3803 = vsub.s32 0, %v3802
  %v3804 = vrot.slane %v3775, %v3803
  %v3805 = vlaneseq
  %v3806 = vshrl.u32 %v3805, 7
  %v3807 = vsub.s32 0, %v3806
  %v3808 = vrot.slane %v3789, %v3807
  %v3809 = vlaneseq
  %v3810 = vshrl.u32 %v3809, 7
  %v3811 = vsub.s32 0, %v3810
  %v3812 = vrot.slane %v3797, %v3811
  %v3813 = vlaneseq
  %v3814 = vshrl.u32 %v3813, 7
  %v3815 = vsub.s32 0, %v3814
  %v3816 = vrot.slane %v3799, %v3815
  %v3817 = vlaneseq
  %v3818 = vshrl.u32 %v3817, 7
  %v3819 = vsub.s32 0, %v3818
  %v3820 = vrot.slane %v3782, %v3819
  %v3821 = vlaneseq
  %v3822 = vshrl.u32 %v3821, 7
  %v3823 = vsub.s32 0, %v3822
  %v3824 = vrot.slane %v3796, %v3823
  %v3825 = vlaneseq
  %v3826 = vshrl.u32 %v3825, 7
  %v3827 = vsub.s32 0, %v3826
  %v3828 = vrot.slane %v3798, %v3827
  %v3829 = vlaneseq
  %v3830 = vshrl.u32 %v3829, 7
  %v3831 = vsub.s32 0, %v3830
  %v3832 = vrot.slane %v3800, %v3831
  %v3841 = vadd.f32 %v3804, %v199
  %v3842 = vadd.f32 %v3808, %v199
  %v3843 = vadd.f32 %v3812, %v199
  %v3844 = vadd.f32 %v3816, %v199
  %v3845 = vadd.f32 %v3820, %v199
  %v3846 = vadd.f32 %v3824, %v199
  %v3847 = vadd.f32 %v3828, %v199
  %v3848 = vadd.f32 %v3832, %v199
  %v3849 = vsel %vm190, %v3841, -inf
  %3850 = vmax.xlane.f32.xlu0 %v3849
  %v3851 = vpop.xlane.xlu0 %3850
  %v3852 = vsel %vm190, %v3842, -inf
  %3853 = vmax.xlane.f32.xlu0 %v3852
  %v3854 = vpop.xlane.xlu0 %3853
  %v3855 = vsel %vm190, %v3843, -inf
  %3856 = vmax.xlane.f32.xlu0 %v3855
  %v3857 = vpop.xlane.xlu0 %3856
  %v3858 = vsel %vm190, %v3844, -inf
  %3859 = vmax.xlane.f32.xlu0 %v3858
  %v3860 = vpop.xlane.xlu0 %3859
  %v3861 = vsel %vm190, %v3845, -inf
  %3862 = vmax.xlane.f32.xlu0 %v3861
  %v3863 = vpop.xlane.xlu0 %3862
  %v3864 = vsel %vm190, %v3846, -inf
  %3865 = vmax.xlane.f32.xlu0 %v3864
  %v3866 = vpop.xlane.xlu0 %3865
  %v3867 = vsel %vm190, %v3847, -inf
  %3868 = vmax.xlane.f32.xlu0 %v3867
  %v3869 = vpop.xlane.xlu0 %3868
  %v3870 = vsel %vm190, %v3848, -inf
  %3871 = vmax.xlane.f32.xlu0 %v3870
  %v3872 = vpop.xlane.xlu0 %3871
  %v3873 = vsub.f32 %v3841, %v3851
  %v3874 = vsub.f32 %v3842, %v3854
  %v3875 = vsub.f32 %v3843, %v3857
  %v3876 = vsub.f32 %v3844, %v3860
  %v3877 = vsub.f32 %v3845, %v3863
  %v3878 = vsub.f32 %v3846, %v3866
  %v3879 = vsub.f32 %v3847, %v3869
  %v3880 = vsub.f32 %v3848, %v3872
  %v3881 = vmul.f32 %v3873, 1.442695
  %v3882 = vpow.pop %v3881
  %v3883 = vmul.f32 %v3874, 1.442695
  %v3884 = vpow.pop %v3883
  %v3885 = vmul.f32 %v3875, 1.442695
  %v3886 = vpow.pop %v3885
  %v3887 = vmul.f32 %v3876, 1.442695
  %v3888 = vpow.pop %v3887
  %v3889 = vmul.f32 %v3877, 1.442695
  %v3890 = vpow.pop %v3889
  %v3891 = vmul.f32 %v3878, 1.442695
  %v3892 = vpow.pop %v3891
  %v3893 = vmul.f32 %v3879, 1.442695
  %v3894 = vpow.pop %v3893
  %v3895 = vmul.f32 %v3880, 1.442695
  %v3896 = vpow.pop %v3895
  %v3897 = vsel %vm190, %v3882, 0.0
  %3898 = vadd.xlane.f32.xlu0 %v3897
  %v3899 = vpop.xlane.xlu0 %3898
  %v3900 = vsel %vm190, %v3884, 0.0
  %3901 = vadd.xlane.f32.xlu0 %v3900
  %v3902 = vpop.xlane.xlu0 %3901
  %v3903 = vsel %vm190, %v3886, 0.0
  %3904 = vadd.xlane.f32.xlu0 %v3903
  %v3905 = vpop.xlane.xlu0 %3904
  %v3906 = vsel %vm190, %v3888, 0.0
  %3907 = vadd.xlane.f32.xlu0 %v3906
  %v3908 = vpop.xlane.xlu0 %3907
  %v3909 = vsel %vm190, %v3890, 0.0
  %3910 = vadd.xlane.f32.xlu0 %v3909
  %v3911 = vpop.xlane.xlu0 %3910
  %v3912 = vsel %vm190, %v3892, 0.0
  %3913 = vadd.xlane.f32.xlu0 %v3912
  %v3914 = vpop.xlane.xlu0 %3913
  %v3915 = vsel %vm190, %v3894, 0.0
  %3916 = vadd.xlane.f32.xlu0 %v3915
  %v3917 = vpop.xlane.xlu0 %3916
  %v3918 = vsel %vm190, %v3896, 0.0
  %3919 = vadd.xlane.f32.xlu0 %v3918
  %v3920 = vpop.xlane.xlu0 %3919
  %v3921 = vlog2.pop %v3899
  %v3922 = vmul.f32 %v3921, 0.6931472
  %v3923 = vlog2.pop %v3902
  %v3924 = vmul.f32 %v3923, 0.6931472
  %v3925 = vlog2.pop %v3905
  %v3926 = vmul.f32 %v3925, 0.6931472
  %v3927 = vlog2.pop %v3908
  %v3928 = vmul.f32 %v3927, 0.6931472
  %v3929 = vlog2.pop %v3911
  %v3930 = vmul.f32 %v3929, 0.6931472
  %v3931 = vlog2.pop %v3914
  %v3932 = vmul.f32 %v3931, 0.6931472
  %v3933 = vlog2.pop %v3917
  %v3934 = vmul.f32 %v3933, 0.6931472
  %v3935 = vlog2.pop %v3920
  %v3936 = vmul.f32 %v3935, 0.6931472
  %v3937 = vadd.f32 %v3922, %v3851
  %v3938 = vadd.f32 %v3924, %v3854
  %v3939 = vadd.f32 %v3926, %v3857
  %v3940 = vadd.f32 %v3928, %v3860
  %v3941 = vadd.f32 %v3930, %v3863
  %v3942 = vadd.f32 %v3932, %v3866
  %v3943 = vadd.f32 %v3934, %v3869
  %v3944 = vadd.f32 %v3936, %v3872
  %vm3945 = vcmp.gt.f32.partialorder %v3750, 0.0
  %v3947 = vlaneseq
  %v3948 = vshrl.u32 %v3947, 7
  %v3949 = vsub.s32 0, %v3948
  %v3950 = vrot.slane %v3748, %v3949
  %3952 = vbcast.lane.b32.xlu0 %v3950, 256
  %v3953 = vpop.permute.xlu0 %3952
  %v3954 = vlaneseq
  %v3955 = vshrl.u32 %v3954, 7
  %v3956 = vsub.s32 1, %v3955
  %v3957 = vrot.slane %v3748, %v3956
  %3959 = vbcast.lane.b32.xlu0 %v3957, 256
  %v3960 = vpop.permute.xlu0 %3959
  %v3961 = vlaneseq
  %v3962 = vshrl.u32 %v3961, 7
  %v3963 = vsub.s32 2, %v3962
  %v3964 = vrot.slane %v3748, %v3963
  %3966 = vbcast.lane.b32.xlu0 %v3964, 256
  %v3967 = vpop.permute.xlu0 %3966
  %v3968 = vlaneseq
  %v3969 = vshrl.u32 %v3968, 7
  %v3970 = vsub.s32 3, %v3969
  %v3971 = vrot.slane %v3748, %v3970
  %3973 = vbcast.lane.b32.xlu0 %v3971, 256
  %v3974 = vpop.permute.xlu0 %3973
  %v3975 = vlaneseq
  %v3976 = vshrl.u32 %v3975, 7
  %v3977 = vsub.s32 4, %v3976
  %v3978 = vrot.slane %v3748, %v3977
  %3980 = vbcast.lane.b32.xlu0 %v3978, 256
  %v3981 = vpop.permute.xlu0 %3980
  %v3982 = vlaneseq
  %v3983 = vshrl.u32 %v3982, 7
  %v3984 = vsub.s32 5, %v3983
  %v3985 = vrot.slane %v3748, %v3984
  %3987 = vbcast.lane.b32.xlu0 %v3985, 256
  %v3988 = vpop.permute.xlu0 %3987
  %v3989 = vlaneseq
  %v3990 = vshrl.u32 %v3989, 7
  %v3991 = vsub.s32 6, %v3990
  %v3992 = vrot.slane %v3748, %v3991
  %3994 = vbcast.lane.b32.xlu0 %v3992, 256
  %v3995 = vpop.permute.xlu0 %3994
  %v3996 = vlaneseq
  %v3997 = vshrl.u32 %v3996, 7
  %v3998 = vsub.s32 7, %v3997
  %v3999 = vrot.slane %v3748, %v3998
  %4001 = vbcast.lane.b32.xlu0 %v3999, 256
  %v4002 = vpop.permute.xlu0 %4001
  %v4011 = vadd.f32 %v3937, %v3953
  %v4012 = vadd.f32 %v3938, %v3960
  %v4013 = vadd.f32 %v3939, %v3967
  %v4014 = vadd.f32 %v3940, %v3974
  %v4015 = vadd.f32 %v3941, %v3981
  %v4016 = vadd.f32 %v3942, %v3988
  %v4017 = vadd.f32 %v3943, %v3995
  %v4018 = vadd.f32 %v3944, %v4002
  %v4019 = vsel %vm3945, 1, 0
  %4020 = vset.pattern.permute.xlu0 0
  %4021 = vperm.xlu0 %4020, %v4019
  %v4022 = vpop.permute.xlu0 %4021
  %vm4023 = vcmp.eq.s32.totalorder %v4022, 1
  %4032 = vset.pattern.permute.xlu0 0
  %4033 = vperm.xlu0 %4032, %v4011
  %v4034 = vpop.permute.xlu0 %4033
  %4035 = vset.pattern.permute.xlu0 0
  %4036 = vperm.xlu0 %4035, %v4012
  %v4037 = vpop.permute.xlu0 %4036
  %4038 = vset.pattern.permute.xlu0 0
  %4039 = vperm.xlu0 %4038, %v4013
  %v4040 = vpop.permute.xlu0 %4039
  %4041 = vset.pattern.permute.xlu0 0
  %4042 = vperm.xlu0 %4041, %v4014
  %v4043 = vpop.permute.xlu0 %4042
  %4044 = vset.pattern.permute.xlu0 0
  %4045 = vperm.xlu0 %4044, %v4015
  %v4046 = vpop.permute.xlu0 %4045
  %4047 = vset.pattern.permute.xlu0 0
  %4048 = vperm.xlu0 %4047, %v4016
  %v4049 = vpop.permute.xlu0 %4048
  %4050 = vset.pattern.permute.xlu0 0
  %4051 = vperm.xlu0 %4050, %v4017
  %v4052 = vpop.permute.xlu0 %4051
  %4053 = vset.pattern.permute.xlu0 0
  %4054 = vperm.xlu0 %4053, %v4018
  %v4055 = vpop.permute.xlu0 %4054
  %v4056 = vlaneseq
  %v4057 = vshrl.u32 %v4056, 7
  %v4058 = vsub.s32 %v520, %v4057
  %v4059 = vrot.slane %v4034, %v4058
  %v4060 = vlaneseq
  %v4061 = vshrl.u32 %v4060, 7
  %v4062 = vsub.s32 %v520, %v4061
  %v4063 = vrot.slane %v4037, %v4062
  %v4064 = vlaneseq
  %v4065 = vshrl.u32 %v4064, 7
  %v4066 = vsub.s32 %v520, %v4065
  %v4067 = vrot.slane %v4040, %v4066
  %v4068 = vlaneseq
  %v4069 = vshrl.u32 %v4068, 7
  %v4070 = vsub.s32 %v520, %v4069
  %v4071 = vrot.slane %v4043, %v4070
  %v4072 = vlaneseq
  %v4073 = vshrl.u32 %v4072, 7
  %v4074 = vsub.s32 %v520, %v4073
  %v4075 = vrot.slane %v4046, %v4074
  %v4076 = vlaneseq
  %v4077 = vshrl.u32 %v4076, 7
  %v4078 = vsub.s32 %v520, %v4077
  %v4079 = vrot.slane %v4049, %v4078
  %v4080 = vlaneseq
  %v4081 = vshrl.u32 %v4080, 7
  %v4082 = vsub.s32 %v520, %v4081
  %v4083 = vrot.slane %v4052, %v4082
  %v4084 = vlaneseq
  %v4085 = vshrl.u32 %v4084, 7
  %v4086 = vsub.s32 %v520, %v4085
  %v4087 = vrot.slane %v4055, %v4086
  %v4088 = vsel %vm553, %v4063, %v4059
  %v4089 = vsel %vm555, %v4067, %v4088
  %v4090 = vsel %vm557, %v4071, %v4089
  %v4091 = vsel %vm559, %v4075, %v4090
  %v4092 = vsel %vm561, %v4079, %v4091
  %v4093 = vsel %vm563, %v4083, %v4092
  %v4094 = vsel %vm565, %v4087, %v4093
  %v4096 = vsel %vm4023, %v4094, %v3366
  %v4098 = vcombine.high %v3705, %v3705
  %v4100 = vunpack.c.l.s4 1966171168
  %v4101 = vunpack.c.0.s8 %v4100
  %v4102 = vlaneseq
  %v4103 = vshrl.u32 %v4102, 7
  %v4104 = vsub.s32 %v4101, %v4103
  %v4105 = vrot.slane %v3705, %v4104
  %v4107 = vunpack.c.l.s4 1966171168
  %v4108 = vunpack.c.0.s8 %v4107
  %v4109 = vlaneseq
  %v4110 = vshrl.u32 %v4109, 7
  %v4111 = vsub.s32 %v4108, %v4110
  %v4112 = vrot.slane %v4098, %v4111
  %v4113 = vcombine.high %v4105, %v4105
  %v4114 = vcombine.high %v4112, %v4112
  %v4116 = vunpack.c.l.s4 1966171168
  %v4117 = vunpack.c.0.s8 %v4116
  %v4118 = vlaneseq
  %v4119 = vshrl.u32 %v4118, 7
  %v4120 = vsub.s32 %v4117, %v4119
  %v4121 = vrot.slane %v4105, %v4120
  %v4123 = vunpack.c.l.s4 1966171168
  %v4124 = vunpack.c.0.s8 %v4123
  %v4125 = vlaneseq
  %v4126 = vshrl.u32 %v4125, 7
  %v4127 = vsub.s32 %v4124, %v4126
  %v4128 = vrot.slane %v4112, %v4127
  %v4130 = vunpack.c.l.s4 1966171168
  %v4131 = vunpack.c.0.s8 %v4130
  %v4132 = vlaneseq
  %v4133 = vshrl.u32 %v4132, 7
  %v4134 = vsub.s32 %v4131, %v4133
  %v4135 = vrot.slane %v4113, %v4134
  %v4137 = vunpack.c.l.s4 1966171168
  %v4138 = vunpack.c.0.s8 %v4137
  %v4139 = vlaneseq
  %v4140 = vshrl.u32 %v4139, 7
  %v4141 = vsub.s32 %v4138, %v4140
  %v4142 = vrot.slane %v4114, %v4141
  %v4143 = vcombine.high %v4121, %v4121
  %v4144 = vcombine.high %v4128, %v4128
  %v4145 = vcombine.high %v4135, %v4135
  %v4146 = vcombine.high %v4142, %v4142
  %v4147 = vlaneseq
  %v4148 = vshrl.u32 %v4147, 7
  %v4149 = vsub.s32 0, %v4148
  %v4150 = vrot.slane %v4121, %v4149
  %v4151 = vlaneseq
  %v4152 = vshrl.u32 %v4151, 7
  %v4153 = vsub.s32 0, %v4152
  %v4154 = vrot.slane %v4135, %v4153
  %v4155 = vlaneseq
  %v4156 = vshrl.u32 %v4155, 7
  %v4157 = vsub.s32 0, %v4156
  %v4158 = vrot.slane %v4143, %v4157
  %v4159 = vlaneseq
  %v4160 = vshrl.u32 %v4159, 7
  %v4161 = vsub.s32 0, %v4160
  %v4162 = vrot.slane %v4145, %v4161
  %v4163 = vlaneseq
  %v4164 = vshrl.u32 %v4163, 7
  %v4165 = vsub.s32 0, %v4164
  %v4166 = vrot.slane %v4128, %v4165
  %v4167 = vlaneseq
  %v4168 = vshrl.u32 %v4167, 7
  %v4169 = vsub.s32 0, %v4168
  %v4170 = vrot.slane %v4142, %v4169
  %v4171 = vlaneseq
  %v4172 = vshrl.u32 %v4171, 7
  %v4173 = vsub.s32 0, %v4172
  %v4174 = vrot.slane %v4144, %v4173
  %v4175 = vlaneseq
  %v4176 = vshrl.u32 %v4175, 7
  %v4177 = vsub.s32 0, %v4176
  %v4178 = vrot.slane %v4146, %v4177
  %v4187 = vadd.f32 %v4150, %v199
  %v4188 = vadd.f32 %v4154, %v199
  %v4189 = vadd.f32 %v4158, %v199
  %v4190 = vadd.f32 %v4162, %v199
  %v4191 = vadd.f32 %v4166, %v199
  %v4192 = vadd.f32 %v4170, %v199
  %v4193 = vadd.f32 %v4174, %v199
  %v4194 = vadd.f32 %v4178, %v199
  %v4195 = vsel %vm190, %v4187, -inf
  %4196 = vmax.xlane.f32.xlu0 %v4195
  %v4197 = vpop.xlane.xlu0 %4196
  %v4198 = vsel %vm190, %v4188, -inf
  %4199 = vmax.xlane.f32.xlu0 %v4198
  %v4200 = vpop.xlane.xlu0 %4199
  %v4201 = vsel %vm190, %v4189, -inf
  %4202 = vmax.xlane.f32.xlu0 %v4201
  %v4203 = vpop.xlane.xlu0 %4202
  %v4204 = vsel %vm190, %v4190, -inf
  %4205 = vmax.xlane.f32.xlu0 %v4204
  %v4206 = vpop.xlane.xlu0 %4205
  %v4207 = vsel %vm190, %v4191, -inf
  %4208 = vmax.xlane.f32.xlu0 %v4207
  %v4209 = vpop.xlane.xlu0 %4208
  %v4210 = vsel %vm190, %v4192, -inf
  %4211 = vmax.xlane.f32.xlu0 %v4210
  %v4212 = vpop.xlane.xlu0 %4211
  %v4213 = vsel %vm190, %v4193, -inf
  %4214 = vmax.xlane.f32.xlu0 %v4213
  %v4215 = vpop.xlane.xlu0 %4214
  %v4216 = vsel %vm190, %v4194, -inf
  %4217 = vmax.xlane.f32.xlu0 %v4216
  %v4218 = vpop.xlane.xlu0 %4217
  %vm4219 = vcmp.eq.f32.partialorder %v4187, %v4197
  %vm4220 = vcmp.eq.f32.partialorder %v4188, %v4200
  %vm4221 = vcmp.eq.f32.partialorder %v4189, %v4203
  %vm4222 = vcmp.eq.f32.partialorder %v4190, %v4206
  %vm4223 = vcmp.eq.f32.partialorder %v4191, %v4209
  %vm4224 = vcmp.eq.f32.partialorder %v4192, %v4212
  %vm4225 = vcmp.eq.f32.partialorder %v4193, %v4215
  %vm4226 = vcmp.eq.f32.partialorder %v4194, %v4218
  %v4227 = vsel %vm4219, %v520, 8
  %v4228 = vsel %vm4220, %v520, 8
  %v4229 = vsel %vm4221, %v520, 8
  %v4230 = vsel %vm4222, %v520, 8
  %v4231 = vsel %vm4223, %v520, 8
  %v4232 = vsel %vm4224, %v520, 8
  %v4233 = vsel %vm4225, %v520, 8
  %v4234 = vsel %vm4226, %v520, 8
  %v4235 = vsel %vm190, %v4227, 2147483647
  %v4236 = vand.u32 %v4235, 65535
  %v4237 = vshra.s32 %v4235, 16
  %v4238 = vcvt.s32.f32 %v4236
  %v4239 = vcvt.s32.f32 %v4237
  %4240 = vmin.xlane.f32.xlu0 %v4239
  %v4241 = vpop.xlane.xlu0 %4240
  %vm4242 = vcmp.eq.f32.partialorder %v4239, %v4241
  %v4243 = vsel %vm4242, %v4238, inf
  %4244 = vmin.xlane.f32.xlu0 %v4243
  %v4245 = vpop.xlane.xlu0 %4244
  %v4246 = vcvt.f32.s32 %v4245
  %v4247 = vcvt.f32.s32 %v4241
  %v4248 = vshll.u32 %v4247, 16
  %v4249 = vadd.s32 %v4248, %v4246
  %v4250 = vsel %vm190, %v4228, 2147483647
  %v4251 = vand.u32 %v4250, 65535
  %v4252 = vshra.s32 %v4250, 16
  %v4253 = vcvt.s32.f32 %v4251
  %v4254 = vcvt.s32.f32 %v4252
  %4255 = vmin.xlane.f32.xlu0 %v4254
  %v4256 = vpop.xlane.xlu0 %4255
  %vm4257 = vcmp.eq.f32.partialorder %v4254, %v4256
  %v4258 = vsel %vm4257, %v4253, inf
  %4259 = vmin.xlane.f32.xlu0 %v4258
  %v4260 = vpop.xlane.xlu0 %4259
  %v4261 = vcvt.f32.s32 %v4260
  %v4262 = vcvt.f32.s32 %v4256
  %v4263 = vshll.u32 %v4262, 16
  %v4264 = vadd.s32 %v4263, %v4261
  %v4265 = vsel %vm190, %v4229, 2147483647
  %v4266 = vand.u32 %v4265, 65535
  %v4267 = vshra.s32 %v4265, 16
  %v4268 = vcvt.s32.f32 %v4266
  %v4269 = vcvt.s32.f32 %v4267
  %4270 = vmin.xlane.f32.xlu0 %v4269
  %v4271 = vpop.xlane.xlu0 %4270
  %vm4272 = vcmp.eq.f32.partialorder %v4269, %v4271
  %v4273 = vsel %vm4272, %v4268, inf
  %4274 = vmin.xlane.f32.xlu0 %v4273
  %v4275 = vpop.xlane.xlu0 %4274
  %v4276 = vcvt.f32.s32 %v4275
  %v4277 = vcvt.f32.s32 %v4271
  %v4278 = vshll.u32 %v4277, 16
  %v4279 = vadd.s32 %v4278, %v4276
  %v4280 = vsel %vm190, %v4230, 2147483647
  %v4281 = vand.u32 %v4280, 65535
  %v4282 = vshra.s32 %v4280, 16
  %v4283 = vcvt.s32.f32 %v4281
  %v4284 = vcvt.s32.f32 %v4282
  %4285 = vmin.xlane.f32.xlu0 %v4284
  %v4286 = vpop.xlane.xlu0 %4285
  %vm4287 = vcmp.eq.f32.partialorder %v4284, %v4286
  %v4288 = vsel %vm4287, %v4283, inf
  %4289 = vmin.xlane.f32.xlu0 %v4288
  %v4290 = vpop.xlane.xlu0 %4289
  %v4291 = vcvt.f32.s32 %v4290
  %v4292 = vcvt.f32.s32 %v4286
  %v4293 = vshll.u32 %v4292, 16
  %v4294 = vadd.s32 %v4293, %v4291
  %v4295 = vsel %vm190, %v4231, 2147483647
  %v4296 = vand.u32 %v4295, 65535
  %v4297 = vshra.s32 %v4295, 16
  %v4298 = vcvt.s32.f32 %v4296
  %v4299 = vcvt.s32.f32 %v4297
  %4300 = vmin.xlane.f32.xlu0 %v4299
  %v4301 = vpop.xlane.xlu0 %4300
  %vm4302 = vcmp.eq.f32.partialorder %v4299, %v4301
  %v4303 = vsel %vm4302, %v4298, inf
  %4304 = vmin.xlane.f32.xlu0 %v4303
  %v4305 = vpop.xlane.xlu0 %4304
  %v4306 = vcvt.f32.s32 %v4305
  %v4307 = vcvt.f32.s32 %v4301
  %v4308 = vshll.u32 %v4307, 16
  %v4309 = vadd.s32 %v4308, %v4306
  %v4310 = vsel %vm190, %v4232, 2147483647
  %v4311 = vand.u32 %v4310, 65535
  %v4312 = vshra.s32 %v4310, 16
  %v4313 = vcvt.s32.f32 %v4311
  %v4314 = vcvt.s32.f32 %v4312
  %4315 = vmin.xlane.f32.xlu0 %v4314
  %v4316 = vpop.xlane.xlu0 %4315
  %vm4317 = vcmp.eq.f32.partialorder %v4314, %v4316
  %v4318 = vsel %vm4317, %v4313, inf
  %4319 = vmin.xlane.f32.xlu0 %v4318
  %v4320 = vpop.xlane.xlu0 %4319
  %v4321 = vcvt.f32.s32 %v4320
  %v4322 = vcvt.f32.s32 %v4316
  %v4323 = vshll.u32 %v4322, 16
  %v4324 = vadd.s32 %v4323, %v4321
  %v4325 = vsel %vm190, %v4233, 2147483647
  %v4326 = vand.u32 %v4325, 65535
  %v4327 = vshra.s32 %v4325, 16
  %v4328 = vcvt.s32.f32 %v4326
  %v4329 = vcvt.s32.f32 %v4327
  %4330 = vmin.xlane.f32.xlu0 %v4329
  %v4331 = vpop.xlane.xlu0 %4330
  %vm4332 = vcmp.eq.f32.partialorder %v4329, %v4331
  %v4333 = vsel %vm4332, %v4328, inf
  %4334 = vmin.xlane.f32.xlu0 %v4333
  %v4335 = vpop.xlane.xlu0 %4334
  %v4336 = vcvt.f32.s32 %v4335
  %v4337 = vcvt.f32.s32 %v4331
  %v4338 = vshll.u32 %v4337, 16
  %v4339 = vadd.s32 %v4338, %v4336
  %v4340 = vsel %vm190, %v4234, 2147483647
  %v4341 = vand.u32 %v4340, 65535
  %v4342 = vshra.s32 %v4340, 16
  %v4343 = vcvt.s32.f32 %v4341
  %v4344 = vcvt.s32.f32 %v4342
  %4345 = vmin.xlane.f32.xlu0 %v4344
  %v4346 = vpop.xlane.xlu0 %4345
  %vm4347 = vcmp.eq.f32.partialorder %v4344, %v4346
  %v4348 = vsel %vm4347, %v4343, inf
  %4349 = vmin.xlane.f32.xlu0 %v4348
  %v4350 = vpop.xlane.xlu0 %4349
  %v4351 = vcvt.f32.s32 %v4350
  %v4352 = vcvt.f32.s32 %v4346
  %v4353 = vshll.u32 %v4352, 16
  %v4354 = vadd.s32 %v4353, %v4351
  %v4355 = vadd.f32 %v4197, %v3953
  %v4356 = vadd.f32 %v4200, %v3960
  %v4357 = vadd.f32 %v4203, %v3967
  %v4358 = vadd.f32 %v4206, %v3974
  %v4359 = vadd.f32 %v4209, %v3981
  %v4360 = vadd.f32 %v4212, %v3988
  %v4361 = vadd.f32 %v4215, %v3995
  %v4362 = vadd.f32 %v4218, %v4002
  %4371 = vset.pattern.permute.xlu0 0
  %4372 = vperm.xlu0 %4371, %v4355
  %v4373 = vpop.permute.xlu0 %4372
  %4374 = vset.pattern.permute.xlu0 0
  %4375 = vperm.xlu0 %4374, %v4356
  %v4376 = vpop.permute.xlu0 %4375
  %4377 = vset.pattern.permute.xlu0 0
  %4378 = vperm.xlu0 %4377, %v4357
  %v4379 = vpop.permute.xlu0 %4378
  %4380 = vset.pattern.permute.xlu0 0
  %4381 = vperm.xlu0 %4380, %v4358
  %v4382 = vpop.permute.xlu0 %4381
  %4383 = vset.pattern.permute.xlu0 0
  %4384 = vperm.xlu0 %4383, %v4359
  %v4385 = vpop.permute.xlu0 %4384
  %4386 = vset.pattern.permute.xlu0 0
  %4387 = vperm.xlu0 %4386, %v4360
  %v4388 = vpop.permute.xlu0 %4387
  %4389 = vset.pattern.permute.xlu0 0
  %4390 = vperm.xlu0 %4389, %v4361
  %v4391 = vpop.permute.xlu0 %4390
  %4392 = vset.pattern.permute.xlu0 0
  %4393 = vperm.xlu0 %4392, %v4362
  %v4394 = vpop.permute.xlu0 %4393
  %v4395 = vlaneseq
  %v4396 = vshrl.u32 %v4395, 7
  %v4397 = vsub.s32 %v520, %v4396
  %v4398 = vrot.slane %v4373, %v4397
  %v4399 = vlaneseq
  %v4400 = vshrl.u32 %v4399, 7
  %v4401 = vsub.s32 %v520, %v4400
  %v4402 = vrot.slane %v4376, %v4401
  %v4403 = vlaneseq
  %v4404 = vshrl.u32 %v4403, 7
  %v4405 = vsub.s32 %v520, %v4404
  %v4406 = vrot.slane %v4379, %v4405
  %v4407 = vlaneseq
  %v4408 = vshrl.u32 %v4407, 7
  %v4409 = vsub.s32 %v520, %v4408
  %v4410 = vrot.slane %v4382, %v4409
  %v4411 = vlaneseq
  %v4412 = vshrl.u32 %v4411, 7
  %v4413 = vsub.s32 %v520, %v4412
  %v4414 = vrot.slane %v4385, %v4413
  %v4415 = vlaneseq
  %v4416 = vshrl.u32 %v4415, 7
  %v4417 = vsub.s32 %v520, %v4416
  %v4418 = vrot.slane %v4388, %v4417
  %v4419 = vlaneseq
  %v4420 = vshrl.u32 %v4419, 7
  %v4421 = vsub.s32 %v520, %v4420
  %v4422 = vrot.slane %v4391, %v4421
  %v4423 = vlaneseq
  %v4424 = vshrl.u32 %v4423, 7
  %v4425 = vsub.s32 %v520, %v4424
  %v4426 = vrot.slane %v4394, %v4425
  %v4427 = vsel %vm553, %v4402, %v4398
  %v4428 = vsel %vm555, %v4406, %v4427
  %v4429 = vsel %vm557, %v4410, %v4428
  %v4430 = vsel %vm559, %v4414, %v4429
  %v4431 = vsel %vm561, %v4418, %v4430
  %v4432 = vsel %vm563, %v4422, %v4431
  %v4433 = vsel %vm565, %v4426, %v4432
  %v4435 = vsel %vm4023, %v4433, %v3705
  %v4436 = vlaneseq
  %v4437 = vshrl.u32 %v4436, 7
  %v4438 = vsub.s32 %v520, %v4437
  %v4439 = vrot.slane %v4249, %v4438
  %v4440 = vlaneseq
  %v4441 = vshrl.u32 %v4440, 7
  %v4442 = vsub.s32 %v520, %v4441
  %v4443 = vrot.slane %v4264, %v4442
  %v4444 = vlaneseq
  %v4445 = vshrl.u32 %v4444, 7
  %v4446 = vsub.s32 %v520, %v4445
  %v4447 = vrot.slane %v4279, %v4446
  %v4448 = vlaneseq
  %v4449 = vshrl.u32 %v4448, 7
  %v4450 = vsub.s32 %v520, %v4449
  %v4451 = vrot.slane %v4294, %v4450
  %v4452 = vlaneseq
  %v4453 = vshrl.u32 %v4452, 7
  %v4454 = vsub.s32 %v520, %v4453
  %v4455 = vrot.slane %v4309, %v4454
  %v4456 = vlaneseq
  %v4457 = vshrl.u32 %v4456, 7
  %v4458 = vsub.s32 %v520, %v4457
  %v4459 = vrot.slane %v4324, %v4458
  %v4460 = vlaneseq
  %v4461 = vshrl.u32 %v4460, 7
  %v4462 = vsub.s32 %v520, %v4461
  %v4463 = vrot.slane %v4339, %v4462
  %v4464 = vlaneseq
  %v4465 = vshrl.u32 %v4464, 7
  %v4466 = vsub.s32 %v520, %v4465
  %v4467 = vrot.slane %v4354, %v4466
  %v4468 = vsel %vm553, %v4443, %v4439
  %v4469 = vsel %vm555, %v4447, %v4468
  %v4470 = vsel %vm557, %v4451, %v4469
  %v4471 = vsel %vm559, %v4455, %v4470
  %v4472 = vsel %vm561, %v4459, %v4471
  %v4473 = vsel %vm563, %v4463, %v4472
  %v4474 = vsel %vm565, %v4467, %v4473
  %s4475 = scalar_lea.vmem %s10, 48
  %4476 = vst.msk [vmem:[%s4475] sm:$0xff] %vm190, %v4474
  %s4477 = scalar_lea.vmem %s7, 56
  %v4478 = vld [vmem:[%s4477] sm:$0xff]
  %s4479 = scalar_lea.vmem %s3, 56
  %v4480 = vld [vmem:[%s4479] sm:$0xff]
  %v4482 = vcombine.high %v4096, %v4096
  %v4484 = vunpack.c.l.s4 1966171168
  %v4485 = vunpack.c.0.s8 %v4484
  %v4486 = vlaneseq
  %v4487 = vshrl.u32 %v4486, 7
  %v4488 = vsub.s32 %v4485, %v4487
  %v4489 = vrot.slane %v4096, %v4488
  %v4491 = vunpack.c.l.s4 1966171168
  %v4492 = vunpack.c.0.s8 %v4491
  %v4493 = vlaneseq
  %v4494 = vshrl.u32 %v4493, 7
  %v4495 = vsub.s32 %v4492, %v4494
  %v4496 = vrot.slane %v4482, %v4495
  %v4497 = vcombine.high %v4489, %v4489
  %v4498 = vcombine.high %v4496, %v4496
  %v4500 = vunpack.c.l.s4 1966171168
  %v4501 = vunpack.c.0.s8 %v4500
  %v4502 = vlaneseq
  %v4503 = vshrl.u32 %v4502, 7
  %v4504 = vsub.s32 %v4501, %v4503
  %v4505 = vrot.slane %v4489, %v4504
  %v4507 = vunpack.c.l.s4 1966171168
  %v4508 = vunpack.c.0.s8 %v4507
  %v4509 = vlaneseq
  %v4510 = vshrl.u32 %v4509, 7
  %v4511 = vsub.s32 %v4508, %v4510
  %v4512 = vrot.slane %v4496, %v4511
  %v4514 = vunpack.c.l.s4 1966171168
  %v4515 = vunpack.c.0.s8 %v4514
  %v4516 = vlaneseq
  %v4517 = vshrl.u32 %v4516, 7
  %v4518 = vsub.s32 %v4515, %v4517
  %v4519 = vrot.slane %v4497, %v4518
  %v4521 = vunpack.c.l.s4 1966171168
  %v4522 = vunpack.c.0.s8 %v4521
  %v4523 = vlaneseq
  %v4524 = vshrl.u32 %v4523, 7
  %v4525 = vsub.s32 %v4522, %v4524
  %v4526 = vrot.slane %v4498, %v4525
  %v4527 = vcombine.high %v4505, %v4505
  %v4528 = vcombine.high %v4512, %v4512
  %v4529 = vcombine.high %v4519, %v4519
  %v4530 = vcombine.high %v4526, %v4526
  %v4531 = vlaneseq
  %v4532 = vshrl.u32 %v4531, 7
  %v4533 = vsub.s32 0, %v4532
  %v4534 = vrot.slane %v4505, %v4533
  %v4535 = vlaneseq
  %v4536 = vshrl.u32 %v4535, 7
  %v4537 = vsub.s32 0, %v4536
  %v4538 = vrot.slane %v4519, %v4537
  %v4539 = vlaneseq
  %v4540 = vshrl.u32 %v4539, 7
  %v4541 = vsub.s32 0, %v4540
  %v4542 = vrot.slane %v4527, %v4541
  %v4543 = vlaneseq
  %v4544 = vshrl.u32 %v4543, 7
  %v4545 = vsub.s32 0, %v4544
  %v4546 = vrot.slane %v4529, %v4545
  %v4547 = vlaneseq
  %v4548 = vshrl.u32 %v4547, 7
  %v4549 = vsub.s32 0, %v4548
  %v4550 = vrot.slane %v4512, %v4549
  %v4551 = vlaneseq
  %v4552 = vshrl.u32 %v4551, 7
  %v4553 = vsub.s32 0, %v4552
  %v4554 = vrot.slane %v4526, %v4553
  %v4555 = vlaneseq
  %v4556 = vshrl.u32 %v4555, 7
  %v4557 = vsub.s32 0, %v4556
  %v4558 = vrot.slane %v4528, %v4557
  %v4559 = vlaneseq
  %v4560 = vshrl.u32 %v4559, 7
  %v4561 = vsub.s32 0, %v4560
  %v4562 = vrot.slane %v4530, %v4561
  %v4571 = vadd.f32 %v4534, %v199
  %v4572 = vadd.f32 %v4538, %v199
  %v4573 = vadd.f32 %v4542, %v199
  %v4574 = vadd.f32 %v4546, %v199
  %v4575 = vadd.f32 %v4550, %v199
  %v4576 = vadd.f32 %v4554, %v199
  %v4577 = vadd.f32 %v4558, %v199
  %v4578 = vadd.f32 %v4562, %v199
  %v4579 = vsel %vm190, %v4571, -inf
  %4580 = vmax.xlane.f32.xlu0 %v4579
  %v4581 = vpop.xlane.xlu0 %4580
  %v4582 = vsel %vm190, %v4572, -inf
  %4583 = vmax.xlane.f32.xlu0 %v4582
  %v4584 = vpop.xlane.xlu0 %4583
  %v4585 = vsel %vm190, %v4573, -inf
  %4586 = vmax.xlane.f32.xlu0 %v4585
  %v4587 = vpop.xlane.xlu0 %4586
  %v4588 = vsel %vm190, %v4574, -inf
  %4589 = vmax.xlane.f32.xlu0 %v4588
  %v4590 = vpop.xlane.xlu0 %4589
  %v4591 = vsel %vm190, %v4575, -inf
  %4592 = vmax.xlane.f32.xlu0 %v4591
  %v4593 = vpop.xlane.xlu0 %4592
  %v4594 = vsel %vm190, %v4576, -inf
  %4595 = vmax.xlane.f32.xlu0 %v4594
  %v4596 = vpop.xlane.xlu0 %4595
  %v4597 = vsel %vm190, %v4577, -inf
  %4598 = vmax.xlane.f32.xlu0 %v4597
  %v4599 = vpop.xlane.xlu0 %4598
  %v4600 = vsel %vm190, %v4578, -inf
  %4601 = vmax.xlane.f32.xlu0 %v4600
  %v4602 = vpop.xlane.xlu0 %4601
  %v4603 = vsub.f32 %v4571, %v4581
  %v4604 = vsub.f32 %v4572, %v4584
  %v4605 = vsub.f32 %v4573, %v4587
  %v4606 = vsub.f32 %v4574, %v4590
  %v4607 = vsub.f32 %v4575, %v4593
  %v4608 = vsub.f32 %v4576, %v4596
  %v4609 = vsub.f32 %v4577, %v4599
  %v4610 = vsub.f32 %v4578, %v4602
  %v4611 = vmul.f32 %v4603, 1.442695
  %v4612 = vpow.pop %v4611
  %v4613 = vmul.f32 %v4604, 1.442695
  %v4614 = vpow.pop %v4613
  %v4615 = vmul.f32 %v4605, 1.442695
  %v4616 = vpow.pop %v4615
  %v4617 = vmul.f32 %v4606, 1.442695
  %v4618 = vpow.pop %v4617
  %v4619 = vmul.f32 %v4607, 1.442695
  %v4620 = vpow.pop %v4619
  %v4621 = vmul.f32 %v4608, 1.442695
  %v4622 = vpow.pop %v4621
  %v4623 = vmul.f32 %v4609, 1.442695
  %v4624 = vpow.pop %v4623
  %v4625 = vmul.f32 %v4610, 1.442695
  %v4626 = vpow.pop %v4625
  %v4627 = vsel %vm190, %v4612, 0.0
  %4628 = vadd.xlane.f32.xlu0 %v4627
  %v4629 = vpop.xlane.xlu0 %4628
  %v4630 = vsel %vm190, %v4614, 0.0
  %4631 = vadd.xlane.f32.xlu0 %v4630
  %v4632 = vpop.xlane.xlu0 %4631
  %v4633 = vsel %vm190, %v4616, 0.0
  %4634 = vadd.xlane.f32.xlu0 %v4633
  %v4635 = vpop.xlane.xlu0 %4634
  %v4636 = vsel %vm190, %v4618, 0.0
  %4637 = vadd.xlane.f32.xlu0 %v4636
  %v4638 = vpop.xlane.xlu0 %4637
  %v4639 = vsel %vm190, %v4620, 0.0
  %4640 = vadd.xlane.f32.xlu0 %v4639
  %v4641 = vpop.xlane.xlu0 %4640
  %v4642 = vsel %vm190, %v4622, 0.0
  %4643 = vadd.xlane.f32.xlu0 %v4642
  %v4644 = vpop.xlane.xlu0 %4643
  %v4645 = vsel %vm190, %v4624, 0.0
  %4646 = vadd.xlane.f32.xlu0 %v4645
  %v4647 = vpop.xlane.xlu0 %4646
  %v4648 = vsel %vm190, %v4626, 0.0
  %4649 = vadd.xlane.f32.xlu0 %v4648
  %v4650 = vpop.xlane.xlu0 %4649
  %v4651 = vlog2.pop %v4629
  %v4652 = vmul.f32 %v4651, 0.6931472
  %v4653 = vlog2.pop %v4632
  %v4654 = vmul.f32 %v4653, 0.6931472
  %v4655 = vlog2.pop %v4635
  %v4656 = vmul.f32 %v4655, 0.6931472
  %v4657 = vlog2.pop %v4638
  %v4658 = vmul.f32 %v4657, 0.6931472
  %v4659 = vlog2.pop %v4641
  %v4660 = vmul.f32 %v4659, 0.6931472
  %v4661 = vlog2.pop %v4644
  %v4662 = vmul.f32 %v4661, 0.6931472
  %v4663 = vlog2.pop %v4647
  %v4664 = vmul.f32 %v4663, 0.6931472
  %v4665 = vlog2.pop %v4650
  %v4666 = vmul.f32 %v4665, 0.6931472
  %v4667 = vadd.f32 %v4652, %v4581
  %v4668 = vadd.f32 %v4654, %v4584
  %v4669 = vadd.f32 %v4656, %v4587
  %v4670 = vadd.f32 %v4658, %v4590
  %v4671 = vadd.f32 %v4660, %v4593
  %v4672 = vadd.f32 %v4662, %v4596
  %v4673 = vadd.f32 %v4664, %v4599
  %v4674 = vadd.f32 %v4666, %v4602
  %vm4675 = vcmp.gt.f32.partialorder %v4480, 0.0
  %v4677 = vlaneseq
  %v4678 = vshrl.u32 %v4677, 7
  %v4679 = vsub.s32 0, %v4678
  %v4680 = vrot.slane %v4478, %v4679
  %4682 = vbcast.lane.b32.xlu0 %v4680, 256
  %v4683 = vpop.permute.xlu0 %4682
  %v4684 = vlaneseq
  %v4685 = vshrl.u32 %v4684, 7
  %v4686 = vsub.s32 1, %v4685
  %v4687 = vrot.slane %v4478, %v4686
  %4689 = vbcast.lane.b32.xlu0 %v4687, 256
  %v4690 = vpop.permute.xlu0 %4689
  %v4691 = vlaneseq
  %v4692 = vshrl.u32 %v4691, 7
  %v4693 = vsub.s32 2, %v4692
  %v4694 = vrot.slane %v4478, %v4693
  %4696 = vbcast.lane.b32.xlu0 %v4694, 256
  %v4697 = vpop.permute.xlu0 %4696
  %v4698 = vlaneseq
  %v4699 = vshrl.u32 %v4698, 7
  %v4700 = vsub.s32 3, %v4699
  %v4701 = vrot.slane %v4478, %v4700
  %4703 = vbcast.lane.b32.xlu0 %v4701, 256
  %v4704 = vpop.permute.xlu0 %4703
  %v4705 = vlaneseq
  %v4706 = vshrl.u32 %v4705, 7
  %v4707 = vsub.s32 4, %v4706
  %v4708 = vrot.slane %v4478, %v4707
  %4710 = vbcast.lane.b32.xlu0 %v4708, 256
  %v4711 = vpop.permute.xlu0 %4710
  %v4712 = vlaneseq
  %v4713 = vshrl.u32 %v4712, 7
  %v4714 = vsub.s32 5, %v4713
  %v4715 = vrot.slane %v4478, %v4714
  %4717 = vbcast.lane.b32.xlu0 %v4715, 256
  %v4718 = vpop.permute.xlu0 %4717
  %v4719 = vlaneseq
  %v4720 = vshrl.u32 %v4719, 7
  %v4721 = vsub.s32 6, %v4720
  %v4722 = vrot.slane %v4478, %v4721
  %4724 = vbcast.lane.b32.xlu0 %v4722, 256
  %v4725 = vpop.permute.xlu0 %4724
  %v4726 = vlaneseq
  %v4727 = vshrl.u32 %v4726, 7
  %v4728 = vsub.s32 7, %v4727
  %v4729 = vrot.slane %v4478, %v4728
  %4731 = vbcast.lane.b32.xlu0 %v4729, 256
  %v4732 = vpop.permute.xlu0 %4731
  %v4741 = vadd.f32 %v4667, %v4683
  %v4742 = vadd.f32 %v4668, %v4690
  %v4743 = vadd.f32 %v4669, %v4697
  %v4744 = vadd.f32 %v4670, %v4704
  %v4745 = vadd.f32 %v4671, %v4711
  %v4746 = vadd.f32 %v4672, %v4718
  %v4747 = vadd.f32 %v4673, %v4725
  %v4748 = vadd.f32 %v4674, %v4732
  %v4749 = vsel %vm4675, 1, 0
  %4750 = vset.pattern.permute.xlu0 0
  %4751 = vperm.xlu0 %4750, %v4749
  %v4752 = vpop.permute.xlu0 %4751
  %vm4753 = vcmp.eq.s32.totalorder %v4752, 1
  %4762 = vset.pattern.permute.xlu0 0
  %4763 = vperm.xlu0 %4762, %v4741
  %v4764 = vpop.permute.xlu0 %4763
  %4765 = vset.pattern.permute.xlu0 0
  %4766 = vperm.xlu0 %4765, %v4742
  %v4767 = vpop.permute.xlu0 %4766
  %4768 = vset.pattern.permute.xlu0 0
  %4769 = vperm.xlu0 %4768, %v4743
  %v4770 = vpop.permute.xlu0 %4769
  %4771 = vset.pattern.permute.xlu0 0
  %4772 = vperm.xlu0 %4771, %v4744
  %v4773 = vpop.permute.xlu0 %4772
  %4774 = vset.pattern.permute.xlu0 0
  %4775 = vperm.xlu0 %4774, %v4745
  %v4776 = vpop.permute.xlu0 %4775
  %4777 = vset.pattern.permute.xlu0 0
  %4778 = vperm.xlu0 %4777, %v4746
  %v4779 = vpop.permute.xlu0 %4778
  %4780 = vset.pattern.permute.xlu0 0
  %4781 = vperm.xlu0 %4780, %v4747
  %v4782 = vpop.permute.xlu0 %4781
  %4783 = vset.pattern.permute.xlu0 0
  %4784 = vperm.xlu0 %4783, %v4748
  %v4785 = vpop.permute.xlu0 %4784
  %v4786 = vlaneseq
  %v4787 = vshrl.u32 %v4786, 7
  %v4788 = vsub.s32 %v520, %v4787
  %v4789 = vrot.slane %v4764, %v4788
  %v4790 = vlaneseq
  %v4791 = vshrl.u32 %v4790, 7
  %v4792 = vsub.s32 %v520, %v4791
  %v4793 = vrot.slane %v4767, %v4792
  %v4794 = vlaneseq
  %v4795 = vshrl.u32 %v4794, 7
  %v4796 = vsub.s32 %v520, %v4795
  %v4797 = vrot.slane %v4770, %v4796
  %v4798 = vlaneseq
  %v4799 = vshrl.u32 %v4798, 7
  %v4800 = vsub.s32 %v520, %v4799
  %v4801 = vrot.slane %v4773, %v4800
  %v4802 = vlaneseq
  %v4803 = vshrl.u32 %v4802, 7
  %v4804 = vsub.s32 %v520, %v4803
  %v4805 = vrot.slane %v4776, %v4804
  %v4806 = vlaneseq
  %v4807 = vshrl.u32 %v4806, 7
  %v4808 = vsub.s32 %v520, %v4807
  %v4809 = vrot.slane %v4779, %v4808
  %v4810 = vlaneseq
  %v4811 = vshrl.u32 %v4810, 7
  %v4812 = vsub.s32 %v520, %v4811
  %v4813 = vrot.slane %v4782, %v4812
  %v4814 = vlaneseq
  %v4815 = vshrl.u32 %v4814, 7
  %v4816 = vsub.s32 %v520, %v4815
  %v4817 = vrot.slane %v4785, %v4816
  %v4818 = vsel %vm553, %v4793, %v4789
  %v4819 = vsel %vm555, %v4797, %v4818
  %v4820 = vsel %vm557, %v4801, %v4819
  %v4821 = vsel %vm559, %v4805, %v4820
  %v4822 = vsel %vm561, %v4809, %v4821
  %v4823 = vsel %vm563, %v4813, %v4822
  %v4824 = vsel %vm565, %v4817, %v4823
  %v4826 = vsel %vm4753, %v4824, %v4096
  %v4828 = vcombine.high %v4435, %v4435
  %v4830 = vunpack.c.l.s4 1966171168
  %v4831 = vunpack.c.0.s8 %v4830
  %v4832 = vlaneseq
  %v4833 = vshrl.u32 %v4832, 7
  %v4834 = vsub.s32 %v4831, %v4833
  %v4835 = vrot.slane %v4435, %v4834
  %v4837 = vunpack.c.l.s4 1966171168
  %v4838 = vunpack.c.0.s8 %v4837
  %v4839 = vlaneseq
  %v4840 = vshrl.u32 %v4839, 7
  %v4841 = vsub.s32 %v4838, %v4840
  %v4842 = vrot.slane %v4828, %v4841
  %v4843 = vcombine.high %v4835, %v4835
  %v4844 = vcombine.high %v4842, %v4842
  %v4846 = vunpack.c.l.s4 1966171168
  %v4847 = vunpack.c.0.s8 %v4846
  %v4848 = vlaneseq
  %v4849 = vshrl.u32 %v4848, 7
  %v4850 = vsub.s32 %v4847, %v4849
  %v4851 = vrot.slane %v4835, %v4850
  %v4853 = vunpack.c.l.s4 1966171168
  %v4854 = vunpack.c.0.s8 %v4853
  %v4855 = vlaneseq
  %v4856 = vshrl.u32 %v4855, 7
  %v4857 = vsub.s32 %v4854, %v4856
  %v4858 = vrot.slane %v4842, %v4857
  %v4860 = vunpack.c.l.s4 1966171168
  %v4861 = vunpack.c.0.s8 %v4860
  %v4862 = vlaneseq
  %v4863 = vshrl.u32 %v4862, 7
  %v4864 = vsub.s32 %v4861, %v4863
  %v4865 = vrot.slane %v4843, %v4864
  %v4867 = vunpack.c.l.s4 1966171168
  %v4868 = vunpack.c.0.s8 %v4867
  %v4869 = vlaneseq
  %v4870 = vshrl.u32 %v4869, 7
  %v4871 = vsub.s32 %v4868, %v4870
  %v4872 = vrot.slane %v4844, %v4871
  %v4873 = vcombine.high %v4851, %v4851
  %v4874 = vcombine.high %v4858, %v4858
  %v4875 = vcombine.high %v4865, %v4865
  %v4876 = vcombine.high %v4872, %v4872
  %v4877 = vlaneseq
  %v4878 = vshrl.u32 %v4877, 7
  %v4879 = vsub.s32 0, %v4878
  %v4880 = vrot.slane %v4851, %v4879
  %v4881 = vlaneseq
  %v4882 = vshrl.u32 %v4881, 7
  %v4883 = vsub.s32 0, %v4882
  %v4884 = vrot.slane %v4865, %v4883
  %v4885 = vlaneseq
  %v4886 = vshrl.u32 %v4885, 7
  %v4887 = vsub.s32 0, %v4886
  %v4888 = vrot.slane %v4873, %v4887
  %v4889 = vlaneseq
  %v4890 = vshrl.u32 %v4889, 7
  %v4891 = vsub.s32 0, %v4890
  %v4892 = vrot.slane %v4875, %v4891
  %v4893 = vlaneseq
  %v4894 = vshrl.u32 %v4893, 7
  %v4895 = vsub.s32 0, %v4894
  %v4896 = vrot.slane %v4858, %v4895
  %v4897 = vlaneseq
  %v4898 = vshrl.u32 %v4897, 7
  %v4899 = vsub.s32 0, %v4898
  %v4900 = vrot.slane %v4872, %v4899
  %v4901 = vlaneseq
  %v4902 = vshrl.u32 %v4901, 7
  %v4903 = vsub.s32 0, %v4902
  %v4904 = vrot.slane %v4874, %v4903
  %v4905 = vlaneseq
  %v4906 = vshrl.u32 %v4905, 7
  %v4907 = vsub.s32 0, %v4906
  %v4908 = vrot.slane %v4876, %v4907
  %v4917 = vadd.f32 %v4880, %v199
  %v4918 = vadd.f32 %v4884, %v199
  %v4919 = vadd.f32 %v4888, %v199
  %v4920 = vadd.f32 %v4892, %v199
  %v4921 = vadd.f32 %v4896, %v199
  %v4922 = vadd.f32 %v4900, %v199
  %v4923 = vadd.f32 %v4904, %v199
  %v4924 = vadd.f32 %v4908, %v199
  %v4925 = vsel %vm190, %v4917, -inf
  %4926 = vmax.xlane.f32.xlu0 %v4925
  %v4927 = vpop.xlane.xlu0 %4926
  %v4928 = vsel %vm190, %v4918, -inf
  %4929 = vmax.xlane.f32.xlu0 %v4928
  %v4930 = vpop.xlane.xlu0 %4929
  %v4931 = vsel %vm190, %v4919, -inf
  %4932 = vmax.xlane.f32.xlu0 %v4931
  %v4933 = vpop.xlane.xlu0 %4932
  %v4934 = vsel %vm190, %v4920, -inf
  %4935 = vmax.xlane.f32.xlu0 %v4934
  %v4936 = vpop.xlane.xlu0 %4935
  %v4937 = vsel %vm190, %v4921, -inf
  %4938 = vmax.xlane.f32.xlu0 %v4937
  %v4939 = vpop.xlane.xlu0 %4938
  %v4940 = vsel %vm190, %v4922, -inf
  %4941 = vmax.xlane.f32.xlu0 %v4940
  %v4942 = vpop.xlane.xlu0 %4941
  %v4943 = vsel %vm190, %v4923, -inf
  %4944 = vmax.xlane.f32.xlu0 %v4943
  %v4945 = vpop.xlane.xlu0 %4944
  %v4946 = vsel %vm190, %v4924, -inf
  %4947 = vmax.xlane.f32.xlu0 %v4946
  %v4948 = vpop.xlane.xlu0 %4947
  %vm4949 = vcmp.eq.f32.partialorder %v4917, %v4927
  %vm4950 = vcmp.eq.f32.partialorder %v4918, %v4930
  %vm4951 = vcmp.eq.f32.partialorder %v4919, %v4933
  %vm4952 = vcmp.eq.f32.partialorder %v4920, %v4936
  %vm4953 = vcmp.eq.f32.partialorder %v4921, %v4939
  %vm4954 = vcmp.eq.f32.partialorder %v4922, %v4942
  %vm4955 = vcmp.eq.f32.partialorder %v4923, %v4945
  %vm4956 = vcmp.eq.f32.partialorder %v4924, %v4948
  %v4957 = vsel %vm4949, %v520, 8
  %v4958 = vsel %vm4950, %v520, 8
  %v4959 = vsel %vm4951, %v520, 8
  %v4960 = vsel %vm4952, %v520, 8
  %v4961 = vsel %vm4953, %v520, 8
  %v4962 = vsel %vm4954, %v520, 8
  %v4963 = vsel %vm4955, %v520, 8
  %v4964 = vsel %vm4956, %v520, 8
  %v4965 = vsel %vm190, %v4957, 2147483647
  %v4966 = vand.u32 %v4965, 65535
  %v4967 = vshra.s32 %v4965, 16
  %v4968 = vcvt.s32.f32 %v4966
  %v4969 = vcvt.s32.f32 %v4967
  %4970 = vmin.xlane.f32.xlu0 %v4969
  %v4971 = vpop.xlane.xlu0 %4970
  %vm4972 = vcmp.eq.f32.partialorder %v4969, %v4971
  %v4973 = vsel %vm4972, %v4968, inf
  %4974 = vmin.xlane.f32.xlu0 %v4973
  %v4975 = vpop.xlane.xlu0 %4974
  %v4976 = vcvt.f32.s32 %v4975
  %v4977 = vcvt.f32.s32 %v4971
  %v4978 = vshll.u32 %v4977, 16
  %v4979 = vadd.s32 %v4978, %v4976
  %v4980 = vsel %vm190, %v4958, 2147483647
  %v4981 = vand.u32 %v4980, 65535
  %v4982 = vshra.s32 %v4980, 16
  %v4983 = vcvt.s32.f32 %v4981
  %v4984 = vcvt.s32.f32 %v4982
  %4985 = vmin.xlane.f32.xlu0 %v4984
  %v4986 = vpop.xlane.xlu0 %4985
  %vm4987 = vcmp.eq.f32.partialorder %v4984, %v4986
  %v4988 = vsel %vm4987, %v4983, inf
  %4989 = vmin.xlane.f32.xlu0 %v4988
  %v4990 = vpop.xlane.xlu0 %4989
  %v4991 = vcvt.f32.s32 %v4990
  %v4992 = vcvt.f32.s32 %v4986
  %v4993 = vshll.u32 %v4992, 16
  %v4994 = vadd.s32 %v4993, %v4991
  %v4995 = vsel %vm190, %v4959, 2147483647
  %v4996 = vand.u32 %v4995, 65535
  %v4997 = vshra.s32 %v4995, 16
  %v4998 = vcvt.s32.f32 %v4996
  %v4999 = vcvt.s32.f32 %v4997
  %5000 = vmin.xlane.f32.xlu0 %v4999
  %v5001 = vpop.xlane.xlu0 %5000
  %vm5002 = vcmp.eq.f32.partialorder %v4999, %v5001
  %v5003 = vsel %vm5002, %v4998, inf
  %5004 = vmin.xlane.f32.xlu0 %v5003
  %v5005 = vpop.xlane.xlu0 %5004
  %v5006 = vcvt.f32.s32 %v5005
  %v5007 = vcvt.f32.s32 %v5001
  %v5008 = vshll.u32 %v5007, 16
  %v5009 = vadd.s32 %v5008, %v5006
  %v5010 = vsel %vm190, %v4960, 2147483647
  %v5011 = vand.u32 %v5010, 65535
  %v5012 = vshra.s32 %v5010, 16
  %v5013 = vcvt.s32.f32 %v5011
  %v5014 = vcvt.s32.f32 %v5012
  %5015 = vmin.xlane.f32.xlu0 %v5014
  %v5016 = vpop.xlane.xlu0 %5015
  %vm5017 = vcmp.eq.f32.partialorder %v5014, %v5016
  %v5018 = vsel %vm5017, %v5013, inf
  %5019 = vmin.xlane.f32.xlu0 %v5018
  %v5020 = vpop.xlane.xlu0 %5019
  %v5021 = vcvt.f32.s32 %v5020
  %v5022 = vcvt.f32.s32 %v5016
  %v5023 = vshll.u32 %v5022, 16
  %v5024 = vadd.s32 %v5023, %v5021
  %v5025 = vsel %vm190, %v4961, 2147483647
  %v5026 = vand.u32 %v5025, 65535
  %v5027 = vshra.s32 %v5025, 16
  %v5028 = vcvt.s32.f32 %v5026
  %v5029 = vcvt.s32.f32 %v5027
  %5030 = vmin.xlane.f32.xlu0 %v5029
  %v5031 = vpop.xlane.xlu0 %5030
  %vm5032 = vcmp.eq.f32.partialorder %v5029, %v5031
  %v5033 = vsel %vm5032, %v5028, inf
  %5034 = vmin.xlane.f32.xlu0 %v5033
  %v5035 = vpop.xlane.xlu0 %5034
  %v5036 = vcvt.f32.s32 %v5035
  %v5037 = vcvt.f32.s32 %v5031
  %v5038 = vshll.u32 %v5037, 16
  %v5039 = vadd.s32 %v5038, %v5036
  %v5040 = vsel %vm190, %v4962, 2147483647
  %v5041 = vand.u32 %v5040, 65535
  %v5042 = vshra.s32 %v5040, 16
  %v5043 = vcvt.s32.f32 %v5041
  %v5044 = vcvt.s32.f32 %v5042
  %5045 = vmin.xlane.f32.xlu0 %v5044
  %v5046 = vpop.xlane.xlu0 %5045
  %vm5047 = vcmp.eq.f32.partialorder %v5044, %v5046
  %v5048 = vsel %vm5047, %v5043, inf
  %5049 = vmin.xlane.f32.xlu0 %v5048
  %v5050 = vpop.xlane.xlu0 %5049
  %v5051 = vcvt.f32.s32 %v5050
  %v5052 = vcvt.f32.s32 %v5046
  %v5053 = vshll.u32 %v5052, 16
  %v5054 = vadd.s32 %v5053, %v5051
  %v5055 = vsel %vm190, %v4963, 2147483647
  %v5056 = vand.u32 %v5055, 65535
  %v5057 = vshra.s32 %v5055, 16
  %v5058 = vcvt.s32.f32 %v5056
  %v5059 = vcvt.s32.f32 %v5057
  %5060 = vmin.xlane.f32.xlu0 %v5059
  %v5061 = vpop.xlane.xlu0 %5060
  %vm5062 = vcmp.eq.f32.partialorder %v5059, %v5061
  %v5063 = vsel %vm5062, %v5058, inf
  %5064 = vmin.xlane.f32.xlu0 %v5063
  %v5065 = vpop.xlane.xlu0 %5064
  %v5066 = vcvt.f32.s32 %v5065
  %v5067 = vcvt.f32.s32 %v5061
  %v5068 = vshll.u32 %v5067, 16
  %v5069 = vadd.s32 %v5068, %v5066
  %v5070 = vsel %vm190, %v4964, 2147483647
  %v5071 = vand.u32 %v5070, 65535
  %v5072 = vshra.s32 %v5070, 16
  %v5073 = vcvt.s32.f32 %v5071
  %v5074 = vcvt.s32.f32 %v5072
  %5075 = vmin.xlane.f32.xlu0 %v5074
  %v5076 = vpop.xlane.xlu0 %5075
  %vm5077 = vcmp.eq.f32.partialorder %v5074, %v5076
  %v5078 = vsel %vm5077, %v5073, inf
  %5079 = vmin.xlane.f32.xlu0 %v5078
  %v5080 = vpop.xlane.xlu0 %5079
  %v5081 = vcvt.f32.s32 %v5080
  %v5082 = vcvt.f32.s32 %v5076
  %v5083 = vshll.u32 %v5082, 16
  %v5084 = vadd.s32 %v5083, %v5081
  %v5085 = vadd.f32 %v4927, %v4683
  %v5086 = vadd.f32 %v4930, %v4690
  %v5087 = vadd.f32 %v4933, %v4697
  %v5088 = vadd.f32 %v4936, %v4704
  %v5089 = vadd.f32 %v4939, %v4711
  %v5090 = vadd.f32 %v4942, %v4718
  %v5091 = vadd.f32 %v4945, %v4725
  %v5092 = vadd.f32 %v4948, %v4732
  %5101 = vset.pattern.permute.xlu0 0
  %5102 = vperm.xlu0 %5101, %v5085
  %v5103 = vpop.permute.xlu0 %5102
  %5104 = vset.pattern.permute.xlu0 0
  %5105 = vperm.xlu0 %5104, %v5086
  %v5106 = vpop.permute.xlu0 %5105
  %5107 = vset.pattern.permute.xlu0 0
  %5108 = vperm.xlu0 %5107, %v5087
  %v5109 = vpop.permute.xlu0 %5108
  %5110 = vset.pattern.permute.xlu0 0
  %5111 = vperm.xlu0 %5110, %v5088
  %v5112 = vpop.permute.xlu0 %5111
  %5113 = vset.pattern.permute.xlu0 0
  %5114 = vperm.xlu0 %5113, %v5089
  %v5115 = vpop.permute.xlu0 %5114
  %5116 = vset.pattern.permute.xlu0 0
  %5117 = vperm.xlu0 %5116, %v5090
  %v5118 = vpop.permute.xlu0 %5117
  %5119 = vset.pattern.permute.xlu0 0
  %5120 = vperm.xlu0 %5119, %v5091
  %v5121 = vpop.permute.xlu0 %5120
  %5122 = vset.pattern.permute.xlu0 0
  %5123 = vperm.xlu0 %5122, %v5092
  %v5124 = vpop.permute.xlu0 %5123
  %v5125 = vlaneseq
  %v5126 = vshrl.u32 %v5125, 7
  %v5127 = vsub.s32 %v520, %v5126
  %v5128 = vrot.slane %v5103, %v5127
  %v5129 = vlaneseq
  %v5130 = vshrl.u32 %v5129, 7
  %v5131 = vsub.s32 %v520, %v5130
  %v5132 = vrot.slane %v5106, %v5131
  %v5133 = vlaneseq
  %v5134 = vshrl.u32 %v5133, 7
  %v5135 = vsub.s32 %v520, %v5134
  %v5136 = vrot.slane %v5109, %v5135
  %v5137 = vlaneseq
  %v5138 = vshrl.u32 %v5137, 7
  %v5139 = vsub.s32 %v520, %v5138
  %v5140 = vrot.slane %v5112, %v5139
  %v5141 = vlaneseq
  %v5142 = vshrl.u32 %v5141, 7
  %v5143 = vsub.s32 %v520, %v5142
  %v5144 = vrot.slane %v5115, %v5143
  %v5145 = vlaneseq
  %v5146 = vshrl.u32 %v5145, 7
  %v5147 = vsub.s32 %v520, %v5146
  %v5148 = vrot.slane %v5118, %v5147
  %v5149 = vlaneseq
  %v5150 = vshrl.u32 %v5149, 7
  %v5151 = vsub.s32 %v520, %v5150
  %v5152 = vrot.slane %v5121, %v5151
  %v5153 = vlaneseq
  %v5154 = vshrl.u32 %v5153, 7
  %v5155 = vsub.s32 %v520, %v5154
  %v5156 = vrot.slane %v5124, %v5155
  %v5157 = vsel %vm553, %v5132, %v5128
  %v5158 = vsel %vm555, %v5136, %v5157
  %v5159 = vsel %vm557, %v5140, %v5158
  %v5160 = vsel %vm559, %v5144, %v5159
  %v5161 = vsel %vm561, %v5148, %v5160
  %v5162 = vsel %vm563, %v5152, %v5161
  %v5163 = vsel %vm565, %v5156, %v5162
  %v5165 = vsel %vm4753, %v5163, %v4435
  %v5166 = vlaneseq
  %v5167 = vshrl.u32 %v5166, 7
  %v5168 = vsub.s32 %v520, %v5167
  %v5169 = vrot.slane %v4979, %v5168
  %v5170 = vlaneseq
  %v5171 = vshrl.u32 %v5170, 7
  %v5172 = vsub.s32 %v520, %v5171
  %v5173 = vrot.slane %v4994, %v5172
  %v5174 = vlaneseq
  %v5175 = vshrl.u32 %v5174, 7
  %v5176 = vsub.s32 %v520, %v5175
  %v5177 = vrot.slane %v5009, %v5176
  %v5178 = vlaneseq
  %v5179 = vshrl.u32 %v5178, 7
  %v5180 = vsub.s32 %v520, %v5179
  %v5181 = vrot.slane %v5024, %v5180
  %v5182 = vlaneseq
  %v5183 = vshrl.u32 %v5182, 7
  %v5184 = vsub.s32 %v520, %v5183
  %v5185 = vrot.slane %v5039, %v5184
  %v5186 = vlaneseq
  %v5187 = vshrl.u32 %v5186, 7
  %v5188 = vsub.s32 %v520, %v5187
  %v5189 = vrot.slane %v5054, %v5188
  %v5190 = vlaneseq
  %v5191 = vshrl.u32 %v5190, 7
  %v5192 = vsub.s32 %v520, %v5191
  %v5193 = vrot.slane %v5069, %v5192
  %v5194 = vlaneseq
  %v5195 = vshrl.u32 %v5194, 7
  %v5196 = vsub.s32 %v520, %v5195
  %v5197 = vrot.slane %v5084, %v5196
  %v5198 = vsel %vm553, %v5173, %v5169
  %v5199 = vsel %vm555, %v5177, %v5198
  %v5200 = vsel %vm557, %v5181, %v5199
  %v5201 = vsel %vm559, %v5185, %v5200
  %v5202 = vsel %vm561, %v5189, %v5201
  %v5203 = vsel %vm563, %v5193, %v5202
  %v5204 = vsel %vm565, %v5197, %v5203
  %s5205 = scalar_lea.vmem %s10, 56
  %5206 = vst.msk [vmem:[%s5205] sm:$0xff] %vm190, %v5204
  %v5207 = vld [vmem:[%s5] sm:$0x1]
  %v5209 = vlaneseq
  %v5210 = vshrl.u32 %v5209, 7
  %v5211 = vsub.s32 0, %v5210
  %v5212 = vrot.slane %v5207, %v5211
  %v5214 = vadd.f32 %v4826, %v5212
  %v5215 = vsel %vm190, %v5214, -inf
  %5216 = vmax.xlane.f32.xlu0 %v5215
  %v5217 = vpop.xlane.xlu0 %5216
  %v5218 = vsub.f32 %v5214, %v5217
  %v5219 = vmul.f32 %v5218, 1.442695
  %v5220 = vpow.pop %v5219
  %v5221 = vsel %vm190, %v5220, 0.0
  %5222 = vadd.xlane.f32.xlu0 %v5221
  %v5223 = vpop.xlane.xlu0 %5222
  %v5224 = vlog2.pop %v5223
  %v5225 = vmul.f32 %v5224, 0.6931472
  %v5226 = vadd.f32 %v5225, %v5217
  %vm5227 = vcmask 7168
  %5228 = vst.msk [vmem:[%s8] sm:$0xff] %vm5227, %v5226
  %v5229 = vld [vmem:[%s5] sm:$0x1]
  %v5231 = vlaneseq
  %v5232 = vshrl.u32 %v5231, 7
  %v5233 = vsub.s32 0, %v5232
  %v5234 = vrot.slane %v5229, %v5233
  %v5236 = vadd.f32 %v5165, %v5234
  %5237 = vst.msk [vmem:[%s9] sm:$0xff] %vm190, %v5236
  // Predicated region
  $region30: #{_forward_core.3} parent=0 // pred_check
    _
  $region31: #{_forward_core.3} parent=0 // pred_check_branch
    %5239 = sbr.rel (0) target = $region33
  $region32: #{_forward_core.3} parent=0 // pred_region
    _
  $region33: #{_forward_core.3} parent=0 // pred_fallthru
    _
  // Predicated region
  $region34: #{_forward_core.3} parent=0 // pred_check
    _
  $region35: #{_forward_core.3} parent=0 // pred_check_branch
    %5241 = sbr.rel (0) target = $region37
  $region36: #{_forward_core.3} parent=0 // pred_region
    _
  $region37: #{_forward_core.3} parent=0 // pred_fallthru
    _
  // Predicated region
  $region38: #{_forward_core.3} parent=0 // pred_check
    _
  $region39: #{_forward_core.3} parent=0 // pred_check_branch
    %5243 = sbr.rel (0) target = $region41
  $region40: #{_forward_core.3} parent=0 // pred_region
    _
  $region41: #{_forward_core.3} parent=0 // pred_fallthru
    _
  // Predicated region
  $region42: #{_forward_core.3} parent=0 // pred_check
    _
  $region43: #{_forward_core.3} parent=0 // pred_check_branch
    %5245 = sbr.rel (0) target = $region45
  $region44: #{_forward_core.3} parent=0 // pred_region
    _
  $region45: #{_forward_core.3} parent=0 // pred_fallthru
    _
  // Predicated region
  $region46: #{_forward_core.3} parent=0 // pred_check
    _
  $region47: #{_forward_core.3} parent=0 // pred_check_branch
    %5247 = sbr.rel (0) target = $region49
  $region48: #{_forward_core.3} parent=0 // pred_region
    _
  $region49: #{_forward_core.3} parent=0 // pred_fallthru
    _
  // Predicated region
  $region50: #{_forward_core.3} parent=0 // pred_check
    _
  $region51: #{_forward_core.3} parent=0 // pred_check_branch
    %5249 = sbr.rel (0) target = $region53
  $region52: #{_forward_core.3} parent=0 // pred_region
    _
  $region53: #{_forward_core.3} parent=0 // pred_fallthru
    _
  // Predicated region
  $region54: #{_forward_core.3} parent=0 // pred_check
    _
  $region55: #{_forward_core.3} parent=0 // pred_check_branch
    %5251 = sbr.rel (0) target = $region57
  $region56: #{_forward_core.3} parent=0 // pred_region
    _
  $region57: #{_forward_core.3} parent=0 // pred_fallthru
    _
  // Predicated region
  $region58: #{_forward_core.3} parent=0 // pred_check
    _
  $region59: #{_forward_core.3} parent=0 // pred_check_branch
    %5253 = sbr.rel (0) target = $region61
  $region60: #{_forward_core.3} parent=0 // pred_region
    _
  $region61: #{_forward_core.3} parent=0 // pred_fallthru
    _

// kernel: _forward_core.2
$region0: #{_forward_core.2}
  #allocation0 [shape = 'u32[]', space=smem, size = 0x4, offset = 0x4, fixed_abs, tag = 'smem constant byte address 0x4 - core index']
  #allocation1 [shape = 'u32[144,128]{1,0:T(1,128)}', space=vmem, size = 0x12000, scoped, tag = 'internal scratch']
  #allocation2 [shape = 'f32[8,8,512]{2,1,0:T(8,128)}', space=vmem, size = 0x20000, scoped, tag = 'scratch operand']
  %s0 = inlined_call_operand.vmem [shape: bf16[8,8,768], index: 0, kind: input, shape index: {}]
  %s1 = inlined_call_operand.hbm [shape: bf16[2,768,512], index: 1, kind: input, shape index: {}]
  %s2 = inlined_call_operand.vmem [shape: f32[2,128,512], index: 2, kind: input, shape index: {}]
  %s3 = inlined_call_operand.hbm [shape: f32[2,1,512], index: 3, kind: input, shape index: {}]
  %s4 = inlined_call_operand.vmem [shape: f32[8,8,256], index: 4, kind: output, shape index: {}]
  %s5 = sld [smem:[#allocation0]]
  $region91: #{_forward_core.2} parent=0
    _
  %s7 = ssub.s32 1, %s5
  %s8 = scalar_select 0, %s7, %s5
  $region1: #{_forward_core.2} parent=0
    #allocation3 [shape = 'u8[1572864]{0}', space=vmem, size = 0x180000, scoped, tag = 'input window, operand 1']
    #allocation4 [shape = 's32[2]{0}', space=sflag, size = 0x8, scoped, tag = 'scoped memory for _forward_core.2']
    #allocation5 [shape = 'u8[4096]{0}', space=vmem, size = 0x1000, scoped, tag = 'input window, operand 3']
    #allocation6 [shape = 's32[2]{0}', space=sflag, size = 0x8, scoped, tag = 'scoped memory for _forward_core.2']
    #allocation7 [shape = 'u8[65536]{0}', space=vmem, size = 0x10000, scoped, tag = 'output window, operand 0']
    %9 = vsyncpa [#allocation4], 0
    %s10 = scalar_lea.sflag [#allocation4], 1
    %11 = vsyncpa %s10, 0
    %12 = vsyncpa [#allocation6], 0
    %s13 = scalar_lea.sflag [#allocation6], 1
    %14 = vsyncpa %s13, 0
    loop: start=0, step=1, limit=4
    $region2: #{_forward_core.2} parent=1 // loop_pre_header
      _
    $region3: #{_forward_core.2} parent=1 // loop_header
      %s16 = sphi 0, %s20
      %p17 = scmp.ge.s32.totalorder %s16, 4
      %s24 = sphi 0, %s24
      %s26 = sphi 0, %s24
      %s27 = sphi 0, %s26
      %s41 = sphi 0, %s27
      %s47 = sphi 0, %s49
      %s50 = sphi 0, %s47
      %s51 = sphi 0, %s50
      %s67 = sphi 0, %s51
      %s73 = sphi 0, %s75
      %s76 = sphi 0, %s73
      %s77 = sphi 0, %s76
      %s93 = sphi 0, %s77
      %s99 = sphi 0, %s101
      %s102 = sphi 0, %s99
      %s103 = sphi 0, %s102
      %s119 = sphi 0, %s103
      %s125 = sphi 0, %s127
      %s128 = sphi 0, %s125
      %s129 = sphi 0, %s128
      %s145 = sphi 0, %s129
    $region4: #{_forward_core.2} parent=1 // loop_header_branch
      %19 = sbr.rel (%p17) target = $region8
    $region5: #{_forward_core.2} parent=1 // loop_body
      %s21 = ssub.s32 %s16, 1
      %s22 = ssub.s32 %s16, 2
      %s23 = sadd.s32 %s16, 1
      %s25 = sadd.s32 %s24, 1
      %p28 = scmp.eq.s32.totalorder %s16, 1
      %p29 = scmp.ne.s32.totalorder %s24, %s26
      %p30 = scmp.eq.s32.totalorder %s16, 0
      %p31 = por %p29, %p30
      %p32 = scmp.ne.s32.totalorder %s24, %s26
      %p33 = scmp.eq.s32.totalorder %s21, 1
      %p34 = por %p32, %p33
      %p35 = scmp.ne.s32.totalorder %s26, %s27
      %p36 = scmp.eq.s32.totalorder %s21, 0
      %p37 = por %p35, %p36
      %p38 = scmp.ne.s32.totalorder %s26, %s27
      %p39 = scmp.eq.s32.totalorder %s22, 1
      %p40 = por %p38, %p39
      %p42 = scmp.ne.s32.totalorder %s27, %s41
      %p43 = scmp.eq.s32.totalorder %s22, 0
      %p44 = por %p42, %p43
      %s45 = ssub.s32 %s16, %s23
      %p46 = scmp.eq.s32.totalorder %s45, 0
      %s48 = sadd.s32 %s47, 1
      %s49 = scalar_select %p46, %s47, %s48
      %p52 = pneg %p46
      %p53 = scmp.eq.s32.totalorder %s16, 1
      %p54 = por %p52, %p53
      %p55 = scmp.ne.s32.totalorder %s47, %s50
      %p56 = scmp.eq.s32.totalorder %s16, 0
      %p57 = por %p55, %p56
      %p58 = scmp.ne.s32.totalorder %s47, %s50
      %p59 = scmp.eq.s32.totalorder %s21, 1
      %p60 = por %p58, %p59
      %p61 = scmp.ne.s32.totalorder %s50, %s51
      %p62 = scmp.eq.s32.totalorder %s21, 0
      %p63 = por %p61, %p62
      %p64 = scmp.ne.s32.totalorder %s50, %s51
      %p65 = scmp.eq.s32.totalorder %s22, 1
      %p66 = por %p64, %p65
      %p68 = scmp.ne.s32.totalorder %s51, %s67
      %p69 = scmp.eq.s32.totalorder %s22, 0
      %p70 = por %p68, %p69
      %s71 = ssub.s32 %s16, %s23
      %p72 = scmp.eq.s32.totalorder %s71, 0
      %s74 = sadd.s32 %s73, 1
      %s75 = scalar_select %p72, %s73, %s74
      %p78 = pneg %p72
      %p79 = scmp.eq.s32.totalorder %s16, 1
      %p80 = por %p78, %p79
      %p81 = scmp.ne.s32.totalorder %s73, %s76
      %p82 = scmp.eq.s32.totalorder %s16, 0
      %p83 = por %p81, %p82
      %p84 = scmp.ne.s32.totalorder %s73, %s76
      %p85 = scmp.eq.s32.totalorder %s21, 1
      %p86 = por %p84, %p85
      %p87 = scmp.ne.s32.totalorder %s76, %s77
      %p88 = scmp.eq.s32.totalorder %s21, 0
      %p89 = por %p87, %p88
      %p90 = scmp.ne.s32.totalorder %s76, %s77
      %p91 = scmp.eq.s32.totalorder %s22, 1
      %p92 = por %p90, %p91
      %p94 = scmp.ne.s32.totalorder %s77, %s93
      %p95 = scmp.eq.s32.totalorder %s22, 0
      %p96 = por %p94, %p95
      %s97 = ssub.s32 %s16, %s23
      %p98 = scmp.eq.s32.totalorder %s97, 0
      %s100 = sadd.s32 %s99, 1
      %s101 = scalar_select %p98, %s99, %s100
      %p104 = pneg %p98
      %p105 = scmp.eq.s32.totalorder %s16, 1
      %p106 = por %p104, %p105
      %p107 = scmp.ne.s32.totalorder %s99, %s102
      %p108 = scmp.eq.s32.totalorder %s16, 0
      %p109 = por %p107, %p108
      %p110 = scmp.ne.s32.totalorder %s99, %s102
      %p111 = scmp.eq.s32.totalorder %s21, 1
      %p112 = por %p110, %p111
      %p113 = scmp.ne.s32.totalorder %s102, %s103
      %p114 = scmp.eq.s32.totalorder %s21, 0
      %p115 = por %p113, %p114
      %p116 = scmp.ne.s32.totalorder %s102, %s103
      %p117 = scmp.eq.s32.totalorder %s22, 1
      %p118 = por %p116, %p117
      %p120 = scmp.ne.s32.totalorder %s103, %s119
      %p121 = scmp.eq.s32.totalorder %s22, 0
      %p122 = por %p120, %p121
      %s123 = ssub.s32 %s16, %s23
      %p124 = scmp.eq.s32.totalorder %s123, 0
      %s126 = sadd.s32 %s125, 1
      %s127 = scalar_select %p124, %s125, %s126
      %p130 = pneg %p124
      %p131 = scmp.eq.s32.totalorder %s16, 1
      %p132 = por %p130, %p131
      %p133 = scmp.ne.s32.totalorder %s125, %s128
      %p134 = scmp.eq.s32.totalorder %s16, 0
      %p135 = por %p133, %p134
      %p136 = scmp.ne.s32.totalorder %s125, %s128
      %p137 = scmp.eq.s32.totalorder %s21, 1
      %p138 = por %p136, %p137
      %p139 = scmp.ne.s32.totalorder %s128, %s129
      %p140 = scmp.eq.s32.totalorder %s21, 0
      %p141 = por %p139, %p140
      %p142 = scmp.ne.s32.totalorder %s128, %s129
      %p143 = scmp.eq.s32.totalorder %s22, 1
      %p144 = por %p142, %p143
      %p146 = scmp.ne.s32.totalorder %s129, %s145
      %p147 = scmp.eq.s32.totalorder %s22, 0
      %p148 = por %p146, %p147
      %p149 = scmp.le.s32.totalorder 1, %s16
      %p150 = scmp.lt.s32.totalorder %s16, 3
      %p151 = pnand %p149, %p150
      %p152 = pneg %p151
      // Predicated region
      $region9: #{_forward_core.2} parent=5 // pred_check
        _
      $region10: #{_forward_core.2} parent=5 // pred_check_branch
        %154 = sbr.rel (%p151) target = $region12
      $region11: #{_forward_core.2} parent=5 // pred_region
        %s155 = ssub.s32 %s16, 1
        // Predicated region
        $region13: #{_forward_core.2} parent=11 // pred_check
          %p156 = pneg %p37
        $region14: #{_forward_core.2} parent=11 // pred_check_branch
          %158 = sbr.rel (%p156) target = $region16
        $region15: #{_forward_core.2} parent=11 // pred_region
          _
        $region16: #{_forward_core.2} parent=11 // pred_fallthru
          _
      $region12: #{_forward_core.2} parent=5 // pred_fallthru
        _
      %p159 = scmp.lt.s32.totalorder %s16, 2
      // Predicated region
      $region17: #{_forward_core.2} parent=5 // pred_check
        %p160 = pneg %p159
      $region18: #{_forward_core.2} parent=5 // pred_check_branch
        %162 = sbr.rel (%p160) target = $region20
      $region19: #{_forward_core.2} parent=5 // pred_region
        // Predicated region
        $region21: #{_forward_core.2} parent=19 // pred_check
          %p163 = pneg %p57
        $region22: #{_forward_core.2} parent=19 // pred_check_branch
          %165 = sbr.rel (%p163) target = $region24
        $region23: #{_forward_core.2} parent=19 // pred_region
          %s166 = sand.u32 %s47, 1
          %s167 = scalar_lea.sflag [#allocation4], %s166
          %s168 = sand.u32 %s47, 1
          %s169 = smul.addr %s168, 1536
          %s170 = scalar_lea.vmem [#allocation3], %s169
          %s172 = ssub.s32 24576, 24576
          %173 = vsyncadd %s167, %s172
          %s174 = smul.addr %s16, 384
          %s175 = smul.addr %s174, 64
          %s176 = scalar_lea.hbm %s1, %s175
          %s177 = sshll.u32 %s170, 4
          %s178 = int_to_ptr.vmem [resolvable:$true] %s177
          %183 = dma.hbm_to_vmem [thread:$0]  %s176, 24576, %s178, %s167, 256, 256, 16
        $region24: #{_forward_core.2} parent=19 // pred_fallthru
          _
        // Predicated region
        $region25: #{_forward_core.2} parent=19 // pred_check
          %p184 = pneg %p83
        $region26: #{_forward_core.2} parent=19 // pred_check_branch
          %186 = sbr.rel (%p184) target = $region28
        $region27: #{_forward_core.2} parent=19 // pred_region
          %p187 = scmp.lt.s32.totalorder %s16, 1
          %s188 = scalar_select %p187, %s16, 1
          %s189 = smul.addr %s188, 64
          %s190 = smul.addr %s189, 8
          %s191 = scalar_lea.vmem %s2, %s190
        $region28: #{_forward_core.2} parent=19 // pred_fallthru
          _
        // Predicated region
        $region29: #{_forward_core.2} parent=19 // pred_check
          %p192 = pneg %p109
        $region30: #{_forward_core.2} parent=19 // pred_check_branch
          %194 = sbr.rel (%p192) target = $region32
        $region31: #{_forward_core.2} parent=19 // pred_region
          %s195 = sand.u32 %s99, 1
          %s196 = scalar_lea.sflag [#allocation6], %s195
          %s197 = sand.u32 %s99, 1
          %s198 = smul.addr %s197, 4
          %s199 = scalar_lea.vmem [#allocation5], %s198
          %s201 = ssub.s32 64, 64
          %202 = vsyncadd %s196, %s201
          %s203 = smul.addr %s16, 4
          %s204 = smul.addr %s203, 16
          %s205 = scalar_lea.hbm %s3, %s204
          %s207 = sshll.u32 %s199, 4
          %s208 = int_to_ptr.vmem [resolvable:$true] %s207
          %210 = dma.hbm_to_vmem [thread:$0]  %s205, 64, %s208, %s196
        $region32: #{_forward_core.2} parent=19 // pred_fallthru
          _
      $region20: #{_forward_core.2} parent=5 // pred_fallthru
        _
      %p211 = scmp.le.s32.totalorder 1, %s16
      %p212 = scmp.lt.s32.totalorder %s16, 3
      %p213 = pnand %p211, %p212
      %p214 = pneg %p213
      // Predicated region
      $region33: #{_forward_core.2} parent=5 // pred_check
        _
      $region34: #{_forward_core.2} parent=5 // pred_check_branch
        %216 = sbr.rel (%p213) target = $region36
      $region35: #{_forward_core.2} parent=5 // pred_region
        %s217 = ssub.s32 %s16, 1
        %s218 = sand.u32 %s50, 1
        %s219 = scalar_lea.sflag [#allocation4], %s218
        %s220 = sand.u32 %s50, 1
        %s221 = smul.addr %s220, 1536
        %s222 = scalar_lea.vmem [#allocation3], %s221
        // Predicated region
        $region37: #{_forward_core.2} parent=35 // pred_check
          %p223 = pneg %p63
        $region38: #{_forward_core.2} parent=35 // pred_check_branch
          %225 = sbr.rel (%p223) target = $region40
        $region39: #{_forward_core.2} parent=35 // pred_region
          %226 = dma.done %s219, 24576
        $region40: #{_forward_core.2} parent=35 // pred_fallthru
          _
        %s227 = sand.u32 %s102, 1
        %s228 = scalar_lea.sflag [#allocation6], %s227
        %s229 = sand.u32 %s102, 1
        %s230 = smul.addr %s229, 4
        %s231 = scalar_lea.vmem [#allocation5], %s230
        // Predicated region
        $region41: #{_forward_core.2} parent=35 // pred_check
          %p232 = pneg %p115
        $region42: #{_forward_core.2} parent=35 // pred_check_branch
          %234 = sbr.rel (%p232) target = $region44
        $region43: #{_forward_core.2} parent=35 // pred_region
          %235 = dma.done %s228, 64
        $region44: #{_forward_core.2} parent=35 // pred_fallthru
          _
        %p236 = pneg %p37
        %p237 = pneg %p34
        %s238 = sand.u32 %s50, 1
        %s239 = scalar_lea.sflag [#allocation4], %s238
        %s240 = sand.u32 %s50, 1
        %s241 = smul.addr %s240, 1536
        %s242 = scalar_lea.vmem [#allocation3], %s241
        %p243 = pneg %p63
        %p244 = pneg %p60
        %p245 = scmp.lt.s32.totalorder %s21, 1
        %s246 = scalar_select %p245, %s21, 1
        %s247 = smul.addr %s246, 64
        %s248 = smul.addr %s247, 8
        %s249 = scalar_lea.vmem %s2, %s248
        %p250 = pneg %p89
        %p251 = pneg %p86
        %s252 = sand.u32 %s102, 1
        %s253 = scalar_lea.sflag [#allocation6], %s252
        %s254 = sand.u32 %s102, 1
        %s255 = smul.addr %s254, 4
        %s256 = scalar_lea.vmem [#allocation5], %s255
        %p257 = pneg %p115
        %p258 = pneg %p112
        %p259 = pneg %p141
        %p260 = pneg %p138
        %s261 = sand.u32 %s128, 1
        %s262 = sand.u32 %s128, 1
        %s263 = smul.addr %s262, 64
        %s264 = scalar_lea.vmem [#allocation7], %s263
        %p265 = scmp.lt.s32.totalorder %s21, 1
        %s266 = scalar_select %p265, %s21, 1
        %s267 = smul.addr %s266, 64
        %s268 = smul.addr %s267, 8
        %s269 = scalar_lea.vmem %s2, %s268
        %v270 = vld [vmem:[%s0] sm:$0xff]
        %v271 = vld [vmem:[%s0 + $0x8] sm:$0xff]
        %v272 = vld [vmem:[%s0 + $0x10] sm:$0xff]
        %v273 = vld [vmem:[%s0 + $0x18] sm:$0xff]
        %v274 = vld [vmem:[%s0 + $0x20] sm:$0xff]
        %v275 = vld [vmem:[%s0 + $0x28] sm:$0xff]
        %v276 = vld [vmem:[%s0 + $0x30] sm:$0xff]
        %v277 = vld [vmem:[%s0 + $0x38] sm:$0xff]
        %v278 = vld [vmem:[%s0 + $0x40] sm:$0xff]
        %v279 = vld [vmem:[%s0 + $0x48] sm:$0xff]
        %v280 = vld [vmem:[%s0 + $0x50] sm:$0xff]
        %v281 = vld [vmem:[%s0 + $0x58] sm:$0xff]
        %v282 = vld [vmem:[%s0 + $0x60] sm:$0xff]
        %v283 = vld [vmem:[%s0 + $0x68] sm:$0xff]
        %v284 = vld [vmem:[%s0 + $0x70] sm:$0xff]
        %v285 = vld [vmem:[%s0 + $0x78] sm:$0xff]
        %v286 = vld [vmem:[%s0 + $0x80] sm:$0xff]
        %v287 = vld [vmem:[%s0 + $0x88] sm:$0xff]
        %v288 = vld [vmem:[%s0 + $0x90] sm:$0xff]
        %v289 = vld [vmem:[%s0 + $0x98] sm:$0xff]
        %v290 = vld [vmem:[%s0 + $0xa0] sm:$0xff]
        %v291 = vld [vmem:[%s0 + $0xa8] sm:$0xff]
        %v292 = vld [vmem:[%s0 + $0xb0] sm:$0xff]
        %v293 = vld [vmem:[%s0 + $0xb8] sm:$0xff]
        %v294 = vld [vmem:[%s222] sm:$0xff]
        %v295 = vld [vmem:[%s222 + $0x8] sm:$0xff]
        %v296 = vld [vmem:[%s222 + $0x10] sm:$0xff]
        %v297 = vld [vmem:[%s222 + $0x18] sm:$0xff]
        %v298 = vld [vmem:[%s222 + $0x20] sm:$0xff]
        %v299 = vld [vmem:[%s222 + $0x28] sm:$0xff]
        %v300 = vld [vmem:[%s222 + $0x30] sm:$0xff]
        %v301 = vld [vmem:[%s222 + $0x38] sm:$0xff]
        %v302 = vld [vmem:[%s222 + $0x40] sm:$0xff]
        %v303 = vld [vmem:[%s222 + $0x48] sm:$0xff]
        %v304 = vld [vmem:[%s222 + $0x50] sm:$0xff]
        %v305 = vld [vmem:[%s222 + $0x58] sm:$0xff]
        %v306 = vld [vmem:[%s222 + $0x60] sm:$0xff]
        %v307 = vld [vmem:[%s222 + $0x68] sm:$0xff]
        %v308 = vld [vmem:[%s222 + $0x70] sm:$0xff]
        %v309 = vld [vmem:[%s222 + $0x78] sm:$0xff]
        %v310 = vld [vmem:[%s222 + $0x80] sm:$0xff]
        %v311 = vld [vmem:[%s222 + $0x88] sm:$0xff]
        %v312 = vld [vmem:[%s222 + $0x90] sm:$0xff]
        %v313 = vld [vmem:[%s222 + $0x98] sm:$0xff]
        %v314 = vld [vmem:[%s222 + $0xa0] sm:$0xff]
        %v315 = vld [vmem:[%s222 + $0xa8] sm:$0xff]
        %v316 = vld [vmem:[%s222 + $0xb0] sm:$0xff]
        %v317 = vld [vmem:[%s222 + $0xb8] sm:$0xff]
        %v318 = vld [vmem:[%s222 + $0xc0] sm:$0xff]
        %v319 = vld [vmem:[%s222 + $0xc8] sm:$0xff]
        %v320 = vld [vmem:[%s222 + $0xd0] sm:$0xff]
        %v321 = vld [vmem:[%s222 + $0xd8] sm:$0xff]
        %v322 = vld [vmem:[%s222 + $0xe0] sm:$0xff]
        %v323 = vld [vmem:[%s222 + $0xe8] sm:$0xff]
        %v324 = vld [vmem:[%s222 + $0xf0] sm:$0xff]
        %v325 = vld [vmem:[%s222 + $0xf8] sm:$0xff]
        %v326 = vld [vmem:[%s222 + $0x100] sm:$0xff]
        %v327 = vld [vmem:[%s222 + $0x108] sm:$0xff]
        %v328 = vld [vmem:[%s222 + $0x110] sm:$0xff]
        %v329 = vld [vmem:[%s222 + $0x118] sm:$0xff]
        %v330 = vld [vmem:[%s222 + $0x120] sm:$0xff]
        %v331 = vld [vmem:[%s222 + $0x128] sm:$0xff]
        %v332 = vld [vmem:[%s222 + $0x130] sm:$0xff]
        %v333 = vld [vmem:[%s222 + $0x138] sm:$0xff]
        %v334 = vld [vmem:[%s222 + $0x140] sm:$0xff]
        %v335 = vld [vmem:[%s222 + $0x148] sm:$0xff]
        %v336 = vld [vmem:[%s222 + $0x150] sm:$0xff]
        %v337 = vld [vmem:[%s222 + $0x158] sm:$0xff]
        %v338 = vld [vmem:[%s222 + $0x160] sm:$0xff]
        %v339 = vld [vmem:[%s222 + $0x168] sm:$0xff]
        %v340 = vld [vmem:[%s222 + $0x170] sm:$0xff]
        %v341 = vld [vmem:[%s222 + $0x178] sm:$0xff]
        %v342 = vld [vmem:[%s222 + $0x180] sm:$0xff]
        %v343 = vld [vmem:[%s222 + $0x188] sm:$0xff]
        %v344 = vld [vmem:[%s222 + $0x190] sm:$0xff]
        %v345 = vld [vmem:[%s222 + $0x198] sm:$0xff]
        %v346 = vld [vmem:[%s222 + $0x1a0] sm:$0xff]
        %v347 = vld [vmem:[%s222 + $0x1a8] sm:$0xff]
        %v348 = vld [vmem:[%s222 + $0x1b0] sm:$0xff]
        %v349 = vld [vmem:[%s222 + $0x1b8] sm:$0xff]
        %v350 = vld [vmem:[%s222 + $0x1c0] sm:$0xff]
        %v351 = vld [vmem:[%s222 + $0x1c8] sm:$0xff]
        %v352 = vld [vmem:[%s222 + $0x1d0] sm:$0xff]
        %v353 = vld [vmem:[%s222 + $0x1d8] sm:$0xff]
        %v354 = vld [vmem:[%s222 + $0x1e0] sm:$0xff]
        %v355 = vld [vmem:[%s222 + $0x1e8] sm:$0xff]
        %v356 = vld [vmem:[%s222 + $0x1f0] sm:$0xff]
        %v357 = vld [vmem:[%s222 + $0x1f8] sm:$0xff]
        %v358 = vld [vmem:[%s222 + $0x200] sm:$0xff]
        %v359 = vld [vmem:[%s222 + $0x208] sm:$0xff]
        %v360 = vld [vmem:[%s222 + $0x210] sm:$0xff]
        %v361 = vld [vmem:[%s222 + $0x218] sm:$0xff]
        %v362 = vld [vmem:[%s222 + $0x220] sm:$0xff]
        %v363 = vld [vmem:[%s222 + $0x228] sm:$0xff]
        %v364 = vld [vmem:[%s222 + $0x230] sm:$0xff]
        %v365 = vld [vmem:[%s222 + $0x238] sm:$0xff]
        %v366 = vld [vmem:[%s222 + $0x240] sm:$0xff]
        %v367 = vld [vmem:[%s222 + $0x248] sm:$0xff]
        %v368 = vld [vmem:[%s222 + $0x250] sm:$0xff]
        %v369 = vld [vmem:[%s222 + $0x258] sm:$0xff]
        %v370 = vld [vmem:[%s222 + $0x260] sm:$0xff]
        %v371 = vld [vmem:[%s222 + $0x268] sm:$0xff]
        %v372 = vld [vmem:[%s222 + $0x270] sm:$0xff]
        %v373 = vld [vmem:[%s222 + $0x278] sm:$0xff]
        %v374 = vld [vmem:[%s222 + $0x280] sm:$0xff]
        %v375 = vld [vmem:[%s222 + $0x288] sm:$0xff]
        %v376 = vld [vmem:[%s222 + $0x290] sm:$0xff]
        %v377 = vld [vmem:[%s222 + $0x298] sm:$0xff]
        %v378 = vld [vmem:[%s222 + $0x2a0] sm:$0xff]
        %v379 = vld [vmem:[%s222 + $0x2a8] sm:$0xff]
        %v380 = vld [vmem:[%s222 + $0x2b0] sm:$0xff]
        %v381 = vld [vmem:[%s222 + $0x2b8] sm:$0xff]
        %v382 = vld [vmem:[%s222 + $0x2c0] sm:$0xff]
        %v383 = vld [vmem:[%s222 + $0x2c8] sm:$0xff]
        %v384 = vld [vmem:[%s222 + $0x2d0] sm:$0xff]
        %v385 = vld [vmem:[%s222 + $0x2d8] sm:$0xff]
        %v386 = vld [vmem:[%s222 + $0x2e0] sm:$0xff]
        %v387 = vld [vmem:[%s222 + $0x2e8] sm:$0xff]
        %v388 = vld [vmem:[%s222 + $0x2f0] sm:$0xff]
        %v389 = vld [vmem:[%s222 + $0x2f8] sm:$0xff]
        %v390 = vld [vmem:[%s222 + $0x300] sm:$0xff]
        %v391 = vld [vmem:[%s222 + $0x308] sm:$0xff]
        %v392 = vld [vmem:[%s222 + $0x310] sm:$0xff]
        %v393 = vld [vmem:[%s222 + $0x318] sm:$0xff]
        %v394 = vld [vmem:[%s222 + $0x320] sm:$0xff]
        %v395 = vld [vmem:[%s222 + $0x328] sm:$0xff]
        %v396 = vld [vmem:[%s222 + $0x330] sm:$0xff]
        %v397 = vld [vmem:[%s222 + $0x338] sm:$0xff]
        %v398 = vld [vmem:[%s222 + $0x340] sm:$0xff]
        %v399 = vld [vmem:[%s222 + $0x348] sm:$0xff]
        %v400 = vld [vmem:[%s222 + $0x350] sm:$0xff]
        %v401 = vld [vmem:[%s222 + $0x358] sm:$0xff]
        %v402 = vld [vmem:[%s222 + $0x360] sm:$0xff]
        %v403 = vld [vmem:[%s222 + $0x368] sm:$0xff]
        %v404 = vld [vmem:[%s222 + $0x370] sm:$0xff]
        %v405 = vld [vmem:[%s222 + $0x378] sm:$0xff]
        %v406 = vld [vmem:[%s222 + $0x380] sm:$0xff]
        %v407 = vld [vmem:[%s222 + $0x388] sm:$0xff]
        %v408 = vld [vmem:[%s222 + $0x390] sm:$0xff]
        %v409 = vld [vmem:[%s222 + $0x398] sm:$0xff]
        %v410 = vld [vmem:[%s222 + $0x3a0] sm:$0xff]
        %v411 = vld [vmem:[%s222 + $0x3a8] sm:$0xff]
        %v412 = vld [vmem:[%s222 + $0x3b0] sm:$0xff]
        %v413 = vld [vmem:[%s222 + $0x3b8] sm:$0xff]
        %v414 = vld [vmem:[%s222 + $0x3c0] sm:$0xff]
        %v415 = vld [vmem:[%s222 + $0x3c8] sm:$0xff]
        %v416 = vld [vmem:[%s222 + $0x3d0] sm:$0xff]
        %v417 = vld [vmem:[%s222 + $0x3d8] sm:$0xff]
        %v418 = vld [vmem:[%s222 + $0x3e0] sm:$0xff]
        %v419 = vld [vmem:[%s222 + $0x3e8] sm:$0xff]
        %v420 = vld [vmem:[%s222 + $0x3f0] sm:$0xff]
        %v421 = vld [vmem:[%s222 + $0x3f8] sm:$0xff]
        %v422 = vld [vmem:[%s222 + $0x400] sm:$0xff]
        %v423 = vld [vmem:[%s222 + $0x408] sm:$0xff]
        %v424 = vld [vmem:[%s222 + $0x410] sm:$0xff]
        %v425 = vld [vmem:[%s222 + $0x418] sm:$0xff]
        %v426 = vld [vmem:[%s222 + $0x420] sm:$0xff]
        %v427 = vld [vmem:[%s222 + $0x428] sm:$0xff]
        %v428 = vld [vmem:[%s222 + $0x430] sm:$0xff]
        %v429 = vld [vmem:[%s222 + $0x438] sm:$0xff]
        %v430 = vld [vmem:[%s222 + $0x440] sm:$0xff]
        %v431 = vld [vmem:[%s222 + $0x448] sm:$0xff]
        %v432 = vld [vmem:[%s222 + $0x450] sm:$0xff]
        %v433 = vld [vmem:[%s222 + $0x458] sm:$0xff]
        %v434 = vld [vmem:[%s222 + $0x460] sm:$0xff]
        %v435 = vld [vmem:[%s222 + $0x468] sm:$0xff]
        %v436 = vld [vmem:[%s222 + $0x470] sm:$0xff]
        %v437 = vld [vmem:[%s222 + $0x478] sm:$0xff]
        %v438 = vld [vmem:[%s222 + $0x480] sm:$0xff]
        %v439 = vld [vmem:[%s222 + $0x488] sm:$0xff]
        %v440 = vld [vmem:[%s222 + $0x490] sm:$0xff]
        %v441 = vld [vmem:[%s222 + $0x498] sm:$0xff]
        %v442 = vld [vmem:[%s222 + $0x4a0] sm:$0xff]
        %v443 = vld [vmem:[%s222 + $0x4a8] sm:$0xff]
        %v444 = vld [vmem:[%s222 + $0x4b0] sm:$0xff]
        %v445 = vld [vmem:[%s222 + $0x4b8] sm:$0xff]
        %v446 = vld [vmem:[%s222 + $0x4c0] sm:$0xff]
        %v447 = vld [vmem:[%s222 + $0x4c8] sm:$0xff]
        %v448 = vld [vmem:[%s222 + $0x4d0] sm:$0xff]
        %v449 = vld [vmem:[%s222 + $0x4d8] sm:$0xff]
        %v450 = vld [vmem:[%s222 + $0x4e0] sm:$0xff]
        %v451 = vld [vmem:[%s222 + $0x4e8] sm:$0xff]
        %v452 = vld [vmem:[%s222 + $0x4f0] sm:$0xff]
        %v453 = vld [vmem:[%s222 + $0x4f8] sm:$0xff]
        %v454 = vld [vmem:[%s222 + $0x500] sm:$0xff]
        %v455 = vld [vmem:[%s222 + $0x508] sm:$0xff]
        %v456 = vld [vmem:[%s222 + $0x510] sm:$0xff]
        %v457 = vld [vmem:[%s222 + $0x518] sm:$0xff]
        %v458 = vld [vmem:[%s222 + $0x520] sm:$0xff]
        %v459 = vld [vmem:[%s222 + $0x528] sm:$0xff]
        %v460 = vld [vmem:[%s222 + $0x530] sm:$0xff]
        %v461 = vld [vmem:[%s222 + $0x538] sm:$0xff]
        %v462 = vld [vmem:[%s222 + $0x540] sm:$0xff]
        %v463 = vld [vmem:[%s222 + $0x548] sm:$0xff]
        %v464 = vld [vmem:[%s222 + $0x550] sm:$0xff]
        %v465 = vld [vmem:[%s222 + $0x558] sm:$0xff]
        %v466 = vld [vmem:[%s222 + $0x560] sm:$0xff]
        %v467 = vld [vmem:[%s222 + $0x568] sm:$0xff]
        %v468 = vld [vmem:[%s222 + $0x570] sm:$0xff]
        %v469 = vld [vmem:[%s222 + $0x578] sm:$0xff]
        %v470 = vld [vmem:[%s222 + $0x580] sm:$0xff]
        %v471 = vld [vmem:[%s222 + $0x588] sm:$0xff]
        %v472 = vld [vmem:[%s222 + $0x590] sm:$0xff]
        %v473 = vld [vmem:[%s222 + $0x598] sm:$0xff]
        %v474 = vld [vmem:[%s222 + $0x5a0] sm:$0xff]
        %v475 = vld [vmem:[%s222 + $0x5a8] sm:$0xff]
        %v476 = vld [vmem:[%s222 + $0x5b0] sm:$0xff]
        %v477 = vld [vmem:[%s222 + $0x5b8] sm:$0xff]
        %v478 = vld [vmem:[%s222 + $0x5c0] sm:$0xff]
        %v479 = vld [vmem:[%s222 + $0x5c8] sm:$0xff]
        %v480 = vld [vmem:[%s222 + $0x5d0] sm:$0xff]
        %v481 = vld [vmem:[%s222 + $0x5d8] sm:$0xff]
        %v482 = vld [vmem:[%s222 + $0x5e0] sm:$0xff]
        %v483 = vld [vmem:[%s222 + $0x5e8] sm:$0xff]
        %v484 = vld [vmem:[%s222 + $0x5f0] sm:$0xff]
        %v485 = vld [vmem:[%s222 + $0x5f8] sm:$0xff]
        %v486 = vld [vmem:[%s231] sm:$0xf]
        %v488 = vlaneseq
        %v489 = vshrl.u32 %v488, 7
        %v490 = vsub.s32 0, %v489
        %v491 = vrot.slane %v486, %v490
        %v492 = vlaneseq
        %v493 = vshrl.u32 %v492, 7
        %v494 = vsub.s32 1, %v493
        %v495 = vrot.slane %v486, %v494
        %v496 = vlaneseq
        %v497 = vshrl.u32 %v496, 7
        %v498 = vsub.s32 2, %v497
        %v499 = vrot.slane %v486, %v498
        %v500 = vlaneseq
        %v501 = vshrl.u32 %v500, 7
        %v502 = vsub.s32 3, %v501
        %v503 = vrot.slane %v486, %v502
        %v532 = vunpack.c.l.b16 %v270
        %v533 = vunpack.c.h.b16 %v270
        %v534 = vunpack.c.l.b16 %v271
        %v535 = vunpack.c.h.b16 %v271
        %v536 = vunpack.c.l.b16 %v272
        %v537 = vunpack.c.h.b16 %v272
        %v538 = vunpack.c.l.b16 %v273
        %v539 = vunpack.c.h.b16 %v273
        %v540 = vunpack.c.l.b16 %v274
        %v541 = vunpack.c.h.b16 %v274
        %v542 = vunpack.c.l.b16 %v275
        %v543 = vunpack.c.h.b16 %v275
        %v544 = vunpack.c.l.b16 %v276
        %v545 = vunpack.c.h.b16 %v276
        %v546 = vunpack.c.l.b16 %v277
        %v547 = vunpack.c.h.b16 %v277
        %v548 = vunpack.c.l.b16 %v278
        %v549 = vunpack.c.h.b16 %v278
        %v550 = vunpack.c.l.b16 %v279
        %v551 = vunpack.c.h.b16 %v279
        %v552 = vunpack.c.l.b16 %v280
        %v553 = vunpack.c.h.b16 %v280
        %v554 = vunpack.c.l.b16 %v281
        %v555 = vunpack.c.h.b16 %v281
        %v556 = vunpack.c.l.b16 %v282
        %v557 = vunpack.c.h.b16 %v282
        %v558 = vunpack.c.l.b16 %v283
        %v559 = vunpack.c.h.b16 %v283
        %v560 = vunpack.c.l.b16 %v284
        %v561 = vunpack.c.h.b16 %v284
        %v562 = vunpack.c.l.b16 %v285
        %v563 = vunpack.c.h.b16 %v285
        %v564 = vunpack.c.l.b16 %v286
        %v565 = vunpack.c.h.b16 %v286
        %v566 = vunpack.c.l.b16 %v287
        %v567 = vunpack.c.h.b16 %v287
        %v568 = vunpack.c.l.b16 %v288
        %v569 = vunpack.c.h.b16 %v288
        %v570 = vunpack.c.l.b16 %v289
        %v571 = vunpack.c.h.b16 %v289
        %v572 = vunpack.c.l.b16 %v290
        %v573 = vunpack.c.h.b16 %v290
        %v574 = vunpack.c.l.b16 %v291
        %v575 = vunpack.c.h.b16 %v291
        %v576 = vunpack.c.l.b16 %v292
        %v577 = vunpack.c.h.b16 %v292
        %v578 = vunpack.c.l.b16 %v293
        %v579 = vunpack.c.h.b16 %v293
        %v580 = vpack.c.b16 %v538, %v532
        %v581 = vpack.c.b16 %v539, %v533
        %v582 = vpack.c.b16 %v540, %v534
        %v583 = vpack.c.b16 %v541, %v535
        %v584 = vpack.c.b16 %v542, %v536
        %v585 = vpack.c.b16 %v543, %v537
        %v586 = vpack.c.b16 %v550, %v544
        %v587 = vpack.c.b16 %v551, %v545
        %v588 = vpack.c.b16 %v552, %v546
        %v589 = vpack.c.b16 %v553, %v547
        %v590 = vpack.c.b16 %v554, %v548
        %v591 = vpack.c.b16 %v555, %v549
        %v592 = vpack.c.b16 %v562, %v556
        %v593 = vpack.c.b16 %v563, %v557
        %v594 = vpack.c.b16 %v564, %v558
        %v595 = vpack.c.b16 %v565, %v559
        %v596 = vpack.c.b16 %v566, %v560
        %v597 = vpack.c.b16 %v567, %v561
        %v598 = vpack.c.b16 %v574, %v568
        %v599 = vpack.c.b16 %v575, %v569
        %v600 = vpack.c.b16 %v576, %v570
        %v601 = vpack.c.b16 %v577, %v571
        %v602 = vpack.c.b16 %v578, %v572
        %v603 = vpack.c.b16 %v579, %v573
        %v820 = vunpack.c.l.b16 %v294
        %v821 = vunpack.c.h.b16 %v294
        %v822 = vunpack.c.l.b16 %v295
        %v823 = vunpack.c.h.b16 %v295
        %v824 = vunpack.c.l.b16 %v296
        %v825 = vunpack.c.h.b16 %v296
        %v826 = vunpack.c.l.b16 %v297
        %v827 = vunpack.c.h.b16 %v297
        %v828 = vunpack.c.l.b16 %v298
        %v829 = vunpack.c.h.b16 %v298
        %v830 = vunpack.c.l.b16 %v299
        %v831 = vunpack.c.h.b16 %v299
        %v832 = vunpack.c.l.b16 %v300
        %v833 = vunpack.c.h.b16 %v300
        %v834 = vunpack.c.l.b16 %v301
        %v835 = vunpack.c.h.b16 %v301
        %v836 = vunpack.c.l.b16 %v302
        %v837 = vunpack.c.h.b16 %v302
        %v838 = vunpack.c.l.b16 %v303
        %v839 = vunpack.c.h.b16 %v303
        %v840 = vunpack.c.l.b16 %v304
        %v841 = vunpack.c.h.b16 %v304
        %v842 = vunpack.c.l.b16 %v305
        %v843 = vunpack.c.h.b16 %v305
        %v844 = vunpack.c.l.b16 %v306
        %v845 = vunpack.c.h.b16 %v306
        %v846 = vunpack.c.l.b16 %v307
        %v847 = vunpack.c.h.b16 %v307
        %v848 = vunpack.c.l.b16 %v308
        %v849 = vunpack.c.h.b16 %v308
        %v850 = vunpack.c.l.b16 %v309
        %v851 = vunpack.c.h.b16 %v309
        %v852 = vunpack.c.l.b16 %v310
        %v853 = vunpack.c.h.b16 %v310
        %v854 = vunpack.c.l.b16 %v311
        %v855 = vunpack.c.h.b16 %v311
        %v856 = vunpack.c.l.b16 %v312
        %v857 = vunpack.c.h.b16 %v312
        %v858 = vunpack.c.l.b16 %v313
        %v859 = vunpack.c.h.b16 %v313
        %v860 = vunpack.c.l.b16 %v314
        %v861 = vunpack.c.h.b16 %v314
        %v862 = vunpack.c.l.b16 %v315
        %v863 = vunpack.c.h.b16 %v315
        %v864 = vunpack.c.l.b16 %v316
        %v865 = vunpack.c.h.b16 %v316
        %v866 = vunpack.c.l.b16 %v317
        %v867 = vunpack.c.h.b16 %v317
        %v868 = vunpack.c.l.b16 %v318
        %v869 = vunpack.c.h.b16 %v318
        %v870 = vunpack.c.l.b16 %v319
        %v871 = vunpack.c.h.b16 %v319
        %v872 = vunpack.c.l.b16 %v320
        %v873 = vunpack.c.h.b16 %v320
        %v874 = vunpack.c.l.b16 %v321
        %v875 = vunpack.c.h.b16 %v321
        %v876 = vunpack.c.l.b16 %v322
        %v877 = vunpack.c.h.b16 %v322
        %v878 = vunpack.c.l.b16 %v323
        %v879 = vunpack.c.h.b16 %v323
        %v880 = vunpack.c.l.b16 %v324
        %v881 = vunpack.c.h.b16 %v324
        %v882 = vunpack.c.l.b16 %v325
        %v883 = vunpack.c.h.b16 %v325
        %v884 = vunpack.c.l.b16 %v326
        %v885 = vunpack.c.h.b16 %v326
        %v886 = vunpack.c.l.b16 %v327
        %v887 = vunpack.c.h.b16 %v327
        %v888 = vunpack.c.l.b16 %v328
        %v889 = vunpack.c.h.b16 %v328
        %v890 = vunpack.c.l.b16 %v329
        %v891 = vunpack.c.h.b16 %v329
        %v892 = vunpack.c.l.b16 %v330
        %v893 = vunpack.c.h.b16 %v330
        %v894 = vunpack.c.l.b16 %v331
        %v895 = vunpack.c.h.b16 %v331
        %v896 = vunpack.c.l.b16 %v332
        %v897 = vunpack.c.h.b16 %v332
        %v898 = vunpack.c.l.b16 %v333
        %v899 = vunpack.c.h.b16 %v333
        %v900 = vunpack.c.l.b16 %v334
        %v901 = vunpack.c.h.b16 %v334
        %v902 = vunpack.c.l.b16 %v335
        %v903 = vunpack.c.h.b16 %v335
        %v904 = vunpack.c.l.b16 %v336
        %v905 = vunpack.c.h.b16 %v336
        %v906 = vunpack.c.l.b16 %v337
        %v907 = vunpack.c.h.b16 %v337
        %v908 = vunpack.c.l.b16 %v338
        %v909 = vunpack.c.h.b16 %v338
        %v910 = vunpack.c.l.b16 %v339
        %v911 = vunpack.c.h.b16 %v339
        %v912 = vunpack.c.l.b16 %v340
        %v913 = vunpack.c.h.b16 %v340
        %v914 = vunpack.c.l.b16 %v341
        %v915 = vunpack.c.h.b16 %v341
        %v916 = vunpack.c.l.b16 %v342
        %v917 = vunpack.c.h.b16 %v342
        %v918 = vunpack.c.l.b16 %v343
        %v919 = vunpack.c.h.b16 %v343
        %v920 = vunpack.c.l.b16 %v344
        %v921 = vunpack.c.h.b16 %v344
        %v922 = vunpack.c.l.b16 %v345
        %v923 = vunpack.c.h.b16 %v345
        %v924 = vunpack.c.l.b16 %v346
        %v925 = vunpack.c.h.b16 %v346
        %v926 = vunpack.c.l.b16 %v347
        %v927 = vunpack.c.h.b16 %v347
        %v928 = vunpack.c.l.b16 %v348
        %v929 = vunpack.c.h.b16 %v348
        %v930 = vunpack.c.l.b16 %v349
        %v931 = vunpack.c.h.b16 %v349
        %v932 = vunpack.c.l.b16 %v350
        %v933 = vunpack.c.h.b16 %v350
        %v934 = vunpack.c.l.b16 %v351
        %v935 = vunpack.c.h.b16 %v351
        %v936 = vunpack.c.l.b16 %v352
        %v937 = vunpack.c.h.b16 %v352
        %v938 = vunpack.c.l.b16 %v353
        %v939 = vunpack.c.h.b16 %v353
        %v940 = vunpack.c.l.b16 %v354
        %v941 = vunpack.c.h.b16 %v354
        %v942 = vunpack.c.l.b16 %v355
        %v943 = vunpack.c.h.b16 %v355
        %v944 = vunpack.c.l.b16 %v356
        %v945 = vunpack.c.h.b16 %v356
        %v946 = vunpack.c.l.b16 %v357
        %v947 = vunpack.c.h.b16 %v357
        %v948 = vunpack.c.l.b16 %v358
        %v949 = vunpack.c.h.b16 %v358
        %v950 = vunpack.c.l.b16 %v359
        %v951 = vunpack.c.h.b16 %v359
        %v952 = vunpack.c.l.b16 %v360
        %v953 = vunpack.c.h.b16 %v360
        %v954 = vunpack.c.l.b16 %v361
        %v955 = vunpack.c.h.b16 %v361
        %v956 = vunpack.c.l.b16 %v362
        %v957 = vunpack.c.h.b16 %v362
        %v958 = vunpack.c.l.b16 %v363
        %v959 = vunpack.c.h.b16 %v363
        %v960 = vunpack.c.l.b16 %v364
        %v961 = vunpack.c.h.b16 %v364
        %v962 = vunpack.c.l.b16 %v365
        %v963 = vunpack.c.h.b16 %v365
        %v964 = vunpack.c.l.b16 %v366
        %v965 = vunpack.c.h.b16 %v366
        %v966 = vunpack.c.l.b16 %v367
        %v967 = vunpack.c.h.b16 %v367
        %v968 = vunpack.c.l.b16 %v368
        %v969 = vunpack.c.h.b16 %v368
        %v970 = vunpack.c.l.b16 %v369
        %v971 = vunpack.c.h.b16 %v369
        %v972 = vunpack.c.l.b16 %v370
        %v973 = vunpack.c.h.b16 %v370
        %v974 = vunpack.c.l.b16 %v371
        %v975 = vunpack.c.h.b16 %v371
        %v976 = vunpack.c.l.b16 %v372
        %v977 = vunpack.c.h.b16 %v372
        %v978 = vunpack.c.l.b16 %v373
        %v979 = vunpack.c.h.b16 %v373
        %v980 = vunpack.c.l.b16 %v374
        %v981 = vunpack.c.h.b16 %v374
        %v982 = vunpack.c.l.b16 %v375
        %v983 = vunpack.c.h.b16 %v375
        %v984 = vunpack.c.l.b16 %v376
        %v985 = vunpack.c.h.b16 %v376
        %v986 = vunpack.c.l.b16 %v377
        %v987 = vunpack.c.h.b16 %v377
        %v988 = vunpack.c.l.b16 %v378
        %v989 = vunpack.c.h.b16 %v378
        %v990 = vunpack.c.l.b16 %v379
        %v991 = vunpack.c.h.b16 %v379
        %v992 = vunpack.c.l.b16 %v380
        %v993 = vunpack.c.h.b16 %v380
        %v994 = vunpack.c.l.b16 %v381
        %v995 = vunpack.c.h.b16 %v381
        %v996 = vunpack.c.l.b16 %v382
        %v997 = vunpack.c.h.b16 %v382
        %v998 = vunpack.c.l.b16 %v383
        %v999 = vunpack.c.h.b16 %v383
        %v1000 = vunpack.c.l.b16 %v384
        %v1001 = vunpack.c.h.b16 %v384
        %v1002 = vunpack.c.l.b16 %v385
        %v1003 = vunpack.c.h.b16 %v385
        %v1004 = vunpack.c.l.b16 %v386
        %v1005 = vunpack.c.h.b16 %v386
        %v1006 = vunpack.c.l.b16 %v387
        %v1007 = vunpack.c.h.b16 %v387
        %v1008 = vunpack.c.l.b16 %v388
        %v1009 = vunpack.c.h.b16 %v388
        %v1010 = vunpack.c.l.b16 %v389
        %v1011 = vunpack.c.h.b16 %v389
        %v1012 = vunpack.c.l.b16 %v390
        %v1013 = vunpack.c.h.b16 %v390
        %v1014 = vunpack.c.l.b16 %v391
        %v1015 = vunpack.c.h.b16 %v391
        %v1016 = vunpack.c.l.b16 %v392
        %v1017 = vunpack.c.h.b16 %v392
        %v1018 = vunpack.c.l.b16 %v393
        %v1019 = vunpack.c.h.b16 %v393
        %v1020 = vunpack.c.l.b16 %v394
        %v1021 = vunpack.c.h.b16 %v394
        %v1022 = vunpack.c.l.b16 %v395
        %v1023 = vunpack.c.h.b16 %v395
        %v1024 = vunpack.c.l.b16 %v396
        %v1025 = vunpack.c.h.b16 %v396
        %v1026 = vunpack.c.l.b16 %v397
        %v1027 = vunpack.c.h.b16 %v397
        %v1028 = vunpack.c.l.b16 %v398
        %v1029 = vunpack.c.h.b16 %v398
        %v1030 = vunpack.c.l.b16 %v399
        %v1031 = vunpack.c.h.b16 %v399
        %v1032 = vunpack.c.l.b16 %v400
        %v1033 = vunpack.c.h.b16 %v400
        %v1034 = vunpack.c.l.b16 %v401
        %v1035 = vunpack.c.h.b16 %v401
        %v1036 = vunpack.c.l.b16 %v402
        %v1037 = vunpack.c.h.b16 %v402
        %v1038 = vunpack.c.l.b16 %v403
        %v1039 = vunpack.c.h.b16 %v403
        %v1040 = vunpack.c.l.b16 %v404
        %v1041 = vunpack.c.h.b16 %v404
        %v1042 = vunpack.c.l.b16 %v405
        %v1043 = vunpack.c.h.b16 %v405
        %v1044 = vunpack.c.l.b16 %v406
        %v1045 = vunpack.c.h.b16 %v406
        %v1046 = vunpack.c.l.b16 %v407
        %v1047 = vunpack.c.h.b16 %v407
        %v1048 = vunpack.c.l.b16 %v408
        %v1049 = vunpack.c.h.b16 %v408
        %v1050 = vunpack.c.l.b16 %v409
        %v1051 = vunpack.c.h.b16 %v409
        %v1052 = vunpack.c.l.b16 %v410
        %v1053 = vunpack.c.h.b16 %v410
        %v1054 = vunpack.c.l.b16 %v411
        %v1055 = vunpack.c.h.b16 %v411
        %v1056 = vunpack.c.l.b16 %v412
        %v1057 = vunpack.c.h.b16 %v412
        %v1058 = vunpack.c.l.b16 %v413
        %v1059 = vunpack.c.h.b16 %v413
        %v1060 = vunpack.c.l.b16 %v414
        %v1061 = vunpack.c.h.b16 %v414
        %v1062 = vunpack.c.l.b16 %v415
        %v1063 = vunpack.c.h.b16 %v415
        %v1064 = vunpack.c.l.b16 %v416
        %v1065 = vunpack.c.h.b16 %v416
        %v1066 = vunpack.c.l.b16 %v417
        %v1067 = vunpack.c.h.b16 %v417
        %v1068 = vunpack.c.l.b16 %v418
        %v1069 = vunpack.c.h.b16 %v418
        %v1070 = vunpack.c.l.b16 %v419
        %v1071 = vunpack.c.h.b16 %v419
        %v1072 = vunpack.c.l.b16 %v420
        %v1073 = vunpack.c.h.b16 %v420
        %v1074 = vunpack.c.l.b16 %v421
        %v1075 = vunpack.c.h.b16 %v421
        %v1076 = vunpack.c.l.b16 %v422
        %v1077 = vunpack.c.h.b16 %v422
        %v1078 = vunpack.c.l.b16 %v423
        %v1079 = vunpack.c.h.b16 %v423
        %v1080 = vunpack.c.l.b16 %v424
        %v1081 = vunpack.c.h.b16 %v424
        %v1082 = vunpack.c.l.b16 %v425
        %v1083 = vunpack.c.h.b16 %v425
        %v1084 = vunpack.c.l.b16 %v426
        %v1085 = vunpack.c.h.b16 %v426
        %v1086 = vunpack.c.l.b16 %v427
        %v1087 = vunpack.c.h.b16 %v427
        %v1088 = vunpack.c.l.b16 %v428
        %v1089 = vunpack.c.h.b16 %v428
        %v1090 = vunpack.c.l.b16 %v429
        %v1091 = vunpack.c.h.b16 %v429
        %v1092 = vunpack.c.l.b16 %v430
        %v1093 = vunpack.c.h.b16 %v430
        %v1094 = vunpack.c.l.b16 %v431
        %v1095 = vunpack.c.h.b16 %v431
        %v1096 = vunpack.c.l.b16 %v432
        %v1097 = vunpack.c.h.b16 %v432
        %v1098 = vunpack.c.l.b16 %v433
        %v1099 = vunpack.c.h.b16 %v433
        %v1100 = vunpack.c.l.b16 %v434
        %v1101 = vunpack.c.h.b16 %v434
        %v1102 = vunpack.c.l.b16 %v435
        %v1103 = vunpack.c.h.b16 %v435
        %v1104 = vunpack.c.l.b16 %v436
        %v1105 = vunpack.c.h.b16 %v436
        %v1106 = vunpack.c.l.b16 %v437
        %v1107 = vunpack.c.h.b16 %v437
        %v1108 = vunpack.c.l.b16 %v438
        %v1109 = vunpack.c.h.b16 %v438
        %v1110 = vunpack.c.l.b16 %v439
        %v1111 = vunpack.c.h.b16 %v439
        %v1112 = vunpack.c.l.b16 %v440
        %v1113 = vunpack.c.h.b16 %v440
        %v1114 = vunpack.c.l.b16 %v441
        %v1115 = vunpack.c.h.b16 %v441
        %v1116 = vunpack.c.l.b16 %v442
        %v1117 = vunpack.c.h.b16 %v442
        %v1118 = vunpack.c.l.b16 %v443
        %v1119 = vunpack.c.h.b16 %v443
        %v1120 = vunpack.c.l.b16 %v444
        %v1121 = vunpack.c.h.b16 %v444
        %v1122 = vunpack.c.l.b16 %v445
        %v1123 = vunpack.c.h.b16 %v445
        %v1124 = vunpack.c.l.b16 %v446
        %v1125 = vunpack.c.h.b16 %v446
        %v1126 = vunpack.c.l.b16 %v447
        %v1127 = vunpack.c.h.b16 %v447
        %v1128 = vunpack.c.l.b16 %v448
        %v1129 = vunpack.c.h.b16 %v448
        %v1130 = vunpack.c.l.b16 %v449
        %v1131 = vunpack.c.h.b16 %v449
        %v1132 = vunpack.c.l.b16 %v450
        %v1133 = vunpack.c.h.b16 %v450
        %v1134 = vunpack.c.l.b16 %v451
        %v1135 = vunpack.c.h.b16 %v451
        %v1136 = vunpack.c.l.b16 %v452
        %v1137 = vunpack.c.h.b16 %v452
        %v1138 = vunpack.c.l.b16 %v453
        %v1139 = vunpack.c.h.b16 %v453
        %v1140 = vunpack.c.l.b16 %v454
        %v1141 = vunpack.c.h.b16 %v454
        %v1142 = vunpack.c.l.b16 %v455
        %v1143 = vunpack.c.h.b16 %v455
        %v1144 = vunpack.c.l.b16 %v456
        %v1145 = vunpack.c.h.b16 %v456
        %v1146 = vunpack.c.l.b16 %v457
        %v1147 = vunpack.c.h.b16 %v457
        %v1148 = vunpack.c.l.b16 %v458
        %v1149 = vunpack.c.h.b16 %v458
        %v1150 = vunpack.c.l.b16 %v459
        %v1151 = vunpack.c.h.b16 %v459
        %v1152 = vunpack.c.l.b16 %v460
        %v1153 = vunpack.c.h.b16 %v460
        %v1154 = vunpack.c.l.b16 %v461
        %v1155 = vunpack.c.h.b16 %v461
        %v1156 = vunpack.c.l.b16 %v462
        %v1157 = vunpack.c.h.b16 %v462
        %v1158 = vunpack.c.l.b16 %v463
        %v1159 = vunpack.c.h.b16 %v463
        %v1160 = vunpack.c.l.b16 %v464
        %v1161 = vunpack.c.h.b16 %v464
        %v1162 = vunpack.c.l.b16 %v465
        %v1163 = vunpack.c.h.b16 %v465
        %v1164 = vunpack.c.l.b16 %v466
        %v1165 = vunpack.c.h.b16 %v466
        %v1166 = vunpack.c.l.b16 %v467
        %v1167 = vunpack.c.h.b16 %v467
        %v1168 = vunpack.c.l.b16 %v468
        %v1169 = vunpack.c.h.b16 %v468
        %v1170 = vunpack.c.l.b16 %v469
        %v1171 = vunpack.c.h.b16 %v469
        %v1172 = vunpack.c.l.b16 %v470
        %v1173 = vunpack.c.h.b16 %v470
        %v1174 = vunpack.c.l.b16 %v471
        %v1175 = vunpack.c.h.b16 %v471
        %v1176 = vunpack.c.l.b16 %v472
        %v1177 = vunpack.c.h.b16 %v472
        %v1178 = vunpack.c.l.b16 %v473
        %v1179 = vunpack.c.h.b16 %v473
        %v1180 = vunpack.c.l.b16 %v474
        %v1181 = vunpack.c.h.b16 %v474
        %v1182 = vunpack.c.l.b16 %v475
        %v1183 = vunpack.c.h.b16 %v475
        %v1184 = vunpack.c.l.b16 %v476
        %v1185 = vunpack.c.h.b16 %v476
        %v1186 = vunpack.c.l.b16 %v477
        %v1187 = vunpack.c.h.b16 %v477
        %v1188 = vunpack.c.l.b16 %v478
        %v1189 = vunpack.c.h.b16 %v478
        %v1190 = vunpack.c.l.b16 %v479
        %v1191 = vunpack.c.h.b16 %v479
        %v1192 = vunpack.c.l.b16 %v480
        %v1193 = vunpack.c.h.b16 %v480
        %v1194 = vunpack.c.l.b16 %v481
        %v1195 = vunpack.c.h.b16 %v481
        %v1196 = vunpack.c.l.b16 %v482
        %v1197 = vunpack.c.h.b16 %v482
        %v1198 = vunpack.c.l.b16 %v483
        %v1199 = vunpack.c.h.b16 %v483
        %v1200 = vunpack.c.l.b16 %v484
        %v1201 = vunpack.c.h.b16 %v484
        %v1202 = vunpack.c.l.b16 %v485
        %v1203 = vunpack.c.h.b16 %v485
        %v1204 = vpack.c.b16 %v824, %v820
        %v1205 = vpack.c.b16 %v825, %v821
        %v1206 = vpack.c.b16 %v826, %v822
        %v1207 = vpack.c.b16 %v827, %v823
        %v1208 = vpack.c.b16 %v832, %v828
        %v1209 = vpack.c.b16 %v833, %v829
        %v1210 = vpack.c.b16 %v834, %v830
        %v1211 = vpack.c.b16 %v835, %v831
        %v1212 = vpack.c.b16 %v840, %v836
        %v1213 = vpack.c.b16 %v841, %v837
        %v1214 = vpack.c.b16 %v842, %v838
        %v1215 = vpack.c.b16 %v843, %v839
        %v1216 = vpack.c.b16 %v848, %v844
        %v1217 = vpack.c.b16 %v849, %v845
        %v1218 = vpack.c.b16 %v850, %v846
        %v1219 = vpack.c.b16 %v851, %v847
        %v1220 = vpack.c.b16 %v856, %v852
        %v1221 = vpack.c.b16 %v857, %v853
        %v1222 = vpack.c.b16 %v858, %v854
        %v1223 = vpack.c.b16 %v859, %v855
        %v1224 = vpack.c.b16 %v864, %v860
        %v1225 = vpack.c.b16 %v865, %v861
        %v1226 = vpack.c.b16 %v866, %v862
        %v1227 = vpack.c.b16 %v867, %v863
        %v1228 = vpack.c.b16 %v872, %v868
        %v1229 = vpack.c.b16 %v873, %v869
        %v1230 = vpack.c.b16 %v874, %v870
        %v1231 = vpack.c.b16 %v875, %v871
        %v1232 = vpack.c.b16 %v880, %v876
        %v1233 = vpack.c.b16 %v881, %v877
        %v1234 = vpack.c.b16 %v882, %v878
        %v1235 = vpack.c.b16 %v883, %v879
        %v1236 = vpack.c.b16 %v888, %v884
        %v1237 = vpack.c.b16 %v889, %v885
        %v1238 = vpack.c.b16 %v890, %v886
        %v1239 = vpack.c.b16 %v891, %v887
        %v1240 = vpack.c.b16 %v896, %v892
        %v1241 = vpack.c.b16 %v897, %v893
        %v1242 = vpack.c.b16 %v898, %v894
        %v1243 = vpack.c.b16 %v899, %v895
        %v1244 = vpack.c.b16 %v904, %v900
        %v1245 = vpack.c.b16 %v905, %v901
        %v1246 = vpack.c.b16 %v906, %v902
        %v1247 = vpack.c.b16 %v907, %v903
        %v1248 = vpack.c.b16 %v912, %v908
        %v1249 = vpack.c.b16 %v913, %v909
        %v1250 = vpack.c.b16 %v914, %v910
        %v1251 = vpack.c.b16 %v915, %v911
        %v1252 = vpack.c.b16 %v920, %v916
        %v1253 = vpack.c.b16 %v921, %v917
        %v1254 = vpack.c.b16 %v922, %v918
        %v1255 = vpack.c.b16 %v923, %v919
        %v1256 = vpack.c.b16 %v928, %v924
        %v1257 = vpack.c.b16 %v929, %v925
        %v1258 = vpack.c.b16 %v930, %v926
        %v1259 = vpack.c.b16 %v931, %v927
        %v1260 = vpack.c.b16 %v936, %v932
        %v1261 = vpack.c.b16 %v937, %v933
        %v1262 = vpack.c.b16 %v938, %v934
        %v1263 = vpack.c.b16 %v939, %v935
        %v1264 = vpack.c.b16 %v944, %v940
        %v1265 = vpack.c.b16 %v945, %v941
        %v1266 = vpack.c.b16 %v946, %v942
        %v1267 = vpack.c.b16 %v947, %v943
        %v1268 = vpack.c.b16 %v952, %v948
        %v1269 = vpack.c.b16 %v953, %v949
        %v1270 = vpack.c.b16 %v954, %v950
        %v1271 = vpack.c.b16 %v955, %v951
        %v1272 = vpack.c.b16 %v960, %v956
        %v1273 = vpack.c.b16 %v961, %v957
        %v1274 = vpack.c.b16 %v962, %v958
        %v1275 = vpack.c.b16 %v963, %v959
        %v1276 = vpack.c.b16 %v968, %v964
        %v1277 = vpack.c.b16 %v969, %v965
        %v1278 = vpack.c.b16 %v970, %v966
        %v1279 = vpack.c.b16 %v971, %v967
        %v1280 = vpack.c.b16 %v976, %v972
        %v1281 = vpack.c.b16 %v977, %v973
        %v1282 = vpack.c.b16 %v978, %v974
        %v1283 = vpack.c.b16 %v979, %v975
        %v1284 = vpack.c.b16 %v984, %v980
        %v1285 = vpack.c.b16 %v985, %v981
        %v1286 = vpack.c.b16 %v986, %v982
        %v1287 = vpack.c.b16 %v987, %v983
        %v1288 = vpack.c.b16 %v992, %v988
        %v1289 = vpack.c.b16 %v993, %v989
        %v1290 = vpack.c.b16 %v994, %v990
        %v1291 = vpack.c.b16 %v995, %v991
        %v1292 = vpack.c.b16 %v1000, %v996
        %v1293 = vpack.c.b16 %v1001, %v997
        %v1294 = vpack.c.b16 %v1002, %v998
        %v1295 = vpack.c.b16 %v1003, %v999
        %v1296 = vpack.c.b16 %v1008, %v1004
        %v1297 = vpack.c.b16 %v1009, %v1005
        %v1298 = vpack.c.b16 %v1010, %v1006
        %v1299 = vpack.c.b16 %v1011, %v1007
        %v1300 = vpack.c.b16 %v1016, %v1012
        %v1301 = vpack.c.b16 %v1017, %v1013
        %v1302 = vpack.c.b16 %v1018, %v1014
        %v1303 = vpack.c.b16 %v1019, %v1015
        %v1304 = vpack.c.b16 %v1024, %v1020
        %v1305 = vpack.c.b16 %v1025, %v1021
        %v1306 = vpack.c.b16 %v1026, %v1022
        %v1307 = vpack.c.b16 %v1027, %v1023
        %v1308 = vpack.c.b16 %v1032, %v1028
        %v1309 = vpack.c.b16 %v1033, %v1029
        %v1310 = vpack.c.b16 %v1034, %v1030
        %v1311 = vpack.c.b16 %v1035, %v1031
        %v1312 = vpack.c.b16 %v1040, %v1036
        %v1313 = vpack.c.b16 %v1041, %v1037
        %v1314 = vpack.c.b16 %v1042, %v1038
        %v1315 = vpack.c.b16 %v1043, %v1039
        %v1316 = vpack.c.b16 %v1048, %v1044
        %v1317 = vpack.c.b16 %v1049, %v1045
        %v1318 = vpack.c.b16 %v1050, %v1046
        %v1319 = vpack.c.b16 %v1051, %v1047
        %v1320 = vpack.c.b16 %v1056, %v1052
        %v1321 = vpack.c.b16 %v1057, %v1053
        %v1322 = vpack.c.b16 %v1058, %v1054
        %v1323 = vpack.c.b16 %v1059, %v1055
        %v1324 = vpack.c.b16 %v1064, %v1060
        %v1325 = vpack.c.b16 %v1065, %v1061
        %v1326 = vpack.c.b16 %v1066, %v1062
        %v1327 = vpack.c.b16 %v1067, %v1063
        %v1328 = vpack.c.b16 %v1072, %v1068
        %v1329 = vpack.c.b16 %v1073, %v1069
        %v1330 = vpack.c.b16 %v1074, %v1070
        %v1331 = vpack.c.b16 %v1075, %v1071
        %v1332 = vpack.c.b16 %v1080, %v1076
        %v1333 = vpack.c.b16 %v1081, %v1077
        %v1334 = vpack.c.b16 %v1082, %v1078
        %v1335 = vpack.c.b16 %v1083, %v1079
        %v1336 = vpack.c.b16 %v1088, %v1084
        %v1337 = vpack.c.b16 %v1089, %v1085
        %v1338 = vpack.c.b16 %v1090, %v1086
        %v1339 = vpack.c.b16 %v1091, %v1087
        %v1340 = vpack.c.b16 %v1096, %v1092
        %v1341 = vpack.c.b16 %v1097, %v1093
        %v1342 = vpack.c.b16 %v1098, %v1094
        %v1343 = vpack.c.b16 %v1099, %v1095
        %v1344 = vpack.c.b16 %v1104, %v1100
        %v1345 = vpack.c.b16 %v1105, %v1101
        %v1346 = vpack.c.b16 %v1106, %v1102
        %v1347 = vpack.c.b16 %v1107, %v1103
        %v1348 = vpack.c.b16 %v1112, %v1108
        %v1349 = vpack.c.b16 %v1113, %v1109
        %v1350 = vpack.c.b16 %v1114, %v1110
        %v1351 = vpack.c.b16 %v1115, %v1111
        %v1352 = vpack.c.b16 %v1120, %v1116
        %v1353 = vpack.c.b16 %v1121, %v1117
        %v1354 = vpack.c.b16 %v1122, %v1118
        %v1355 = vpack.c.b16 %v1123, %v1119
        %v1356 = vpack.c.b16 %v1128, %v1124
        %v1357 = vpack.c.b16 %v1129, %v1125
        %v1358 = vpack.c.b16 %v1130, %v1126
        %v1359 = vpack.c.b16 %v1131, %v1127
        %v1360 = vpack.c.b16 %v1136, %v1132
        %v1361 = vpack.c.b16 %v1137, %v1133
        %v1362 = vpack.c.b16 %v1138, %v1134
        %v1363 = vpack.c.b16 %v1139, %v1135
        %v1364 = vpack.c.b16 %v1144, %v1140
        %v1365 = vpack.c.b16 %v1145, %v1141
        %v1366 = vpack.c.b16 %v1146, %v1142
        %v1367 = vpack.c.b16 %v1147, %v1143
        %v1368 = vpack.c.b16 %v1152, %v1148
        %v1369 = vpack.c.b16 %v1153, %v1149
        %v1370 = vpack.c.b16 %v1154, %v1150
        %v1371 = vpack.c.b16 %v1155, %v1151
        %v1372 = vpack.c.b16 %v1160, %v1156
        %v1373 = vpack.c.b16 %v1161, %v1157
        %v1374 = vpack.c.b16 %v1162, %v1158
        %v1375 = vpack.c.b16 %v1163, %v1159
        %v1376 = vpack.c.b16 %v1168, %v1164
        %v1377 = vpack.c.b16 %v1169, %v1165
        %v1378 = vpack.c.b16 %v1170, %v1166
        %v1379 = vpack.c.b16 %v1171, %v1167
        %v1380 = vpack.c.b16 %v1176, %v1172
        %v1381 = vpack.c.b16 %v1177, %v1173
        %v1382 = vpack.c.b16 %v1178, %v1174
        %v1383 = vpack.c.b16 %v1179, %v1175
        %v1384 = vpack.c.b16 %v1184, %v1180
        %v1385 = vpack.c.b16 %v1185, %v1181
        %v1386 = vpack.c.b16 %v1186, %v1182
        %v1387 = vpack.c.b16 %v1187, %v1183
        %v1388 = vpack.c.b16 %v1192, %v1188
        %v1389 = vpack.c.b16 %v1193, %v1189
        %v1390 = vpack.c.b16 %v1194, %v1190
        %v1391 = vpack.c.b16 %v1195, %v1191
        %v1392 = vpack.c.b16 %v1200, %v1196
        %v1393 = vpack.c.b16 %v1201, %v1197
        %v1394 = vpack.c.b16 %v1202, %v1198
        %v1395 = vpack.c.b16 %v1203, %v1199
        %1588 = vmatprep.subr.bf16.mxu0 %v1233
        %1589 = vmatpush1.bf16.msra.mxu0 %v1232
        %1590 = vmatprep.subr.bf16.mxu0 %v1229
        %1591 = vmatpush1.bf16.msra.mxu0 %v1228
        %1592 = vmatprep.subr.bf16.mxu0 %v1225
        %1593 = vmatpush1.bf16.msra.mxu0 %v1224
        %1594 = vmatprep.subr.bf16.mxu0 %v1221
        %1595 = vmatpush1.bf16.msra.mxu0 %v1220
        %1596 = vmatprep.subr.bf16.mxu0 %v1217
        %1597 = vmatpush1.bf16.msra.mxu0 %v1216
        %1598 = vmatprep.subr.bf16.mxu0 %v1213
        %1599 = vmatpush1.bf16.msra.mxu0 %v1212
        %1600 = vmatprep.subr.bf16.mxu0 %v1209
        %1601 = vmatpush1.bf16.msra.mxu0 %v1208
        %1602 = vmatprep.subr.bf16.mxu0 %v1205
        %1603 = vmatpush1.bf16.msra.mxu0 %v1204
        %1604 = vmatprep.subr.bf16.mxu0 %v1265
        %1605 = vmatpush2.bf16.msra.mxu0 %v1264
        %1606 = vmatprep.subr.bf16.mxu0 %v1261
        %1607 = vmatpush2.bf16.msra.mxu0 %v1260
        %1608 = vmatprep.subr.bf16.mxu0 %v1257
        %1609 = vmatpush2.bf16.msra.mxu0 %v1256
        %1610 = vmatprep.subr.bf16.mxu0 %v1253
        %1611 = vmatpush2.bf16.msra.mxu0 %v1252
        %1612 = vmatprep.subr.bf16.mxu0 %v1249
        %1613 = vmatpush2.bf16.msra.mxu0 %v1248
        %1614 = vmatprep.subr.bf16.mxu0 %v1245
        %1615 = vmatpush2.bf16.msra.mxu0 %v1244
        %1616 = vmatprep.subr.bf16.mxu0 %v1241
        %1617 = vmatpush2.bf16.msra.mxu0 %v1240
        %1618 = vmatprep.subr.bf16.mxu0 %v1237
        %1619 = vmatpush2.bf16.msra.mxu0 %v1236
        %1620 = vmatprep.mubr.bf16.mxu0 %v581
        %1621 = vmatmul.mubr.bf16.gmra.mxu0 %v580
        %v1622 = vpop.f32.mrf.mxu0
        %v1623 = vadd.f32 %v491, %v1622
        %v1624 = vpop.f32.mrf.mxu0
        %v1625 = vadd.f32 %v495, %v1624
        %v1626 = vpop.f32.mrf.mxu0
        %v1627 = vadd.f32 %v491, %v1626
        %v1628 = vpop.f32.mrf.mxu0
        %v1629 = vadd.f32 %v495, %v1628
        %1630 = vmatprep.mubr.bf16.mxu0 %v587
        %1631 = vmatmul.mubr.bf16.gmra.mxu0 %v586
        %v1632 = vpop.f32.mrf.mxu0
        %v1633 = vadd.f32 %v491, %v1632
        %v1634 = vpop.f32.mrf.mxu0
        %v1635 = vadd.f32 %v495, %v1634
        %v1636 = vpop.f32.mrf.mxu0
        %v1637 = vadd.f32 %v491, %v1636
        %v1638 = vpop.f32.mrf.mxu0
        %v1639 = vadd.f32 %v495, %v1638
        %1640 = vmatprep.mubr.bf16.mxu0 %v593
        %1641 = vmatmul.mubr.bf16.gmra.mxu0 %v592
        %v1642 = vpop.f32.mrf.mxu0
        %v1643 = vadd.f32 %v491, %v1642
        %v1644 = vpop.f32.mrf.mxu0
        %v1645 = vadd.f32 %v495, %v1644
        %v1646 = vpop.f32.mrf.mxu0
        %v1647 = vadd.f32 %v491, %v1646
        %v1648 = vpop.f32.mrf.mxu0
        %v1649 = vadd.f32 %v495, %v1648
        %1650 = vmatprep.mubr.bf16.mxu0 %v599
        %1651 = vmatmul.mubr.bf16.gmra.mxu0 %v598
        %v1652 = vpop.f32.mrf.mxu0
        %v1653 = vadd.f32 %v491, %v1652
        %v1654 = vpop.f32.mrf.mxu0
        %v1655 = vadd.f32 %v495, %v1654
        %v1656 = vpop.f32.mrf.mxu0
        %v1657 = vadd.f32 %v491, %v1656
        %v1658 = vpop.f32.mrf.mxu0
        %v1659 = vadd.f32 %v495, %v1658
        %1660 = vdwg.mxu0
        %1661 = vmatprep.subr.bf16.mxu0 %v1297
        %1662 = vmatpush1.bf16.msra.mxu0 %v1296
        %1663 = vmatprep.subr.bf16.mxu0 %v1293
        %1664 = vmatpush1.bf16.msra.mxu0 %v1292
        %1665 = vmatprep.subr.bf16.mxu0 %v1289
        %1666 = vmatpush1.bf16.msra.mxu0 %v1288
        %1667 = vmatprep.subr.bf16.mxu0 %v1285
        %1668 = vmatpush1.bf16.msra.mxu0 %v1284
        %1669 = vmatprep.subr.bf16.mxu0 %v1281
        %1670 = vmatpush1.bf16.msra.mxu0 %v1280
        %1671 = vmatprep.subr.bf16.mxu0 %v1277
        %1672 = vmatpush1.bf16.msra.mxu0 %v1276
        %1673 = vmatprep.subr.bf16.mxu0 %v1273
        %1674 = vmatpush1.bf16.msra.mxu0 %v1272
        %1675 = vmatprep.subr.bf16.mxu0 %v1269
        %1676 = vmatpush1.bf16.msra.mxu0 %v1268
        %1677 = vmatprep.subr.bf16.mxu0 %v1329
        %1678 = vmatpush2.bf16.msra.mxu0 %v1328
        %1679 = vmatprep.subr.bf16.mxu0 %v1325
        %1680 = vmatpush2.bf16.msra.mxu0 %v1324
        %1681 = vmatprep.subr.bf16.mxu0 %v1321
        %1682 = vmatpush2.bf16.msra.mxu0 %v1320
        %1683 = vmatprep.subr.bf16.mxu0 %v1317
        %1684 = vmatpush2.bf16.msra.mxu0 %v1316
        %1685 = vmatprep.subr.bf16.mxu0 %v1313
        %1686 = vmatpush2.bf16.msra.mxu0 %v1312
        %1687 = vmatprep.subr.bf16.mxu0 %v1309
        %1688 = vmatpush2.bf16.msra.mxu0 %v1308
        %1689 = vmatprep.subr.bf16.mxu0 %v1305
        %1690 = vmatpush2.bf16.msra.mxu0 %v1304
        %1691 = vmatprep.subr.bf16.mxu0 %v1301
        %1692 = vmatpush2.bf16.msra.mxu0 %v1300
        %1693 = vmatprep.mubr.bf16.mxu0 %v583
        %1694 = vmatmul.mubr.bf16.gmra.mxu0 %v582
        %v1695 = vpop.f32.mrf.mxu0
        %v1696 = vadd.f32 %v1623, %v1695
        %v1697 = vpop.f32.mrf.mxu0
        %v1698 = vadd.f32 %v1625, %v1697
        %v1699 = vpop.f32.mrf.mxu0
        %v1700 = vadd.f32 %v1627, %v1699
        %v1701 = vpop.f32.mrf.mxu0
        %v1702 = vadd.f32 %v1629, %v1701
        %1703 = vmatprep.mubr.bf16.mxu0 %v589
        %1704 = vmatmul.mubr.bf16.gmra.mxu0 %v588
        %v1705 = vpop.f32.mrf.mxu0
        %v1706 = vadd.f32 %v1633, %v1705
        %v1707 = vpop.f32.mrf.mxu0
        %v1708 = vadd.f32 %v1635, %v1707
        %v1709 = vpop.f32.mrf.mxu0
        %v1710 = vadd.f32 %v1637, %v1709
        %v1711 = vpop.f32.mrf.mxu0
        %v1712 = vadd.f32 %v1639, %v1711
        %1713 = vmatprep.mubr.bf16.mxu0 %v595
        %1714 = vmatmul.mubr.bf16.gmra.mxu0 %v594
        %v1715 = vpop.f32.mrf.mxu0
        %v1716 = vadd.f32 %v1643, %v1715
        %v1717 = vpop.f32.mrf.mxu0
        %v1718 = vadd.f32 %v1645, %v1717
        %v1719 = vpop.f32.mrf.mxu0
        %v1720 = vadd.f32 %v1647, %v1719
        %v1721 = vpop.f32.mrf.mxu0
        %v1722 = vadd.f32 %v1649, %v1721
        %1723 = vmatprep.mubr.bf16.mxu0 %v601
        %1724 = vmatmul.mubr.bf16.gmra.mxu0 %v600
        %v1725 = vpop.f32.mrf.mxu0
        %v1726 = vadd.f32 %v1653, %v1725
        %v1727 = vpop.f32.mrf.mxu0
        %v1728 = vadd.f32 %v1655, %v1727
        %v1729 = vpop.f32.mrf.mxu0
        %v1730 = vadd.f32 %v1657, %v1729
        %v1731 = vpop.f32.mrf.mxu0
        %v1732 = vadd.f32 %v1659, %v1731
        %1733 = vdwg.mxu0
        %1734 = vmatprep.subr.bf16.mxu0 %v1361
        %1735 = vmatpush1.bf16.msra.mxu0 %v1360
        %1736 = vmatprep.subr.bf16.mxu0 %v1357
        %1737 = vmatpush1.bf16.msra.mxu0 %v1356
        %1738 = vmatprep.subr.bf16.mxu0 %v1353
        %1739 = vmatpush1.bf16.msra.mxu0 %v1352
        %1740 = vmatprep.subr.bf16.mxu0 %v1349
        %1741 = vmatpush1.bf16.msra.mxu0 %v1348
        %1742 = vmatprep.subr.bf16.mxu0 %v1345
        %1743 = vmatpush1.bf16.msra.mxu0 %v1344
        %1744 = vmatprep.subr.bf16.mxu0 %v1341
        %1745 = vmatpush1.bf16.msra.mxu0 %v1340
        %1746 = vmatprep.subr.bf16.mxu0 %v1337
        %1747 = vmatpush1.bf16.msra.mxu0 %v1336
        %1748 = vmatprep.subr.bf16.mxu0 %v1333
        %1749 = vmatpush1.bf16.msra.mxu0 %v1332
        %1750 = vmatprep.subr.bf16.mxu0 %v1393
        %1751 = vmatpush2.bf16.msra.mxu0 %v1392
        %1752 = vmatprep.subr.bf16.mxu0 %v1389
        %1753 = vmatpush2.bf16.msra.mxu0 %v1388
        %1754 = vmatprep.subr.bf16.mxu0 %v1385
        %1755 = vmatpush2.bf16.msra.mxu0 %v1384
        %1756 = vmatprep.subr.bf16.mxu0 %v1381
        %1757 = vmatpush2.bf16.msra.mxu0 %v1380
        %1758 = vmatprep.subr.bf16.mxu0 %v1377
        %1759 = vmatpush2.bf16.msra.mxu0 %v1376
        %1760 = vmatprep.subr.bf16.mxu0 %v1373
        %1761 = vmatpush2.bf16.msra.mxu0 %v1372
        %1762 = vmatprep.subr.bf16.mxu0 %v1369
        %1763 = vmatpush2.bf16.msra.mxu0 %v1368
        %1764 = vmatprep.subr.bf16.mxu0 %v1365
        %1765 = vmatpush2.bf16.msra.mxu0 %v1364
        %1766 = vmatprep.mubr.bf16.mxu0 %v585
        %1767 = vmatmul.mubr.bf16.gmra.mxu0 %v584
        %v1768 = vpop.f32.mrf.mxu0
        %v1769 = vadd.f32 %v1696, %v1768
        %v1770 = vpop.f32.mrf.mxu0
        %v1771 = vadd.f32 %v1698, %v1770
        %v1772 = vpop.f32.mrf.mxu0
        %v1773 = vadd.f32 %v1700, %v1772
        %v1774 = vpop.f32.mrf.mxu0
        %v1775 = vadd.f32 %v1702, %v1774
        %1776 = vmatprep.mubr.bf16.mxu0 %v591
        %1777 = vmatmul.mubr.bf16.gmra.mxu0 %v590
        %v1778 = vpop.f32.mrf.mxu0
        %v1779 = vadd.f32 %v1706, %v1778
        %v1780 = vpop.f32.mrf.mxu0
        %v1781 = vadd.f32 %v1708, %v1780
        %v1782 = vpop.f32.mrf.mxu0
        %v1783 = vadd.f32 %v1710, %v1782
        %v1784 = vpop.f32.mrf.mxu0
        %v1785 = vadd.f32 %v1712, %v1784
        %1786 = vmatprep.mubr.bf16.mxu0 %v597
        %1787 = vmatmul.mubr.bf16.gmra.mxu0 %v596
        %v1788 = vpop.f32.mrf.mxu0
        %v1789 = vadd.f32 %v1716, %v1788
        %v1790 = vpop.f32.mrf.mxu0
        %v1791 = vadd.f32 %v1718, %v1790
        %v1792 = vpop.f32.mrf.mxu0
        %v1793 = vadd.f32 %v1720, %v1792
        %v1794 = vpop.f32.mrf.mxu0
        %v1795 = vadd.f32 %v1722, %v1794
        %1796 = vmatprep.mubr.bf16.mxu0 %v603
        %1797 = vmatmul.mubr.bf16.gmra.mxu0 %v602
        %v1798 = vpop.f32.mrf.mxu0
        %v1799 = vadd.f32 %v1726, %v1798
        %v1800 = vpop.f32.mrf.mxu0
        %v1801 = vadd.f32 %v1728, %v1800
        %v1802 = vpop.f32.mrf.mxu0
        %v1803 = vadd.f32 %v1730, %v1802
        %v1804 = vpop.f32.mrf.mxu0
        %v1805 = vadd.f32 %v1732, %v1804
        %1806 = vdwg.mxu0
        %1807 = vmatprep.subr.bf16.mxu0 %v1235
        %1808 = vmatpush1.bf16.msra.mxu0 %v1234
        %1809 = vmatprep.subr.bf16.mxu0 %v1231
        %1810 = vmatpush1.bf16.msra.mxu0 %v1230
        %1811 = vmatprep.subr.bf16.mxu0 %v1227
        %1812 = vmatpush1.bf16.msra.mxu0 %v1226
        %1813 = vmatprep.subr.bf16.mxu0 %v1223
        %1814 = vmatpush1.bf16.msra.mxu0 %v1222
        %1815 = vmatprep.subr.bf16.mxu0 %v1219
        %1816 = vmatpush1.bf16.msra.mxu0 %v1218
        %1817 = vmatprep.subr.bf16.mxu0 %v1215
        %1818 = vmatpush1.bf16.msra.mxu0 %v1214
        %1819 = vmatprep.subr.bf16.mxu0 %v1211
        %1820 = vmatpush1.bf16.msra.mxu0 %v1210
        %1821 = vmatprep.subr.bf16.mxu0 %v1207
        %1822 = vmatpush1.bf16.msra.mxu0 %v1206
        %1823 = vmatprep.subr.bf16.mxu0 %v1267
        %1824 = vmatpush2.bf16.msra.mxu0 %v1266
        %1825 = vmatprep.subr.bf16.mxu0 %v1263
        %1826 = vmatpush2.bf16.msra.mxu0 %v1262
        %1827 = vmatprep.subr.bf16.mxu0 %v1259
        %1828 = vmatpush2.bf16.msra.mxu0 %v1258
        %1829 = vmatprep.subr.bf16.mxu0 %v1255
        %1830 = vmatpush2.bf16.msra.mxu0 %v1254
        %1831 = vmatprep.subr.bf16.mxu0 %v1251
        %1832 = vmatpush2.bf16.msra.mxu0 %v1250
        %1833 = vmatprep.subr.bf16.mxu0 %v1247
        %1834 = vmatpush2.bf16.msra.mxu0 %v1246
        %1835 = vmatprep.subr.bf16.mxu0 %v1243
        %1836 = vmatpush2.bf16.msra.mxu0 %v1242
        %1837 = vmatprep.subr.bf16.mxu0 %v1239
        %1838 = vmatpush2.bf16.msra.mxu0 %v1238
        %1839 = vmatprep.mubr.bf16.mxu0 %v581
        %1840 = vmatmul.mubr.bf16.gmra.mxu0 %v580
        %v1841 = vpop.f32.mrf.mxu0
        %v1842 = vadd.f32 %v499, %v1841
        %v1843 = vpop.f32.mrf.mxu0
        %v1844 = vadd.f32 %v503, %v1843
        %v1845 = vpop.f32.mrf.mxu0
        %v1846 = vadd.f32 %v499, %v1845
        %v1847 = vpop.f32.mrf.mxu0
        %v1848 = vadd.f32 %v503, %v1847
        %1849 = vmatprep.mubr.bf16.mxu0 %v587
        %1850 = vmatmul.mubr.bf16.gmra.mxu0 %v586
        %v1851 = vpop.f32.mrf.mxu0
        %v1852 = vadd.f32 %v499, %v1851
        %v1853 = vpop.f32.mrf.mxu0
        %v1854 = vadd.f32 %v503, %v1853
        %v1855 = vpop.f32.mrf.mxu0
        %v1856 = vadd.f32 %v499, %v1855
        %v1857 = vpop.f32.mrf.mxu0
        %v1858 = vadd.f32 %v503, %v1857
        %1859 = vmatprep.mubr.bf16.mxu0 %v593
        %1860 = vmatmul.mubr.bf16.gmra.mxu0 %v592
        %v1861 = vpop.f32.mrf.mxu0
        %v1862 = vadd.f32 %v499, %v1861
        %v1863 = vpop.f32.mrf.mxu0
        %v1864 = vadd.f32 %v503, %v1863
        %v1865 = vpop.f32.mrf.mxu0
        %v1866 = vadd.f32 %v499, %v1865
        %v1867 = vpop.f32.mrf.mxu0
        %v1868 = vadd.f32 %v503, %v1867
        %1869 = vmatprep.mubr.bf16.mxu0 %v599
        %1870 = vmatmul.mubr.bf16.gmra.mxu0 %v598
        %v1871 = vpop.f32.mrf.mxu0
        %v1872 = vadd.f32 %v499, %v1871
        %v1873 = vpop.f32.mrf.mxu0
        %v1874 = vadd.f32 %v503, %v1873
        %v1875 = vpop.f32.mrf.mxu0
        %v1876 = vadd.f32 %v499, %v1875
        %v1877 = vpop.f32.mrf.mxu0
        %v1878 = vadd.f32 %v503, %v1877
        %1879 = vdwg.mxu0
        %1880 = vmatprep.subr.bf16.mxu0 %v1299
        %1881 = vmatpush1.bf16.msra.mxu0 %v1298
        %1882 = vmatprep.subr.bf16.mxu0 %v1295
        %1883 = vmatpush1.bf16.msra.mxu0 %v1294
        %1884 = vmatprep.subr.bf16.mxu0 %v1291
        %1885 = vmatpush1.bf16.msra.mxu0 %v1290
        %1886 = vmatprep.subr.bf16.mxu0 %v1287
        %1887 = vmatpush1.bf16.msra.mxu0 %v1286
        %1888 = vmatprep.subr.bf16.mxu0 %v1283
        %1889 = vmatpush1.bf16.msra.mxu0 %v1282
        %1890 = vmatprep.subr.bf16.mxu0 %v1279
        %1891 = vmatpush1.bf16.msra.mxu0 %v1278
        %1892 = vmatprep.subr.bf16.mxu0 %v1275
        %1893 = vmatpush1.bf16.msra.mxu0 %v1274
        %1894 = vmatprep.subr.bf16.mxu0 %v1271
        %1895 = vmatpush1.bf16.msra.mxu0 %v1270
        %1896 = vmatprep.subr.bf16.mxu0 %v1331
        %1897 = vmatpush2.bf16.msra.mxu0 %v1330
        %1898 = vmatprep.subr.bf16.mxu0 %v1327
        %1899 = vmatpush2.bf16.msra.mxu0 %v1326
        %1900 = vmatprep.subr.bf16.mxu0 %v1323
        %1901 = vmatpush2.bf16.msra.mxu0 %v1322
        %1902 = vmatprep.subr.bf16.mxu0 %v1319
        %1903 = vmatpush2.bf16.msra.mxu0 %v1318
        %1904 = vmatprep.subr.bf16.mxu0 %v1315
        %1905 = vmatpush2.bf16.msra.mxu0 %v1314
        %1906 = vmatprep.subr.bf16.mxu0 %v1311
        %1907 = vmatpush2.bf16.msra.mxu0 %v1310
        %1908 = vmatprep.subr.bf16.mxu0 %v1307
        %1909 = vmatpush2.bf16.msra.mxu0 %v1306
        %1910 = vmatprep.subr.bf16.mxu0 %v1303
        %1911 = vmatpush2.bf16.msra.mxu0 %v1302
        %1912 = vmatprep.mubr.bf16.mxu0 %v583
        %1913 = vmatmul.mubr.bf16.gmra.mxu0 %v582
        %v1914 = vpop.f32.mrf.mxu0
        %v1915 = vadd.f32 %v1842, %v1914
        %v1916 = vpop.f32.mrf.mxu0
        %v1917 = vadd.f32 %v1844, %v1916
        %v1918 = vpop.f32.mrf.mxu0
        %v1919 = vadd.f32 %v1846, %v1918
        %v1920 = vpop.f32.mrf.mxu0
        %v1921 = vadd.f32 %v1848, %v1920
        %1922 = vmatprep.mubr.bf16.mxu0 %v589
        %1923 = vmatmul.mubr.bf16.gmra.mxu0 %v588
        %v1924 = vpop.f32.mrf.mxu0
        %v1925 = vadd.f32 %v1852, %v1924
        %v1926 = vpop.f32.mrf.mxu0
        %v1927 = vadd.f32 %v1854, %v1926
        %v1928 = vpop.f32.mrf.mxu0
        %v1929 = vadd.f32 %v1856, %v1928
        %v1930 = vpop.f32.mrf.mxu0
        %v1931 = vadd.f32 %v1858, %v1930
        %1932 = vmatprep.mubr.bf16.mxu0 %v595
        %1933 = vmatmul.mubr.bf16.gmra.mxu0 %v594
        %v1934 = vpop.f32.mrf.mxu0
        %v1935 = vadd.f32 %v1862, %v1934
        %v1936 = vpop.f32.mrf.mxu0
        %v1937 = vadd.f32 %v1864, %v1936
        %v1938 = vpop.f32.mrf.mxu0
        %v1939 = vadd.f32 %v1866, %v1938
        %v1940 = vpop.f32.mrf.mxu0
        %v1941 = vadd.f32 %v1868, %v1940
        %1942 = vmatprep.mubr.bf16.mxu0 %v601
        %1943 = vmatmul.mubr.bf16.gmra.mxu0 %v600
        %v1944 = vpop.f32.mrf.mxu0
        %v1945 = vadd.f32 %v1872, %v1944
        %v1946 = vpop.f32.mrf.mxu0
        %v1947 = vadd.f32 %v1874, %v1946
        %v1948 = vpop.f32.mrf.mxu0
        %v1949 = vadd.f32 %v1876, %v1948
        %v1950 = vpop.f32.mrf.mxu0
        %v1951 = vadd.f32 %v1878, %v1950
        %1952 = vdwg.mxu0
        %1953 = vmatprep.subr.bf16.mxu0 %v1363
        %1954 = vmatpush1.bf16.msra.mxu0 %v1362
        %1955 = vmatprep.subr.bf16.mxu0 %v1359
        %1956 = vmatpush1.bf16.msra.mxu0 %v1358
        %1957 = vmatprep.subr.bf16.mxu0 %v1355
        %1958 = vmatpush1.bf16.msra.mxu0 %v1354
        %1959 = vmatprep.subr.bf16.mxu0 %v1351
        %1960 = vmatpush1.bf16.msra.mxu0 %v1350
        %1961 = vmatprep.subr.bf16.mxu0 %v1347
        %1962 = vmatpush1.bf16.msra.mxu0 %v1346
        %1963 = vmatprep.subr.bf16.mxu0 %v1343
        %1964 = vmatpush1.bf16.msra.mxu0 %v1342
        %1965 = vmatprep.subr.bf16.mxu0 %v1339
        %1966 = vmatpush1.bf16.msra.mxu0 %v1338
        %1967 = vmatprep.subr.bf16.mxu0 %v1335
        %1968 = vmatpush1.bf16.msra.mxu0 %v1334
        %1969 = vmatprep.subr.bf16.mxu0 %v1395
        %1970 = vmatpush2.bf16.msra.mxu0 %v1394
        %1971 = vmatprep.subr.bf16.mxu0 %v1391
        %1972 = vmatpush2.bf16.msra.mxu0 %v1390
        %1973 = vmatprep.subr.bf16.mxu0 %v1387
        %1974 = vmatpush2.bf16.msra.mxu0 %v1386
        %1975 = vmatprep.subr.bf16.mxu0 %v1383
        %1976 = vmatpush2.bf16.msra.mxu0 %v1382
        %1977 = vmatprep.subr.bf16.mxu0 %v1379
        %1978 = vmatpush2.bf16.msra.mxu0 %v1378
        %1979 = vmatprep.subr.bf16.mxu0 %v1375
        %1980 = vmatpush2.bf16.msra.mxu0 %v1374
        %1981 = vmatprep.subr.bf16.mxu0 %v1371
        %1982 = vmatpush2.bf16.msra.mxu0 %v1370
        %1983 = vmatprep.subr.bf16.mxu0 %v1367
        %1984 = vmatpush2.bf16.msra.mxu0 %v1366
        %1985 = vmatprep.mubr.bf16.mxu0 %v585
        %1986 = vmatmul.mubr.bf16.gmra.mxu0 %v584
        %v1987 = vpop.f32.mrf.mxu0
        %v1988 = vadd.f32 %v1915, %v1987
        %v1989 = vpop.f32.mrf.mxu0
        %v1990 = vadd.f32 %v1917, %v1989
        %v1991 = vpop.f32.mrf.mxu0
        %v1992 = vadd.f32 %v1919, %v1991
        %v1993 = vpop.f32.mrf.mxu0
        %v1994 = vadd.f32 %v1921, %v1993
        %1995 = vmatprep.mubr.bf16.mxu0 %v591
        %1996 = vmatmul.mubr.bf16.gmra.mxu0 %v590
        %v1997 = vpop.f32.mrf.mxu0
        %v1998 = vadd.f32 %v1925, %v1997
        %v1999 = vpop.f32.mrf.mxu0
        %v2000 = vadd.f32 %v1927, %v1999
        %v2001 = vpop.f32.mrf.mxu0
        %v2002 = vadd.f32 %v1929, %v2001
        %v2003 = vpop.f32.mrf.mxu0
        %v2004 = vadd.f32 %v1931, %v2003
        %2005 = vmatprep.mubr.bf16.mxu0 %v597
        %2006 = vmatmul.mubr.bf16.gmra.mxu0 %v596
        %v2007 = vpop.f32.mrf.mxu0
        %v2008 = vadd.f32 %v1935, %v2007
        %v2009 = vpop.f32.mrf.mxu0
        %v2010 = vadd.f32 %v1937, %v2009
        %v2011 = vpop.f32.mrf.mxu0
        %v2012 = vadd.f32 %v1939, %v2011
        %v2013 = vpop.f32.mrf.mxu0
        %v2014 = vadd.f32 %v1941, %v2013
        %2015 = vmatprep.mubr.bf16.mxu0 %v603
        %2016 = vmatmul.mubr.bf16.gmra.mxu0 %v602
        %v2017 = vpop.f32.mrf.mxu0
        %v2018 = vadd.f32 %v1945, %v2017
        %v2019 = vpop.f32.mrf.mxu0
        %v2020 = vadd.f32 %v1947, %v2019
        %v2021 = vpop.f32.mrf.mxu0
        %v2022 = vadd.f32 %v1949, %v2021
        %v2023 = vpop.f32.mrf.mxu0
        %v2024 = vadd.f32 %v1951, %v2023
        %2025 = vdwg.mxu0
        %2026 = vst [vmem:[#allocation2] sm:$0xff] %v1769
        %2027 = vst [vmem:[#allocation2 + $0x8] sm:$0xff] %v1771
        %2028 = vst [vmem:[#allocation2 + $0x10] sm:$0xff] %v1988
        %2029 = vst [vmem:[#allocation2 + $0x18] sm:$0xff] %v1990
        %2030 = vst [vmem:[#allocation2 + $0x20] sm:$0xff] %v1773
        %2031 = vst [vmem:[#allocation2 + $0x28] sm:$0xff] %v1775
        %2032 = vst [vmem:[#allocation2 + $0x30] sm:$0xff] %v1992
        %2033 = vst [vmem:[#allocation2 + $0x38] sm:$0xff] %v1994
        %2034 = vst [vmem:[#allocation2 + $0x40] sm:$0xff] %v1779
        %2035 = vst [vmem:[#allocation2 + $0x48] sm:$0xff] %v1781
        %2036 = vst [vmem:[#allocation2 + $0x50] sm:$0xff] %v1998
        %2037 = vst [vmem:[#allocation2 + $0x58] sm:$0xff] %v2000
        %2038 = vst [vmem:[#allocation2 + $0x60] sm:$0xff] %v1783
        %2039 = vst [vmem:[#allocation2 + $0x68] sm:$0xff] %v1785
        %2040 = vst [vmem:[#allocation2 + $0x70] sm:$0xff] %v2002
        %2041 = vst [vmem:[#allocation2 + $0x78] sm:$0xff] %v2004
        %2042 = vst [vmem:[#allocation2 + $0x80] sm:$0xff] %v1789
        %2043 = vst [vmem:[#allocation2 + $0x88] sm:$0xff] %v1791
        %2044 = vst [vmem:[#allocation2 + $0x90] sm:$0xff] %v2008
        %2045 = vst [vmem:[#allocation2 + $0x98] sm:$0xff] %v2010
        %2046 = vst [vmem:[#allocation2 + $0xa0] sm:$0xff] %v1793
        %2047 = vst [vmem:[#allocation2 + $0xa8] sm:$0xff] %v1795
        %2048 = vst [vmem:[#allocation2 + $0xb0] sm:$0xff] %v2012
        %2049 = vst [vmem:[#allocation2 + $0xb8] sm:$0xff] %v2014
        %2050 = vst [vmem:[#allocation2 + $0xc0] sm:$0xff] %v1799
        %2051 = vst [vmem:[#allocation2 + $0xc8] sm:$0xff] %v1801
        %2052 = vst [vmem:[#allocation2 + $0xd0] sm:$0xff] %v2018
        %2053 = vst [vmem:[#allocation2 + $0xd8] sm:$0xff] %v2020
        %2054 = vst [vmem:[#allocation2 + $0xe0] sm:$0xff] %v1803
        %2055 = vst [vmem:[#allocation2 + $0xe8] sm:$0xff] %v1805
        %2056 = vst [vmem:[#allocation2 + $0xf0] sm:$0xff] %v2022
        %2057 = vst [vmem:[#allocation2 + $0xf8] sm:$0xff] %v2024
        %v2058 = vld [vmem:[%s269] sm:$0xff]
        %v2059 = vld [vmem:[%s269 + $0x8] sm:$0xff]
        %v2060 = vld [vmem:[%s269 + $0x10] sm:$0xff]
        %v2061 = vld [vmem:[%s269 + $0x18] sm:$0xff]
        %v2062 = vld [vmem:[%s269 + $0x20] sm:$0xff]
        %v2063 = vld [vmem:[%s269 + $0x28] sm:$0xff]
        %v2064 = vld [vmem:[%s269 + $0x30] sm:$0xff]
        %v2065 = vld [vmem:[%s269 + $0x38] sm:$0xff]
        %v2066 = vld [vmem:[%s269 + $0x40] sm:$0xff]
        %v2067 = vld [vmem:[%s269 + $0x48] sm:$0xff]
        %v2068 = vld [vmem:[%s269 + $0x50] sm:$0xff]
        %v2069 = vld [vmem:[%s269 + $0x58] sm:$0xff]
        %v2070 = vld [vmem:[%s269 + $0x60] sm:$0xff]
        %v2071 = vld [vmem:[%s269 + $0x68] sm:$0xff]
        %v2072 = vld [vmem:[%s269 + $0x70] sm:$0xff]
        %v2073 = vld [vmem:[%s269 + $0x78] sm:$0xff]
        %v2074 = vld [vmem:[%s269 + $0x80] sm:$0xff]
        %v2075 = vld [vmem:[%s269 + $0x88] sm:$0xff]
        %v2076 = vld [vmem:[%s269 + $0x90] sm:$0xff]
        %v2077 = vld [vmem:[%s269 + $0x98] sm:$0xff]
        %v2078 = vld [vmem:[%s269 + $0xa0] sm:$0xff]
        %v2079 = vld [vmem:[%s269 + $0xa8] sm:$0xff]
        %v2080 = vld [vmem:[%s269 + $0xb0] sm:$0xff]
        %v2081 = vld [vmem:[%s269 + $0xb8] sm:$0xff]
        %v2082 = vld [vmem:[%s269 + $0xc0] sm:$0xff]
        %v2083 = vld [vmem:[%s269 + $0xc8] sm:$0xff]
        %v2084 = vld [vmem:[%s269 + $0xd0] sm:$0xff]
        %v2085 = vld [vmem:[%s269 + $0xd8] sm:$0xff]
        %v2086 = vld [vmem:[%s269 + $0xe0] sm:$0xff]
        %v2087 = vld [vmem:[%s269 + $0xe8] sm:$0xff]
        %v2088 = vld [vmem:[%s269 + $0xf0] sm:$0xff]
        %v2089 = vld [vmem:[%s269 + $0xf8] sm:$0xff]
        %v2090 = vld [vmem:[%s269 + $0x100] sm:$0xff]
        %v2091 = vld [vmem:[%s269 + $0x108] sm:$0xff]
        %v2092 = vld [vmem:[%s269 + $0x110] sm:$0xff]
        %v2093 = vld [vmem:[%s269 + $0x118] sm:$0xff]
        %v2094 = vld [vmem:[%s269 + $0x120] sm:$0xff]
        %v2095 = vld [vmem:[%s269 + $0x128] sm:$0xff]
        %v2096 = vld [vmem:[%s269 + $0x130] sm:$0xff]
        %v2097 = vld [vmem:[%s269 + $0x138] sm:$0xff]
        %v2098 = vld [vmem:[%s269 + $0x140] sm:$0xff]
        %v2099 = vld [vmem:[%s269 + $0x148] sm:$0xff]
        %v2100 = vld [vmem:[%s269 + $0x150] sm:$0xff]
        %v2101 = vld [vmem:[%s269 + $0x158] sm:$0xff]
        %v2102 = vld [vmem:[%s269 + $0x160] sm:$0xff]
        %v2103 = vld [vmem:[%s269 + $0x168] sm:$0xff]
        %v2104 = vld [vmem:[%s269 + $0x170] sm:$0xff]
        %v2105 = vld [vmem:[%s269 + $0x178] sm:$0xff]
        %v2106 = vld [vmem:[%s269 + $0x180] sm:$0xff]
        %v2107 = vld [vmem:[%s269 + $0x188] sm:$0xff]
        %v2108 = vld [vmem:[%s269 + $0x190] sm:$0xff]
        %v2109 = vld [vmem:[%s269 + $0x198] sm:$0xff]
        %v2110 = vld [vmem:[%s269 + $0x1a0] sm:$0xff]
        %v2111 = vld [vmem:[%s269 + $0x1a8] sm:$0xff]
        %v2112 = vld [vmem:[%s269 + $0x1b0] sm:$0xff]
        %v2113 = vld [vmem:[%s269 + $0x1b8] sm:$0xff]
        %v2114 = vld [vmem:[%s269 + $0x1c0] sm:$0xff]
        %v2115 = vld [vmem:[%s269 + $0x1c8] sm:$0xff]
        %v2116 = vld [vmem:[%s269 + $0x1d0] sm:$0xff]
        %v2117 = vld [vmem:[%s269 + $0x1d8] sm:$0xff]
        %v2118 = vld [vmem:[%s269 + $0x1e0] sm:$0xff]
        %v2119 = vld [vmem:[%s269 + $0x1e8] sm:$0xff]
        %v2120 = vld [vmem:[%s269 + $0x1f0] sm:$0xff]
        %v2121 = vld [vmem:[%s269 + $0x1f8] sm:$0xff]
        %s2122 = smul.u32 %s21, 7
        %s2123 = smul.u32 %s2122, 4
        %s2124 = smul.addr %s2123, 8
        %s2125 = scalar_lea.vmem [#allocation2], %s2124
        %v2126 = vld [vmem:[%s2125] sm:$0xff]
        %v2127 = vld [vmem:[%s2125 + $0x8] sm:$0xff]
        %v2128 = vld [vmem:[%s2125 + $0x10] sm:$0xff]
        %v2129 = vld [vmem:[%s2125 + $0x18] sm:$0xff]
        %2130 = vmatprep.subr.mxu0 %v2119
        %2131 = vmatpush1.msra.mxu0 %v2118
        %2132 = vmatprep.subr.mxu0 %v2115
        %2133 = vmatpush1.msra.mxu0 %v2114
        %2134 = vmatprep.subr.mxu0 %v2111
        %2135 = vmatpush1.msra.mxu0 %v2110
        %2136 = vmatprep.subr.mxu0 %v2107
        %2137 = vmatpush1.msra.mxu0 %v2106
        %2138 = vmatprep.subr.mxu0 %v2103
        %2139 = vmatpush1.msra.mxu0 %v2102
        %2140 = vmatprep.subr.mxu0 %v2099
        %2141 = vmatpush1.msra.mxu0 %v2098
        %2142 = vmatprep.subr.mxu0 %v2095
        %2143 = vmatpush1.msra.mxu0 %v2094
        %2144 = vmatprep.subr.mxu0 %v2091
        %2145 = vmatpush1.msra.mxu0 %v2090
        %2146 = vmatprep.subr.mxu0 %v2087
        %2147 = vmatpush1.msra.mxu0 %v2086
        %2148 = vmatprep.subr.mxu0 %v2083
        %2149 = vmatpush1.msra.mxu0 %v2082
        %2150 = vmatprep.subr.mxu0 %v2079
        %2151 = vmatpush1.msra.mxu0 %v2078
        %2152 = vmatprep.subr.mxu0 %v2075
        %2153 = vmatpush1.msra.mxu0 %v2074
        %2154 = vmatprep.subr.mxu0 %v2071
        %2155 = vmatpush1.msra.mxu0 %v2070
        %2156 = vmatprep.subr.mxu0 %v2067
        %2157 = vmatpush1.msra.mxu0 %v2066
        %2158 = vmatprep.subr.mxu0 %v2063
        %2159 = vmatpush1.msra.mxu0 %v2062
        %2160 = vmatprep.subr.mxu0 %v2059
        %2161 = vmatpush1.msra.mxu0 %v2058
        %2162 = vmatprep.subr.mxu0 0.0
        %2163 = vmatpush2.msra.mxu0 0.0
        %2164 = vmatprep.subr.mxu0 0.0
        %2165 = vmatpush2.msra.mxu0 0.0
        %2166 = vmatprep.subr.mxu0 0.0
        %2167 = vmatpush2.msra.mxu0 0.0
        %2168 = vmatprep.subr.mxu0 0.0
        %2169 = vmatpush2.msra.mxu0 0.0
        %2170 = vmatprep.subr.mxu0 0.0
        %2171 = vmatpush2.msra.mxu0 0.0
        %2172 = vmatprep.subr.mxu0 0.0
        %2173 = vmatpush2.msra.mxu0 0.0
        %2174 = vmatprep.subr.mxu0 0.0
        %2175 = vmatpush2.msra.mxu0 0.0
        %2176 = vmatprep.subr.mxu0 0.0
        %2177 = vmatpush2.msra.mxu0 0.0
        %2178 = vmatprep.subr.mxu0 0.0
        %2179 = vmatpush2.msra.mxu0 0.0
        %2180 = vmatprep.subr.mxu0 0.0
        %2181 = vmatpush2.msra.mxu0 0.0
        %2182 = vmatprep.subr.mxu0 0.0
        %2183 = vmatpush2.msra.mxu0 0.0
        %2184 = vmatprep.subr.mxu0 0.0
        %2185 = vmatpush2.msra.mxu0 0.0
        %2186 = vmatprep.subr.mxu0 0.0
        %2187 = vmatpush2.msra.mxu0 0.0
        %2188 = vmatprep.subr.mxu0 0.0
        %2189 = vmatpush2.msra.mxu0 0.0
        %2190 = vmatprep.subr.mxu0 0.0
        %2191 = vmatpush2.msra.mxu0 0.0
        %2192 = vmatprep.subr.mxu0 0.0
        %2193 = vmatpush2.msra.mxu0 0.0
        %2194 = vmatprep.mubr.f32.mxu0 0.0
        %2195 = vmatmul.mubr.f32.gmra.mxu0 0.0
        %v2196 = vpop.f32.mrf.mxu0
        %v2197 = vadd.f32 0.0, %v2196
        %v2198 = vpop.f32.mrf.mxu0
        %v2199 = vadd.f32 0.0, %v2198
        %2200 = vdwg.mxu0
        %2201 = vmatprep.subr.mxu0 %v2121
        %2202 = vmatpush1.msra.mxu0 %v2120
        %2203 = vmatprep.subr.mxu0 %v2117
        %2204 = vmatpush1.msra.mxu0 %v2116
        %2205 = vmatprep.subr.mxu0 %v2113
        %2206 = vmatpush1.msra.mxu0 %v2112
        %2207 = vmatprep.subr.mxu0 %v2109
        %2208 = vmatpush1.msra.mxu0 %v2108
        %2209 = vmatprep.subr.mxu0 %v2105
        %2210 = vmatpush1.msra.mxu0 %v2104
        %2211 = vmatprep.subr.mxu0 %v2101
        %2212 = vmatpush1.msra.mxu0 %v2100
        %2213 = vmatprep.subr.mxu0 %v2097
        %2214 = vmatpush1.msra.mxu0 %v2096
        %2215 = vmatprep.subr.mxu0 %v2093
        %2216 = vmatpush1.msra.mxu0 %v2092
        %2217 = vmatprep.subr.mxu0 %v2089
        %2218 = vmatpush1.msra.mxu0 %v2088
        %2219 = vmatprep.subr.mxu0 %v2085
        %2220 = vmatpush1.msra.mxu0 %v2084
        %2221 = vmatprep.subr.mxu0 %v2081
        %2222 = vmatpush1.msra.mxu0 %v2080
        %2223 = vmatprep.subr.mxu0 %v2077
        %2224 = vmatpush1.msra.mxu0 %v2076
        %2225 = vmatprep.subr.mxu0 %v2073
        %2226 = vmatpush1.msra.mxu0 %v2072
        %2227 = vmatprep.subr.mxu0 %v2069
        %2228 = vmatpush1.msra.mxu0 %v2068
        %2229 = vmatprep.subr.mxu0 %v2065
        %2230 = vmatpush1.msra.mxu0 %v2064
        %2231 = vmatprep.subr.mxu0 %v2061
        %2232 = vmatpush1.msra.mxu0 %v2060
        %2233 = vmatprep.subr.mxu0 0.0
        %2234 = vmatpush2.msra.mxu0 0.0
        %2235 = vmatprep.subr.mxu0 0.0
        %2236 = vmatpush2.msra.mxu0 0.0
        %2237 = vmatprep.subr.mxu0 0.0
        %2238 = vmatpush2.msra.mxu0 0.0
        %2239 = vmatprep.subr.mxu0 0.0
        %2240 = vmatpush2.msra.mxu0 0.0
        %2241 = vmatprep.subr.mxu0 0.0
        %2242 = vmatpush2.msra.mxu0 0.0
        %2243 = vmatprep.subr.mxu0 0.0
        %2244 = vmatpush2.msra.mxu0 0.0
        %2245 = vmatprep.subr.mxu0 0.0
        %2246 = vmatpush2.msra.mxu0 0.0
        %2247 = vmatprep.subr.mxu0 0.0
        %2248 = vmatpush2.msra.mxu0 0.0
        %2249 = vmatprep.subr.mxu0 0.0
        %2250 = vmatpush2.msra.mxu0 0.0
        %2251 = vmatprep.subr.mxu0 0.0
        %2252 = vmatpush2.msra.mxu0 0.0
        %2253 = vmatprep.subr.mxu0 0.0
        %2254 = vmatpush2.msra.mxu0 0.0
        %2255 = vmatprep.subr.mxu0 0.0
        %2256 = vmatpush2.msra.mxu0 0.0
        %2257 = vmatprep.subr.mxu0 0.0
        %2258 = vmatpush2.msra.mxu0 0.0
        %2259 = vmatprep.subr.mxu0 0.0
        %2260 = vmatpush2.msra.mxu0 0.0
        %2261 = vmatprep.subr.mxu0 0.0
        %2262 = vmatpush2.msra.mxu0 0.0
        %2263 = vmatprep.subr.mxu0 0.0
        %2264 = vmatpush2.msra.mxu0 0.0
        %2265 = vmatprep.mubr.f32.mxu0 0.0
        %2266 = vmatmul.mubr.f32.gmra.mxu0 0.0
        %v2267 = vpop.f32.mrf.mxu0
        %v2268 = vadd.f32 0.0, %v2267
        %v2269 = vpop.f32.mrf.mxu0
        %v2270 = vadd.f32 0.0, %v2269
        %2271 = vdwg.mxu0
        %v2272 = vadd.f32 %v2126, %v2197
        %v2273 = vadd.f32 %v2127, %v2199
        %v2274 = vadd.f32 %v2128, %v2268
        %v2275 = vadd.f32 %v2129, %v2270
        %v2276 = vxor.u32 %v2272, 2147483648
        %v2277 = vmul.f32 %v2276, 1.442695
        %v2278 = vpow.pop %v2277
        %v2279 = vadd.f32 %v2278, 1.0
        %v2280 = vrcp.pop %v2279
        %v2281 = vmul.f32 1.0, %v2280
        %v2282 = vxor.u32 %v2273, 2147483648
        %v2283 = vmul.f32 %v2282, 1.442695
        %v2284 = vpow.pop %v2283
        %v2285 = vadd.f32 %v2284, 1.0
        %v2286 = vrcp.pop %v2285
        %v2287 = vmul.f32 1.0, %v2286
        %v2288 = vtanh.pop %v2274
        %v2289 = vxor.u32 %v2275, 2147483648
        %v2290 = vmul.f32 %v2289, 1.442695
        %v2291 = vpow.pop %v2290
        %v2292 = vadd.f32 %v2291, 1.0
        %v2293 = vrcp.pop %v2292
        %v2294 = vmul.f32 1.0, %v2293
        %v2295 = vmul.f32 %v2287, 0.0
        %v2296 = vmul.f32 %v2281, %v2288
        %v2297 = vadd.f32 %v2295, %v2296
        %v2298 = vtanh.pop %v2297
        %v2299 = vmul.f32 %v2294, %v2298
        %s2300 = smul.u32 %s2122, 8
        %s2301 = scalar_lea.vmem %s264, %s2300 [#allocation7]
        %2302 = vst [vmem:[%s2301] sm:$0xff] %v2299
        %s2303 = smul.u32 %s21, 5
        %s2304 = sadd.s32 %s2303, 1
        %s2305 = smul.u32 %s2304, 4
        %s2306 = smul.addr %s2305, 8
        %s2307 = scalar_lea.vmem [#allocation2], %s2306
        %v2308 = vld [vmem:[%s2307] sm:$0xff]
        %v2309 = vld [vmem:[%s2307 + $0x8] sm:$0xff]
        %v2310 = vld [vmem:[%s2307 + $0x10] sm:$0xff]
        %v2311 = vld [vmem:[%s2307 + $0x18] sm:$0xff]
        %2312 = vmatprep.subr.mxu0 %v2119
        %2313 = vmatpush1.msra.mxu0 %v2118
        %2314 = vmatprep.subr.mxu0 %v2115
        %2315 = vmatpush1.msra.mxu0 %v2114
        %2316 = vmatprep.subr.mxu0 %v2111
        %2317 = vmatpush1.msra.mxu0 %v2110
        %2318 = vmatprep.subr.mxu0 %v2107
        %2319 = vmatpush1.msra.mxu0 %v2106
        %2320 = vmatprep.subr.mxu0 %v2103
        %2321 = vmatpush1.msra.mxu0 %v2102
        %2322 = vmatprep.subr.mxu0 %v2099
        %2323 = vmatpush1.msra.mxu0 %v2098
        %2324 = vmatprep.subr.mxu0 %v2095
        %2325 = vmatpush1.msra.mxu0 %v2094
        %2326 = vmatprep.subr.mxu0 %v2091
        %2327 = vmatpush1.msra.mxu0 %v2090
        %2328 = vmatprep.subr.mxu0 %v2087
        %2329 = vmatpush1.msra.mxu0 %v2086
        %2330 = vmatprep.subr.mxu0 %v2083
        %2331 = vmatpush1.msra.mxu0 %v2082
        %2332 = vmatprep.subr.mxu0 %v2079
        %2333 = vmatpush1.msra.mxu0 %v2078
        %2334 = vmatprep.subr.mxu0 %v2075
        %2335 = vmatpush1.msra.mxu0 %v2074
        %2336 = vmatprep.subr.mxu0 %v2071
        %2337 = vmatpush1.msra.mxu0 %v2070
        %2338 = vmatprep.subr.mxu0 %v2067
        %2339 = vmatpush1.msra.mxu0 %v2066
        %2340 = vmatprep.subr.mxu0 %v2063
        %2341 = vmatpush1.msra.mxu0 %v2062
        %2342 = vmatprep.subr.mxu0 %v2059
        %2343 = vmatpush1.msra.mxu0 %v2058
        %2344 = vmatprep.subr.mxu0 0.0
        %2345 = vmatpush2.msra.mxu0 0.0
        %2346 = vmatprep.subr.mxu0 0.0
        %2347 = vmatpush2.msra.mxu0 0.0
        %2348 = vmatprep.subr.mxu0 0.0
        %2349 = vmatpush2.msra.mxu0 0.0
        %2350 = vmatprep.subr.mxu0 0.0
        %2351 = vmatpush2.msra.mxu0 0.0
        %2352 = vmatprep.subr.mxu0 0.0
        %2353 = vmatpush2.msra.mxu0 0.0
        %2354 = vmatprep.subr.mxu0 0.0
        %2355 = vmatpush2.msra.mxu0 0.0
        %2356 = vmatprep.subr.mxu0 0.0
        %2357 = vmatpush2.msra.mxu0 0.0
        %2358 = vmatprep.subr.mxu0 0.0
        %2359 = vmatpush2.msra.mxu0 0.0
        %2360 = vmatprep.subr.mxu0 0.0
        %2361 = vmatpush2.msra.mxu0 0.0
        %2362 = vmatprep.subr.mxu0 0.0
        %2363 = vmatpush2.msra.mxu0 0.0
        %2364 = vmatprep.subr.mxu0 0.0
        %2365 = vmatpush2.msra.mxu0 0.0
        %2366 = vmatprep.subr.mxu0 0.0
        %2367 = vmatpush2.msra.mxu0 0.0
        %2368 = vmatprep.subr.mxu0 0.0
        %2369 = vmatpush2.msra.mxu0 0.0
        %2370 = vmatprep.subr.mxu0 0.0
        %2371 = vmatpush2.msra.mxu0 0.0
        %2372 = vmatprep.subr.mxu0 0.0
        %2373 = vmatpush2.msra.mxu0 0.0
        %2374 = vmatprep.subr.mxu0 0.0
        %2375 = vmatpush2.msra.mxu0 0.0
        %2376 = vmatprep.mubr.f32.mxu0 0.0
        %2377 = vmatmul.mubr.f32.gmra.mxu0 %v2299
        %v2378 = vpop.f32.mrf.mxu0
        %v2379 = vadd.f32 0.0, %v2378
        %v2380 = vpop.f32.mrf.mxu0
        %v2381 = vadd.f32 0.0, %v2380
        %2382 = vdwg.mxu0
        %2383 = vmatprep.subr.mxu0 %v2121
        %2384 = vmatpush1.msra.mxu0 %v2120
        %2385 = vmatprep.subr.mxu0 %v2117
        %2386 = vmatpush1.msra.mxu0 %v2116
        %2387 = vmatprep.subr.mxu0 %v2113
        %2388 = vmatpush1.msra.mxu0 %v2112
        %2389 = vmatprep.subr.mxu0 %v2109
        %2390 = vmatpush1.msra.mxu0 %v2108
        %2391 = vmatprep.subr.mxu0 %v2105
        %2392 = vmatpush1.msra.mxu0 %v2104
        %2393 = vmatprep.subr.mxu0 %v2101
        %2394 = vmatpush1.msra.mxu0 %v2100
        %2395 = vmatprep.subr.mxu0 %v2097
        %2396 = vmatpush1.msra.mxu0 %v2096
        %2397 = vmatprep.subr.mxu0 %v2093
        %2398 = vmatpush1.msra.mxu0 %v2092
        %2399 = vmatprep.subr.mxu0 %v2089
        %2400 = vmatpush1.msra.mxu0 %v2088
        %2401 = vmatprep.subr.mxu0 %v2085
        %2402 = vmatpush1.msra.mxu0 %v2084
        %2403 = vmatprep.subr.mxu0 %v2081
        %2404 = vmatpush1.msra.mxu0 %v2080
        %2405 = vmatprep.subr.mxu0 %v2077
        %2406 = vmatpush1.msra.mxu0 %v2076
        %2407 = vmatprep.subr.mxu0 %v2073
        %2408 = vmatpush1.msra.mxu0 %v2072
        %2409 = vmatprep.subr.mxu0 %v2069
        %2410 = vmatpush1.msra.mxu0 %v2068
        %2411 = vmatprep.subr.mxu0 %v2065
        %2412 = vmatpush1.msra.mxu0 %v2064
        %2413 = vmatprep.subr.mxu0 %v2061
        %2414 = vmatpush1.msra.mxu0 %v2060
        %2415 = vmatprep.subr.mxu0 0.0
        %2416 = vmatpush2.msra.mxu0 0.0
        %2417 = vmatprep.subr.mxu0 0.0
        %2418 = vmatpush2.msra.mxu0 0.0
        %2419 = vmatprep.subr.mxu0 0.0
        %2420 = vmatpush2.msra.mxu0 0.0
        %2421 = vmatprep.subr.mxu0 0.0
        %2422 = vmatpush2.msra.mxu0 0.0
        %2423 = vmatprep.subr.mxu0 0.0
        %2424 = vmatpush2.msra.mxu0 0.0
        %2425 = vmatprep.subr.mxu0 0.0
        %2426 = vmatpush2.msra.mxu0 0.0
        %2427 = vmatprep.subr.mxu0 0.0
        %2428 = vmatpush2.msra.mxu0 0.0
        %2429 = vmatprep.subr.mxu0 0.0
        %2430 = vmatpush2.msra.mxu0 0.0
        %2431 = vmatprep.subr.mxu0 0.0
        %2432 = vmatpush2.msra.mxu0 0.0
        %2433 = vmatprep.subr.mxu0 0.0
        %2434 = vmatpush2.msra.mxu0 0.0
        %2435 = vmatprep.subr.mxu0 0.0
        %2436 = vmatpush2.msra.mxu0 0.0
        %2437 = vmatprep.subr.mxu0 0.0
        %2438 = vmatpush2.msra.mxu0 0.0
        %2439 = vmatprep.subr.mxu0 0.0
        %2440 = vmatpush2.msra.mxu0 0.0
        %2441 = vmatprep.subr.mxu0 0.0
        %2442 = vmatpush2.msra.mxu0 0.0
        %2443 = vmatprep.subr.mxu0 0.0
        %2444 = vmatpush2.msra.mxu0 0.0
        %2445 = vmatprep.subr.mxu0 0.0
        %2446 = vmatpush2.msra.mxu0 0.0
        %2447 = vmatprep.mubr.f32.mxu0 0.0
        %2448 = vmatmul.mubr.f32.gmra.mxu0 %v2299
        %v2449 = vpop.f32.mrf.mxu0
        %v2450 = vadd.f32 0.0, %v2449
        %v2451 = vpop.f32.mrf.mxu0
        %v2452 = vadd.f32 0.0, %v2451
        %2453 = vdwg.mxu0
        %v2454 = vadd.f32 %v2308, %v2379
        %v2455 = vadd.f32 %v2309, %v2381
        %v2456 = vadd.f32 %v2310, %v2450
        %v2457 = vadd.f32 %v2311, %v2452
        %v2458 = vxor.u32 %v2454, 2147483648
        %v2459 = vmul.f32 %v2458, 1.442695
        %v2460 = vpow.pop %v2459
        %v2461 = vadd.f32 %v2460, 1.0
        %v2462 = vrcp.pop %v2461
        %v2463 = vmul.f32 1.0, %v2462
        %v2464 = vxor.u32 %v2455, 2147483648
        %v2465 = vmul.f32 %v2464, 1.442695
        %v2466 = vpow.pop %v2465
        %v2467 = vadd.f32 %v2466, 1.0
        %v2468 = vrcp.pop %v2467
        %v2469 = vmul.f32 1.0, %v2468
        %v2470 = vtanh.pop %v2456
        %v2471 = vxor.u32 %v2457, 2147483648
        %v2472 = vmul.f32 %v2471, 1.442695
        %v2473 = vpow.pop %v2472
        %v2474 = vadd.f32 %v2473, 1.0
        %v2475 = vrcp.pop %v2474
        %v2476 = vmul.f32 1.0, %v2475
        %v2477 = vmul.f32 %v2469, %v2297
        %v2478 = vmul.f32 %v2463, %v2470
        %v2479 = vadd.f32 %v2477, %v2478
        %v2480 = vtanh.pop %v2479
        %v2481 = vmul.f32 %v2476, %v2480
        %s2482 = smul.u32 %s2304, 8
        %s2483 = scalar_lea.vmem %s264, %s2482 [#allocation7]
        %2484 = vst [vmem:[%s2483] sm:$0xff] %v2481
        %s2485 = smul.u32 %s21, 3
        %s2486 = sadd.s32 %s2485, 2
        %s2487 = smul.u32 %s2486, 4
        %s2488 = smul.addr %s2487, 8
        %s2489 = scalar_lea.vmem [#allocation2], %s2488
        %v2490 = vld [vmem:[%s2489] sm:$0xff]
        %v2491 = vld [vmem:[%s2489 + $0x8] sm:$0xff]
        %v2492 = vld [vmem:[%s2489 + $0x10] sm:$0xff]
        %v2493 = vld [vmem:[%s2489 + $0x18] sm:$0xff]
        %2494 = vmatprep.subr.mxu0 %v2119
        %2495 = vmatpush1.msra.mxu0 %v2118
        %2496 = vmatprep.subr.mxu0 %v2115
        %2497 = vmatpush1.msra.mxu0 %v2114
        %2498 = vmatprep.subr.mxu0 %v2111
        %2499 = vmatpush1.msra.mxu0 %v2110
        %2500 = vmatprep.subr.mxu0 %v2107
        %2501 = vmatpush1.msra.mxu0 %v2106
        %2502 = vmatprep.subr.mxu0 %v2103
        %2503 = vmatpush1.msra.mxu0 %v2102
        %2504 = vmatprep.subr.mxu0 %v2099
        %2505 = vmatpush1.msra.mxu0 %v2098
        %2506 = vmatprep.subr.mxu0 %v2095
        %2507 = vmatpush1.msra.mxu0 %v2094
        %2508 = vmatprep.subr.mxu0 %v2091
        %2509 = vmatpush1.msra.mxu0 %v2090
        %2510 = vmatprep.subr.mxu0 %v2087
        %2511 = vmatpush1.msra.mxu0 %v2086
        %2512 = vmatprep.subr.mxu0 %v2083
        %2513 = vmatpush1.msra.mxu0 %v2082
        %2514 = vmatprep.subr.mxu0 %v2079
        %2515 = vmatpush1.msra.mxu0 %v2078
        %2516 = vmatprep.subr.mxu0 %v2075
        %2517 = vmatpush1.msra.mxu0 %v2074
        %2518 = vmatprep.subr.mxu0 %v2071
        %2519 = vmatpush1.msra.mxu0 %v2070
        %2520 = vmatprep.subr.mxu0 %v2067
        %2521 = vmatpush1.msra.mxu0 %v2066
        %2522 = vmatprep.subr.mxu0 %v2063
        %2523 = vmatpush1.msra.mxu0 %v2062
        %2524 = vmatprep.subr.mxu0 %v2059
        %2525 = vmatpush1.msra.mxu0 %v2058
        %2526 = vmatprep.subr.mxu0 0.0
        %2527 = vmatpush2.msra.mxu0 0.0
        %2528 = vmatprep.subr.mxu0 0.0
        %2529 = vmatpush2.msra.mxu0 0.0
        %2530 = vmatprep.subr.mxu0 0.0
        %2531 = vmatpush2.msra.mxu0 0.0
        %2532 = vmatprep.subr.mxu0 0.0
        %2533 = vmatpush2.msra.mxu0 0.0
        %2534 = vmatprep.subr.mxu0 0.0
        %2535 = vmatpush2.msra.mxu0 0.0
        %2536 = vmatprep.subr.mxu0 0.0
        %2537 = vmatpush2.msra.mxu0 0.0
        %2538 = vmatprep.subr.mxu0 0.0
        %2539 = vmatpush2.msra.mxu0 0.0
        %2540 = vmatprep.subr.mxu0 0.0
        %2541 = vmatpush2.msra.mxu0 0.0
        %2542 = vmatprep.subr.mxu0 0.0
        %2543 = vmatpush2.msra.mxu0 0.0
        %2544 = vmatprep.subr.mxu0 0.0
        %2545 = vmatpush2.msra.mxu0 0.0
        %2546 = vmatprep.subr.mxu0 0.0
        %2547 = vmatpush2.msra.mxu0 0.0
        %2548 = vmatprep.subr.mxu0 0.0
        %2549 = vmatpush2.msra.mxu0 0.0
        %2550 = vmatprep.subr.mxu0 0.0
        %2551 = vmatpush2.msra.mxu0 0.0
        %2552 = vmatprep.subr.mxu0 0.0
        %2553 = vmatpush2.msra.mxu0 0.0
        %2554 = vmatprep.subr.mxu0 0.0
        %2555 = vmatpush2.msra.mxu0 0.0
        %2556 = vmatprep.subr.mxu0 0.0
        %2557 = vmatpush2.msra.mxu0 0.0
        %2558 = vmatprep.mubr.f32.mxu0 0.0
        %2559 = vmatmul.mubr.f32.gmra.mxu0 %v2481
        %v2560 = vpop.f32.mrf.mxu0
        %v2561 = vadd.f32 0.0, %v2560
        %v2562 = vpop.f32.mrf.mxu0
        %v2563 = vadd.f32 0.0, %v2562
        %2564 = vdwg.mxu0
        %2565 = vmatprep.subr.mxu0 %v2121
        %2566 = vmatpush1.msra.mxu0 %v2120
        %2567 = vmatprep.subr.mxu0 %v2117
        %2568 = vmatpush1.msra.mxu0 %v2116
        %2569 = vmatprep.subr.mxu0 %v2113
        %2570 = vmatpush1.msra.mxu0 %v2112
        %2571 = vmatprep.subr.mxu0 %v2109
        %2572 = vmatpush1.msra.mxu0 %v2108
        %2573 = vmatprep.subr.mxu0 %v2105
        %2574 = vmatpush1.msra.mxu0 %v2104
        %2575 = vmatprep.subr.mxu0 %v2101
        %2576 = vmatpush1.msra.mxu0 %v2100
        %2577 = vmatprep.subr.mxu0 %v2097
        %2578 = vmatpush1.msra.mxu0 %v2096
        %2579 = vmatprep.subr.mxu0 %v2093
        %2580 = vmatpush1.msra.mxu0 %v2092
        %2581 = vmatprep.subr.mxu0 %v2089
        %2582 = vmatpush1.msra.mxu0 %v2088
        %2583 = vmatprep.subr.mxu0 %v2085
        %2584 = vmatpush1.msra.mxu0 %v2084
        %2585 = vmatprep.subr.mxu0 %v2081
        %2586 = vmatpush1.msra.mxu0 %v2080
        %2587 = vmatprep.subr.mxu0 %v2077
        %2588 = vmatpush1.msra.mxu0 %v2076
        %2589 = vmatprep.subr.mxu0 %v2073
        %2590 = vmatpush1.msra.mxu0 %v2072
        %2591 = vmatprep.subr.mxu0 %v2069
        %2592 = vmatpush1.msra.mxu0 %v2068
        %2593 = vmatprep.subr.mxu0 %v2065
        %2594 = vmatpush1.msra.mxu0 %v2064
        %2595 = vmatprep.subr.mxu0 %v2061
        %2596 = vmatpush1.msra.mxu0 %v2060
        %2597 = vmatprep.subr.mxu0 0.0
        %2598 = vmatpush2.msra.mxu0 0.0
        %2599 = vmatprep.subr.mxu0 0.0
        %2600 = vmatpush2.msra.mxu0 0.0
        %2601 = vmatprep.subr.mxu0 0.0
        %2602 = vmatpush2.msra.mxu0 0.0
        %2603 = vmatprep.subr.mxu0 0.0
        %2604 = vmatpush2.msra.mxu0 0.0
        %2605 = vmatprep.subr.mxu0 0.0
        %2606 = vmatpush2.msra.mxu0 0.0
        %2607 = vmatprep.subr.mxu0 0.0
        %2608 = vmatpush2.msra.mxu0 0.0
        %2609 = vmatprep.subr.mxu0 0.0
        %2610 = vmatpush2.msra.mxu0 0.0
        %2611 = vmatprep.subr.mxu0 0.0
        %2612 = vmatpush2.msra.mxu0 0.0
        %2613 = vmatprep.subr.mxu0 0.0
        %2614 = vmatpush2.msra.mxu0 0.0
        %2615 = vmatprep.subr.mxu0 0.0
        %2616 = vmatpush2.msra.mxu0 0.0
        %2617 = vmatprep.subr.mxu0 0.0
        %2618 = vmatpush2.msra.mxu0 0.0
        %2619 = vmatprep.subr.mxu0 0.0
        %2620 = vmatpush2.msra.mxu0 0.0
        %2621 = vmatprep.subr.mxu0 0.0
        %2622 = vmatpush2.msra.mxu0 0.0
        %2623 = vmatprep.subr.mxu0 0.0
        %2624 = vmatpush2.msra.mxu0 0.0
        %2625 = vmatprep.subr.mxu0 0.0
        %2626 = vmatpush2.msra.mxu0 0.0
        %2627 = vmatprep.subr.mxu0 0.0
        %2628 = vmatpush2.msra.mxu0 0.0
        %2629 = vmatprep.mubr.f32.mxu0 0.0
        %2630 = vmatmul.mubr.f32.gmra.mxu0 %v2481
        %v2631 = vpop.f32.mrf.mxu0
        %v2632 = vadd.f32 0.0, %v2631
        %v2633 = vpop.f32.mrf.mxu0
        %v2634 = vadd.f32 0.0, %v2633
        %2635 = vdwg.mxu0
        %v2636 = vadd.f32 %v2490, %v2561
        %v2637 = vadd.f32 %v2491, %v2563
        %v2638 = vadd.f32 %v2492, %v2632
        %v2639 = vadd.f32 %v2493, %v2634
        %v2640 = vxor.u32 %v2636, 2147483648
        %v2641 = vmul.f32 %v2640, 1.442695
        %v2642 = vpow.pop %v2641
        %v2643 = vadd.f32 %v2642, 1.0
        %v2644 = vrcp.pop %v2643
        %v2645 = vmul.f32 1.0, %v2644
        %v2646 = vxor.u32 %v2637, 2147483648
        %v2647 = vmul.f32 %v2646, 1.442695
        %v2648 = vpow.pop %v2647
        %v2649 = vadd.f32 %v2648, 1.0
        %v2650 = vrcp.pop %v2649
        %v2651 = vmul.f32 1.0, %v2650
        %v2652 = vtanh.pop %v2638
        %v2653 = vxor.u32 %v2639, 2147483648
        %v2654 = vmul.f32 %v2653, 1.442695
        %v2655 = vpow.pop %v2654
        %v2656 = vadd.f32 %v2655, 1.0
        %v2657 = vrcp.pop %v2656
        %v2658 = vmul.f32 1.0, %v2657
        %v2659 = vmul.f32 %v2651, %v2479
        %v2660 = vmul.f32 %v2645, %v2652
        %v2661 = vadd.f32 %v2659, %v2660
        %v2662 = vtanh.pop %v2661
        %v2663 = vmul.f32 %v2658, %v2662
        %s2664 = smul.u32 %s2486, 8
        %s2665 = scalar_lea.vmem %s264, %s2664 [#allocation7]
        %2666 = vst [vmem:[%s2665] sm:$0xff] %v2663
        %s2667 = sadd.s32 %s21, 3
        %s2668 = smul.u32 %s2667, 4
        %s2669 = smul.addr %s2668, 8
        %s2670 = scalar_lea.vmem [#allocation2], %s2669
        %v2671 = vld [vmem:[%s2670] sm:$0xff]
        %v2672 = vld [vmem:[%s2670 + $0x8] sm:$0xff]
        %v2673 = vld [vmem:[%s2670 + $0x10] sm:$0xff]
        %v2674 = vld [vmem:[%s2670 + $0x18] sm:$0xff]
        %2675 = vmatprep.subr.mxu0 %v2119
        %2676 = vmatpush1.msra.mxu0 %v2118
        %2677 = vmatprep.subr.mxu0 %v2115
        %2678 = vmatpush1.msra.mxu0 %v2114
        %2679 = vmatprep.subr.mxu0 %v2111
        %2680 = vmatpush1.msra.mxu0 %v2110
        %2681 = vmatprep.subr.mxu0 %v2107
        %2682 = vmatpush1.msra.mxu0 %v2106
        %2683 = vmatprep.subr.mxu0 %v2103
        %2684 = vmatpush1.msra.mxu0 %v2102
        %2685 = vmatprep.subr.mxu0 %v2099
        %2686 = vmatpush1.msra.mxu0 %v2098
        %2687 = vmatprep.subr.mxu0 %v2095
        %2688 = vmatpush1.msra.mxu0 %v2094
        %2689 = vmatprep.subr.mxu0 %v2091
        %2690 = vmatpush1.msra.mxu0 %v2090
        %2691 = vmatprep.subr.mxu0 %v2087
        %2692 = vmatpush1.msra.mxu0 %v2086
        %2693 = vmatprep.subr.mxu0 %v2083
        %2694 = vmatpush1.msra.mxu0 %v2082
        %2695 = vmatprep.subr.mxu0 %v2079
        %2696 = vmatpush1.msra.mxu0 %v2078
        %2697 = vmatprep.subr.mxu0 %v2075
        %2698 = vmatpush1.msra.mxu0 %v2074
        %2699 = vmatprep.subr.mxu0 %v2071
        %2700 = vmatpush1.msra.mxu0 %v2070
        %2701 = vmatprep.subr.mxu0 %v2067
        %2702 = vmatpush1.msra.mxu0 %v2066
        %2703 = vmatprep.subr.mxu0 %v2063
        %2704 = vmatpush1.msra.mxu0 %v2062
        %2705 = vmatprep.subr.mxu0 %v2059
        %2706 = vmatpush1.msra.mxu0 %v2058
        %2707 = vmatprep.subr.mxu0 0.0
        %2708 = vmatpush2.msra.mxu0 0.0
        %2709 = vmatprep.subr.mxu0 0.0
        %2710 = vmatpush2.msra.mxu0 0.0
        %2711 = vmatprep.subr.mxu0 0.0
        %2712 = vmatpush2.msra.mxu0 0.0
        %2713 = vmatprep.subr.mxu0 0.0
        %2714 = vmatpush2.msra.mxu0 0.0
        %2715 = vmatprep.subr.mxu0 0.0
        %2716 = vmatpush2.msra.mxu0 0.0
        %2717 = vmatprep.subr.mxu0 0.0
        %2718 = vmatpush2.msra.mxu0 0.0
        %2719 = vmatprep.subr.mxu0 0.0
        %2720 = vmatpush2.msra.mxu0 0.0
        %2721 = vmatprep.subr.mxu0 0.0
        %2722 = vmatpush2.msra.mxu0 0.0
        %2723 = vmatprep.subr.mxu0 0.0
        %2724 = vmatpush2.msra.mxu0 0.0
        %2725 = vmatprep.subr.mxu0 0.0
        %2726 = vmatpush2.msra.mxu0 0.0
        %2727 = vmatprep.subr.mxu0 0.0
        %2728 = vmatpush2.msra.mxu0 0.0
        %2729 = vmatprep.subr.mxu0 0.0
        %2730 = vmatpush2.msra.mxu0 0.0
        %2731 = vmatprep.subr.mxu0 0.0
        %2732 = vmatpush2.msra.mxu0 0.0
        %2733 = vmatprep.subr.mxu0 0.0
        %2734 = vmatpush2.msra.mxu0 0.0
        %2735 = vmatprep.subr.mxu0 0.0
        %2736 = vmatpush2.msra.mxu0 0.0
        %2737 = vmatprep.subr.mxu0 0.0
        %2738 = vmatpush2.msra.mxu0 0.0
        %2739 = vmatprep.mubr.f32.mxu0 0.0
        %2740 = vmatmul.mubr.f32.gmra.mxu0 %v2663
        %v2741 = vpop.f32.mrf.mxu0
        %v2742 = vadd.f32 0.0, %v2741
        %v2743 = vpop.f32.mrf.mxu0
        %v2744 = vadd.f32 0.0, %v2743
        %2745 = vdwg.mxu0
        %2746 = vmatprep.subr.mxu0 %v2121
        %2747 = vmatpush1.msra.mxu0 %v2120
        %2748 = vmatprep.subr.mxu0 %v2117
        %2749 = vmatpush1.msra.mxu0 %v2116
        %2750 = vmatprep.subr.mxu0 %v2113
        %2751 = vmatpush1.msra.mxu0 %v2112
        %2752 = vmatprep.subr.mxu0 %v2109
        %2753 = vmatpush1.msra.mxu0 %v2108
        %2754 = vmatprep.subr.mxu0 %v2105
        %2755 = vmatpush1.msra.mxu0 %v2104
        %2756 = vmatprep.subr.mxu0 %v2101
        %2757 = vmatpush1.msra.mxu0 %v2100
        %2758 = vmatprep.subr.mxu0 %v2097
        %2759 = vmatpush1.msra.mxu0 %v2096
        %2760 = vmatprep.subr.mxu0 %v2093
        %2761 = vmatpush1.msra.mxu0 %v2092
        %2762 = vmatprep.subr.mxu0 %v2089
        %2763 = vmatpush1.msra.mxu0 %v2088
        %2764 = vmatprep.subr.mxu0 %v2085
        %2765 = vmatpush1.msra.mxu0 %v2084
        %2766 = vmatprep.subr.mxu0 %v2081
        %2767 = vmatpush1.msra.mxu0 %v2080
        %2768 = vmatprep.subr.mxu0 %v2077
        %2769 = vmatpush1.msra.mxu0 %v2076
        %2770 = vmatprep.subr.mxu0 %v2073
        %2771 = vmatpush1.msra.mxu0 %v2072
        %2772 = vmatprep.subr.mxu0 %v2069
        %2773 = vmatpush1.msra.mxu0 %v2068
        %2774 = vmatprep.subr.mxu0 %v2065
        %2775 = vmatpush1.msra.mxu0 %v2064
        %2776 = vmatprep.subr.mxu0 %v2061
        %2777 = vmatpush1.msra.mxu0 %v2060
        %2778 = vmatprep.subr.mxu0 0.0
        %2779 = vmatpush2.msra.mxu0 0.0
        %2780 = vmatprep.subr.mxu0 0.0
        %2781 = vmatpush2.msra.mxu0 0.0
        %2782 = vmatprep.subr.mxu0 0.0
        %2783 = vmatpush2.msra.mxu0 0.0
        %2784 = vmatprep.subr.mxu0 0.0
        %2785 = vmatpush2.msra.mxu0 0.0
        %2786 = vmatprep.subr.mxu0 0.0
        %2787 = vmatpush2.msra.mxu0 0.0
        %2788 = vmatprep.subr.mxu0 0.0
        %2789 = vmatpush2.msra.mxu0 0.0
        %2790 = vmatprep.subr.mxu0 0.0
        %2791 = vmatpush2.msra.mxu0 0.0
        %2792 = vmatprep.subr.mxu0 0.0
        %2793 = vmatpush2.msra.mxu0 0.0
        %2794 = vmatprep.subr.mxu0 0.0
        %2795 = vmatpush2.msra.mxu0 0.0
        %2796 = vmatprep.subr.mxu0 0.0
        %2797 = vmatpush2.msra.mxu0 0.0
        %2798 = vmatprep.subr.mxu0 0.0
        %2799 = vmatpush2.msra.mxu0 0.0
        %2800 = vmatprep.subr.mxu0 0.0
        %2801 = vmatpush2.msra.mxu0 0.0
        %2802 = vmatprep.subr.mxu0 0.0
        %2803 = vmatpush2.msra.mxu0 0.0
        %2804 = vmatprep.subr.mxu0 0.0
        %2805 = vmatpush2.msra.mxu0 0.0
        %2806 = vmatprep.subr.mxu0 0.0
        %2807 = vmatpush2.msra.mxu0 0.0
        %2808 = vmatprep.subr.mxu0 0.0
        %2809 = vmatpush2.msra.mxu0 0.0
        %2810 = vmatprep.mubr.f32.mxu0 0.0
        %2811 = vmatmul.mubr.f32.gmra.mxu0 %v2663
        %v2812 = vpop.f32.mrf.mxu0
        %v2813 = vadd.f32 0.0, %v2812
        %v2814 = vpop.f32.mrf.mxu0
        %v2815 = vadd.f32 0.0, %v2814
        %2816 = vdwg.mxu0
        %v2817 = vadd.f32 %v2671, %v2742
        %v2818 = vadd.f32 %v2672, %v2744
        %v2819 = vadd.f32 %v2673, %v2813
        %v2820 = vadd.f32 %v2674, %v2815
        %v2821 = vxor.u32 %v2817, 2147483648
        %v2822 = vmul.f32 %v2821, 1.442695
        %v2823 = vpow.pop %v2822
        %v2824 = vadd.f32 %v2823, 1.0
        %v2825 = vrcp.pop %v2824
        %v2826 = vmul.f32 1.0, %v2825
        %v2827 = vxor.u32 %v2818, 2147483648
        %v2828 = vmul.f32 %v2827, 1.442695
        %v2829 = vpow.pop %v2828
        %v2830 = vadd.f32 %v2829, 1.0
        %v2831 = vrcp.pop %v2830
        %v2832 = vmul.f32 1.0, %v2831
        %v2833 = vtanh.pop %v2819
        %v2834 = vxor.u32 %v2820, 2147483648
        %v2835 = vmul.f32 %v2834, 1.442695
        %v2836 = vpow.pop %v2835
        %v2837 = vadd.f32 %v2836, 1.0
        %v2838 = vrcp.pop %v2837
        %v2839 = vmul.f32 1.0, %v2838
        %v2840 = vmul.f32 %v2832, %v2661
        %v2841 = vmul.f32 %v2826, %v2833
        %v2842 = vadd.f32 %v2840, %v2841
        %v2843 = vtanh.pop %v2842
        %v2844 = vmul.f32 %v2839, %v2843
        %s2845 = smul.u32 %s2667, 8
        %s2846 = scalar_lea.vmem %s264, %s2845 [#allocation7]
        %2847 = vst [vmem:[%s2846] sm:$0xff] %v2844
        %s2848 = ssub.s32 4, %s21
        %s2849 = smul.u32 %s2848, 4
        %s2850 = smul.addr %s2849, 8
        %s2851 = scalar_lea.vmem [#allocation2], %s2850
        %v2852 = vld [vmem:[%s2851] sm:$0xff]
        %v2853 = vld [vmem:[%s2851 + $0x8] sm:$0xff]
        %v2854 = vld [vmem:[%s2851 + $0x10] sm:$0xff]
        %v2855 = vld [vmem:[%s2851 + $0x18] sm:$0xff]
        %2856 = vmatprep.subr.mxu0 %v2119
        %2857 = vmatpush1.msra.mxu0 %v2118
        %2858 = vmatprep.subr.mxu0 %v2115
        %2859 = vmatpush1.msra.mxu0 %v2114
        %2860 = vmatprep.subr.mxu0 %v2111
        %2861 = vmatpush1.msra.mxu0 %v2110
        %2862 = vmatprep.subr.mxu0 %v2107
        %2863 = vmatpush1.msra.mxu0 %v2106
        %2864 = vmatprep.subr.mxu0 %v2103
        %2865 = vmatpush1.msra.mxu0 %v2102
        %2866 = vmatprep.subr.mxu0 %v2099
        %2867 = vmatpush1.msra.mxu0 %v2098
        %2868 = vmatprep.subr.mxu0 %v2095
        %2869 = vmatpush1.msra.mxu0 %v2094
        %2870 = vmatprep.subr.mxu0 %v2091
        %2871 = vmatpush1.msra.mxu0 %v2090
        %2872 = vmatprep.subr.mxu0 %v2087
        %2873 = vmatpush1.msra.mxu0 %v2086
        %2874 = vmatprep.subr.mxu0 %v2083
        %2875 = vmatpush1.msra.mxu0 %v2082
        %2876 = vmatprep.subr.mxu0 %v2079
        %2877 = vmatpush1.msra.mxu0 %v2078
        %2878 = vmatprep.subr.mxu0 %v2075
        %2879 = vmatpush1.msra.mxu0 %v2074
        %2880 = vmatprep.subr.mxu0 %v2071
        %2881 = vmatpush1.msra.mxu0 %v2070
        %2882 = vmatprep.subr.mxu0 %v2067
        %2883 = vmatpush1.msra.mxu0 %v2066
        %2884 = vmatprep.subr.mxu0 %v2063
        %2885 = vmatpush1.msra.mxu0 %v2062
        %2886 = vmatprep.subr.mxu0 %v2059
        %2887 = vmatpush1.msra.mxu0 %v2058
        %2888 = vmatprep.subr.mxu0 0.0
        %2889 = vmatpush2.msra.mxu0 0.0
        %2890 = vmatprep.subr.mxu0 0.0
        %2891 = vmatpush2.msra.mxu0 0.0
        %2892 = vmatprep.subr.mxu0 0.0
        %2893 = vmatpush2.msra.mxu0 0.0
        %2894 = vmatprep.subr.mxu0 0.0
        %2895 = vmatpush2.msra.mxu0 0.0
        %2896 = vmatprep.subr.mxu0 0.0
        %2897 = vmatpush2.msra.mxu0 0.0
        %2898 = vmatprep.subr.mxu0 0.0
        %2899 = vmatpush2.msra.mxu0 0.0
        %2900 = vmatprep.subr.mxu0 0.0
        %2901 = vmatpush2.msra.mxu0 0.0
        %2902 = vmatprep.subr.mxu0 0.0
        %2903 = vmatpush2.msra.mxu0 0.0
        %2904 = vmatprep.subr.mxu0 0.0
        %2905 = vmatpush2.msra.mxu0 0.0
        %2906 = vmatprep.subr.mxu0 0.0
        %2907 = vmatpush2.msra.mxu0 0.0
        %2908 = vmatprep.subr.mxu0 0.0
        %2909 = vmatpush2.msra.mxu0 0.0
        %2910 = vmatprep.subr.mxu0 0.0
        %2911 = vmatpush2.msra.mxu0 0.0
        %2912 = vmatprep.subr.mxu0 0.0
        %2913 = vmatpush2.msra.mxu0 0.0
        %2914 = vmatprep.subr.mxu0 0.0
        %2915 = vmatpush2.msra.mxu0 0.0
        %2916 = vmatprep.subr.mxu0 0.0
        %2917 = vmatpush2.msra.mxu0 0.0
        %2918 = vmatprep.subr.mxu0 0.0
        %2919 = vmatpush2.msra.mxu0 0.0
        %2920 = vmatprep.mubr.f32.mxu0 0.0
        %2921 = vmatmul.mubr.f32.gmra.mxu0 %v2844
        %v2922 = vpop.f32.mrf.mxu0
        %v2923 = vadd.f32 0.0, %v2922
        %v2924 = vpop.f32.mrf.mxu0
        %v2925 = vadd.f32 0.0, %v2924
        %2926 = vdwg.mxu0
        %2927 = vmatprep.subr.mxu0 %v2121
        %2928 = vmatpush1.msra.mxu0 %v2120
        %2929 = vmatprep.subr.mxu0 %v2117
        %2930 = vmatpush1.msra.mxu0 %v2116
        %2931 = vmatprep.subr.mxu0 %v2113
        %2932 = vmatpush1.msra.mxu0 %v2112
        %2933 = vmatprep.subr.mxu0 %v2109
        %2934 = vmatpush1.msra.mxu0 %v2108
        %2935 = vmatprep.subr.mxu0 %v2105
        %2936 = vmatpush1.msra.mxu0 %v2104
        %2937 = vmatprep.subr.mxu0 %v2101
        %2938 = vmatpush1.msra.mxu0 %v2100
        %2939 = vmatprep.subr.mxu0 %v2097
        %2940 = vmatpush1.msra.mxu0 %v2096
        %2941 = vmatprep.subr.mxu0 %v2093
        %2942 = vmatpush1.msra.mxu0 %v2092
        %2943 = vmatprep.subr.mxu0 %v2089
        %2944 = vmatpush1.msra.mxu0 %v2088
        %2945 = vmatprep.subr.mxu0 %v2085
        %2946 = vmatpush1.msra.mxu0 %v2084
        %2947 = vmatprep.subr.mxu0 %v2081
        %2948 = vmatpush1.msra.mxu0 %v2080
        %2949 = vmatprep.subr.mxu0 %v2077
        %2950 = vmatpush1.msra.mxu0 %v2076
        %2951 = vmatprep.subr.mxu0 %v2073
        %2952 = vmatpush1.msra.mxu0 %v2072
        %2953 = vmatprep.subr.mxu0 %v2069
        %2954 = vmatpush1.msra.mxu0 %v2068
        %2955 = vmatprep.subr.mxu0 %v2065
        %2956 = vmatpush1.msra.mxu0 %v2064
        %2957 = vmatprep.subr.mxu0 %v2061
        %2958 = vmatpush1.msra.mxu0 %v2060
        %2959 = vmatprep.subr.mxu0 0.0
        %2960 = vmatpush2.msra.mxu0 0.0
        %2961 = vmatprep.subr.mxu0 0.0
        %2962 = vmatpush2.msra.mxu0 0.0
        %2963 = vmatprep.subr.mxu0 0.0
        %2964 = vmatpush2.msra.mxu0 0.0
        %2965 = vmatprep.subr.mxu0 0.0
        %2966 = vmatpush2.msra.mxu0 0.0
        %2967 = vmatprep.subr.mxu0 0.0
        %2968 = vmatpush2.msra.mxu0 0.0
        %2969 = vmatprep.subr.mxu0 0.0
        %2970 = vmatpush2.msra.mxu0 0.0
        %2971 = vmatprep.subr.mxu0 0.0
        %2972 = vmatpush2.msra.mxu0 0.0
        %2973 = vmatprep.subr.mxu0 0.0
        %2974 = vmatpush2.msra.mxu0 0.0
        %2975 = vmatprep.subr.mxu0 0.0
        %2976 = vmatpush2.msra.mxu0 0.0
        %2977 = vmatprep.subr.mxu0 0.0
        %2978 = vmatpush2.msra.mxu0 0.0
        %2979 = vmatprep.subr.mxu0 0.0
        %2980 = vmatpush2.msra.mxu0 0.0
        %2981 = vmatprep.subr.mxu0 0.0
        %2982 = vmatpush2.msra.mxu0 0.0
        %2983 = vmatprep.subr.mxu0 0.0
        %2984 = vmatpush2.msra.mxu0 0.0
        %2985 = vmatprep.subr.mxu0 0.0
        %2986 = vmatpush2.msra.mxu0 0.0
        %2987 = vmatprep.subr.mxu0 0.0
        %2988 = vmatpush2.msra.mxu0 0.0
        %2989 = vmatprep.subr.mxu0 0.0
        %2990 = vmatpush2.msra.mxu0 0.0
        %2991 = vmatprep.mubr.f32.mxu0 0.0
        %2992 = vmatmul.mubr.f32.gmra.mxu0 %v2844
        %v2993 = vpop.f32.mrf.mxu0
        %v2994 = vadd.f32 0.0, %v2993
        %v2995 = vpop.f32.mrf.mxu0
        %v2996 = vadd.f32 0.0, %v2995
        %2997 = vdwg.mxu0
        %v2998 = vadd.f32 %v2852, %v2923
        %v2999 = vadd.f32 %v2853, %v2925
        %v3000 = vadd.f32 %v2854, %v2994
        %v3001 = vadd.f32 %v2855, %v2996
        %v3002 = vxor.u32 %v2998, 2147483648
        %v3003 = vmul.f32 %v3002, 1.442695
        %v3004 = vpow.pop %v3003
        %v3005 = vadd.f32 %v3004, 1.0
        %v3006 = vrcp.pop %v3005
        %v3007 = vmul.f32 1.0, %v3006
        %v3008 = vxor.u32 %v2999, 2147483648
        %v3009 = vmul.f32 %v3008, 1.442695
        %v3010 = vpow.pop %v3009
        %v3011 = vadd.f32 %v3010, 1.0
        %v3012 = vrcp.pop %v3011
        %v3013 = vmul.f32 1.0, %v3012
        %v3014 = vtanh.pop %v3000
        %v3015 = vxor.u32 %v3001, 2147483648
        %v3016 = vmul.f32 %v3015, 1.442695
        %v3017 = vpow.pop %v3016
        %v3018 = vadd.f32 %v3017, 1.0
        %v3019 = vrcp.pop %v3018
        %v3020 = vmul.f32 1.0, %v3019
        %v3021 = vmul.f32 %v3013, %v2842
        %v3022 = vmul.f32 %v3007, %v3014
        %v3023 = vadd.f32 %v3021, %v3022
        %v3024 = vtanh.pop %v3023
        %v3025 = vmul.f32 %v3020, %v3024
        %s3026 = smul.u32 %s2848, 8
        %s3027 = scalar_lea.vmem %s264, %s3026 [#allocation7]
        %3028 = vst [vmem:[%s3027] sm:$0xff] %v3025
        %s3029 = smul.u32 %s21, 4294967293
        %s3030 = sadd.s32 %s3029, 5
        %s3031 = smul.u32 %s3030, 4
        %s3032 = smul.addr %s3031, 8
        %s3033 = scalar_lea.vmem [#allocation2], %s3032
        %v3034 = vld [vmem:[%s3033] sm:$0xff]
        %v3035 = vld [vmem:[%s3033 + $0x8] sm:$0xff]
        %v3036 = vld [vmem:[%s3033 + $0x10] sm:$0xff]
        %v3037 = vld [vmem:[%s3033 + $0x18] sm:$0xff]
        %3038 = vmatprep.subr.mxu0 %v2119
        %3039 = vmatpush1.msra.mxu0 %v2118
        %3040 = vmatprep.subr.mxu0 %v2115
        %3041 = vmatpush1.msra.mxu0 %v2114
        %3042 = vmatprep.subr.mxu0 %v2111
        %3043 = vmatpush1.msra.mxu0 %v2110
        %3044 = vmatprep.subr.mxu0 %v2107
        %3045 = vmatpush1.msra.mxu0 %v2106
        %3046 = vmatprep.subr.mxu0 %v2103
        %3047 = vmatpush1.msra.mxu0 %v2102
        %3048 = vmatprep.subr.mxu0 %v2099
        %3049 = vmatpush1.msra.mxu0 %v2098
        %3050 = vmatprep.subr.mxu0 %v2095
        %3051 = vmatpush1.msra.mxu0 %v2094
        %3052 = vmatprep.subr.mxu0 %v2091
        %3053 = vmatpush1.msra.mxu0 %v2090
        %3054 = vmatprep.subr.mxu0 %v2087
        %3055 = vmatpush1.msra.mxu0 %v2086
        %3056 = vmatprep.subr.mxu0 %v2083
        %3057 = vmatpush1.msra.mxu0 %v2082
        %3058 = vmatprep.subr.mxu0 %v2079
        %3059 = vmatpush1.msra.mxu0 %v2078
        %3060 = vmatprep.subr.mxu0 %v2075
        %3061 = vmatpush1.msra.mxu0 %v2074
        %3062 = vmatprep.subr.mxu0 %v2071
        %3063 = vmatpush1.msra.mxu0 %v2070
        %3064 = vmatprep.subr.mxu0 %v2067
        %3065 = vmatpush1.msra.mxu0 %v2066
        %3066 = vmatprep.subr.mxu0 %v2063
        %3067 = vmatpush1.msra.mxu0 %v2062
        %3068 = vmatprep.subr.mxu0 %v2059
        %3069 = vmatpush1.msra.mxu0 %v2058
        %3070 = vmatprep.subr.mxu0 0.0
        %3071 = vmatpush2.msra.mxu0 0.0
        %3072 = vmatprep.subr.mxu0 0.0
        %3073 = vmatpush2.msra.mxu0 0.0
        %3074 = vmatprep.subr.mxu0 0.0
        %3075 = vmatpush2.msra.mxu0 0.0
        %3076 = vmatprep.subr.mxu0 0.0
        %3077 = vmatpush2.msra.mxu0 0.0
        %3078 = vmatprep.subr.mxu0 0.0
        %3079 = vmatpush2.msra.mxu0 0.0
        %3080 = vmatprep.subr.mxu0 0.0
        %3081 = vmatpush2.msra.mxu0 0.0
        %3082 = vmatprep.subr.mxu0 0.0
        %3083 = vmatpush2.msra.mxu0 0.0
        %3084 = vmatprep.subr.mxu0 0.0
        %3085 = vmatpush2.msra.mxu0 0.0
        %3086 = vmatprep.subr.mxu0 0.0
        %3087 = vmatpush2.msra.mxu0 0.0
        %3088 = vmatprep.subr.mxu0 0.0
        %3089 = vmatpush2.msra.mxu0 0.0
        %3090 = vmatprep.subr.mxu0 0.0
        %3091 = vmatpush2.msra.mxu0 0.0
        %3092 = vmatprep.subr.mxu0 0.0
        %3093 = vmatpush2.msra.mxu0 0.0
        %3094 = vmatprep.subr.mxu0 0.0
        %3095 = vmatpush2.msra.mxu0 0.0
        %3096 = vmatprep.subr.mxu0 0.0
        %3097 = vmatpush2.msra.mxu0 0.0
        %3098 = vmatprep.subr.mxu0 0.0
        %3099 = vmatpush2.msra.mxu0 0.0
        %3100 = vmatprep.subr.mxu0 0.0
        %3101 = vmatpush2.msra.mxu0 0.0
        %3102 = vmatprep.mubr.f32.mxu0 0.0
        %3103 = vmatmul.mubr.f32.gmra.mxu0 %v3025
        %v3104 = vpop.f32.mrf.mxu0
        %v3105 = vadd.f32 0.0, %v3104
        %v3106 = vpop.f32.mrf.mxu0
        %v3107 = vadd.f32 0.0, %v3106
        %3108 = vdwg.mxu0
        %3109 = vmatprep.subr.mxu0 %v2121
        %3110 = vmatpush1.msra.mxu0 %v2120
        %3111 = vmatprep.subr.mxu0 %v2117
        %3112 = vmatpush1.msra.mxu0 %v2116
        %3113 = vmatprep.subr.mxu0 %v2113
        %3114 = vmatpush1.msra.mxu0 %v2112
        %3115 = vmatprep.subr.mxu0 %v2109
        %3116 = vmatpush1.msra.mxu0 %v2108
        %3117 = vmatprep.subr.mxu0 %v2105
        %3118 = vmatpush1.msra.mxu0 %v2104
        %3119 = vmatprep.subr.mxu0 %v2101
        %3120 = vmatpush1.msra.mxu0 %v2100
        %3121 = vmatprep.subr.mxu0 %v2097
        %3122 = vmatpush1.msra.mxu0 %v2096
        %3123 = vmatprep.subr.mxu0 %v2093
        %3124 = vmatpush1.msra.mxu0 %v2092
        %3125 = vmatprep.subr.mxu0 %v2089
        %3126 = vmatpush1.msra.mxu0 %v2088
        %3127 = vmatprep.subr.mxu0 %v2085
        %3128 = vmatpush1.msra.mxu0 %v2084
        %3129 = vmatprep.subr.mxu0 %v2081
        %3130 = vmatpush1.msra.mxu0 %v2080
        %3131 = vmatprep.subr.mxu0 %v2077
        %3132 = vmatpush1.msra.mxu0 %v2076
        %3133 = vmatprep.subr.mxu0 %v2073
        %3134 = vmatpush1.msra.mxu0 %v2072
        %3135 = vmatprep.subr.mxu0 %v2069
        %3136 = vmatpush1.msra.mxu0 %v2068
        %3137 = vmatprep.subr.mxu0 %v2065
        %3138 = vmatpush1.msra.mxu0 %v2064
        %3139 = vmatprep.subr.mxu0 %v2061
        %3140 = vmatpush1.msra.mxu0 %v2060
        %3141 = vmatprep.subr.mxu0 0.0
        %3142 = vmatpush2.msra.mxu0 0.0
        %3143 = vmatprep.subr.mxu0 0.0
        %3144 = vmatpush2.msra.mxu0 0.0
        %3145 = vmatprep.subr.mxu0 0.0
        %3146 = vmatpush2.msra.mxu0 0.0
        %3147 = vmatprep.subr.mxu0 0.0
        %3148 = vmatpush2.msra.mxu0 0.0
        %3149 = vmatprep.subr.mxu0 0.0
        %3150 = vmatpush2.msra.mxu0 0.0
        %3151 = vmatprep.subr.mxu0 0.0
        %3152 = vmatpush2.msra.mxu0 0.0
        %3153 = vmatprep.subr.mxu0 0.0
        %3154 = vmatpush2.msra.mxu0 0.0
        %3155 = vmatprep.subr.mxu0 0.0
        %3156 = vmatpush2.msra.mxu0 0.0
        %3157 = vmatprep.subr.mxu0 0.0
        %3158 = vmatpush2.msra.mxu0 0.0
        %3159 = vmatprep.subr.mxu0 0.0
        %3160 = vmatpush2.msra.mxu0 0.0
        %3161 = vmatprep.subr.mxu0 0.0
        %3162 = vmatpush2.msra.mxu0 0.0
        %3163 = vmatprep.subr.mxu0 0.0
        %3164 = vmatpush2.msra.mxu0 0.0
        %3165 = vmatprep.subr.mxu0 0.0
        %3166 = vmatpush2.msra.mxu0 0.0
        %3167 = vmatprep.subr.mxu0 0.0
        %3168 = vmatpush2.msra.mxu0 0.0
        %3169 = vmatprep.subr.mxu0 0.0
        %3170 = vmatpush2.msra.mxu0 0.0
        %3171 = vmatprep.subr.mxu0 0.0
        %3172 = vmatpush2.msra.mxu0 0.0
        %3173 = vmatprep.mubr.f32.mxu0 0.0
        %3174 = vmatmul.mubr.f32.gmra.mxu0 %v3025
        %v3175 = vpop.f32.mrf.mxu0
        %v3176 = vadd.f32 0.0, %v3175
        %v3177 = vpop.f32.mrf.mxu0
        %v3178 = vadd.f32 0.0, %v3177
        %3179 = vdwg.mxu0
        %v3180 = vadd.f32 %v3034, %v3105
        %v3181 = vadd.f32 %v3035, %v3107
        %v3182 = vadd.f32 %v3036, %v3176
        %v3183 = vadd.f32 %v3037, %v3178
        %v3184 = vxor.u32 %v3180, 2147483648
        %v3185 = vmul.f32 %v3184, 1.442695
        %v3186 = vpow.pop %v3185
        %v3187 = vadd.f32 %v3186, 1.0
        %v3188 = vrcp.pop %v3187
        %v3189 = vmul.f32 1.0, %v3188
        %v3190 = vxor.u32 %v3181, 2147483648
        %v3191 = vmul.f32 %v3190, 1.442695
        %v3192 = vpow.pop %v3191
        %v3193 = vadd.f32 %v3192, 1.0
        %v3194 = vrcp.pop %v3193
        %v3195 = vmul.f32 1.0, %v3194
        %v3196 = vtanh.pop %v3182
        %v3197 = vxor.u32 %v3183, 2147483648
        %v3198 = vmul.f32 %v3197, 1.442695
        %v3199 = vpow.pop %v3198
        %v3200 = vadd.f32 %v3199, 1.0
        %v3201 = vrcp.pop %v3200
        %v3202 = vmul.f32 1.0, %v3201
        %v3203 = vmul.f32 %v3195, %v3023
        %v3204 = vmul.f32 %v3189, %v3196
        %v3205 = vadd.f32 %v3203, %v3204
        %v3206 = vtanh.pop %v3205
        %v3207 = vmul.f32 %v3202, %v3206
        %s3208 = smul.u32 %s3030, 8
        %s3209 = scalar_lea.vmem %s264, %s3208 [#allocation7]
        %3210 = vst [vmem:[%s3209] sm:$0xff] %v3207
        %s3211 = smul.u32 %s21, 4294967291
        %s3212 = sadd.s32 %s3211, 6
        %s3213 = smul.u32 %s3212, 4
        %s3214 = smul.addr %s3213, 8
        %s3215 = scalar_lea.vmem [#allocation2], %s3214
        %v3216 = vld [vmem:[%s3215] sm:$0xff]
        %v3217 = vld [vmem:[%s3215 + $0x8] sm:$0xff]
        %v3218 = vld [vmem:[%s3215 + $0x10] sm:$0xff]
        %v3219 = vld [vmem:[%s3215 + $0x18] sm:$0xff]
        %3220 = vmatprep.subr.mxu0 %v2119
        %3221 = vmatpush1.msra.mxu0 %v2118
        %3222 = vmatprep.subr.mxu0 %v2115
        %3223 = vmatpush1.msra.mxu0 %v2114
        %3224 = vmatprep.subr.mxu0 %v2111
        %3225 = vmatpush1.msra.mxu0 %v2110
        %3226 = vmatprep.subr.mxu0 %v2107
        %3227 = vmatpush1.msra.mxu0 %v2106
        %3228 = vmatprep.subr.mxu0 %v2103
        %3229 = vmatpush1.msra.mxu0 %v2102
        %3230 = vmatprep.subr.mxu0 %v2099
        %3231 = vmatpush1.msra.mxu0 %v2098
        %3232 = vmatprep.subr.mxu0 %v2095
        %3233 = vmatpush1.msra.mxu0 %v2094
        %3234 = vmatprep.subr.mxu0 %v2091
        %3235 = vmatpush1.msra.mxu0 %v2090
        %3236 = vmatprep.subr.mxu0 %v2087
        %3237 = vmatpush1.msra.mxu0 %v2086
        %3238 = vmatprep.subr.mxu0 %v2083
        %3239 = vmatpush1.msra.mxu0 %v2082
        %3240 = vmatprep.subr.mxu0 %v2079
        %3241 = vmatpush1.msra.mxu0 %v2078
        %3242 = vmatprep.subr.mxu0 %v2075
        %3243 = vmatpush1.msra.mxu0 %v2074
        %3244 = vmatprep.subr.mxu0 %v2071
        %3245 = vmatpush1.msra.mxu0 %v2070
        %3246 = vmatprep.subr.mxu0 %v2067
        %3247 = vmatpush1.msra.mxu0 %v2066
        %3248 = vmatprep.subr.mxu0 %v2063
        %3249 = vmatpush1.msra.mxu0 %v2062
        %3250 = vmatprep.subr.mxu0 %v2059
        %3251 = vmatpush1.msra.mxu0 %v2058
        %3252 = vmatprep.subr.mxu0 0.0
        %3253 = vmatpush2.msra.mxu0 0.0
        %3254 = vmatprep.subr.mxu0 0.0
        %3255 = vmatpush2.msra.mxu0 0.0
        %3256 = vmatprep.subr.mxu0 0.0
        %3257 = vmatpush2.msra.mxu0 0.0
        %3258 = vmatprep.subr.mxu0 0.0
        %3259 = vmatpush2.msra.mxu0 0.0
        %3260 = vmatprep.subr.mxu0 0.0
        %3261 = vmatpush2.msra.mxu0 0.0
        %3262 = vmatprep.subr.mxu0 0.0
        %3263 = vmatpush2.msra.mxu0 0.0
        %3264 = vmatprep.subr.mxu0 0.0
        %3265 = vmatpush2.msra.mxu0 0.0
        %3266 = vmatprep.subr.mxu0 0.0
        %3267 = vmatpush2.msra.mxu0 0.0
        %3268 = vmatprep.subr.mxu0 0.0
        %3269 = vmatpush2.msra.mxu0 0.0
        %3270 = vmatprep.subr.mxu0 0.0
        %3271 = vmatpush2.msra.mxu0 0.0
        %3272 = vmatprep.subr.mxu0 0.0
        %3273 = vmatpush2.msra.mxu0 0.0
        %3274 = vmatprep.subr.mxu0 0.0
        %3275 = vmatpush2.msra.mxu0 0.0
        %3276 = vmatprep.subr.mxu0 0.0
        %3277 = vmatpush2.msra.mxu0 0.0
        %3278 = vmatprep.subr.mxu0 0.0
        %3279 = vmatpush2.msra.mxu0 0.0
        %3280 = vmatprep.subr.mxu0 0.0
        %3281 = vmatpush2.msra.mxu0 0.0
        %3282 = vmatprep.subr.mxu0 0.0
        %3283 = vmatpush2.msra.mxu0 0.0
        %3284 = vmatprep.mubr.f32.mxu0 0.0
        %3285 = vmatmul.mubr.f32.gmra.mxu0 %v3207
        %v3286 = vpop.f32.mrf.mxu0
        %v3287 = vadd.f32 0.0, %v3286
        %v3288 = vpop.f32.mrf.mxu0
        %v3289 = vadd.f32 0.0, %v3288
        %3290 = vdwg.mxu0
        %3291 = vmatprep.subr.mxu0 %v2121
        %3292 = vmatpush1.msra.mxu0 %v2120
        %3293 = vmatprep.subr.mxu0 %v2117
        %3294 = vmatpush1.msra.mxu0 %v2116
        %3295 = vmatprep.subr.mxu0 %v2113
        %3296 = vmatpush1.msra.mxu0 %v2112
        %3297 = vmatprep.subr.mxu0 %v2109
        %3298 = vmatpush1.msra.mxu0 %v2108
        %3299 = vmatprep.subr.mxu0 %v2105
        %3300 = vmatpush1.msra.mxu0 %v2104
        %3301 = vmatprep.subr.mxu0 %v2101
        %3302 = vmatpush1.msra.mxu0 %v2100
        %3303 = vmatprep.subr.mxu0 %v2097
        %3304 = vmatpush1.msra.mxu0 %v2096
        %3305 = vmatprep.subr.mxu0 %v2093
        %3306 = vmatpush1.msra.mxu0 %v2092
        %3307 = vmatprep.subr.mxu0 %v2089
        %3308 = vmatpush1.msra.mxu0 %v2088
        %3309 = vmatprep.subr.mxu0 %v2085
        %3310 = vmatpush1.msra.mxu0 %v2084
        %3311 = vmatprep.subr.mxu0 %v2081
        %3312 = vmatpush1.msra.mxu0 %v2080
        %3313 = vmatprep.subr.mxu0 %v2077
        %3314 = vmatpush1.msra.mxu0 %v2076
        %3315 = vmatprep.subr.mxu0 %v2073
        %3316 = vmatpush1.msra.mxu0 %v2072
        %3317 = vmatprep.subr.mxu0 %v2069
        %3318 = vmatpush1.msra.mxu0 %v2068
        %3319 = vmatprep.subr.mxu0 %v2065
        %3320 = vmatpush1.msra.mxu0 %v2064
        %3321 = vmatprep.subr.mxu0 %v2061
        %3322 = vmatpush1.msra.mxu0 %v2060
        %3323 = vmatprep.subr.mxu0 0.0
        %3324 = vmatpush2.msra.mxu0 0.0
        %3325 = vmatprep.subr.mxu0 0.0
        %3326 = vmatpush2.msra.mxu0 0.0
        %3327 = vmatprep.subr.mxu0 0.0
        %3328 = vmatpush2.msra.mxu0 0.0
        %3329 = vmatprep.subr.mxu0 0.0
        %3330 = vmatpush2.msra.mxu0 0.0
        %3331 = vmatprep.subr.mxu0 0.0
        %3332 = vmatpush2.msra.mxu0 0.0
        %3333 = vmatprep.subr.mxu0 0.0
        %3334 = vmatpush2.msra.mxu0 0.0
        %3335 = vmatprep.subr.mxu0 0.0
        %3336 = vmatpush2.msra.mxu0 0.0
        %3337 = vmatprep.subr.mxu0 0.0
        %3338 = vmatpush2.msra.mxu0 0.0
        %3339 = vmatprep.subr.mxu0 0.0
        %3340 = vmatpush2.msra.mxu0 0.0
        %3341 = vmatprep.subr.mxu0 0.0
        %3342 = vmatpush2.msra.mxu0 0.0
        %3343 = vmatprep.subr.mxu0 0.0
        %3344 = vmatpush2.msra.mxu0 0.0
        %3345 = vmatprep.subr.mxu0 0.0
        %3346 = vmatpush2.msra.mxu0 0.0
        %3347 = vmatprep.subr.mxu0 0.0
        %3348 = vmatpush2.msra.mxu0 0.0
        %3349 = vmatprep.subr.mxu0 0.0
        %3350 = vmatpush2.msra.mxu0 0.0
        %3351 = vmatprep.subr.mxu0 0.0
        %3352 = vmatpush2.msra.mxu0 0.0
        %3353 = vmatprep.subr.mxu0 0.0
        %3354 = vmatpush2.msra.mxu0 0.0
        %3355 = vmatprep.mubr.f32.mxu0 0.0
        %3356 = vmatmul.mubr.f32.gmra.mxu0 %v3207
        %v3357 = vpop.f32.mrf.mxu0
        %v3358 = vadd.f32 0.0, %v3357
        %v3359 = vpop.f32.mrf.mxu0
        %v3360 = vadd.f32 0.0, %v3359
        %3361 = vdwg.mxu0
        %v3362 = vadd.f32 %v3216, %v3287
        %v3363 = vadd.f32 %v3217, %v3289
        %v3364 = vadd.f32 %v3218, %v3358
        %v3365 = vadd.f32 %v3219, %v3360
        %v3366 = vxor.u32 %v3362, 2147483648
        %v3367 = vmul.f32 %v3366, 1.442695
        %v3368 = vpow.pop %v3367
        %v3369 = vadd.f32 %v3368, 1.0
        %v3370 = vrcp.pop %v3369
        %v3371 = vmul.f32 1.0, %v3370
        %v3372 = vxor.u32 %v3363, 2147483648
        %v3373 = vmul.f32 %v3372, 1.442695
        %v3374 = vpow.pop %v3373
        %v3375 = vadd.f32 %v3374, 1.0
        %v3376 = vrcp.pop %v3375
        %v3377 = vmul.f32 1.0, %v3376
        %v3378 = vtanh.pop %v3364
        %v3379 = vxor.u32 %v3365, 2147483648
        %v3380 = vmul.f32 %v3379, 1.442695
        %v3381 = vpow.pop %v3380
        %v3382 = vadd.f32 %v3381, 1.0
        %v3383 = vrcp.pop %v3382
        %v3384 = vmul.f32 1.0, %v3383
        %v3385 = vmul.f32 %v3377, %v3205
        %v3386 = vmul.f32 %v3371, %v3378
        %v3387 = vadd.f32 %v3385, %v3386
        %v3388 = vtanh.pop %v3387
        %v3389 = vmul.f32 %v3384, %v3388
        %s3390 = smul.u32 %s3212, 8
        %s3391 = scalar_lea.vmem %s264, %s3390 [#allocation7]
        %3392 = vst [vmem:[%s3391] sm:$0xff] %v3389
        %s3393 = smul.u32 %s21, 4294967289
        %s3394 = sadd.s32 %s3393, 7
        %s3395 = smul.u32 %s3394, 4
        %s3396 = smul.addr %s3395, 8
        %s3397 = scalar_lea.vmem [#allocation2], %s3396
        %v3398 = vld [vmem:[%s3397] sm:$0xff]
        %v3399 = vld [vmem:[%s3397 + $0x8] sm:$0xff]
        %v3400 = vld [vmem:[%s3397 + $0x10] sm:$0xff]
        %v3401 = vld [vmem:[%s3397 + $0x18] sm:$0xff]
        %3402 = vmatprep.subr.mxu0 %v2119
        %3403 = vmatpush1.msra.mxu0 %v2118
        %3404 = vmatprep.subr.mxu0 %v2115
        %3405 = vmatpush1.msra.mxu0 %v2114
        %3406 = vmatprep.subr.mxu0 %v2111
        %3407 = vmatpush1.msra.mxu0 %v2110
        %3408 = vmatprep.subr.mxu0 %v2107
        %3409 = vmatpush1.msra.mxu0 %v2106
        %3410 = vmatprep.subr.mxu0 %v2103
        %3411 = vmatpush1.msra.mxu0 %v2102
        %3412 = vmatprep.subr.mxu0 %v2099
        %3413 = vmatpush1.msra.mxu0 %v2098
        %3414 = vmatprep.subr.mxu0 %v2095
        %3415 = vmatpush1.msra.mxu0 %v2094
        %3416 = vmatprep.subr.mxu0 %v2091
        %3417 = vmatpush1.msra.mxu0 %v2090
        %3418 = vmatprep.subr.mxu0 %v2087
        %3419 = vmatpush1.msra.mxu0 %v2086
        %3420 = vmatprep.subr.mxu0 %v2083
        %3421 = vmatpush1.msra.mxu0 %v2082
        %3422 = vmatprep.subr.mxu0 %v2079
        %3423 = vmatpush1.msra.mxu0 %v2078
        %3424 = vmatprep.subr.mxu0 %v2075
        %3425 = vmatpush1.msra.mxu0 %v2074
        %3426 = vmatprep.subr.mxu0 %v2071
        %3427 = vmatpush1.msra.mxu0 %v2070
        %3428 = vmatprep.subr.mxu0 %v2067
        %3429 = vmatpush1.msra.mxu0 %v2066
        %3430 = vmatprep.subr.mxu0 %v2063
        %3431 = vmatpush1.msra.mxu0 %v2062
        %3432 = vmatprep.subr.mxu0 %v2059
        %3433 = vmatpush1.msra.mxu0 %v2058
        %3434 = vmatprep.subr.mxu0 0.0
        %3435 = vmatpush2.msra.mxu0 0.0
        %3436 = vmatprep.subr.mxu0 0.0
        %3437 = vmatpush2.msra.mxu0 0.0
        %3438 = vmatprep.subr.mxu0 0.0
        %3439 = vmatpush2.msra.mxu0 0.0
        %3440 = vmatprep.subr.mxu0 0.0
        %3441 = vmatpush2.msra.mxu0 0.0
        %3442 = vmatprep.subr.mxu0 0.0
        %3443 = vmatpush2.msra.mxu0 0.0
        %3444 = vmatprep.subr.mxu0 0.0
        %3445 = vmatpush2.msra.mxu0 0.0
        %3446 = vmatprep.subr.mxu0 0.0
        %3447 = vmatpush2.msra.mxu0 0.0
        %3448 = vmatprep.subr.mxu0 0.0
        %3449 = vmatpush2.msra.mxu0 0.0
        %3450 = vmatprep.subr.mxu0 0.0
        %3451 = vmatpush2.msra.mxu0 0.0
        %3452 = vmatprep.subr.mxu0 0.0
        %3453 = vmatpush2.msra.mxu0 0.0
        %3454 = vmatprep.subr.mxu0 0.0
        %3455 = vmatpush2.msra.mxu0 0.0
        %3456 = vmatprep.subr.mxu0 0.0
        %3457 = vmatpush2.msra.mxu0 0.0
        %3458 = vmatprep.subr.mxu0 0.0
        %3459 = vmatpush2.msra.mxu0 0.0
        %3460 = vmatprep.subr.mxu0 0.0
        %3461 = vmatpush2.msra.mxu0 0.0
        %3462 = vmatprep.subr.mxu0 0.0
        %3463 = vmatpush2.msra.mxu0 0.0
        %3464 = vmatprep.subr.mxu0 0.0
        %3465 = vmatpush2.msra.mxu0 0.0
        %3466 = vmatprep.mubr.f32.mxu0 0.0
        %3467 = vmatmul.mubr.f32.gmra.mxu0 %v3389
        %v3468 = vpop.f32.mrf.mxu0
        %v3469 = vadd.f32 0.0, %v3468
        %v3470 = vpop.f32.mrf.mxu0
        %v3471 = vadd.f32 0.0, %v3470
        %3472 = vdwg.mxu0
        %3473 = vmatprep.subr.mxu0 %v2121
        %3474 = vmatpush1.msra.mxu0 %v2120
        %3475 = vmatprep.subr.mxu0 %v2117
        %3476 = vmatpush1.msra.mxu0 %v2116
        %3477 = vmatprep.subr.mxu0 %v2113
        %3478 = vmatpush1.msra.mxu0 %v2112
        %3479 = vmatprep.subr.mxu0 %v2109
        %3480 = vmatpush1.msra.mxu0 %v2108
        %3481 = vmatprep.subr.mxu0 %v2105
        %3482 = vmatpush1.msra.mxu0 %v2104
        %3483 = vmatprep.subr.mxu0 %v2101
        %3484 = vmatpush1.msra.mxu0 %v2100
        %3485 = vmatprep.subr.mxu0 %v2097
        %3486 = vmatpush1.msra.mxu0 %v2096
        %3487 = vmatprep.subr.mxu0 %v2093
        %3488 = vmatpush1.msra.mxu0 %v2092
        %3489 = vmatprep.subr.mxu0 %v2089
        %3490 = vmatpush1.msra.mxu0 %v2088
        %3491 = vmatprep.subr.mxu0 %v2085
        %3492 = vmatpush1.msra.mxu0 %v2084
        %3493 = vmatprep.subr.mxu0 %v2081
        %3494 = vmatpush1.msra.mxu0 %v2080
        %3495 = vmatprep.subr.mxu0 %v2077
        %3496 = vmatpush1.msra.mxu0 %v2076
        %3497 = vmatprep.subr.mxu0 %v2073
        %3498 = vmatpush1.msra.mxu0 %v2072
        %3499 = vmatprep.subr.mxu0 %v2069
        %3500 = vmatpush1.msra.mxu0 %v2068
        %3501 = vmatprep.subr.mxu0 %v2065
        %3502 = vmatpush1.msra.mxu0 %v2064
        %3503 = vmatprep.subr.mxu0 %v2061
        %3504 = vmatpush1.msra.mxu0 %v2060
        %3505 = vmatprep.subr.mxu0 0.0
        %3506 = vmatpush2.msra.mxu0 0.0
        %3507 = vmatprep.subr.mxu0 0.0
        %3508 = vmatpush2.msra.mxu0 0.0
        %3509 = vmatprep.subr.mxu0 0.0
        %3510 = vmatpush2.msra.mxu0 0.0
        %3511 = vmatprep.subr.mxu0 0.0
        %3512 = vmatpush2.msra.mxu0 0.0
        %3513 = vmatprep.subr.mxu0 0.0
        %3514 = vmatpush2.msra.mxu0 0.0
        %3515 = vmatprep.subr.mxu0 0.0
        %3516 = vmatpush2.msra.mxu0 0.0
        %3517 = vmatprep.subr.mxu0 0.0
        %3518 = vmatpush2.msra.mxu0 0.0
        %3519 = vmatprep.subr.mxu0 0.0
        %3520 = vmatpush2.msra.mxu0 0.0
        %3521 = vmatprep.subr.mxu0 0.0
        %3522 = vmatpush2.msra.mxu0 0.0
        %3523 = vmatprep.subr.mxu0 0.0
        %3524 = vmatpush2.msra.mxu0 0.0
        %3525 = vmatprep.subr.mxu0 0.0
        %3526 = vmatpush2.msra.mxu0 0.0
        %3527 = vmatprep.subr.mxu0 0.0
        %3528 = vmatpush2.msra.mxu0 0.0
        %3529 = vmatprep.subr.mxu0 0.0
        %3530 = vmatpush2.msra.mxu0 0.0
        %3531 = vmatprep.subr.mxu0 0.0
        %3532 = vmatpush2.msra.mxu0 0.0
        %3533 = vmatprep.subr.mxu0 0.0
        %3534 = vmatpush2.msra.mxu0 0.0
        %3535 = vmatprep.subr.mxu0 0.0
        %3536 = vmatpush2.msra.mxu0 0.0
        %3537 = vmatprep.mubr.f32.mxu0 0.0
        %3538 = vmatmul.mubr.f32.gmra.mxu0 %v3389
        %v3539 = vpop.f32.mrf.mxu0
        %v3540 = vadd.f32 0.0, %v3539
        %v3541 = vpop.f32.mrf.mxu0
        %v3542 = vadd.f32 0.0, %v3541
        %3543 = vdwg.mxu0
        %v3544 = vadd.f32 %v3398, %v3469
        %v3545 = vadd.f32 %v3399, %v3471
        %v3546 = vadd.f32 %v3400, %v3540
        %v3547 = vadd.f32 %v3401, %v3542
        %v3548 = vxor.u32 %v3544, 2147483648
        %v3549 = vmul.f32 %v3548, 1.442695
        %v3550 = vpow.pop %v3549
        %v3551 = vadd.f32 %v3550, 1.0
        %v3552 = vrcp.pop %v3551
        %v3553 = vmul.f32 1.0, %v3552
        %v3554 = vxor.u32 %v3545, 2147483648
        %v3555 = vmul.f32 %v3554, 1.442695
        %v3556 = vpow.pop %v3555
        %v3557 = vadd.f32 %v3556, 1.0
        %v3558 = vrcp.pop %v3557
        %v3559 = vmul.f32 1.0, %v3558
        %v3560 = vtanh.pop %v3546
        %v3561 = vxor.u32 %v3547, 2147483648
        %v3562 = vmul.f32 %v3561, 1.442695
        %v3563 = vpow.pop %v3562
        %v3564 = vadd.f32 %v3563, 1.0
        %v3565 = vrcp.pop %v3564
        %v3566 = vmul.f32 1.0, %v3565
        %v3567 = vmul.f32 %v3559, %v3387
        %v3568 = vmul.f32 %v3553, %v3560
        %v3569 = vadd.f32 %v3567, %v3568
        %v3570 = vtanh.pop %v3569
        %v3571 = vmul.f32 %v3566, %v3570
        %s3572 = smul.u32 %s3394, 8
        %s3573 = scalar_lea.vmem %s264, %s3572 [#allocation7]
        %3574 = vst [vmem:[%s3573] sm:$0xff] %v3571
        %s3575 = sand.u32 %s128, 1
        %s3576 = sand.u32 %s128, 1
        %s3577 = smul.addr %s3576, 64
        %s3578 = scalar_lea.vmem [#allocation7], %s3577
        // Predicated region
        $region45: #{_forward_core.2} parent=35 // pred_check
          %p3579 = pneg %p138
        $region46: #{_forward_core.2} parent=35 // pred_check_branch
          %3581 = sbr.rel (%p3579) target = $region48
        $region47: #{_forward_core.2} parent=35 // pred_region
          %s3582 = smul.addr %s21, 8
          %s3583 = scalar_lea.vmem %s4, %s3582
          // Predicated region
          $region49: #{_forward_core.2} parent=47 // pred_check
            _
          $region50: #{_forward_core.2} parent=47 // pred_check_branch
            %3585 = sbr.rel (0) target = $region52
          $region51: #{_forward_core.2} parent=47 // pred_region
            // Predicated region
            $region53: #{_forward_core.2} parent=51 // pred_check
              _
            $region54: #{_forward_core.2} parent=51 // pred_check_branch
              %3587 = sbr.rel (0) target = $region56
            $region55: #{_forward_core.2} parent=51 // pred_region
              // Predicated region
              $region68: #{_forward_core.2} parent=55 // pred_check
                _
              $region69: #{_forward_core.2} parent=55 // pred_check_branch
                %3617 = sbr.rel (0) target = $region71
              $region70: #{_forward_core.2} parent=55 // pred_region
                loop: start=0, step=1, limit=1
                $region72: #{_forward_core.2} parent=70 // loop_pre_header
                  _
                $region73: #{_forward_core.2} parent=70 // loop_header
                  %s3619 = sphi 0, %s3623
                  %p3620 = scmp.ge.s32.totalorder %s3619, 1
                  %s3624 = sphi %s3578, %s3578
                  %s3625 = sphi %s3583, %s3583
                $region74: #{_forward_core.2} parent=70 // loop_header_branch
                  %3622 = sbr.rel (%p3620) target = $region78
                $region75: #{_forward_core.2} parent=70 // loop_body
                  %v3626 = vld [vmem:[%s3624] sm:$0xff]
                  %3627 = vst [vmem:[%s3625] sm:$0xff] %v3626
                  %v3628 = vld [vmem:[%s3624 + $0x8] sm:$0xff]
                  %3629 = vst [vmem:[%s3625 + $0x10] sm:$0xff] %v3628
                  %v3630 = vld [vmem:[%s3624 + $0x10] sm:$0xff]
                  %3631 = vst [vmem:[%s3625 + $0x20] sm:$0xff] %v3630
                  %v3632 = vld [vmem:[%s3624 + $0x18] sm:$0xff]
                  %3633 = vst [vmem:[%s3625 + $0x30] sm:$0xff] %v3632
                  %v3634 = vld [vmem:[%s3624 + $0x20] sm:$0xff]
                  %3635 = vst [vmem:[%s3625 + $0x40] sm:$0xff] %v3634
                  %v3636 = vld [vmem:[%s3624 + $0x28] sm:$0xff]
                  %3637 = vst [vmem:[%s3625 + $0x50] sm:$0xff] %v3636
                  %v3638 = vld [vmem:[%s3624 + $0x30] sm:$0xff]
                  %3639 = vst [vmem:[%s3625 + $0x60] sm:$0xff] %v3638
                  %v3640 = vld [vmem:[%s3624 + $0x38] sm:$0xff]
                  %3641 = vst [vmem:[%s3625 + $0x70] sm:$0xff] %v3640
                $region76: #{_forward_core.2} parent=70 // loop_footer
                  %s3623 = sadd.s32 1, %s3619
                $region77: #{_forward_core.2} parent=70 // loop_footer_branch
                  %3618 = sbr.rel target = $region73
                $region78: #{_forward_core.2} parent=70 // loop_exit
                  _
              $region71: #{_forward_core.2} parent=55 // pred_fallthru
                _
              // Predicated region
              $region79: #{_forward_core.2} parent=55 // pred_check
                _
              $region80: #{_forward_core.2} parent=55 // pred_check_branch
                %3643 = sbr.rel target = $region82
              $region81: #{_forward_core.2} parent=55 // pred_region
                _
              $region82: #{_forward_core.2} parent=55 // pred_fallthru
                _
            $region56: #{_forward_core.2} parent=51 // pred_fallthru
              _
            // Predicated region
            $region57: #{_forward_core.2} parent=51 // pred_check
              _
            $region58: #{_forward_core.2} parent=51 // pred_check_branch
              %3589 = sbr.rel target = $region60
            $region59: #{_forward_core.2} parent=51 // pred_region
              %s3591 = ssub.s32 256, 1
              loop: start=0, step=1, limit=1
              $region61: #{_forward_core.2} parent=59 // loop_pre_header
                _
              $region62: #{_forward_core.2} parent=59 // loop_header
                %s3593 = sphi 0, %s3597
                %p3594 = scmp.ge.s32.totalorder %s3593, 1
                %s3598 = sphi %s3578, %s3578
                %s3599 = sphi %s3583, %s3583
              $region63: #{_forward_core.2} parent=59 // loop_header_branch
                %3596 = sbr.rel (%p3594) target = $region67
              $region64: #{_forward_core.2} parent=59 // loop_body
                %v3600 = vld [vmem:[%s3598] sm:%s3591]
                %3601 = vst [vmem:[%s3599] sm:%s3591] %v3600
                %v3602 = vld [vmem:[%s3598 + $0x8] sm:%s3591]
                %3603 = vst [vmem:[%s3599 + $0x10] sm:%s3591] %v3602
                %v3604 = vld [vmem:[%s3598 + $0x10] sm:%s3591]
                %3605 = vst [vmem:[%s3599 + $0x20] sm:%s3591] %v3604
                %v3606 = vld [vmem:[%s3598 + $0x18] sm:%s3591]
                %3607 = vst [vmem:[%s3599 + $0x30] sm:%s3591] %v3606
                %v3608 = vld [vmem:[%s3598 + $0x20] sm:%s3591]
                %3609 = vst [vmem:[%s3599 + $0x40] sm:%s3591] %v3608
                %v3610 = vld [vmem:[%s3598 + $0x28] sm:%s3591]
                %3611 = vst [vmem:[%s3599 + $0x50] sm:%s3591] %v3610
                %v3612 = vld [vmem:[%s3598 + $0x30] sm:%s3591]
                %3613 = vst [vmem:[%s3599 + $0x60] sm:%s3591] %v3612
                %v3614 = vld [vmem:[%s3598 + $0x38] sm:%s3591]
                %3615 = vst [vmem:[%s3599 + $0x70] sm:%s3591] %v3614
              $region65: #{_forward_core.2} parent=59 // loop_footer
                %s3597 = sadd.s32 1, %s3593
              $region66: #{_forward_core.2} parent=59 // loop_footer_branch
                %3592 = sbr.rel target = $region62
              $region67: #{_forward_core.2} parent=59 // loop_exit
                _
            $region60: #{_forward_core.2} parent=51 // pred_fallthru
              _
          $region52: #{_forward_core.2} parent=47 // pred_fallthru
            _
          %3644 = vnop
        $region48: #{_forward_core.2} parent=35 // pred_fallthru
          _
      $region36: #{_forward_core.2} parent=5 // pred_fallthru
        _
      %p3645 = scmp.le.s32.totalorder 2, %s16
      // Predicated region
      $region83: #{_forward_core.2} parent=5 // pred_check
        %p3646 = pneg %p3645
      $region84: #{_forward_core.2} parent=5 // pred_check_branch
        %3648 = sbr.rel (%p3646) target = $region86
      $region85: #{_forward_core.2} parent=5 // pred_region
        %s3649 = ssub.s32 %s16, 2
        // Predicated region
        $region87: #{_forward_core.2} parent=85 // pred_check
          %p3650 = pneg %p144
        $region88: #{_forward_core.2} parent=85 // pred_check_branch
          %3652 = sbr.rel (%p3650) target = $region90
        $region89: #{_forward_core.2} parent=85 // pred_region
          %s3653 = sand.u32 %s129, 1
          %s3654 = sand.u32 %s129, 1
          %s3655 = smul.addr %s3654, 64
          %s3656 = scalar_lea.vmem [#allocation7], %s3655
        $region90: #{_forward_core.2} parent=85 // pred_fallthru
          _
      $region86: #{_forward_core.2} parent=5 // pred_fallthru
        _
    $region6: #{_forward_core.2} parent=1 // loop_footer
      %s20 = sadd.s32 1, %s16
    $region7: #{_forward_core.2} parent=1 // loop_footer_branch
      %15 = sbr.rel target = $region3
    $region8: #{_forward_core.2} parent=1 // loop_exit
      _
    %3657 = vsyncpa [#allocation4], 1
    %s3658 = scalar_lea.sflag [#allocation4], 1
    %3659 = vsyncpa %s3658, 1
    %3660 = vsyncpa [#allocation6], 1
    %s3661 = scalar_lea.sflag [#allocation6], 1
    %3662 = vsyncpa %s3661, 1

</llo_original>
